<compile_context>
chip_gen: v7x
topology: tpu7x:2x2x1
jax: 0.10.0
libtpu: 0.0.40
codegen_flags: <defaults>
</compile_context>

<pallas_src>
import functools

import jax
import jax.numpy as jnp
import numpy as np
from jax.experimental import pallas as pl
from jax.experimental.pallas import tpu as pltpu

d_k = d_v = 64
d_model = 768
n_heads = 12
d_ff = 4 * d_model
LN_EPS = 1e-5


def _row_tile(m):
    """Row-tile size: big enough for pipelining, small enough for VMEM."""
    for t in (256, 512, 128):
        if m % t == 0:
            return t
    return m  # small / odd M: single full-extent block


# ---------------------------------------------------------------------------
# Kernel 1: fused QKV projection  out = x @ [Wq | Wk | Wv] + b
#   grid = (M tiles, 3 projection column blocks), both parallel
# ---------------------------------------------------------------------------
def _qkv_kernel(x_ref, w_ref, b_ref, o_ref, *, compute_dtype):
    acc = jnp.dot(x_ref[...].astype(compute_dtype),
                  w_ref[...].astype(compute_dtype),
                  preferred_element_type=jnp.float32)
    o_ref[...] = (acc + b_ref[...]).astype(o_ref.dtype)


def pallas_qkv_proj(x, w, b, compute_dtype):
    M, K = x.shape
    N = w.shape[1]
    TM = _row_tile(M)
    TN = d_model  # one block each for Q, K, V columns
    return pl.pallas_call(
        functools.partial(_qkv_kernel, compute_dtype=compute_dtype),
        out_shape=jax.ShapeDtypeStruct((M, N), compute_dtype),
        grid=(M // TM, N // TN),
        in_specs=[
            pl.BlockSpec((TM, K), lambda i, j: (i, 0)),
            pl.BlockSpec((K, TN), lambda i, j: (0, j)),
            pl.BlockSpec((1, TN), lambda i, j: (0, j)),
        ],
        out_specs=pl.BlockSpec((TM, TN), lambda i, j: (i, j)),
        compiler_params=pltpu.CompilerParams(
            dimension_semantics=("parallel", "parallel")),
    )(x, w, b.reshape(1, N))


# ---------------------------------------------------------------------------
# Kernel 2: scaled dot-product attention, 4 heads per grid step.
#   Reads head columns directly from the fused [B, S, 3*d_model] projection.
#   ctx written in [B, S, H*dv] layout (lane-dense 256-wide block).
# ---------------------------------------------------------------------------
def _attention_kernel(q_ref, k_ref, v_ref, bias_ref, ctx_ref, attn_ref, *,
                      heads_per_block, compute_dtype):
    bias = bias_ref[0]                                  # (S, S) additive mask
    scale = jnp.float32(1.0 / np.sqrt(d_k))
    for h in range(heads_per_block):                    # unrolled, static slices
        lo = h * d_k
        q_h = q_ref[0, :, lo:lo + d_k].astype(compute_dtype)      # (S, d_k)
        k_h = k_ref[0, :, lo:lo + d_k].astype(compute_dtype)      # (S, d_k)
        v_h = v_ref[0, :, lo:lo + d_v].astype(compute_dtype)      # (S, d_v)

        s = jax.lax.dot_general(q_h, k_h, (((1,), (1,)), ((), ())),
                                preferred_element_type=jnp.float32) * scale
        s = s + bias
        s_max = jnp.max(s, axis=-1, keepdims=True)
        e = jnp.exp(s - s_max)
        p = e * pl.reciprocal(jnp.sum(e, axis=-1, keepdims=True), approx=True)

        ctx_h = jnp.dot(p.astype(compute_dtype), v_h,
                        preferred_element_type=jnp.float32)

        ctx_ref[0, :, lo:lo + d_v] = ctx_h.astype(ctx_ref.dtype)
        attn_ref[0, h] = p.astype(attn_ref.dtype)


def pallas_attention(qkv, bias, compute_dtype, heads_per_block=4):
    B, S, _ = qkv.shape
    HG = heads_per_block
    assert n_heads % HG == 0
    n_groups = n_heads // HG
    kernel = functools.partial(_attention_kernel, heads_per_block=HG,
                               compute_dtype=compute_dtype)
    return pl.pallas_call(
        kernel,
        out_shape=(
            jax.ShapeDtypeStruct((B, S, n_heads * d_v), compute_dtype),
            jax.ShapeDtypeStruct((B, n_heads, S, S), jnp.float32),
        ),
        grid=(B, n_groups),
        in_specs=[
            # Q / K / V column blocks of the fused projection (same array 3x).
            pl.BlockSpec((1, S, HG * d_k), lambda b, g: (b, 0, g)),
            pl.BlockSpec((1, S, HG * d_k), lambda b, g: (b, 0, n_groups + g)),
            pl.BlockSpec((1, S, HG * d_v), lambda b, g: (b, 0, 2 * n_groups + g)),
            pl.BlockSpec((1, S, S), lambda b, g: (b, 0, 0)),
        ],
        out_specs=(
            pl.BlockSpec((1, S, HG * d_v), lambda b, g: (b, 0, g)),
            pl.BlockSpec((1, HG, S, S), lambda b, g: (b, g, 0, 0)),
        ),
        compiler_params=pltpu.CompilerParams(
            dimension_semantics=("parallel", "parallel")),
    )(qkv, qkv, qkv, bias)


# ---------------------------------------------------------------------------
# Kernel 3: W_O projection + residual add + LayerNorm, fused, row-tiled.
# ---------------------------------------------------------------------------
def _wo_add_ln_kernel(x_ref, res_ref, w_ref, b_ref, g_ref, be_ref, o_ref, *,
                      compute_dtype):
    acc = jnp.dot(x_ref[...].astype(compute_dtype),
                  w_ref[...].astype(compute_dtype),
                  preferred_element_type=jnp.float32)
    y = acc + b_ref[...] + res_ref[...].astype(jnp.float32)
    mean = jnp.mean(y, axis=-1, keepdims=True)
    c = y - mean
    var = jnp.mean(c * c, axis=-1, keepdims=True)
    yn = c * jax.lax.rsqrt(var + jnp.float32(LN_EPS))
    o_ref[...] = (yn * g_ref[...] + be_ref[...]).astype(o_ref.dtype)


def pallas_wo_add_ln(ctx, residual, w, b, gamma, beta, compute_dtype):
    M, K = ctx.shape
    N = w.shape[1]
    TM = _row_tile(M)
    return pl.pallas_call(
        functools.partial(_wo_add_ln_kernel, compute_dtype=compute_dtype),
        out_shape=jax.ShapeDtypeStruct((M, N), jnp.float32),
        grid=(M // TM,),
        in_specs=[
            pl.BlockSpec((TM, K), lambda i: (i, 0)),
            pl.BlockSpec((TM, N), lambda i: (i, 0)),
            pl.BlockSpec((K, N), lambda i: (0, 0)),
            pl.BlockSpec((1, N), lambda i: (0, 0)),
            pl.BlockSpec((1, N), lambda i: (0, 0)),
            pl.BlockSpec((1, N), lambda i: (0, 0)),
        ],
        out_specs=pl.BlockSpec((TM, N), lambda i: (i, 0)),
        compiler_params=pltpu.CompilerParams(
            dimension_semantics=("parallel",)),
    )(ctx, residual, w, b.reshape(1, N), gamma.reshape(1, N), beta.reshape(1, N))


# ---------------------------------------------------------------------------
# Kernel 4: position-wise FFN (1x1 conv = linear) fully fused:
#   LN(relu(x @ W1 + b1) @ W2 + b2 + x), tiled over rows and over d_ff.
# ---------------------------------------------------------------------------
def _ffn_kernel(x_ref, w1_ref, b1_ref, w2_ref, b2_ref, g_ref, be_ref, o_ref,
                acc_ref, *, compute_dtype):
    f = pl.program_id(1)

    @pl.when(f == 0)
    def _():
        acc_ref[...] = jnp.zeros_like(acc_ref)

    x = x_ref[...].astype(compute_dtype)
    h = jnp.dot(x, w1_ref[...].astype(compute_dtype),
                preferred_element_type=jnp.float32)
    h = jnp.maximum(h + b1_ref[...], jnp.float32(0.0))
    acc_ref[...] += jnp.dot(h.astype(compute_dtype),
                            w2_ref[...].astype(compute_dtype),
                            preferred_element_type=jnp.float32)

    @pl.when(f == pl.num_programs(1) - 1)
    def _():
        y = acc_ref[...] + b2_ref[...] + x_ref[...].astype(jnp.float32)
        mean = jnp.mean(y, axis=-1, keepdims=True)
        c = y - mean
        var = jnp.mean(c * c, axis=-1, keepdims=True)
        yn = c * jax.lax.rsqrt(var + jnp.float32(LN_EPS))
        o_ref[...] = (yn * g_ref[...] + be_ref[...]).astype(o_ref.dtype)


def pallas_ffn(x, w1, b1, w2, b2, gamma, beta, compute_dtype, tf=768):
    M, D = x.shape
    F = w1.shape[1]
    TM = _row_tile(M)
    return pl.pallas_call(
        functools.partial(_ffn_kernel, compute_dtype=compute_dtype),
        out_shape=jax.ShapeDtypeStruct((M, D), jnp.float32),
        grid=(M // TM, F // tf),
        in_specs=[
            pl.BlockSpec((TM, D), lambda i, f: (i, 0)),
            pl.BlockSpec((D, tf), lambda i, f: (0, f)),
            pl.BlockSpec((1, tf), lambda i, f: (0, f)),
            pl.BlockSpec((tf, D), lambda i, f: (f, 0)),
            pl.BlockSpec((1, D), lambda i, f: (0, 0)),
            pl.BlockSpec((1, D), lambda i, f: (0, 0)),
            pl.BlockSpec((1, D), lambda i, f: (0, 0)),
        ],
        out_specs=pl.BlockSpec((TM, D), lambda i, f: (i, 0)),
        scratch_shapes=[pltpu.VMEM((TM, D), jnp.float32)],
        compiler_params=pltpu.CompilerParams(
            dimension_semantics=("parallel", "arbitrary")),
    )(x, w1, b1.reshape(1, F), w2, b2.reshape(1, D),
      gamma.reshape(1, D), beta.reshape(1, D))


# ---------------------------------------------------------------------------
# Full EncoderLayer forward
# ---------------------------------------------------------------------------
@functools.partial(jax.jit, static_argnames=("compute_dtype",))
def encoder_layer(x, attn_mask, params, compute_dtype=jnp.float32):
    B, S, _ = x.shape
    M = B * S
    cd = compute_dtype
    x2 = x.reshape(M, d_model)

    # Fused Q/K/V projection (Q == K == V).
    qkv = pallas_qkv_proj(x2.astype(cd), params["w_qkv"].astype(cd),
                          params["b_qkv"], cd)
    qkv = qkv.reshape(B, S, 3 * d_model)

    # Additive mask bias (True == mask out), computed once.
    bias = jnp.where(attn_mask, jnp.float32(-1e9), jnp.float32(0.0))

    ctx, attn = pallas_attention(qkv, bias, cd)          # ctx: [B, S, H*dv]

    # W_O projection + residual + LayerNorm, fused.
    attn_out = pallas_wo_add_ln(ctx.reshape(M, d_model), x2,
                                params["w_o"].astype(cd), params["b_o"],
                                params["gamma1"], params["beta1"], cd)

    # Position-wise FFN (+ residual + LayerNorm), fused.
    ffn_out = pallas_ffn(attn_out, params["w1"].astype(cd), params["b1"],
                         params["w2"].astype(cd), params["b2"],
                         params["gamma2"], params["beta2"], cd)

    return ffn_out.reshape(B, S, d_model), attn


# ---------------------------------------------------------------------------
# Pure-JAX reference (mirrors the PyTorch EncoderLayer forward)
# ---------------------------------------------------------------------------
def _ln_ref(x, g, b):
    mean = jnp.mean(x, axis=-1, keepdims=True)
    var = jnp.mean((x - mean) ** 2, axis=-1, keepdims=True)
    return (x - mean) / jnp.sqrt(var + LN_EPS) * g + b


def encoder_layer_ref(x, attn_mask, params):
    B, S, _ = x.shape
    w_q, w_k, w_v = jnp.split(params["w_qkv"], 3, axis=1)
    b_q, b_k, b_v = jnp.split(params["b_qkv"], 3)
    Q_s = (x @ w_q + b_q).reshape(B, S, n_heads, d_k).transpose(0, 2, 1, 3)
    K_s = (x @ w_k + b_k).reshape(B, S, n_heads, d_k).transpose(0, 2, 1, 3)
    V_s = (x @ w_v + b_v).reshape(B, S, n_heads, d_v).transpose(0, 2, 1, 3)
    scores = jnp.einsum("bhqd,bhkd->bhqk", Q_s, K_s) / np.sqrt(d_k)
    scores = jnp.where(attn_mask[:, None, :, :], jnp.float32(-1e9), scores)
    attn = jax.nn.softmax(scores, axis=-1)
    ctx = jnp.einsum("bhqk,bhkd->bhqd", attn, V_s)
    ctx = ctx.transpose(0, 2, 1, 3).reshape(B, S, n_heads * d_v)
    out = _ln_ref(ctx @ params["w_o"] + params["b_o"] + x,
                  params["gamma1"], params["beta1"])
    h = jnp.maximum(out @ params["w1"] + params["b1"], 0.0)
    y = _ln_ref(h @ params["w2"] + params["b2"] + out,
                params["gamma2"], params["beta2"])
    return y, attn


if __name__ == "__main__":
    key = jax.random.PRNGKey(0)
    B, S = 2, 8  # small batch / seq; d_model=768, n_heads=12, d_ff=3072 fixed

    ks = jax.random.split(key, 16)
    scale = 0.02
    params = {
        "w_qkv": scale * jax.random.normal(ks[0], (d_model, 3 * d_model), jnp.float32),
        "b_qkv": scale * jax.random.normal(ks[1], (3 * d_model,), jnp.float32),
        "w_o": scale * jax.random.normal(ks[2], (n_heads * d_v, d_model), jnp.float32),
        "b_o": scale * jax.random.normal(ks[3], (d_model,), jnp.float32),
        "gamma1": 1.0 + 0.1 * jax.random.normal(ks[4], (d_model,), jnp.float32),
        "beta1": 0.1 * jax.random.normal(ks[5], (d_model,), jnp.float32),
        "w1": scale * jax.random.normal(ks[6], (d_model, d_ff), jnp.float32),
        "b1": scale * jax.random.normal(ks[7], (d_ff,), jnp.float32),
        "w2": scale * jax.random.normal(ks[8], (d_ff, d_model), jnp.float32),
        "b2": scale * jax.random.normal(ks[9], (d_model,), jnp.float32),
        "gamma2": 1.0 + 0.1 * jax.random.normal(ks[10], (d_model,), jnp.float32),
        "beta2": 0.1 * jax.random.normal(ks[11], (d_model,), jnp.float32),
    }

    x = jax.random.normal(ks[12], (B, S, d_model), jnp.float32)
    # deterministic boolean mask: mask out last 2 key positions for every query
    attn_mask = jnp.zeros((B, S, S), dtype=bool).at[:, :, -2:].set(True)

    out_ref, attn_ref = encoder_layer_ref(x, attn_mask, params)

    # ---- f32-operand path: tight correctness check ----
    out, attn = encoder_layer(x, attn_mask, params, compute_dtype=jnp.float32)
    out = jax.block_until_ready(out)
    attn = jax.block_until_ready(attn)
    np.testing.assert_allclose(np.asarray(out), np.asarray(out_ref),
                               rtol=2e-3, atol=2e-3)
    np.testing.assert_allclose(np.asarray(attn), np.asarray(attn_ref),
                               rtol=2e-3, atol=2e-3)

    # ---- bf16 MXU-operand path (f32 accumulation): perf config, looser check ----
    out_bf, attn_bf = encoder_layer(x, attn_mask, params, compute_dtype=jnp.bfloat16)
    out_bf = jax.block_until_ready(out_bf)
    attn_bf = jax.block_until_ready(attn_bf)
    np.testing.assert_allclose(np.asarray(out_bf), np.asarray(out_ref),
                               rtol=8e-2, atol=8e-2)
    np.testing.assert_allclose(np.asarray(attn_bf), np.asarray(attn_ref),
                               rtol=2e-2, atol=2e-2)

    print("KERNEL_OK")
</pallas_src>

<mosaic_0001>
module attributes {stable_mosaic.version = 11 : i64} {
  func.func @_qkv_kernel(%arg0: i32, %arg1: i32, %arg2: memref<16x768xf32, #tpu.memory_space<vmem>>, %arg3: memref<768x768xf32, #tpu.memory_space<vmem>>, %arg4: memref<1x768xf32, #tpu.memory_space<vmem>>, %arg5: memref<16x768xf32, #tpu.memory_space<vmem>>) attributes {dimension_semantics = [#tpu.dimension_semantics<parallel>, #tpu.dimension_semantics<parallel>], iteration_bounds = array<i64: 1, 3>, scalar_prefetch = 0 : i64, scratch_operands = 0 : i64, tpu.core_type = #tpu.core_type<tc>, window_params = [{transform_indices = @transform_0, window_bounds = array<i64: 16, 768>}, {transform_indices = @transform_1, window_bounds = array<i64: 768, 768>}, {transform_indices = @transform_2, window_bounds = array<i64: 1, 768>}, {transform_indices = @transform_3, window_bounds = array<i64: 16, 768>}]} {
    %c0 = arith.constant 0 : index
    %c0_0 = arith.constant 0 : index
    %0 = vector.load %arg2[%c0, %c0_0] : memref<16x768xf32, #tpu.memory_space<vmem>>, vector<16x768xf32>
    %c0_1 = arith.constant 0 : index
    %c0_2 = arith.constant 0 : index
    %1 = vector.load %arg3[%c0_1, %c0_2] : memref<768x768xf32, #tpu.memory_space<vmem>>, vector<768x768xf32>
    %cst = arith.constant dense<0.000000e+00> : vector<16x768xf32>
    %2 = tpu.matmul %0, %1, %cst {dimension_numbers = #tpu.dot_dimension_numbers<[1], [0], [0], [1], [0, 0, 1, 1], [], []>} : vector<16x768xf32>, vector<768x768xf32>, vector<16x768xf32> -> vector<16x768xf32>
    %c0_3 = arith.constant 0 : index
    %c0_4 = arith.constant 0 : index
    %3 = vector.load %arg4[%c0_3, %c0_4] : memref<1x768xf32, #tpu.memory_space<vmem>>, vector<1x768xf32>
    %4 = vector.broadcast %3 : vector<1x768xf32> to vector<16x768xf32>
    %5 = arith.addf %2, %4 : vector<16x768xf32>
    %c0_5 = arith.constant 0 : index
    %c0_6 = arith.constant 0 : index
    %6 = vector.load %arg5[%c0_5, %c0_6] : memref<16x768xf32, #tpu.memory_space<vmem>>, vector<16x768xf32>
    tpu.vector_store %arg5[%c0_5, %c0_6], %5 {strides = array<i32>} : memref<16x768xf32, #tpu.memory_space<vmem>>, vector<16x768xf32>,
    return
  }
  func.func @transform_0(%arg0: i32, %arg1: i32) -> (i32, i32) {
    %c0_i32 = arith.constant 0 : i32
    %c0_i32_0 = arith.constant 0 : i32
    return %arg0, %c0_i32 : i32, i32
  }
  func.func @transform_1(%arg0: i32, %arg1: i32) -> (i32, i32) {
    %c0_i32 = arith.constant 0 : i32
    %c0_i32_0 = arith.constant 0 : i32
    return %c0_i32, %arg1 : i32, i32
  }
  func.func @transform_2(%arg0: i32, %arg1: i32) -> (i32, i32) {
    %c0_i32 = arith.constant 0 : i32
    %c0_i32_0 = arith.constant 0 : i32
    return %c0_i32, %arg1 : i32, i32
  }
  func.func @transform_3(%arg0: i32, %arg1: i32) -> (i32, i32) {
    %c0_i32 = arith.constant 0 : i32
    return %arg0, %arg1 : i32, i32
  }
}

module attributes {stable_mosaic.version = 11 : i64} {
  func.func @_attention_kernel(%arg0: i32, %arg1: i32, %arg2: memref<1x8x256xf32, #tpu.memory_space<vmem>>, %arg3: memref<1x8x256xf32, #tpu.memory_space<vmem>>, %arg4: memref<1x8x256xf32, #tpu.memory_space<vmem>>, %arg5: memref<1x8x8xf32, #tpu.memory_space<vmem>>, %arg6: memref<1x8x256xf32, #tpu.memory_space<vmem>>, %arg7: memref<1x4x8x8xf32, #tpu.memory_space<vmem>>) attributes {dimension_semantics = [#tpu.dimension_semantics<parallel>, #tpu.dimension_semantics<parallel>], iteration_bounds = array<i64: 2, 3>, scalar_prefetch = 0 : i64, scratch_operands = 0 : i64, tpu.core_type = #tpu.core_type<tc>, window_params = [{transform_indices = @transform_0, window_bounds = array<i64: 1, 8, 256>}, {transform_indices = @transform_1, window_bounds = array<i64: 1, 8, 256>}, {transform_indices = @transform_2, window_bounds = array<i64: 1, 8, 256>}, {transform_indices = @transform_3, window_bounds = array<i64: 1, 8, 8>}, {transform_indices = @transform_4, window_bounds = array<i64: 1, 8, 256>}, {transform_indices = @transform_5, window_bounds = array<i64: 1, 4, 8, 8>}]} {
    %c0 = arith.constant 0 : index
    %c0_0 = arith.constant 0 : index
    %c0_1 = arith.constant 0 : index
    %0 = vector.load %arg5[%c0, %c0_0, %c0_1] : memref<1x8x8xf32, #tpu.memory_space<vmem>>, vector<1x8x8xf32>
    %1 = vector.shape_cast %0 : vector<1x8x8xf32> to vector<8x8xf32>
    %c0_2 = arith.constant 0 : index
    %c0_3 = arith.constant 0 : index
    %c0_4 = arith.constant 0 : index
    %2 = vector.load %arg2[%c0_2, %c0_3, %c0_4] : memref<1x8x256xf32, #tpu.memory_space<vmem>>, vector<1x8x64xf32>
    %3 = vector.shape_cast %2 : vector<1x8x64xf32> to vector<8x64xf32>
    %c0_5 = arith.constant 0 : index
    %c0_6 = arith.constant 0 : index
    %c0_7 = arith.constant 0 : index
    %4 = vector.load %arg3[%c0_5, %c0_6, %c0_7] : memref<1x8x256xf32, #tpu.memory_space<vmem>>, vector<1x8x64xf32>
    %5 = vector.shape_cast %4 : vector<1x8x64xf32> to vector<8x64xf32>
    %c0_8 = arith.constant 0 : index
    %c0_9 = arith.constant 0 : index
    %c0_10 = arith.constant 0 : index
    %6 = vector.load %arg4[%c0_8, %c0_9, %c0_10] : memref<1x8x256xf32, #tpu.memory_space<vmem>>, vector<1x8x64xf32>
    %7 = vector.shape_cast %6 : vector<1x8x64xf32> to vector<8x64xf32>
    %cst = arith.constant dense<0.000000e+00> : vector<8x8xf32>
    %8 = tpu.matmul %3, %5, %cst {dimension_numbers = #tpu.dot_dimension_numbers<[1], [1], [0], [0], [0, 0, 1, 0], [], []>} : vector<8x64xf32>, vector<8x64xf32>, vector<8x8xf32> -> vector<8x8xf32>
    %cst_11 = arith.constant 1.250000e-01 : f32
    %9 = vector.broadcast %cst_11 : f32 to vector<8x8xf32>
    %10 = arith.mulf %8, %9 : vector<8x8xf32>
    %11 = arith.addf %10, %1 : vector<8x8xf32>
    %cst_12 = arith.constant dense<0xFF800000> : vector<8xf32>
    %12 = vector.multi_reduction <maximumf>, %11, %cst_12 [1] : vector<8x8xf32> to vector<8xf32>
    %13 = vector.shape_cast %12 : vector<8xf32> to vector<8x1xf32>
    %14 = vector.broadcast %13 : vector<8x1xf32> to vector<8x8xf32>
    %15 = arith.subf %11, %14 : vector<8x8xf32>
    %16 = math.exp %15 : vector<8x8xf32>
    %cst_13 = arith.constant dense<0.000000e+00> : vector<8xf32>
    %17 = vector.multi_reduction <add>, %16, %cst_13 [1] : vector<8x8xf32> to vector<8xf32>
    %18 = vector.shape_cast %17 : vector<8xf32> to vector<8x1xf32>
    %19 = tpu.reciprocal %18 {approx = true} : vector<8x1xf32> -> vector<8x1xf32>
    %20 = vector.broadcast %19 : vector<8x1xf32> to vector<8x8xf32>
    %21 = arith.mulf %16, %20 : vector<8x8xf32>
    %cst_14 = arith.constant dense<0.000000e+00> : vector<8x64xf32>
    %22 = tpu.matmul %21, %7, %cst_14 {dimension_numbers = #tpu.dot_dimension_numbers<[1], [0], [0], [1], [0, 0, 1, 1], [], []>} : vector<8x8xf32>, vector<8x64xf32>, vector<8x64xf32> -> vector<8x64xf32>
    %c0_15 = arith.constant 0 : index
    %c0_16 = arith.constant 0 : index
    %c0_17 = arith.constant 0 : index
    %23 = vector.load %arg6[%c0_15, %c0_16, %c0_17] : memref<1x8x256xf32, #tpu.memory_space<vmem>>, vector<1x8x64xf32>
    %24 = vector.shape_cast %23 : vector<1x8x64xf32> to vector<8x64xf32>
    %25 = vector.shape_cast %22 : vector<8x64xf32> to vector<1x8x64xf32>
    tpu.vector_store %arg6[%c0_15, %c0_16, %c0_17], %25 {strides = array<i32>} : memref<1x8x256xf32, #tpu.memory_space<vmem>>, vector<1x8x64xf32>,
    %c0_18 = arith.constant 0 : index
    %c0_19 = arith.constant 0 : index
    %c0_20 = arith.constant 0 : index
    %c0_21 = arith.constant 0 : index
    %26 = vector.load %arg7[%c0_18, %c0_19, %c0_20, %c0_21] : memref<1x4x8x8xf32, #tpu.memory_space<vmem>>, vector<1x1x8x8xf32>
    %27 = vector.shape_cast %26 : vector<1x1x8x8xf32> to vector<8x8xf32>
    %28 = vector.shape_cast %21 : vector<8x8xf32> to vector<1x1x8x8xf32>
    tpu.vector_store %arg7[%c0_18, %c0_19, %c0_20, %c0_21], %28 {strides = array<i32>} : memref<1x4x8x8xf32, #tpu.memory_space<vmem>>, vector<1x1x8x8xf32>,
    %c0_22 = arith.constant 0 : index
    %c0_23 = arith.constant 0 : index
    %c64 = arith.constant 64 : index
    %29 = vector.load %arg2[%c0_22, %c0_23, %c64] : memref<1x8x256xf32, #tpu.memory_space<vmem>>, vector<1x8x64xf32>
    %30 = vector.shape_cast %29 : vector<1x8x64xf32> to vector<8x64xf32>
    %c0_24 = arith.constant 0 : index
    %c0_25 = arith.constant 0 : index
    %c64_26 = arith.constant 64 : index
    %31 = vector.load %arg3[%c0_24, %c0_25, %c64_26] : memref<1x8x256xf32, #tpu.memory_space<vmem>>, vector<1x8x64xf32>
    %32 = vector.shape_cast %31 : vector<1x8x64xf32> to vector<8x64xf32>
    %c0_27 = arith.constant 0 : index
    %c0_28 = arith.constant 0 : index
    %c64_29 = arith.constant 64 : index
    %33 = vector.load %arg4[%c0_27, %c0_28, %c64_29] : memref<1x8x256xf32, #tpu.memory_space<vmem>>, vector<1x8x64xf32>
    %34 = vector.shape_cast %33 : vector<1x8x64xf32> to vector<8x64xf32>
    %cst_30 = arith.constant dense<0.000000e+00> : vector<8x8xf32>
    %35 = tpu.matmul %30, %32, %cst_30 {dimension_numbers = #tpu.dot_dimension_numbers<[1], [1], [0], [0], [0, 0, 1, 0], [], []>} : vector<8x64xf32>, vector<8x64xf32>, vector<8x8xf32> -> vector<8x8xf32>
    %cst_31 = arith.constant 1.250000e-01 : f32
    %36 = vector.broadcast %cst_31 : f32 to vector<8x8xf32>
    %37 = arith.mulf %35, %36 : vector<8x8xf32>
    %38 = arith.addf %37, %1 : vector<8x8xf32>
    %cst_32 = arith.constant dense<0xFF800000> : vector<8xf32>
    %39 = vector.multi_reduction <maximumf>, %38, %cst_32 [1] : vector<8x8xf32> to vector<8xf32>
    %40 = vector.shape_cast %39 : vector<8xf32> to vector<8x1xf32>
    %41 = vector.broadcast %40 : vector<8x1xf32> to vector<8x8xf32>
    %42 = arith.subf %38, %41 : vector<8x8xf32>
    %43 = math.exp %42 : vector<8x8xf32>
    %cst_33 = arith.constant dense<0.000000e+00> : vector<8xf32>
    %44 = vector.multi_reduction <add>, %43, %cst_33 [1] : vector<8x8xf32> to vector<8xf32>
    %45 = vector.shape_cast %44 : vector<8xf32> to vector<8x1xf32>
    %46 = tpu.reciprocal %45 {approx = true} : vector<8x1xf32> -> vector<8x1xf32>
    %47 = vector.broadcast %46 : vector<8x1xf32> to vector<8x8xf32>
    %48 = arith.mulf %43, %47 : vector<8x8xf32>
    %cst_34 = arith.constant dense<0.000000e+00> : vector<8x64xf32>
    %49 = tpu.matmul %48, %34, %cst_34 {dimension_numbers = #tpu.dot_dimension_numbers<[1], [0], [0], [1], [0, 0, 1, 1], [], []>} : vector<8x8xf32>, vector<8x64xf32>, vector<8x64xf32> -> vector<8x64xf32>
    %c0_35 = arith.constant 0 : index
    %c0_36 = arith.constant 0 : index
    %c64_37 = arith.constant 64 : index
    %50 = vector.load %arg6[%c0_35, %c0_36, %c64_37] : memref<1x8x256xf32, #tpu.memory_space<vmem>>, vector<1x8x64xf32>
    %51 = vector.shape_cast %50 : vector<1x8x64xf32> to vector<8x64xf32>
    %52 = vector.shape_cast %49 : vector<8x64xf32> to vector<1x8x64xf32>
    tpu.vector_store %arg6[%c0_35, %c0_36, %c64_37], %52 {strides = array<i32>} : memref<1x8x256xf32, #tpu.memory_space<vmem>>, vector<1x8x64xf32>,
    %c0_38 = arith.constant 0 : index
    %c1 = arith.constant 1 : index
    %c0_39 = arith.constant 0 : index
    %c0_40 = arith.constant 0 : index
    %53 = vector.load %arg7[%c0_38, %c1, %c0_39, %c0_40] : memref<1x4x8x8xf32, #tpu.memory_space<vmem>>, vector<1x1x8x8xf32>
    %54 = vector.shape_cast %53 : vector<1x1x8x8xf32> to vector<8x8xf32>
    %55 = vector.shape_cast %48 : vector<8x8xf32> to vector<1x1x8x8xf32>
    tpu.vector_store %arg7[%c0_38, %c1, %c0_39, %c0_40], %55 {strides = array<i32>} : memref<1x4x8x8xf32, #tpu.memory_space<vmem>>, vector<1x1x8x8xf32>,
    %c0_41 = arith.constant 0 : index
    %c0_42 = arith.constant 0 : index
    %c128 = arith.constant 128 : index
    %56 = vector.load %arg2[%c0_41, %c0_42, %c128] : memref<1x8x256xf32, #tpu.memory_space<vmem>>, vector<1x8x64xf32>
    %57 = vector.shape_cast %56 : vector<1x8x64xf32> to vector<8x64xf32>
    %c0_43 = arith.constant 0 : index
    %c0_44 = arith.constant 0 : index
    %c128_45 = arith.constant 128 : index
    %58 = vector.load %arg3[%c0_43, %c0_44, %c128_45] : memref<1x8x256xf32, #tpu.memory_space<vmem>>, vector<1x8x64xf32>
    %59 = vector.shape_cast %58 : vector<1x8x64xf32> to vector<8x64xf32>
    %c0_46 = arith.constant 0 : index
    %c0_47 = arith.constant 0 : index
    %c128_48 = arith.constant 128 : index
    %60 = vector.load %arg4[%c0_46, %c0_47, %c128_48] : memref<1x8x256xf32, #tpu.memory_space<vmem>>, vector<1x8x64xf32>
    %61 = vector.shape_cast %60 : vector<1x8x64xf32> to vector<8x64xf32>
    %cst_49 = arith.constant dense<0.000000e+00> : vector<8x8xf32>
    %62 = tpu.matmul %57, %59, %cst_49 {dimension_numbers = #tpu.dot_dimension_numbers<[1], [1], [0], [0], [0, 0, 1, 0], [], []>} : vector<8x64xf32>, vector<8x64xf32>, vector<8x8xf32> -> vector<8x8xf32>
    %cst_50 = arith.constant 1.250000e-01 : f32
    %63 = vector.broadcast %cst_50 : f32 to vector<8x8xf32>
    %64 = arith.mulf %62, %63 : vector<8x8xf32>
    %65 = arith.addf %64, %1 : vector<8x8xf32>
    %cst_51 = arith.constant dense<0xFF800000> : vector<8xf32>
    %66 = vector.multi_reduction <maximumf>, %65, %cst_51 [1] : vector<8x8xf32> to vector<8xf32>
    %67 = vector.shape_cast %66 : vector<8xf32> to vector<8x1xf32>
    %68 = vector.broadcast %67 : vector<8x1xf32> to vector<8x8xf32>
    %69 = arith.subf %65, %68 : vector<8x8xf32>
    %70 = math.exp %69 : vector<8x8xf32>
    %cst_52 = arith.constant dense<0.000000e+00> : vector<8xf32>
    %71 = vector.multi_reduction <add>, %70, %cst_52 [1] : vector<8x8xf32> to vector<8xf32>
    %72 = vector.shape_cast %71 : vector<8xf32> to vector<8x1xf32>
    %73 = tpu.reciprocal %72 {approx = true} : vector<8x1xf32> -> vector<8x1xf32>
    %74 = vector.broadcast %73 : vector<8x1xf32> to vector<8x8xf32>
    %75 = arith.mulf %70, %74 : vector<8x8xf32>
    %cst_53 = arith.constant dense<0.000000e+00> : vector<8x64xf32>
    %76 = tpu.matmul %75, %61, %cst_53 {dimension_numbers = #tpu.dot_dimension_numbers<[1], [0], [0], [1], [0, 0, 1, 1], [], []>} : vector<8x8xf32>, vector<8x64xf32>, vector<8x64xf32> -> vector<8x64xf32>
    %c0_54 = arith.constant 0 : index
    %c0_55 = arith.constant 0 : index
    %c128_56 = arith.constant 128 : index
    %77 = vector.load %arg6[%c0_54, %c0_55, %c128_56] : memref<1x8x256xf32, #tpu.memory_space<vmem>>, vector<1x8x64xf32>
    %78 = vector.shape_cast %77 : vector<1x8x64xf32> to vector<8x64xf32>
    %79 = vector.shape_cast %76 : vector<8x64xf32> to vector<1x8x64xf32>
    tpu.vector_store %arg6[%c0_54, %c0_55, %c128_56], %79 {strides = array<i32>} : memref<1x8x256xf32, #tpu.memory_space<vmem>>, vector<1x8x64xf32>,
    %c0_57 = arith.constant 0 : index
    %c2 = arith.constant 2 : index
    %c0_58 = arith.constant 0 : index
    %c0_59 = arith.constant 0 : index
    %80 = vector.load %arg7[%c0_57, %c2, %c0_58, %c0_59] : memref<1x4x8x8xf32, #tpu.memory_space<vmem>>, vector<1x1x8x8xf32>
    %81 = vector.shape_cast %80 : vector<1x1x8x8xf32> to vector<8x8xf32>
    %82 = vector.shape_cast %75 : vector<8x8xf32> to vector<1x1x8x8xf32>
    tpu.vector_store %arg7[%c0_57, %c2, %c0_58, %c0_59], %82 {strides = array<i32>} : memref<1x4x8x8xf32, #tpu.memory_space<vmem>>, vector<1x1x8x8xf32>,
    %c0_60 = arith.constant 0 : index
    %c0_61 = arith.constant 0 : index
    %c192 = arith.constant 192 : index
    %83 = vector.load %arg2[%c0_60, %c0_61, %c192] : memref<1x8x256xf32, #tpu.memory_space<vmem>>, vector<1x8x64xf32>
    %84 = vector.shape_cast %83 : vector<1x8x64xf32> to vector<8x64xf32>
    %c0_62 = arith.constant 0 : index
    %c0_63 = arith.constant 0 : index
    %c192_64 = arith.constant 192 : index
    %85 = vector.load %arg3[%c0_62, %c0_63, %c192_64] : memref<1x8x256xf32, #tpu.memory_space<vmem>>, vector<1x8x64xf32>
    %86 = vector.shape_cast %85 : vector<1x8x64xf32> to vector<8x64xf32>
    %c0_65 = arith.constant 0 : index
    %c0_66 = arith.constant 0 : index
    %c192_67 = arith.constant 192 : index
    %87 = vector.load %arg4[%c0_65, %c0_66, %c192_67] : memref<1x8x256xf32, #tpu.memory_space<vmem>>, vector<1x8x64xf32>
    %88 = vector.shape_cast %87 : vector<1x8x64xf32> to vector<8x64xf32>
    %cst_68 = arith.constant dense<0.000000e+00> : vector<8x8xf32>
    %89 = tpu.matmul %84, %86, %cst_68 {dimension_numbers = #tpu.dot_dimension_numbers<[1], [1], [0], [0], [0, 0, 1, 0], [], []>} : vector<8x64xf32>, vector<8x64xf32>, vector<8x8xf32> -> vector<8x8xf32>
    %cst_69 = arith.constant 1.250000e-01 : f32
    %90 = vector.broadcast %cst_69 : f32 to vector<8x8xf32>
    %91 = arith.mulf %89, %90 : vector<8x8xf32>
    %92 = arith.addf %91, %1 : vector<8x8xf32>
    %cst_70 = arith.constant dense<0xFF800000> : vector<8xf32>
    %93 = vector.multi_reduction <maximumf>, %92, %cst_70 [1] : vector<8x8xf32> to vector<8xf32>
    %94 = vector.shape_cast %93 : vector<8xf32> to vector<8x1xf32>
    %95 = vector.broadcast %94 : vector<8x1xf32> to vector<8x8xf32>
    %96 = arith.subf %92, %95 : vector<8x8xf32>
    %97 = math.exp %96 : vector<8x8xf32>
    %cst_71 = arith.constant dense<0.000000e+00> : vector<8xf32>
    %98 = vector.multi_reduction <add>, %97, %cst_71 [1] : vector<8x8xf32> to vector<8xf32>
    %99 = vector.shape_cast %98 : vector<8xf32> to vector<8x1xf32>
    %100 = tpu.reciprocal %99 {approx = true} : vector<8x1xf32> -> vector<8x1xf32>
    %101 = vector.broadcast %100 : vector<8x1xf32> to vector<8x8xf32>
    %102 = arith.mulf %97, %101 : vector<8x8xf32>
    %cst_72 = arith.constant dense<0.000000e+00> : vector<8x64xf32>
    %103 = tpu.matmul %102, %88, %cst_72 {dimension_numbers = #tpu.dot_dimension_numbers<[1], [0], [0], [1], [0, 0, 1, 1], [], []>} : vector<8x8xf32>, vector<8x64xf32>, vector<8x64xf32> -> vector<8x64xf32>
    %c0_73 = arith.constant 0 : index
    %c0_74 = arith.constant 0 : index
    %c192_75 = arith.constant 192 : index
    %104 = vector.load %arg6[%c0_73, %c0_74, %c192_75] : memref<1x8x256xf32, #tpu.memory_space<vmem>>, vector<1x8x64xf32>
    %105 = vector.shape_cast %104 : vector<1x8x64xf32> to vector<8x64xf32>
    %106 = vector.shape_cast %103 : vector<8x64xf32> to vector<1x8x64xf32>
    tpu.vector_store %arg6[%c0_73, %c0_74, %c192_75], %106 {strides = array<i32>} : memref<1x8x256xf32, #tpu.memory_space<vmem>>, vector<1x8x64xf32>,
    %c0_76 = arith.constant 0 : index
    %c3 = arith.constant 3 : index
    %c0_77 = arith.constant 0 : index
    %c0_78 = arith.constant 0 : index
    %107 = vector.load %arg7[%c0_76, %c3, %c0_77, %c0_78] : memref<1x4x8x8xf32, #tpu.memory_space<vmem>>, vector<1x1x8x8xf32>
    %108 = vector.shape_cast %107 : vector<1x1x8x8xf32> to vector<8x8xf32>
    %109 = vector.shape_cast %102 : vector<8x8xf32> to vector<1x1x8x8xf32>
    tpu.vector_store %arg7[%c0_76, %c3, %c0_77, %c0_78], %109 {strides = array<i32>} : memref<1x4x8x8xf32, #tpu.memory_space<vmem>>, vector<1x1x8x8xf32>,
    return
  }
  func.func @transform_0(%arg0: i32, %arg1: i32) -> (i32, i32, i32) {
    %c0_i32 = arith.constant 0 : i32
    %c0_i32_0 = arith.constant 0 : i32
    return %arg0, %c0_i32, %arg1 : i32, i32, i32
  }
  func.func @transform_1(%arg0: i32, %arg1: i32) -> (i32, i32, i32) {
    %c3_i32 = arith.constant 3 : i32
    %0 = arith.addi %c3_i32, %arg1 : i32
    %c0_i32 = arith.constant 0 : i32
    %c0_i32_0 = arith.constant 0 : i32
    return %arg0, %c0_i32, %0 : i32, i32, i32
  }
  func.func @transform_2(%arg0: i32, %arg1: i32) -> (i32, i32, i32) {
    %c6_i32 = arith.constant 6 : i32
    %0 = arith.addi %c6_i32, %arg1 : i32
    %c0_i32 = arith.constant 0 : i32
    %c0_i32_0 = arith.constant 0 : i32
    return %arg0, %c0_i32, %0 : i32, i32, i32
  }
  func.func @transform_3(%arg0: i32, %arg1: i32) -> (i32, i32, i32) {
    %c0_i32 = arith.constant 0 : i32
    %c0_i32_0 = arith.constant 0 : i32
    %c0_i32_1 = arith.constant 0 : i32
    return %arg0, %c0_i32, %c0_i32_0 : i32, i32, i32
  }
  func.func @transform_4(%arg0: i32, %arg1: i32) -> (i32, i32, i32) {
    %c0_i32 = arith.constant 0 : i32
    %c0_i32_0 = arith.constant 0 : i32
    return %arg0, %c0_i32, %arg1 : i32, i32, i32
  }
  func.func @transform_5(%arg0: i32, %arg1: i32) -> (i32, i32, i32, i32) {
    %c0_i32 = arith.constant 0 : i32
    %c0_i32_0 = arith.constant 0 : i32
    %c0_i32_1 = arith.constant 0 : i32
    return %arg0, %arg1, %c0_i32, %c0_i32_0 : i32, i32, i32, i32
  }
}

module attributes {stable_mosaic.version = 11 : i64} {
  func.func @_wo_add_ln_kernel(%arg0: i32, %arg1: memref<16x768xf32, #tpu.memory_space<vmem>>, %arg2: memref<16x768xf32, #tpu.memory_space<vmem>>, %arg3: memref<768x768xf32, #tpu.memory_space<vmem>>, %arg4: memref<1x768xf32, #tpu.memory_space<vmem>>, %arg5: memref<1x768xf32, #tpu.memory_space<vmem>>, %arg6: memref<1x768xf32, #tpu.memory_space<vmem>>, %arg7: memref<16x768xf32, #tpu.memory_space<vmem>>) attributes {dimension_semantics = [#tpu.dimension_semantics<parallel>], iteration_bounds = array<i64: 1>, scalar_prefetch = 0 : i64, scratch_operands = 0 : i64, tpu.core_type = #tpu.core_type<tc>, window_params = [{transform_indices = @transform_0, window_bounds = array<i64: 16, 768>}, {transform_indices = @transform_1, window_bounds = array<i64: 16, 768>}, {pipeline_mode = #tpu.pipeline_mode<synchronous>, transform_indices = @transform_2, window_bounds = array<i64: 768, 768>}, {pipeline_mode = #tpu.pipeline_mode<synchronous>, transform_indices = @transform_3, window_bounds = array<i64: 1, 768>}, {pipeline_mode = #tpu.pipeline_mode<synchronous>, transform_indices = @transform_4, window_bounds = array<i64: 1, 768>}, {pipeline_mode = #tpu.pipeline_mode<synchronous>, transform_indices = @transform_5, window_bounds = array<i64: 1, 768>}, {transform_indices = @transform_6, window_bounds = array<i64: 16, 768>}]} {
    %c0 = arith.constant 0 : index
    %c0_0 = arith.constant 0 : index
    %0 = vector.load %arg1[%c0, %c0_0] : memref<16x768xf32, #tpu.memory_space<vmem>>, vector<16x768xf32>
    %c0_1 = arith.constant 0 : index
    %c0_2 = arith.constant 0 : index
    %1 = vector.load %arg3[%c0_1, %c0_2] : memref<768x768xf32, #tpu.memory_space<vmem>>, vector<768x768xf32>
    %cst = arith.constant dense<0.000000e+00> : vector<16x768xf32>
    %2 = tpu.matmul %0, %1, %cst {dimension_numbers = #tpu.dot_dimension_numbers<[1], [0], [0], [1], [0, 0, 1, 1], [], []>} : vector<16x768xf32>, vector<768x768xf32>, vector<16x768xf32> -> vector<16x768xf32>
    %c0_3 = arith.constant 0 : index
    %c0_4 = arith.constant 0 : index
    %3 = vector.load %arg4[%c0_3, %c0_4] : memref<1x768xf32, #tpu.memory_space<vmem>>, vector<1x768xf32>
    %4 = vector.broadcast %3 : vector<1x768xf32> to vector<16x768xf32>
    %5 = arith.addf %2, %4 : vector<16x768xf32>
    %c0_5 = arith.constant 0 : index
    %c0_6 = arith.constant 0 : index
    %6 = vector.load %arg2[%c0_5, %c0_6] : memref<16x768xf32, #tpu.memory_space<vmem>>, vector<16x768xf32>
    %7 = arith.addf %5, %6 : vector<16x768xf32>
    %cst_7 = arith.constant dense<0.000000e+00> : vector<16xf32>
    %8 = vector.multi_reduction <add>, %7, %cst_7 [1] : vector<16x768xf32> to vector<16xf32>
    %9 = vector.shape_cast %8 : vector<16xf32> to vector<16x1xf32>
    %cst_8 = arith.constant 7.680000e+02 : f32
    %10 = vector.broadcast %cst_8 : f32 to vector<16x1xf32>
    %11 = arith.divf %9, %10 : vector<16x1xf32>
    %12 = vector.broadcast %11 : vector<16x1xf32> to vector<16x768xf32>
    %13 = arith.subf %7, %12 : vector<16x768xf32>
    %14 = arith.mulf %13, %13 : vector<16x768xf32>
    %cst_9 = arith.constant dense<0.000000e+00> : vector<16xf32>
    %15 = vector.multi_reduction <add>, %14, %cst_9 [1] : vector<16x768xf32> to vector<16xf32>
    %16 = vector.shape_cast %15 : vector<16xf32> to vector<16x1xf32>
    %cst_10 = arith.constant 7.680000e+02 : f32
    %17 = vector.broadcast %cst_10 : f32 to vector<16x1xf32>
    %18 = arith.divf %16, %17 : vector<16x1xf32>
    %cst_11 = arith.constant 9.99999974E-6 : f32
    %19 = vector.broadcast %cst_11 : f32 to vector<16x1xf32>
    %20 = arith.addf %18, %19 : vector<16x1xf32>
    %21 = math.rsqrt %20 : vector<16x1xf32>
    %22 = vector.broadcast %21 : vector<16x1xf32> to vector<16x768xf32>
    %23 = arith.mulf %13, %22 : vector<16x768xf32>
    %c0_12 = arith.constant 0 : index
    %c0_13 = arith.constant 0 : index
    %24 = vector.load %arg5[%c0_12, %c0_13] : memref<1x768xf32, #tpu.memory_space<vmem>>, vector<1x768xf32>
    %25 = vector.broadcast %24 : vector<1x768xf32> to vector<16x768xf32>
    %26 = arith.mulf %23, %25 : vector<16x768xf32>
    %c0_14 = arith.constant 0 : index
    %c0_15 = arith.constant 0 : index
    %27 = vector.load %arg6[%c0_14, %c0_15] : memref<1x768xf32, #tpu.memory_space<vmem>>, vector<1x768xf32>
    %28 = vector.broadcast %27 : vector<1x768xf32> to vector<16x768xf32>
    %29 = arith.addf %26, %28 : vector<16x768xf32>
    %c0_16 = arith.constant 0 : index
    %c0_17 = arith.constant 0 : index
    %30 = vector.load %arg7[%c0_16, %c0_17] : memref<16x768xf32, #tpu.memory_space<vmem>>, vector<16x768xf32>
    tpu.vector_store %arg7[%c0_16, %c0_17], %29 {strides = array<i32>} : memref<16x768xf32, #tpu.memory_space<vmem>>, vector<16x768xf32>,
    return
  }
  func.func @transform_0(%arg0: i32) -> (i32, i32) {
    %c0_i32 = arith.constant 0 : i32
    %c0_i32_0 = arith.constant 0 : i32
    return %arg0, %c0_i32 : i32, i32
  }
  func.func @transform_1(%arg0: i32) -> (i32, i32) {
    %c0_i32 = arith.constant 0 : i32
    %c0_i32_0 = arith.constant 0 : i32
    return %arg0, %c0_i32 : i32, i32
  }
  func.func @transform_2(%arg0: i32) -> (i32, i32) {
    %c0_i32 = arith.constant 0 : i32
    %c0_i32_0 = arith.constant 0 : i32
    %c0_i32_1 = arith.constant 0 : i32
    return %c0_i32, %c0_i32_0 : i32, i32
  }
  func.func @transform_3(%arg0: i32) -> (i32, i32) {
    %c0_i32 = arith.constant 0 : i32
    %c0_i32_0 = arith.constant 0 : i32
    %c0_i32_1 = arith.constant 0 : i32
    return %c0_i32, %c0_i32_0 : i32, i32
  }
  func.func @transform_4(%arg0: i32) -> (i32, i32) {
    %c0_i32 = arith.constant 0 : i32
    %c0_i32_0 = arith.constant 0 : i32
    %c0_i32_1 = arith.constant 0 : i32
    return %c0_i32, %c0_i32_0 : i32, i32
  }
  func.func @transform_5(%arg0: i32) -> (i32, i32) {
    %c0_i32 = arith.constant 0 : i32
    %c0_i32_0 = arith.constant 0 : i32
    %c0_i32_1 = arith.constant 0 : i32
    return %c0_i32, %c0_i32_0 : i32, i32
  }
  func.func @transform_6(%arg0: i32) -> (i32, i32) {
    %c0_i32 = arith.constant 0 : i32
    %c0_i32_0 = arith.constant 0 : i32
    return %arg0, %c0_i32 : i32, i32
  }
}

module attributes {stable_mosaic.version = 11 : i64} {
  func.func @_ffn_kernel(%arg0: i32, %arg1: i32, %arg2: memref<16x768xf32, #tpu.memory_space<vmem>>, %arg3: memref<768x768xf32, #tpu.memory_space<vmem>>, %arg4: memref<1x768xf32, #tpu.memory_space<vmem>>, %arg5: memref<768x768xf32, #tpu.memory_space<vmem>>, %arg6: memref<1x768xf32, #tpu.memory_space<vmem>>, %arg7: memref<1x768xf32, #tpu.memory_space<vmem>>, %arg8: memref<1x768xf32, #tpu.memory_space<vmem>>, %arg9: memref<16x768xf32, #tpu.memory_space<vmem>>, %arg10: memref<16x768xf32, #tpu.memory_space<vmem>>) attributes {dimension_semantics = [#tpu.dimension_semantics<parallel>, #tpu.dimension_semantics<arbitrary>], iteration_bounds = array<i64: 1, 4>, scalar_prefetch = 0 : i64, scratch_operands = 1 : i64, tpu.core_type = #tpu.core_type<tc>, window_params = [{transform_indices = @transform_0, window_bounds = array<i64: 16, 768>}, {transform_indices = @transform_1, window_bounds = array<i64: 768, 768>}, {transform_indices = @transform_2, window_bounds = array<i64: 1, 768>}, {transform_indices = @transform_3, window_bounds = array<i64: 768, 768>}, {pipeline_mode = #tpu.pipeline_mode<synchronous>, transform_indices = @transform_4, window_bounds = array<i64: 1, 768>}, {pipeline_mode = #tpu.pipeline_mode<synchronous>, transform_indices = @transform_5, window_bounds = array<i64: 1, 768>}, {pipeline_mode = #tpu.pipeline_mode<synchronous>, transform_indices = @transform_6, window_bounds = array<i64: 1, 768>}, {transform_indices = @transform_7, window_bounds = array<i64: 16, 768>}]} {
    %c0_i32 = arith.constant 0 : i32
    %0 = arith.cmpi eq, %arg1, %c0_i32 : i32
    %1 = arith.extui %0 : i1 to i32
    %c0_i32_0 = arith.constant 0 : i32
    %2 = arith.cmpi ne, %1, %c0_i32_0 : i32
    scf.if %2 {
      %cst_15 = arith.constant 0.000000e+00 : f32
      %19 = vector.broadcast %cst_15 : f32 to vector<16x768xf32>
      %c0_16 = arith.constant 0 : index
      %c0_17 = arith.constant 0 : index
      %20 = vector.load %arg10[%c0_16, %c0_17] : memref<16x768xf32, #tpu.memory_space<vmem>>, vector<16x768xf32>
      tpu.vector_store %arg10[%c0_16, %c0_17], %19 {strides = array<i32>} : memref<16x768xf32, #tpu.memory_space<vmem>>, vector<16x768xf32>,
    } else {
    }
    %c0 = arith.constant 0 : index
    %c0_1 = arith.constant 0 : index
    %3 = vector.load %arg2[%c0, %c0_1] : memref<16x768xf32, #tpu.memory_space<vmem>>, vector<16x768xf32>
    %c0_2 = arith.constant 0 : index
    %c0_3 = arith.constant 0 : index
    %4 = vector.load %arg3[%c0_2, %c0_3] : memref<768x768xf32, #tpu.memory_space<vmem>>, vector<768x768xf32>
    %cst = arith.constant dense<0.000000e+00> : vector<16x768xf32>
    %5 = tpu.matmul %3, %4, %cst {dimension_numbers = #tpu.dot_dimension_numbers<[1], [0], [0], [1], [0, 0, 1, 1], [], []>} : vector<16x768xf32>, vector<768x768xf32>, vector<16x768xf32> -> vector<16x768xf32>
    %c0_4 = arith.constant 0 : index
    %c0_5 = arith.constant 0 : index
    %6 = vector.load %arg4[%c0_4, %c0_5] : memref<1x768xf32, #tpu.memory_space<vmem>>, vector<1x768xf32>
    %7 = vector.broadcast %6 : vector<1x768xf32> to vector<16x768xf32>
    %8 = arith.addf %5, %7 : vector<16x768xf32>
    %cst_6 = arith.constant 0.000000e+00 : f32
    %9 = vector.broadcast %cst_6 : f32 to vector<16x768xf32>
    %10 = arith.maximumf %8, %9 : vector<16x768xf32>
    %c0_7 = arith.constant 0 : index
    %c0_8 = arith.constant 0 : index
    %11 = vector.load %arg10[%c0_7, %c0_8] : memref<16x768xf32, #tpu.memory_space<vmem>>, vector<16x768xf32>
    %c0_9 = arith.constant 0 : index
    %c0_10 = arith.constant 0 : index
    %12 = vector.load %arg5[%c0_9, %c0_10] : memref<768x768xf32, #tpu.memory_space<vmem>>, vector<768x768xf32>
    %cst_11 = arith.constant dense<0.000000e+00> : vector<16x768xf32>
    %13 = tpu.matmul %10, %12, %cst_11 {dimension_numbers = #tpu.dot_dimension_numbers<[1], [0], [0], [1], [0, 0, 1, 1], [], []>} : vector<16x768xf32>, vector<768x768xf32>, vector<16x768xf32> -> vector<16x768xf32>
    %14 = arith.addf %11, %13 : vector<16x768xf32>
    %c0_12 = arith.constant 0 : index
    %c0_13 = arith.constant 0 : index
    %15 = vector.load %arg10[%c0_12, %c0_13] : memref<16x768xf32, #tpu.memory_space<vmem>>, vector<16x768xf32>
    tpu.vector_store %arg10[%c0_12, %c0_13], %14 {strides = array<i32>} : memref<16x768xf32, #tpu.memory_space<vmem>>, vector<16x768xf32>,
    %c3_i32 = arith.constant 3 : i32
    %16 = arith.cmpi eq, %arg1, %c3_i32 : i32
    %17 = arith.extui %16 : i1 to i32
    %c0_i32_14 = arith.constant 0 : i32
    %18 = arith.cmpi ne, %17, %c0_i32_14 : i32
    scf.if %18 {
      %c0_15 = arith.constant 0 : index
      %c0_16 = arith.constant 0 : index
      %19 = vector.load %arg10[%c0_15, %c0_16] : memref<16x768xf32, #tpu.memory_space<vmem>>, vector<16x768xf32>
      %c0_17 = arith.constant 0 : index
      %c0_18 = arith.constant 0 : index
      %20 = vector.load %arg6[%c0_17, %c0_18] : memref<1x768xf32, #tpu.memory_space<vmem>>, vector<1x768xf32>
      %21 = vector.broadcast %20 : vector<1x768xf32> to vector<16x768xf32>
      %22 = arith.addf %19, %21 : vector<16x768xf32>
      %c0_19 = arith.constant 0 : index
      %c0_20 = arith.constant 0 : index
      %23 = vector.load %arg2[%c0_19, %c0_20] : memref<16x768xf32, #tpu.memory_space<vmem>>, vector<16x768xf32>
      %24 = arith.addf %22, %23 : vector<16x768xf32>
      %cst_21 = arith.constant dense<0.000000e+00> : vector<16xf32>
      %25 = vector.multi_reduction <add>, %24, %cst_21 [1] : vector<16x768xf32> to vector<16xf32>
      %26 = vector.shape_cast %25 : vector<16xf32> to vector<16x1xf32>
      %cst_22 = arith.constant 7.680000e+02 : f32
      %27 = vector.broadcast %cst_22 : f32 to vector<16x1xf32>
      %28 = arith.divf %26, %27 : vector<16x1xf32>
      %29 = vector.broadcast %28 : vector<16x1xf32> to vector<16x768xf32>
      %30 = arith.subf %24, %29 : vector<16x768xf32>
      %31 = arith.mulf %30, %30 : vector<16x768xf32>
      %cst_23 = arith.constant dense<0.000000e+00> : vector<16xf32>
      %32 = vector.multi_reduction <add>, %31, %cst_23 [1] : vector<16x768xf32> to vector<16xf32>
      %33 = vector.shape_cast %32 : vector<16xf32> to vector<16x1xf32>
      %cst_24 = arith.constant 7.680000e+02 : f32
      %34 = vector.broadcast %cst_24 : f32 to vector<16x1xf32>
      %35 = arith.divf %33, %34 : vector<16x1xf32>
      %cst_25 = arith.constant 9.99999974E-6 : f32
      %36 = vector.broadcast %cst_25 : f32 to vector<16x1xf32>
      %37 = arith.addf %35, %36 : vector<16x1xf32>
      %38 = math.rsqrt %37 : vector<16x1xf32>
      %39 = vector.broadcast %38 : vector<16x1xf32> to vector<16x768xf32>
      %40 = arith.mulf %30, %39 : vector<16x768xf32>
      %c0_26 = arith.constant 0 : index
      %c0_27 = arith.constant 0 : index
      %41 = vector.load %arg7[%c0_26, %c0_27] : memref<1x768xf32, #tpu.memory_space<vmem>>, vector<1x768xf32>
      %42 = vector.broadcast %41 : vector<1x768xf32> to vector<16x768xf32>
      %43 = arith.mulf %40, %42 : vector<16x768xf32>
      %c0_28 = arith.constant 0 : index
      %c0_29 = arith.constant 0 : index
      %44 = vector.load %arg8[%c0_28, %c0_29] : memref<1x768xf32, #tpu.memory_space<vmem>>, vector<1x768xf32>
      %45 = vector.broadcast %44 : vector<1x768xf32> to vector<16x768xf32>
      %46 = arith.addf %43, %45 : vector<16x768xf32>
      %c0_30 = arith.constant 0 : index
      %c0_31 = arith.constant 0 : index
      %47 = vector.load %arg9[%c0_30, %c0_31] : memref<16x768xf32, #tpu.memory_space<vmem>>, vector<16x768xf32>
      tpu.vector_store %arg9[%c0_30, %c0_31], %46 {strides = array<i32>} : memref<16x768xf32, #tpu.memory_space<vmem>>, vector<16x768xf32>,
    } else {
    }
    return
  }
  func.func @transform_0(%arg0: i32, %arg1: i32) -> (i32, i32) {
    %c0_i32 = arith.constant 0 : i32
    %c0_i32_0 = arith.constant 0 : i32
    return %arg0, %c0_i32 : i32, i32
  }
  func.func @transform_1(%arg0: i32, %arg1: i32) -> (i32, i32) {
    %c0_i32 = arith.constant 0 : i32
    %c0_i32_0 = arith.constant 0 : i32
    return %c0_i32, %arg1 : i32, i32
  }
  func.func @transform_2(%arg0: i32, %arg1: i32) -> (i32, i32) {
    %c0_i32 = arith.constant 0 : i32
    %c0_i32_0 = arith.constant 0 : i32
    return %c0_i32, %arg1 : i32, i32
  }
  func.func @transform_3(%arg0: i32, %arg1: i32) -> (i32, i32) {
    %c0_i32 = arith.constant 0 : i32
    %c0_i32_0 = arith.constant 0 : i32
    return %arg1, %c0_i32 : i32, i32
  }
  func.func @transform_4(%arg0: i32, %arg1: i32) -> (i32, i32) {
    %c0_i32 = arith.constant 0 : i32
    %c0_i32_0 = arith.constant 0 : i32
    %c0_i32_1 = arith.constant 0 : i32
    return %c0_i32, %c0_i32_0 : i32, i32
  }
  func.func @transform_5(%arg0: i32, %arg1: i32) -> (i32, i32) {
    %c0_i32 = arith.constant 0 : i32
    %c0_i32_0 = arith.constant 0 : i32
    %c0_i32_1 = arith.constant 0 : i32
    return %c0_i32, %c0_i32_0 : i32, i32
  }
  func.func @transform_6(%arg0: i32, %arg1: i32) -> (i32, i32) {
    %c0_i32 = arith.constant 0 : i32
    %c0_i32_0 = arith.constant 0 : i32
    %c0_i32_1 = arith.constant 0 : i32
    return %c0_i32, %c0_i32_0 : i32, i32
  }
  func.func @transform_7(%arg0: i32, %arg1: i32) -> (i32, i32) {
    %c0_i32 = arith.constant 0 : i32
    %c0_i32_0 = arith.constant 0 : i32
    return %arg0, %c0_i32 : i32, i32
  }
}

</mosaic_0001>

<llo_original>
// kernel: encoder_layer.5
$region0: #{encoder_layer.5}
  #allocation0 [shape = 'u32[]', space=smem, size = 0x4, offset = 0x4, fixed_abs, tag = 'smem constant byte address 0x4 - core index']
  #allocation1 [shape = 'u32[144,128]{1,0:T(1,128)}', space=vmem, size = 0x12000, scoped, tag = 'internal scratch']
  %s0 = inlined_call_operand.vmem [shape: f32[2,8,2304], index: 0, kind: input, shape index: {}, may-alias: {0,1,2}]
  %s1 = inlined_call_operand.vmem [shape: f32[2,8,2304], index: 1, kind: input, shape index: {}, may-alias: {0,1,2}]
  %s2 = inlined_call_operand.vmem [shape: f32[2,8,2304], index: 2, kind: input, shape index: {}, may-alias: {0,1,2}]
  %s3 = inlined_call_operand.vmem [shape: f32[2,8,8], index: 3, kind: input, shape index: {}]
  %s4 = inlined_call_operand.vmem [shape: f32[2,8,768], index: 4, kind: output, shape index: {0}]
  %s5 = inlined_call_operand.vmem [shape: f32[2,12,8,8], index: 5, kind: output, shape index: {1}]
  %6 = xla_tuple %s4, %s5
  %s7 = sld [smem:[#allocation0]]
  $region57: #{encoder_layer.5} parent=0
    _
  %s9 = ssub.s32 1, %s7
  %s10 = scalar_select 0, %s9, %s7
  loop: start=0, step=1, limit=8
  $region2: #{encoder_layer.5} parent=0 // loop_pre_header
    _
  $region3: #{encoder_layer.5} parent=0 // loop_header
    %s12 = sphi 0, %s16
    %p13 = scmp.ge.s32.totalorder %s12, 8
    %s19 = sphi 0, %s31
    %s20 = sphi 0, %s27
    %s21 = sphi 0, %s19
    %s22 = sphi 0, %s20
    %s23 = sphi 0, %s21
    %s24 = sphi 0, %s22
    %s36 = sphi 0, %s38
    %s39 = sphi 0, %s36
    %s40 = sphi 0, %s39
    %s56 = sphi 0, %s40
    %s66 = sphi 0, %s68
    %s69 = sphi 0, %s66
    %s70 = sphi 0, %s69
    %s86 = sphi 0, %s70
    %s96 = sphi 0, %s98
    %s99 = sphi 0, %s96
    %s100 = sphi 0, %s99
    %s116 = sphi 0, %s100
    %s122 = sphi 0, %s124
    %s125 = sphi 0, %s122
    %s126 = sphi 0, %s125
    %s142 = sphi 0, %s126
    %s150 = sphi 0, %s152
    %s153 = sphi 0, %s150
    %s154 = sphi 0, %s153
    %s170 = sphi 0, %s154
    %s178 = sphi 0, %s180
    %s181 = sphi 0, %s178
    %s182 = sphi 0, %s181
    %s198 = sphi 0, %s182
  $region4: #{encoder_layer.5} parent=0 // loop_header_branch
    %15 = sbr.rel (%p13) target = $region8
  $region5: #{encoder_layer.5} parent=0 // loop_body
    %s17 = ssub.s32 %s12, 1
    %s18 = ssub.s32 %s12, 2
    %s25 = sadd.s32 1, %s20
    %p26 = scmp.ge.s32.totalorder %s25, 3
    %s27 = scalar_select %p26, 0, %s25
    %s28 = sadd.s32 1, %s19
    %s29 = scalar_select %p26, %s28, %s19
    %p30 = scmp.ge.s32.totalorder %s29, 2
    %s31 = scalar_select %p30, 0, %s29
    %s32 = ssub.s32 %s19, %s31
    %s33 = ssub.s32 %s20, %s27
    %s34 = sor.u32 %s32, %s33
    %p35 = scmp.eq.s32.totalorder %s34, 0
    %s37 = sadd.s32 %s36, 1
    %s38 = scalar_select %p35, %s36, %s37
    %p41 = pneg %p35
    %p42 = scmp.eq.s32.totalorder %s12, 5
    %p43 = por %p41, %p42
    %p44 = scmp.ne.s32.totalorder %s36, %s39
    %p45 = scmp.eq.s32.totalorder %s12, 0
    %p46 = por %p44, %p45
    %p47 = scmp.ne.s32.totalorder %s36, %s39
    %p48 = scmp.eq.s32.totalorder %s17, 5
    %p49 = por %p47, %p48
    %p50 = scmp.ne.s32.totalorder %s39, %s40
    %p51 = scmp.eq.s32.totalorder %s17, 0
    %p52 = por %p50, %p51
    %p53 = scmp.ne.s32.totalorder %s39, %s40
    %p54 = scmp.eq.s32.totalorder %s18, 5
    %p55 = por %p53, %p54
    %p57 = scmp.ne.s32.totalorder %s40, %s56
    %p58 = scmp.eq.s32.totalorder %s18, 0
    %p59 = por %p57, %p58
    %s60 = sadd.s32 %s20, 3
    %s61 = sadd.s32 %s27, 3
    %s62 = ssub.s32 %s19, %s31
    %s63 = ssub.s32 %s60, %s61
    %s64 = sor.u32 %s62, %s63
    %p65 = scmp.eq.s32.totalorder %s64, 0
    %s67 = sadd.s32 %s66, 1
    %s68 = scalar_select %p65, %s66, %s67
    %p71 = pneg %p65
    %p72 = scmp.eq.s32.totalorder %s12, 5
    %p73 = por %p71, %p72
    %p74 = scmp.ne.s32.totalorder %s66, %s69
    %p75 = scmp.eq.s32.totalorder %s12, 0
    %p76 = por %p74, %p75
    %p77 = scmp.ne.s32.totalorder %s66, %s69
    %p78 = scmp.eq.s32.totalorder %s17, 5
    %p79 = por %p77, %p78
    %p80 = scmp.ne.s32.totalorder %s69, %s70
    %p81 = scmp.eq.s32.totalorder %s17, 0
    %p82 = por %p80, %p81
    %p83 = scmp.ne.s32.totalorder %s69, %s70
    %p84 = scmp.eq.s32.totalorder %s18, 5
    %p85 = por %p83, %p84
    %p87 = scmp.ne.s32.totalorder %s70, %s86
    %p88 = scmp.eq.s32.totalorder %s18, 0
    %p89 = por %p87, %p88
    %s90 = sadd.s32 %s20, 6
    %s91 = sadd.s32 %s27, 6
    %s92 = ssub.s32 %s19, %s31
    %s93 = ssub.s32 %s90, %s91
    %s94 = sor.u32 %s92, %s93
    %p95 = scmp.eq.s32.totalorder %s94, 0
    %s97 = sadd.s32 %s96, 1
    %s98 = scalar_select %p95, %s96, %s97
    %p101 = pneg %p95
    %p102 = scmp.eq.s32.totalorder %s12, 5
    %p103 = por %p101, %p102
    %p104 = scmp.ne.s32.totalorder %s96, %s99
    %p105 = scmp.eq.s32.totalorder %s12, 0
    %p106 = por %p104, %p105
    %p107 = scmp.ne.s32.totalorder %s96, %s99
    %p108 = scmp.eq.s32.totalorder %s17, 5
    %p109 = por %p107, %p108
    %p110 = scmp.ne.s32.totalorder %s99, %s100
    %p111 = scmp.eq.s32.totalorder %s17, 0
    %p112 = por %p110, %p111
    %p113 = scmp.ne.s32.totalorder %s99, %s100
    %p114 = scmp.eq.s32.totalorder %s18, 5
    %p115 = por %p113, %p114
    %p117 = scmp.ne.s32.totalorder %s100, %s116
    %p118 = scmp.eq.s32.totalorder %s18, 0
    %p119 = por %p117, %p118
    %s120 = ssub.s32 %s19, %s31
    %p121 = scmp.eq.s32.totalorder %s120, 0
    %s123 = sadd.s32 %s122, 1
    %s124 = scalar_select %p121, %s122, %s123
    %p127 = pneg %p121
    %p128 = scmp.eq.s32.totalorder %s12, 5
    %p129 = por %p127, %p128
    %p130 = scmp.ne.s32.totalorder %s122, %s125
    %p131 = scmp.eq.s32.totalorder %s12, 0
    %p132 = por %p130, %p131
    %p133 = scmp.ne.s32.totalorder %s122, %s125
    %p134 = scmp.eq.s32.totalorder %s17, 5
    %p135 = por %p133, %p134
    %p136 = scmp.ne.s32.totalorder %s125, %s126
    %p137 = scmp.eq.s32.totalorder %s17, 0
    %p138 = por %p136, %p137
    %p139 = scmp.ne.s32.totalorder %s125, %s126
    %p140 = scmp.eq.s32.totalorder %s18, 5
    %p141 = por %p139, %p140
    %p143 = scmp.ne.s32.totalorder %s126, %s142
    %p144 = scmp.eq.s32.totalorder %s18, 0
    %p145 = por %p143, %p144
    %s146 = ssub.s32 %s19, %s31
    %s147 = ssub.s32 %s20, %s27
    %s148 = sor.u32 %s146, %s147
    %p149 = scmp.eq.s32.totalorder %s148, 0
    %s151 = sadd.s32 %s150, 1
    %s152 = scalar_select %p149, %s150, %s151
    %p155 = pneg %p149
    %p156 = scmp.eq.s32.totalorder %s12, 5
    %p157 = por %p155, %p156
    %p158 = scmp.ne.s32.totalorder %s150, %s153
    %p159 = scmp.eq.s32.totalorder %s12, 0
    %p160 = por %p158, %p159
    %p161 = scmp.ne.s32.totalorder %s150, %s153
    %p162 = scmp.eq.s32.totalorder %s17, 5
    %p163 = por %p161, %p162
    %p164 = scmp.ne.s32.totalorder %s153, %s154
    %p165 = scmp.eq.s32.totalorder %s17, 0
    %p166 = por %p164, %p165
    %p167 = scmp.ne.s32.totalorder %s153, %s154
    %p168 = scmp.eq.s32.totalorder %s18, 5
    %p169 = por %p167, %p168
    %p171 = scmp.ne.s32.totalorder %s154, %s170
    %p172 = scmp.eq.s32.totalorder %s18, 0
    %p173 = por %p171, %p172
    %s174 = ssub.s32 %s19, %s31
    %s175 = ssub.s32 %s20, %s27
    %s176 = sor.u32 %s174, %s175
    %p177 = scmp.eq.s32.totalorder %s176, 0
    %s179 = sadd.s32 %s178, 1
    %s180 = scalar_select %p177, %s178, %s179
    %p183 = pneg %p177
    %p184 = scmp.eq.s32.totalorder %s12, 5
    %p185 = por %p183, %p184
    %p186 = scmp.ne.s32.totalorder %s178, %s181
    %p187 = scmp.eq.s32.totalorder %s12, 0
    %p188 = por %p186, %p187
    %p189 = scmp.ne.s32.totalorder %s178, %s181
    %p190 = scmp.eq.s32.totalorder %s17, 5
    %p191 = por %p189, %p190
    %p192 = scmp.ne.s32.totalorder %s181, %s182
    %p193 = scmp.eq.s32.totalorder %s17, 0
    %p194 = por %p192, %p193
    %p195 = scmp.ne.s32.totalorder %s181, %s182
    %p196 = scmp.eq.s32.totalorder %s18, 5
    %p197 = por %p195, %p196
    %p199 = scmp.ne.s32.totalorder %s182, %s198
    %p200 = scmp.eq.s32.totalorder %s18, 0
    %p201 = por %p199, %p200
    %p202 = scmp.le.s32.totalorder 1, %s12
    %p203 = scmp.lt.s32.totalorder %s12, 7
    %p204 = pnand %p202, %p203
    %p205 = pneg %p204
    // Predicated region
    $region9: #{encoder_layer.5} parent=5 // pred_check
      _
    $region10: #{encoder_layer.5} parent=5 // pred_check_branch
      %207 = sbr.rel (%p204) target = $region12
    $region11: #{encoder_layer.5} parent=5 // pred_region
      %s208 = ssub.s32 %s12, 1
    $region12: #{encoder_layer.5} parent=5 // pred_fallthru
      _
    %p209 = scmp.lt.s32.totalorder %s12, 6
    // Predicated region
    $region13: #{encoder_layer.5} parent=5 // pred_check
      %p210 = pneg %p209
    $region14: #{encoder_layer.5} parent=5 // pred_check_branch
      %212 = sbr.rel (%p210) target = $region16
    $region15: #{encoder_layer.5} parent=5 // pred_region
      // Predicated region
      $region17: #{encoder_layer.5} parent=15 // pred_check
        %p213 = pneg %p46
      $region18: #{encoder_layer.5} parent=15 // pred_check_branch
        %215 = sbr.rel (%p213) target = $region20
      $region19: #{encoder_layer.5} parent=15 // pred_region
        %s216 = smul.u32 2, %s20
        %p217 = scmp.lt.s32.totalorder %s19, 1
        %s218 = scalar_select %p217, %s19, 1
        %p219 = scmp.lt.s32.totalorder %s216, 17
        %s220 = scalar_select %p219, %s216, 17
        %s221 = smul.addr %s218, 18
        %s222 = sadd.s32 %s220, %s221
        %s223 = smul.addr %s222, 8
        %s224 = scalar_lea.vmem %s0, %s223
        %s225 = smul.u32 2, %s20
      $region20: #{encoder_layer.5} parent=15 // pred_fallthru
        _
      // Predicated region
      $region21: #{encoder_layer.5} parent=15 // pred_check
        %p226 = pneg %p76
      $region22: #{encoder_layer.5} parent=15 // pred_check_branch
        %228 = sbr.rel (%p226) target = $region24
      $region23: #{encoder_layer.5} parent=15 // pred_region
        %s229 = sadd.s32 %s20, 3
        %s230 = smul.u32 2, %s229
        %p231 = scmp.lt.s32.totalorder %s19, 1
        %s232 = scalar_select %p231, %s19, 1
        %p233 = scmp.lt.s32.totalorder %s230, 17
        %s234 = scalar_select %p233, %s230, 17
        %s235 = smul.addr %s232, 18
        %s236 = sadd.s32 %s234, %s235
        %s237 = smul.addr %s236, 8
        %s238 = scalar_lea.vmem %s1, %s237
        %s239 = sadd.s32 %s20, 3
        %s240 = smul.u32 2, %s239
      $region24: #{encoder_layer.5} parent=15 // pred_fallthru
        _
      // Predicated region
      $region25: #{encoder_layer.5} parent=15 // pred_check
        %p241 = pneg %p106
      $region26: #{encoder_layer.5} parent=15 // pred_check_branch
        %243 = sbr.rel (%p241) target = $region28
      $region27: #{encoder_layer.5} parent=15 // pred_region
        %s244 = sadd.s32 %s20, 6
        %s245 = smul.u32 2, %s244
        %p246 = scmp.lt.s32.totalorder %s19, 1
        %s247 = scalar_select %p246, %s19, 1
        %p248 = scmp.lt.s32.totalorder %s245, 17
        %s249 = scalar_select %p248, %s245, 17
        %s250 = smul.addr %s247, 18
        %s251 = sadd.s32 %s249, %s250
        %s252 = smul.addr %s251, 8
        %s253 = scalar_lea.vmem %s2, %s252
        %s254 = sadd.s32 %s20, 6
        %s255 = smul.u32 2, %s254
      $region28: #{encoder_layer.5} parent=15 // pred_fallthru
        _
      // Predicated region
      $region29: #{encoder_layer.5} parent=15 // pred_check
        %p256 = pneg %p132
      $region30: #{encoder_layer.5} parent=15 // pred_check_branch
        %258 = sbr.rel (%p256) target = $region32
      $region31: #{encoder_layer.5} parent=15 // pred_region
        %p259 = scmp.lt.s32.totalorder %s19, 1
        %s260 = scalar_select %p259, %s19, 1
        %s261 = smul.addr %s260, 8
        %s262 = scalar_lea.vmem %s3, %s261
      $region32: #{encoder_layer.5} parent=15 // pred_fallthru
        _
    $region16: #{encoder_layer.5} parent=5 // pred_fallthru
      _
    %p263 = scmp.le.s32.totalorder 1, %s12
    %p264 = scmp.lt.s32.totalorder %s12, 7
    %p265 = pnand %p263, %p264
    %p266 = pneg %p265
    // Predicated region
    $region33: #{encoder_layer.5} parent=5 // pred_check
      _
    $region34: #{encoder_layer.5} parent=5 // pred_check_branch
      %268 = sbr.rel (%p265) target = $region36
    $region35: #{encoder_layer.5} parent=5 // pred_region
      %s269 = ssub.s32 %s12, 1
      %s270 = smul.u32 2, %s22
      %p271 = scmp.lt.s32.totalorder %s21, 1
      %s272 = scalar_select %p271, %s21, 1
      %p273 = scmp.lt.s32.totalorder %s270, 17
      %s274 = scalar_select %p273, %s270, 17
      %s275 = smul.addr %s272, 18
      %s276 = sadd.s32 %s274, %s275
      %s277 = smul.addr %s276, 8
      %s278 = scalar_lea.vmem %s0, %s277
      %p279 = pneg %p52
      %p280 = pneg %p49
      %s281 = sadd.s32 %s22, 3
      %s282 = smul.u32 2, %s281
      %p283 = scmp.lt.s32.totalorder %s21, 1
      %s284 = scalar_select %p283, %s21, 1
      %p285 = scmp.lt.s32.totalorder %s282, 17
      %s286 = scalar_select %p285, %s282, 17
      %s287 = smul.addr %s284, 18
      %s288 = sadd.s32 %s286, %s287
      %s289 = smul.addr %s288, 8
      %s290 = scalar_lea.vmem %s1, %s289
      %p291 = pneg %p82
      %p292 = pneg %p79
      %s293 = sadd.s32 %s22, 6
      %s294 = smul.u32 2, %s293
      %p295 = scmp.lt.s32.totalorder %s21, 1
      %s296 = scalar_select %p295, %s21, 1
      %p297 = scmp.lt.s32.totalorder %s294, 17
      %s298 = scalar_select %p297, %s294, 17
      %s299 = smul.addr %s296, 18
      %s300 = sadd.s32 %s298, %s299
      %s301 = smul.addr %s300, 8
      %s302 = scalar_lea.vmem %s2, %s301
      %p303 = pneg %p112
      %p304 = pneg %p109
      %p305 = scmp.lt.s32.totalorder %s21, 1
      %s306 = scalar_select %p305, %s21, 1
      %s307 = smul.addr %s306, 8
      %s308 = scalar_lea.vmem %s3, %s307
      %p309 = pneg %p138
      %p310 = pneg %p135
      %p311 = pneg %p166
      %p312 = pneg %p163
      %s313 = smul.u32 2, %s22
      %p314 = scmp.lt.s32.totalorder %s21, 1
      %s315 = scalar_select %p314, %s21, 1
      %p316 = scmp.lt.s32.totalorder %s313, 5
      %s317 = scalar_select %p316, %s313, 5
      %s318 = smul.addr %s315, 6
      %s319 = sadd.s32 %s317, %s318
      %s320 = smul.addr %s319, 8
      %s321 = scalar_lea.vmem %s4, %s320
      %p322 = pneg %p194
      %p323 = pneg %p191
      %s324 = smul.u32 4, %s22
      %p325 = scmp.lt.s32.totalorder %s21, 1
      %s326 = scalar_select %p325, %s21, 1
      %p327 = scmp.lt.s32.totalorder %s324, 11
      %s328 = scalar_select %p327, %s324, 11
      %s329 = smul.addr %s326, 12
      %s330 = sadd.s32 %s328, %s329
      %s331 = smul.addr %s330, 8
      %s332 = scalar_lea.vmem %s5, %s331
      %s333 = smul.u32 2, %s22
      %p334 = scmp.lt.s32.totalorder %s21, 1
      %s335 = scalar_select %p334, %s21, 1
      %p336 = scmp.lt.s32.totalorder %s333, 17
      %s337 = scalar_select %p336, %s333, 17
      %s338 = smul.addr %s335, 18
      %s339 = sadd.s32 %s337, %s338
      %s340 = smul.addr %s339, 8
      %s341 = scalar_lea.vmem %s0, %s340
      %s342 = smul.u32 2, %s22
      %s343 = sadd.s32 %s22, 3
      %s344 = smul.u32 2, %s343
      %p345 = scmp.lt.s32.totalorder %s21, 1
      %s346 = scalar_select %p345, %s21, 1
      %p347 = scmp.lt.s32.totalorder %s344, 17
      %s348 = scalar_select %p347, %s344, 17
      %s349 = smul.addr %s346, 18
      %s350 = sadd.s32 %s348, %s349
      %s351 = smul.addr %s350, 8
      %s352 = scalar_lea.vmem %s1, %s351
      %s353 = sadd.s32 %s22, 3
      %s354 = smul.u32 2, %s353
      %s355 = sadd.s32 %s22, 6
      %s356 = smul.u32 2, %s355
      %p357 = scmp.lt.s32.totalorder %s21, 1
      %s358 = scalar_select %p357, %s21, 1
      %p359 = scmp.lt.s32.totalorder %s356, 17
      %s360 = scalar_select %p359, %s356, 17
      %s361 = smul.addr %s358, 18
      %s362 = sadd.s32 %s360, %s361
      %s363 = smul.addr %s362, 8
      %s364 = scalar_lea.vmem %s2, %s363
      %s365 = sadd.s32 %s22, 6
      %s366 = smul.u32 2, %s365
      %p367 = scmp.lt.s32.totalorder %s21, 1
      %s368 = scalar_select %p367, %s21, 1
      %s369 = smul.addr %s368, 8
      %s370 = scalar_lea.vmem %s3, %s369
      %s371 = smul.u32 2, %s22
      %p372 = scmp.lt.s32.totalorder %s21, 1
      %s373 = scalar_select %p372, %s21, 1
      %p374 = scmp.lt.s32.totalorder %s371, 5
      %s375 = scalar_select %p374, %s371, 5
      %s376 = smul.addr %s373, 6
      %s377 = sadd.s32 %s375, %s376
      %s378 = smul.addr %s377, 8
      %s379 = scalar_lea.vmem %s4, %s378
      %s380 = smul.u32 2, %s22
      %s381 = smul.u32 4, %s22
      %p382 = scmp.lt.s32.totalorder %s21, 1
      %s383 = scalar_select %p382, %s21, 1
      %p384 = scmp.lt.s32.totalorder %s381, 11
      %s385 = scalar_select %p384, %s381, 11
      %s386 = smul.addr %s383, 12
      %s387 = sadd.s32 %s385, %s386
      %s388 = smul.addr %s387, 8
      %s389 = scalar_lea.vmem %s5, %s388
      %s390 = smul.u32 4, %s22
      %v391 = vld [vmem:[%s370] sm:$0xff]
      %v392 = vld [vmem:[%s341] sm:$0xff]
      %v393 = vld [vmem:[%s352] sm:$0xff]
      %v394 = vld [vmem:[%s364] sm:$0xff]
      %vm395 = vcmask 523264
      %v397 = vsel %vm395, %v392, 0
      %v400 = vsel %vm395, %v393, 0
      %402 = vmatprep.subr.mxu0 0.0
      %403 = vmatpush1.xpose.msra.mxu0 %v400
      %404 = vmatprep.subr.mxu0 0.0
      %405 = vmatpush1.xpose.msra.mxu0 0.0
      %406 = vmatprep.subr.mxu0 0.0
      %407 = vmatpush1.xpose.msra.mxu0 0.0
      %408 = vmatprep.subr.mxu0 0.0
      %409 = vmatpush1.xpose.msra.mxu0 0.0
      %410 = vmatprep.subr.mxu0 0.0
      %411 = vmatpush1.xpose.msra.mxu0 0.0
      %412 = vmatprep.subr.mxu0 0.0
      %413 = vmatpush1.xpose.msra.mxu0 0.0
      %414 = vmatprep.subr.mxu0 0.0
      %415 = vmatpush1.xpose.msra.mxu0 0.0
      %416 = vmatprep.subr.mxu0 0.0
      %417 = vmatpush1.xpose.msra.mxu0 0.0
      %418 = vmatprep.subr.mxu0 0.0
      %419 = vmatpush1.xpose.msra.mxu0 0.0
      %420 = vmatprep.subr.mxu0 0.0
      %421 = vmatpush1.xpose.msra.mxu0 0.0
      %422 = vmatprep.subr.mxu0 0.0
      %423 = vmatpush1.xpose.msra.mxu0 0.0
      %424 = vmatprep.subr.mxu0 0.0
      %425 = vmatpush1.xpose.msra.mxu0 0.0
      %426 = vmatprep.subr.mxu0 0.0
      %427 = vmatpush1.xpose.msra.mxu0 0.0
      %428 = vmatprep.subr.mxu0 0.0
      %429 = vmatpush1.xpose.msra.mxu0 0.0
      %430 = vmatprep.subr.mxu0 0.0
      %431 = vmatpush1.xpose.msra.mxu0 0.0
      %432 = vmatprep.subr.mxu0 0.0
      %433 = vmatpush1.xpose.msra.mxu0 0.0
      %434 = vmatprep.subr.mxu0 0.0
      %435 = vmatpush1.xpose.msra.mxu0 0.0
      %436 = vmatprep.subr.mxu0 0.0
      %437 = vmatpush1.xpose.msra.mxu0 0.0
      %438 = vmatprep.subr.mxu0 0.0
      %439 = vmatpush1.xpose.msra.mxu0 0.0
      %440 = vmatprep.subr.mxu0 0.0
      %441 = vmatpush1.xpose.msra.mxu0 0.0
      %442 = vmatprep.subr.mxu0 0.0
      %443 = vmatpush1.xpose.msra.mxu0 0.0
      %444 = vmatprep.subr.mxu0 0.0
      %445 = vmatpush1.xpose.msra.mxu0 0.0
      %446 = vmatprep.subr.mxu0 0.0
      %447 = vmatpush1.xpose.msra.mxu0 0.0
      %448 = vmatprep.subr.mxu0 0.0
      %449 = vmatpush1.xpose.msra.mxu0 0.0
      %450 = vmatprep.subr.mxu0 0.0
      %451 = vmatpush1.xpose.msra.mxu0 0.0
      %452 = vmatprep.subr.mxu0 0.0
      %453 = vmatpush1.xpose.msra.mxu0 0.0
      %454 = vmatprep.subr.mxu0 0.0
      %455 = vmatpush1.xpose.msra.mxu0 0.0
      %456 = vmatprep.subr.mxu0 0.0
      %457 = vmatpush1.xpose.msra.mxu0 0.0
      %458 = vmatprep.subr.mxu0 0.0
      %459 = vmatpush1.xpose.msra.mxu0 0.0
      %460 = vmatprep.subr.mxu0 0.0
      %461 = vmatpush1.xpose.msra.mxu0 0.0
      %462 = vmatprep.subr.mxu0 0.0
      %463 = vmatpush1.xpose.msra.mxu0 0.0
      %464 = vmatprep.subr.mxu0 0.0
      %465 = vmatpush1.xpose.msra.mxu0 0.0
      %466 = vmatprep.mubr.f32.mxu0 0.0
      %467 = vmatmul.mubr.f32.gmra.mrb[0].mxu0 %v397
      %v468 = vpop.f32.mrb[0].mxu0
      %v469 = vadd.f32 0.0, %v468
      %v470 = vpop.f32.mrb[0].mxu0
      %471 = vdwg.mxu0
      %v472 = vmul.f32 %v469, 0.125
      %v473 = vadd.f32 %v472, %v391
      %vm474 = vcmask 64512
      %v475 = vsel %vm474, %v473, -inf
      %476 = vmax.xlane.f32.xlu0 %v475
      %v477 = vpop.xlane.xlu0 %476
      %v478 = vsub.f32 %v473, %v477
      %v479 = vmul.f32 %v478, 1.442695
      %v480 = vpow.pop %v479
      %v481 = vsel %vm474, %v480, 0.0
      %482 = vadd.xlane.f32.xlu0 %v481
      %v483 = vpop.xlane.xlu0 %482
      %v484 = vrcp.pop %v483
      %v485 = vmul.f32 %v480, %v484
      %v487 = vsel %vm474, %v485, 0
      %489 = vmatprep.subr.mxu0 0.0
      %490 = vmatpush1.msra.mxu0 %v394
      %491 = vmatprep.subr.mxu0 0.0
      %492 = vmatpush1.msra.mxu0 0.0
      %493 = vmatprep.subr.mxu0 0.0
      %494 = vmatpush1.msra.mxu0 0.0
      %495 = vmatprep.subr.mxu0 0.0
      %496 = vmatpush1.msra.mxu0 0.0
      %497 = vmatprep.subr.mxu0 0.0
      %498 = vmatpush1.msra.mxu0 0.0
      %499 = vmatprep.subr.mxu0 0.0
      %500 = vmatpush1.msra.mxu0 0.0
      %501 = vmatprep.subr.mxu0 0.0
      %502 = vmatpush1.msra.mxu0 0.0
      %503 = vmatprep.subr.mxu0 0.0
      %504 = vmatpush1.msra.mxu0 0.0
      %505 = vmatprep.subr.mxu0 0.0
      %506 = vmatpush1.msra.mxu0 0.0
      %507 = vmatprep.subr.mxu0 0.0
      %508 = vmatpush1.msra.mxu0 0.0
      %509 = vmatprep.subr.mxu0 0.0
      %510 = vmatpush1.msra.mxu0 0.0
      %511 = vmatprep.subr.mxu0 0.0
      %512 = vmatpush1.msra.mxu0 0.0
      %513 = vmatprep.subr.mxu0 0.0
      %514 = vmatpush1.msra.mxu0 0.0
      %515 = vmatprep.subr.mxu0 0.0
      %516 = vmatpush1.msra.mxu0 0.0
      %517 = vmatprep.subr.mxu0 0.0
      %518 = vmatpush1.msra.mxu0 0.0
      %519 = vmatprep.subr.mxu0 0.0
      %520 = vmatpush1.msra.mxu0 0.0
      %521 = vmatprep.subr.mxu0 0.0
      %522 = vmatpush1.msra.mxu0 0.0
      %523 = vmatprep.subr.mxu0 0.0
      %524 = vmatpush1.msra.mxu0 0.0
      %525 = vmatprep.subr.mxu0 0.0
      %526 = vmatpush1.msra.mxu0 0.0
      %527 = vmatprep.subr.mxu0 0.0
      %528 = vmatpush1.msra.mxu0 0.0
      %529 = vmatprep.subr.mxu0 0.0
      %530 = vmatpush1.msra.mxu0 0.0
      %531 = vmatprep.subr.mxu0 0.0
      %532 = vmatpush1.msra.mxu0 0.0
      %533 = vmatprep.subr.mxu0 0.0
      %534 = vmatpush1.msra.mxu0 0.0
      %535 = vmatprep.subr.mxu0 0.0
      %536 = vmatpush1.msra.mxu0 0.0
      %537 = vmatprep.subr.mxu0 0.0
      %538 = vmatpush1.msra.mxu0 0.0
      %539 = vmatprep.subr.mxu0 0.0
      %540 = vmatpush1.msra.mxu0 0.0
      %541 = vmatprep.subr.mxu0 0.0
      %542 = vmatpush1.msra.mxu0 0.0
      %543 = vmatprep.subr.mxu0 0.0
      %544 = vmatpush1.msra.mxu0 0.0
      %545 = vmatprep.subr.mxu0 0.0
      %546 = vmatpush1.msra.mxu0 0.0
      %547 = vmatprep.subr.mxu0 0.0
      %548 = vmatpush1.msra.mxu0 0.0
      %549 = vmatprep.subr.mxu0 0.0
      %550 = vmatpush1.msra.mxu0 0.0
      %551 = vmatprep.subr.mxu0 0.0
      %552 = vmatpush1.msra.mxu0 0.0
      %553 = vmatprep.mubr.f32.mxu0 0.0
      %554 = vmatmul.mubr.f32.gmra.mrb[0].mxu0 %v487
      %v555 = vpop.f32.mrb[0].mxu0
      %v556 = vadd.f32 0.0, %v555
      %v557 = vpop.f32.mrb[0].mxu0
      %558 = vdwg.mxu0
      %559 = vst.msk [vmem:[%s379] sm:$0xff] %vm395, %v556
      %560 = vst.msk [vmem:[%s389] sm:$0xff] %vm474, %v485
      %v561 = vld [vmem:[%s341] sm:$0xff]
      %v562 = vld [vmem:[%s352] sm:$0xff]
      %v563 = vld [vmem:[%s364] sm:$0xff]
      %565 = vrot.lane.b32.xlu0 %v561, 64
      %v566 = vpop.permute.xlu0 %565
      %568 = vrot.lane.b32.xlu0 %v562, 64
      %v569 = vpop.permute.xlu0 %568
      %v570 = vsel %vm395, %v566, 0
      %v572 = vsel %vm395, %v569, 0
      %574 = vmatprep.subr.mxu0 0.0
      %575 = vmatpush1.xpose.msra.mxu0 %v572
      %576 = vmatprep.subr.mxu0 0.0
      %577 = vmatpush1.xpose.msra.mxu0 0.0
      %578 = vmatprep.subr.mxu0 0.0
      %579 = vmatpush1.xpose.msra.mxu0 0.0
      %580 = vmatprep.subr.mxu0 0.0
      %581 = vmatpush1.xpose.msra.mxu0 0.0
      %582 = vmatprep.subr.mxu0 0.0
      %583 = vmatpush1.xpose.msra.mxu0 0.0
      %584 = vmatprep.subr.mxu0 0.0
      %585 = vmatpush1.xpose.msra.mxu0 0.0
      %586 = vmatprep.subr.mxu0 0.0
      %587 = vmatpush1.xpose.msra.mxu0 0.0
      %588 = vmatprep.subr.mxu0 0.0
      %589 = vmatpush1.xpose.msra.mxu0 0.0
      %590 = vmatprep.subr.mxu0 0.0
      %591 = vmatpush1.xpose.msra.mxu0 0.0
      %592 = vmatprep.subr.mxu0 0.0
      %593 = vmatpush1.xpose.msra.mxu0 0.0
      %594 = vmatprep.subr.mxu0 0.0
      %595 = vmatpush1.xpose.msra.mxu0 0.0
      %596 = vmatprep.subr.mxu0 0.0
      %597 = vmatpush1.xpose.msra.mxu0 0.0
      %598 = vmatprep.subr.mxu0 0.0
      %599 = vmatpush1.xpose.msra.mxu0 0.0
      %600 = vmatprep.subr.mxu0 0.0
      %601 = vmatpush1.xpose.msra.mxu0 0.0
      %602 = vmatprep.subr.mxu0 0.0
      %603 = vmatpush1.xpose.msra.mxu0 0.0
      %604 = vmatprep.subr.mxu0 0.0
      %605 = vmatpush1.xpose.msra.mxu0 0.0
      %606 = vmatprep.subr.mxu0 0.0
      %607 = vmatpush1.xpose.msra.mxu0 0.0
      %608 = vmatprep.subr.mxu0 0.0
      %609 = vmatpush1.xpose.msra.mxu0 0.0
      %610 = vmatprep.subr.mxu0 0.0
      %611 = vmatpush1.xpose.msra.mxu0 0.0
      %612 = vmatprep.subr.mxu0 0.0
      %613 = vmatpush1.xpose.msra.mxu0 0.0
      %614 = vmatprep.subr.mxu0 0.0
      %615 = vmatpush1.xpose.msra.mxu0 0.0
      %616 = vmatprep.subr.mxu0 0.0
      %617 = vmatpush1.xpose.msra.mxu0 0.0
      %618 = vmatprep.subr.mxu0 0.0
      %619 = vmatpush1.xpose.msra.mxu0 0.0
      %620 = vmatprep.subr.mxu0 0.0
      %621 = vmatpush1.xpose.msra.mxu0 0.0
      %622 = vmatprep.subr.mxu0 0.0
      %623 = vmatpush1.xpose.msra.mxu0 0.0
      %624 = vmatprep.subr.mxu0 0.0
      %625 = vmatpush1.xpose.msra.mxu0 0.0
      %626 = vmatprep.subr.mxu0 0.0
      %627 = vmatpush1.xpose.msra.mxu0 0.0
      %628 = vmatprep.subr.mxu0 0.0
      %629 = vmatpush1.xpose.msra.mxu0 0.0
      %630 = vmatprep.subr.mxu0 0.0
      %631 = vmatpush1.xpose.msra.mxu0 0.0
      %632 = vmatprep.subr.mxu0 0.0
      %633 = vmatpush1.xpose.msra.mxu0 0.0
      %634 = vmatprep.subr.mxu0 0.0
      %635 = vmatpush1.xpose.msra.mxu0 0.0
      %636 = vmatprep.subr.mxu0 0.0
      %637 = vmatpush1.xpose.msra.mxu0 0.0
      %638 = vmatprep.mubr.f32.mxu0 0.0
      %639 = vmatmul.mubr.f32.gmra.mrb[0].mxu0 %v570
      %v640 = vpop.f32.mrb[0].mxu0
      %v641 = vadd.f32 0.0, %v640
      %v642 = vpop.f32.mrb[0].mxu0
      %643 = vdwg.mxu0
      %v644 = vmul.f32 %v641, 0.125
      %v645 = vadd.f32 %v644, %v391
      %v646 = vsel %vm474, %v645, -inf
      %647 = vmax.xlane.f32.xlu0 %v646
      %v648 = vpop.xlane.xlu0 %647
      %v649 = vsub.f32 %v645, %v648
      %v650 = vmul.f32 %v649, 1.442695
      %v651 = vpow.pop %v650
      %v652 = vsel %vm474, %v651, 0.0
      %653 = vadd.xlane.f32.xlu0 %v652
      %v654 = vpop.xlane.xlu0 %653
      %v655 = vrcp.pop %v654
      %v656 = vmul.f32 %v651, %v655
      %658 = vrot.lane.b32.xlu0 %v563, 64
      %v659 = vpop.permute.xlu0 %658
      %v662 = vsel %vm474, %v656, 0
      %664 = vmatprep.subr.mxu0 0.0
      %665 = vmatpush1.msra.mxu0 %v659
      %666 = vmatprep.subr.mxu0 0.0
      %667 = vmatpush1.msra.mxu0 0.0
      %668 = vmatprep.subr.mxu0 0.0
      %669 = vmatpush1.msra.mxu0 0.0
      %670 = vmatprep.subr.mxu0 0.0
      %671 = vmatpush1.msra.mxu0 0.0
      %672 = vmatprep.subr.mxu0 0.0
      %673 = vmatpush1.msra.mxu0 0.0
      %674 = vmatprep.subr.mxu0 0.0
      %675 = vmatpush1.msra.mxu0 0.0
      %676 = vmatprep.subr.mxu0 0.0
      %677 = vmatpush1.msra.mxu0 0.0
      %678 = vmatprep.subr.mxu0 0.0
      %679 = vmatpush1.msra.mxu0 0.0
      %680 = vmatprep.subr.mxu0 0.0
      %681 = vmatpush1.msra.mxu0 0.0
      %682 = vmatprep.subr.mxu0 0.0
      %683 = vmatpush1.msra.mxu0 0.0
      %684 = vmatprep.subr.mxu0 0.0
      %685 = vmatpush1.msra.mxu0 0.0
      %686 = vmatprep.subr.mxu0 0.0
      %687 = vmatpush1.msra.mxu0 0.0
      %688 = vmatprep.subr.mxu0 0.0
      %689 = vmatpush1.msra.mxu0 0.0
      %690 = vmatprep.subr.mxu0 0.0
      %691 = vmatpush1.msra.mxu0 0.0
      %692 = vmatprep.subr.mxu0 0.0
      %693 = vmatpush1.msra.mxu0 0.0
      %694 = vmatprep.subr.mxu0 0.0
      %695 = vmatpush1.msra.mxu0 0.0
      %696 = vmatprep.subr.mxu0 0.0
      %697 = vmatpush1.msra.mxu0 0.0
      %698 = vmatprep.subr.mxu0 0.0
      %699 = vmatpush1.msra.mxu0 0.0
      %700 = vmatprep.subr.mxu0 0.0
      %701 = vmatpush1.msra.mxu0 0.0
      %702 = vmatprep.subr.mxu0 0.0
      %703 = vmatpush1.msra.mxu0 0.0
      %704 = vmatprep.subr.mxu0 0.0
      %705 = vmatpush1.msra.mxu0 0.0
      %706 = vmatprep.subr.mxu0 0.0
      %707 = vmatpush1.msra.mxu0 0.0
      %708 = vmatprep.subr.mxu0 0.0
      %709 = vmatpush1.msra.mxu0 0.0
      %710 = vmatprep.subr.mxu0 0.0
      %711 = vmatpush1.msra.mxu0 0.0
      %712 = vmatprep.subr.mxu0 0.0
      %713 = vmatpush1.msra.mxu0 0.0
      %714 = vmatprep.subr.mxu0 0.0
      %715 = vmatpush1.msra.mxu0 0.0
      %716 = vmatprep.subr.mxu0 0.0
      %717 = vmatpush1.msra.mxu0 0.0
      %718 = vmatprep.subr.mxu0 0.0
      %719 = vmatpush1.msra.mxu0 0.0
      %720 = vmatprep.subr.mxu0 0.0
      %721 = vmatpush1.msra.mxu0 0.0
      %722 = vmatprep.subr.mxu0 0.0
      %723 = vmatpush1.msra.mxu0 0.0
      %724 = vmatprep.subr.mxu0 0.0
      %725 = vmatpush1.msra.mxu0 0.0
      %726 = vmatprep.subr.mxu0 0.0
      %727 = vmatpush1.msra.mxu0 0.0
      %728 = vmatprep.mubr.f32.mxu0 0.0
      %729 = vmatmul.mubr.f32.gmra.mrb[0].mxu0 %v662
      %v730 = vpop.f32.mrb[0].mxu0
      %v731 = vadd.f32 0.0, %v730
      %v732 = vpop.f32.mrb[0].mxu0
      %733 = vdwg.mxu0
      %735 = vrot.lane.b32.xlu0 %v731, 64
      %v736 = vpop.permute.xlu0 %735
      %vm738 = vcmask 1048064
      %739 = vst.msk [vmem:[%s379] sm:$0xff] %vm738, %v736
      %s740 = scalar_lea.vmem %s389, 8
      %741 = vst.msk [vmem:[%s740] sm:$0xff] %vm474, %v656
      %v742 = vld [vmem:[%s341 + $0x8] sm:$0xff]
      %v743 = vld [vmem:[%s352 + $0x8] sm:$0xff]
      %v744 = vld [vmem:[%s364 + $0x8] sm:$0xff]
      %v746 = vsel %vm395, %v742, 0
      %v749 = vsel %vm395, %v743, 0
      %751 = vmatprep.subr.mxu0 0.0
      %752 = vmatpush1.xpose.msra.mxu0 %v749
      %753 = vmatprep.subr.mxu0 0.0
      %754 = vmatpush1.xpose.msra.mxu0 0.0
      %755 = vmatprep.subr.mxu0 0.0
      %756 = vmatpush1.xpose.msra.mxu0 0.0
      %757 = vmatprep.subr.mxu0 0.0
      %758 = vmatpush1.xpose.msra.mxu0 0.0
      %759 = vmatprep.subr.mxu0 0.0
      %760 = vmatpush1.xpose.msra.mxu0 0.0
      %761 = vmatprep.subr.mxu0 0.0
      %762 = vmatpush1.xpose.msra.mxu0 0.0
      %763 = vmatprep.subr.mxu0 0.0
      %764 = vmatpush1.xpose.msra.mxu0 0.0
      %765 = vmatprep.subr.mxu0 0.0
      %766 = vmatpush1.xpose.msra.mxu0 0.0
      %767 = vmatprep.subr.mxu0 0.0
      %768 = vmatpush1.xpose.msra.mxu0 0.0
      %769 = vmatprep.subr.mxu0 0.0
      %770 = vmatpush1.xpose.msra.mxu0 0.0
      %771 = vmatprep.subr.mxu0 0.0
      %772 = vmatpush1.xpose.msra.mxu0 0.0
      %773 = vmatprep.subr.mxu0 0.0
      %774 = vmatpush1.xpose.msra.mxu0 0.0
      %775 = vmatprep.subr.mxu0 0.0
      %776 = vmatpush1.xpose.msra.mxu0 0.0
      %777 = vmatprep.subr.mxu0 0.0
      %778 = vmatpush1.xpose.msra.mxu0 0.0
      %779 = vmatprep.subr.mxu0 0.0
      %780 = vmatpush1.xpose.msra.mxu0 0.0
      %781 = vmatprep.subr.mxu0 0.0
      %782 = vmatpush1.xpose.msra.mxu0 0.0
      %783 = vmatprep.subr.mxu0 0.0
      %784 = vmatpush1.xpose.msra.mxu0 0.0
      %785 = vmatprep.subr.mxu0 0.0
      %786 = vmatpush1.xpose.msra.mxu0 0.0
      %787 = vmatprep.subr.mxu0 0.0
      %788 = vmatpush1.xpose.msra.mxu0 0.0
      %789 = vmatprep.subr.mxu0 0.0
      %790 = vmatpush1.xpose.msra.mxu0 0.0
      %791 = vmatprep.subr.mxu0 0.0
      %792 = vmatpush1.xpose.msra.mxu0 0.0
      %793 = vmatprep.subr.mxu0 0.0
      %794 = vmatpush1.xpose.msra.mxu0 0.0
      %795 = vmatprep.subr.mxu0 0.0
      %796 = vmatpush1.xpose.msra.mxu0 0.0
      %797 = vmatprep.subr.mxu0 0.0
      %798 = vmatpush1.xpose.msra.mxu0 0.0
      %799 = vmatprep.subr.mxu0 0.0
      %800 = vmatpush1.xpose.msra.mxu0 0.0
      %801 = vmatprep.subr.mxu0 0.0
      %802 = vmatpush1.xpose.msra.mxu0 0.0
      %803 = vmatprep.subr.mxu0 0.0
      %804 = vmatpush1.xpose.msra.mxu0 0.0
      %805 = vmatprep.subr.mxu0 0.0
      %806 = vmatpush1.xpose.msra.mxu0 0.0
      %807 = vmatprep.subr.mxu0 0.0
      %808 = vmatpush1.xpose.msra.mxu0 0.0
      %809 = vmatprep.subr.mxu0 0.0
      %810 = vmatpush1.xpose.msra.mxu0 0.0
      %811 = vmatprep.subr.mxu0 0.0
      %812 = vmatpush1.xpose.msra.mxu0 0.0
      %813 = vmatprep.subr.mxu0 0.0
      %814 = vmatpush1.xpose.msra.mxu0 0.0
      %815 = vmatprep.mubr.f32.mxu0 0.0
      %816 = vmatmul.mubr.f32.gmra.mrb[0].mxu0 %v746
      %v817 = vpop.f32.mrb[0].mxu0
      %v818 = vadd.f32 0.0, %v817
      %v819 = vpop.f32.mrb[0].mxu0
      %820 = vdwg.mxu0
      %v821 = vmul.f32 %v818, 0.125
      %v822 = vadd.f32 %v821, %v391
      %v823 = vsel %vm474, %v822, -inf
      %824 = vmax.xlane.f32.xlu0 %v823
      %v825 = vpop.xlane.xlu0 %824
      %v826 = vsub.f32 %v822, %v825
      %v827 = vmul.f32 %v826, 1.442695
      %v828 = vpow.pop %v827
      %v829 = vsel %vm474, %v828, 0.0
      %830 = vadd.xlane.f32.xlu0 %v829
      %v831 = vpop.xlane.xlu0 %830
      %v832 = vrcp.pop %v831
      %v833 = vmul.f32 %v828, %v832
      %v835 = vsel %vm474, %v833, 0
      %837 = vmatprep.subr.mxu0 0.0
      %838 = vmatpush1.msra.mxu0 %v744
      %839 = vmatprep.subr.mxu0 0.0
      %840 = vmatpush1.msra.mxu0 0.0
      %841 = vmatprep.subr.mxu0 0.0
      %842 = vmatpush1.msra.mxu0 0.0
      %843 = vmatprep.subr.mxu0 0.0
      %844 = vmatpush1.msra.mxu0 0.0
      %845 = vmatprep.subr.mxu0 0.0
      %846 = vmatpush1.msra.mxu0 0.0
      %847 = vmatprep.subr.mxu0 0.0
      %848 = vmatpush1.msra.mxu0 0.0
      %849 = vmatprep.subr.mxu0 0.0
      %850 = vmatpush1.msra.mxu0 0.0
      %851 = vmatprep.subr.mxu0 0.0
      %852 = vmatpush1.msra.mxu0 0.0
      %853 = vmatprep.subr.mxu0 0.0
      %854 = vmatpush1.msra.mxu0 0.0
      %855 = vmatprep.subr.mxu0 0.0
      %856 = vmatpush1.msra.mxu0 0.0
      %857 = vmatprep.subr.mxu0 0.0
      %858 = vmatpush1.msra.mxu0 0.0
      %859 = vmatprep.subr.mxu0 0.0
      %860 = vmatpush1.msra.mxu0 0.0
      %861 = vmatprep.subr.mxu0 0.0
      %862 = vmatpush1.msra.mxu0 0.0
      %863 = vmatprep.subr.mxu0 0.0
      %864 = vmatpush1.msra.mxu0 0.0
      %865 = vmatprep.subr.mxu0 0.0
      %866 = vmatpush1.msra.mxu0 0.0
      %867 = vmatprep.subr.mxu0 0.0
      %868 = vmatpush1.msra.mxu0 0.0
      %869 = vmatprep.subr.mxu0 0.0
      %870 = vmatpush1.msra.mxu0 0.0
      %871 = vmatprep.subr.mxu0 0.0
      %872 = vmatpush1.msra.mxu0 0.0
      %873 = vmatprep.subr.mxu0 0.0
      %874 = vmatpush1.msra.mxu0 0.0
      %875 = vmatprep.subr.mxu0 0.0
      %876 = vmatpush1.msra.mxu0 0.0
      %877 = vmatprep.subr.mxu0 0.0
      %878 = vmatpush1.msra.mxu0 0.0
      %879 = vmatprep.subr.mxu0 0.0
      %880 = vmatpush1.msra.mxu0 0.0
      %881 = vmatprep.subr.mxu0 0.0
      %882 = vmatpush1.msra.mxu0 0.0
      %883 = vmatprep.subr.mxu0 0.0
      %884 = vmatpush1.msra.mxu0 0.0
      %885 = vmatprep.subr.mxu0 0.0
      %886 = vmatpush1.msra.mxu0 0.0
      %887 = vmatprep.subr.mxu0 0.0
      %888 = vmatpush1.msra.mxu0 0.0
      %889 = vmatprep.subr.mxu0 0.0
      %890 = vmatpush1.msra.mxu0 0.0
      %891 = vmatprep.subr.mxu0 0.0
      %892 = vmatpush1.msra.mxu0 0.0
      %893 = vmatprep.subr.mxu0 0.0
      %894 = vmatpush1.msra.mxu0 0.0
      %895 = vmatprep.subr.mxu0 0.0
      %896 = vmatpush1.msra.mxu0 0.0
      %897 = vmatprep.subr.mxu0 0.0
      %898 = vmatpush1.msra.mxu0 0.0
      %899 = vmatprep.subr.mxu0 0.0
      %900 = vmatpush1.msra.mxu0 0.0
      %901 = vmatprep.mubr.f32.mxu0 0.0
      %902 = vmatmul.mubr.f32.gmra.mrb[0].mxu0 %v835
      %v903 = vpop.f32.mrb[0].mxu0
      %v904 = vadd.f32 0.0, %v903
      %v905 = vpop.f32.mrb[0].mxu0
      %906 = vdwg.mxu0
      %907 = vst.msk [vmem:[%s379 + $0x8] sm:$0xff] %vm395, %v904
      %s908 = scalar_lea.vmem %s389, 16
      %909 = vst.msk [vmem:[%s908] sm:$0xff] %vm474, %v833
      %v910 = vld [vmem:[%s341 + $0x8] sm:$0xff]
      %v911 = vld [vmem:[%s352 + $0x8] sm:$0xff]
      %v912 = vld [vmem:[%s364 + $0x8] sm:$0xff]
      %914 = vrot.lane.b32.xlu0 %v910, 64
      %v915 = vpop.permute.xlu0 %914
      %917 = vrot.lane.b32.xlu0 %v911, 64
      %v918 = vpop.permute.xlu0 %917
      %v919 = vsel %vm395, %v915, 0
      %v921 = vsel %vm395, %v918, 0
      %923 = vmatprep.subr.mxu0 0.0
      %924 = vmatpush1.xpose.msra.mxu0 %v921
      %925 = vmatprep.subr.mxu0 0.0
      %926 = vmatpush1.xpose.msra.mxu0 0.0
      %927 = vmatprep.subr.mxu0 0.0
      %928 = vmatpush1.xpose.msra.mxu0 0.0
      %929 = vmatprep.subr.mxu0 0.0
      %930 = vmatpush1.xpose.msra.mxu0 0.0
      %931 = vmatprep.subr.mxu0 0.0
      %932 = vmatpush1.xpose.msra.mxu0 0.0
      %933 = vmatprep.subr.mxu0 0.0
      %934 = vmatpush1.xpose.msra.mxu0 0.0
      %935 = vmatprep.subr.mxu0 0.0
      %936 = vmatpush1.xpose.msra.mxu0 0.0
      %937 = vmatprep.subr.mxu0 0.0
      %938 = vmatpush1.xpose.msra.mxu0 0.0
      %939 = vmatprep.subr.mxu0 0.0
      %940 = vmatpush1.xpose.msra.mxu0 0.0
      %941 = vmatprep.subr.mxu0 0.0
      %942 = vmatpush1.xpose.msra.mxu0 0.0
      %943 = vmatprep.subr.mxu0 0.0
      %944 = vmatpush1.xpose.msra.mxu0 0.0
      %945 = vmatprep.subr.mxu0 0.0
      %946 = vmatpush1.xpose.msra.mxu0 0.0
      %947 = vmatprep.subr.mxu0 0.0
      %948 = vmatpush1.xpose.msra.mxu0 0.0
      %949 = vmatprep.subr.mxu0 0.0
      %950 = vmatpush1.xpose.msra.mxu0 0.0
      %951 = vmatprep.subr.mxu0 0.0
      %952 = vmatpush1.xpose.msra.mxu0 0.0
      %953 = vmatprep.subr.mxu0 0.0
      %954 = vmatpush1.xpose.msra.mxu0 0.0
      %955 = vmatprep.subr.mxu0 0.0
      %956 = vmatpush1.xpose.msra.mxu0 0.0
      %957 = vmatprep.subr.mxu0 0.0
      %958 = vmatpush1.xpose.msra.mxu0 0.0
      %959 = vmatprep.subr.mxu0 0.0
      %960 = vmatpush1.xpose.msra.mxu0 0.0
      %961 = vmatprep.subr.mxu0 0.0
      %962 = vmatpush1.xpose.msra.mxu0 0.0
      %963 = vmatprep.subr.mxu0 0.0
      %964 = vmatpush1.xpose.msra.mxu0 0.0
      %965 = vmatprep.subr.mxu0 0.0
      %966 = vmatpush1.xpose.msra.mxu0 0.0
      %967 = vmatprep.subr.mxu0 0.0
      %968 = vmatpush1.xpose.msra.mxu0 0.0
      %969 = vmatprep.subr.mxu0 0.0
      %970 = vmatpush1.xpose.msra.mxu0 0.0
      %971 = vmatprep.subr.mxu0 0.0
      %972 = vmatpush1.xpose.msra.mxu0 0.0
      %973 = vmatprep.subr.mxu0 0.0
      %974 = vmatpush1.xpose.msra.mxu0 0.0
      %975 = vmatprep.subr.mxu0 0.0
      %976 = vmatpush1.xpose.msra.mxu0 0.0
      %977 = vmatprep.subr.mxu0 0.0
      %978 = vmatpush1.xpose.msra.mxu0 0.0
      %979 = vmatprep.subr.mxu0 0.0
      %980 = vmatpush1.xpose.msra.mxu0 0.0
      %981 = vmatprep.subr.mxu0 0.0
      %982 = vmatpush1.xpose.msra.mxu0 0.0
      %983 = vmatprep.subr.mxu0 0.0
      %984 = vmatpush1.xpose.msra.mxu0 0.0
      %985 = vmatprep.subr.mxu0 0.0
      %986 = vmatpush1.xpose.msra.mxu0 0.0
      %987 = vmatprep.mubr.f32.mxu0 0.0
      %988 = vmatmul.mubr.f32.gmra.mrb[0].mxu0 %v919
      %v989 = vpop.f32.mrb[0].mxu0
      %v990 = vadd.f32 0.0, %v989
      %v991 = vpop.f32.mrb[0].mxu0
      %992 = vdwg.mxu0
      %v993 = vmul.f32 %v990, 0.125
      %v994 = vadd.f32 %v993, %v391
      %v995 = vsel %vm474, %v994, -inf
      %996 = vmax.xlane.f32.xlu0 %v995
      %v997 = vpop.xlane.xlu0 %996
      %v998 = vsub.f32 %v994, %v997
      %v999 = vmul.f32 %v998, 1.442695
      %v1000 = vpow.pop %v999
      %v1001 = vsel %vm474, %v1000, 0.0
      %1002 = vadd.xlane.f32.xlu0 %v1001
      %v1003 = vpop.xlane.xlu0 %1002
      %v1004 = vrcp.pop %v1003
      %v1005 = vmul.f32 %v1000, %v1004
      %1007 = vrot.lane.b32.xlu0 %v912, 64
      %v1008 = vpop.permute.xlu0 %1007
      %v1011 = vsel %vm474, %v1005, 0
      %1013 = vmatprep.subr.mxu0 0.0
      %1014 = vmatpush1.msra.mxu0 %v1008
      %1015 = vmatprep.subr.mxu0 0.0
      %1016 = vmatpush1.msra.mxu0 0.0
      %1017 = vmatprep.subr.mxu0 0.0
      %1018 = vmatpush1.msra.mxu0 0.0
      %1019 = vmatprep.subr.mxu0 0.0
      %1020 = vmatpush1.msra.mxu0 0.0
      %1021 = vmatprep.subr.mxu0 0.0
      %1022 = vmatpush1.msra.mxu0 0.0
      %1023 = vmatprep.subr.mxu0 0.0
      %1024 = vmatpush1.msra.mxu0 0.0
      %1025 = vmatprep.subr.mxu0 0.0
      %1026 = vmatpush1.msra.mxu0 0.0
      %1027 = vmatprep.subr.mxu0 0.0
      %1028 = vmatpush1.msra.mxu0 0.0
      %1029 = vmatprep.subr.mxu0 0.0
      %1030 = vmatpush1.msra.mxu0 0.0
      %1031 = vmatprep.subr.mxu0 0.0
      %1032 = vmatpush1.msra.mxu0 0.0
      %1033 = vmatprep.subr.mxu0 0.0
      %1034 = vmatpush1.msra.mxu0 0.0
      %1035 = vmatprep.subr.mxu0 0.0
      %1036 = vmatpush1.msra.mxu0 0.0
      %1037 = vmatprep.subr.mxu0 0.0
      %1038 = vmatpush1.msra.mxu0 0.0
      %1039 = vmatprep.subr.mxu0 0.0
      %1040 = vmatpush1.msra.mxu0 0.0
      %1041 = vmatprep.subr.mxu0 0.0
      %1042 = vmatpush1.msra.mxu0 0.0
      %1043 = vmatprep.subr.mxu0 0.0
      %1044 = vmatpush1.msra.mxu0 0.0
      %1045 = vmatprep.subr.mxu0 0.0
      %1046 = vmatpush1.msra.mxu0 0.0
      %1047 = vmatprep.subr.mxu0 0.0
      %1048 = vmatpush1.msra.mxu0 0.0
      %1049 = vmatprep.subr.mxu0 0.0
      %1050 = vmatpush1.msra.mxu0 0.0
      %1051 = vmatprep.subr.mxu0 0.0
      %1052 = vmatpush1.msra.mxu0 0.0
      %1053 = vmatprep.subr.mxu0 0.0
      %1054 = vmatpush1.msra.mxu0 0.0
      %1055 = vmatprep.subr.mxu0 0.0
      %1056 = vmatpush1.msra.mxu0 0.0
      %1057 = vmatprep.subr.mxu0 0.0
      %1058 = vmatpush1.msra.mxu0 0.0
      %1059 = vmatprep.subr.mxu0 0.0
      %1060 = vmatpush1.msra.mxu0 0.0
      %1061 = vmatprep.subr.mxu0 0.0
      %1062 = vmatpush1.msra.mxu0 0.0
      %1063 = vmatprep.subr.mxu0 0.0
      %1064 = vmatpush1.msra.mxu0 0.0
      %1065 = vmatprep.subr.mxu0 0.0
      %1066 = vmatpush1.msra.mxu0 0.0
      %1067 = vmatprep.subr.mxu0 0.0
      %1068 = vmatpush1.msra.mxu0 0.0
      %1069 = vmatprep.subr.mxu0 0.0
      %1070 = vmatpush1.msra.mxu0 0.0
      %1071 = vmatprep.subr.mxu0 0.0
      %1072 = vmatpush1.msra.mxu0 0.0
      %1073 = vmatprep.subr.mxu0 0.0
      %1074 = vmatpush1.msra.mxu0 0.0
      %1075 = vmatprep.subr.mxu0 0.0
      %1076 = vmatpush1.msra.mxu0 0.0
      %1077 = vmatprep.mubr.f32.mxu0 0.0
      %1078 = vmatmul.mubr.f32.gmra.mrb[0].mxu0 %v1011
      %v1079 = vpop.f32.mrb[0].mxu0
      %v1080 = vadd.f32 0.0, %v1079
      %v1081 = vpop.f32.mrb[0].mxu0
      %1082 = vdwg.mxu0
      %1084 = vrot.lane.b32.xlu0 %v1080, 64
      %v1085 = vpop.permute.xlu0 %1084
      %1087 = vst.msk [vmem:[%s379 + $0x8] sm:$0xff] %vm738, %v1085
      %s1088 = scalar_lea.vmem %s389, 24
      %1089 = vst.msk [vmem:[%s1088] sm:$0xff] %vm474, %v1005
      %s1090 = smul.u32 2, %s22
      %p1091 = scmp.lt.s32.totalorder %s21, 1
      %s1092 = scalar_select %p1091, %s21, 1
      %p1093 = scmp.lt.s32.totalorder %s1090, 5
      %s1094 = scalar_select %p1093, %s1090, 5
      %s1095 = smul.addr %s1092, 6
      %s1096 = sadd.s32 %s1094, %s1095
      %s1097 = smul.addr %s1096, 8
      %s1098 = scalar_lea.vmem %s4, %s1097
      %s1099 = smul.u32 4, %s22
      %p1100 = scmp.lt.s32.totalorder %s21, 1
      %s1101 = scalar_select %p1100, %s21, 1
      %p1102 = scmp.lt.s32.totalorder %s1099, 11
      %s1103 = scalar_select %p1102, %s1099, 11
      %s1104 = smul.addr %s1101, 12
      %s1105 = sadd.s32 %s1103, %s1104
      %s1106 = smul.addr %s1105, 8
      %s1107 = scalar_lea.vmem %s5, %s1106
      // Predicated region
      $region37: #{encoder_layer.5} parent=35 // pred_check
        %p1108 = pneg %p163
      $region38: #{encoder_layer.5} parent=35 // pred_check_branch
        %1110 = sbr.rel (%p1108) target = $region40
      $region39: #{encoder_layer.5} parent=35 // pred_region
        %s1111 = smul.u32 2, %s22
      $region40: #{encoder_layer.5} parent=35 // pred_fallthru
        _
      // Predicated region
      $region41: #{encoder_layer.5} parent=35 // pred_check
        %p1112 = pneg %p191
      $region42: #{encoder_layer.5} parent=35 // pred_check_branch
        %1114 = sbr.rel (%p1112) target = $region44
      $region43: #{encoder_layer.5} parent=35 // pred_region
        %s1115 = smul.u32 4, %s22
      $region44: #{encoder_layer.5} parent=35 // pred_fallthru
        _
    $region36: #{encoder_layer.5} parent=5 // pred_fallthru
      _
    %p1116 = scmp.le.s32.totalorder 2, %s12
    // Predicated region
    $region45: #{encoder_layer.5} parent=5 // pred_check
      %p1117 = pneg %p1116
    $region46: #{encoder_layer.5} parent=5 // pred_check_branch
      %1119 = sbr.rel (%p1117) target = $region48
    $region47: #{encoder_layer.5} parent=5 // pred_region
      %s1120 = ssub.s32 %s12, 2
      // Predicated region
      $region49: #{encoder_layer.5} parent=47 // pred_check
        %p1121 = pneg %p169
      $region50: #{encoder_layer.5} parent=47 // pred_check_branch
        %1123 = sbr.rel (%p1121) target = $region52
      $region51: #{encoder_layer.5} parent=47 // pred_region
        %s1124 = smul.u32 2, %s24
        %p1125 = scmp.lt.s32.totalorder %s23, 1
        %s1126 = scalar_select %p1125, %s23, 1
        %p1127 = scmp.lt.s32.totalorder %s1124, 5
        %s1128 = scalar_select %p1127, %s1124, 5
        %s1129 = smul.addr %s1126, 6
        %s1130 = sadd.s32 %s1128, %s1129
        %s1131 = smul.addr %s1130, 8
        %s1132 = scalar_lea.vmem %s4, %s1131
      $region52: #{encoder_layer.5} parent=47 // pred_fallthru
        _
      // Predicated region
      $region53: #{encoder_layer.5} parent=47 // pred_check
        %p1133 = pneg %p197
      $region54: #{encoder_layer.5} parent=47 // pred_check_branch
        %1135 = sbr.rel (%p1133) target = $region56
      $region55: #{encoder_layer.5} parent=47 // pred_region
        %s1136 = smul.u32 4, %s24
        %p1137 = scmp.lt.s32.totalorder %s23, 1
        %s1138 = scalar_select %p1137, %s23, 1
        %p1139 = scmp.lt.s32.totalorder %s1136, 11
        %s1140 = scalar_select %p1139, %s1136, 11
        %s1141 = smul.addr %s1138, 12
        %s1142 = sadd.s32 %s1140, %s1141
        %s1143 = smul.addr %s1142, 8
        %s1144 = scalar_lea.vmem %s5, %s1143
      $region56: #{encoder_layer.5} parent=47 // pred_fallthru
        _
    $region48: #{encoder_layer.5} parent=5 // pred_fallthru
      _
  $region6: #{encoder_layer.5} parent=0 // loop_footer
    %s16 = sadd.s32 1, %s12
  $region7: #{encoder_layer.5} parent=0 // loop_footer_branch
    %11 = sbr.rel target = $region3
  $region8: #{encoder_layer.5} parent=0 // loop_exit
    _

// kernel: encoder_layer.4
$region0: #{encoder_layer.4}
  #allocation0 [shape = 'u32[]', space=smem, size = 0x4, offset = 0x4, fixed_abs, tag = 'smem constant byte address 0x4 - core index']
  #allocation1 [shape = 'u32[144,128]{1,0:T(1,128)}', space=vmem, size = 0x12000, scoped, tag = 'internal scratch']
  %s0 = inlined_call_operand.hbm [shape: f32[16,768], index: 0, kind: input, shape index: {}]
  %s1 = inlined_call_operand.hbm [shape: f32[768,2304], index: 1, kind: input, shape index: {}]
  %s2 = inlined_call_operand.vmem [shape: f32[1,2304], index: 2, kind: input, shape index: {}]
  %s3 = inlined_call_operand.vmem [shape: f32[16,2304], index: 3, kind: output, shape index: {}]
  %s4 = sld [smem:[#allocation0]]
  $region72: #{encoder_layer.4} parent=0
    _
  %s6 = ssub.s32 1, %s4
  %s7 = scalar_select 0, %s6, %s4
  $region1: #{encoder_layer.4} parent=0
    #allocation2 [shape = 'u8[49152]{0}', space=vmem, size = 0xc000, scoped, tag = 'input window, operand 0, single buffered']
    #allocation3 [shape = 's32[2]{0}', space=sflag, size = 0x8, scoped, tag = 'scoped memory for encoder_layer.4']
    #allocation4 [shape = 'u8[4718592]{0}', space=vmem, size = 0x480000, scoped, tag = 'input window, operand 1']
    #allocation5 [shape = 's32[2]{0}', space=sflag, size = 0x8, scoped, tag = 'scoped memory for encoder_layer.4']
    #allocation6 [shape = 'u8[98304]{0}', space=vmem, size = 0x18000, scoped, tag = 'output window, operand 0']
    %8 = vsyncpa [#allocation3], 0
    %9 = vsyncpa [#allocation5], 0
    %s10 = scalar_lea.sflag [#allocation5], 1
    %11 = vsyncpa %s10, 0
    loop: start=0, step=1, limit=5
    $region2: #{encoder_layer.4} parent=1 // loop_pre_header
      _
    $region3: #{encoder_layer.4} parent=1 // loop_header
      %s13 = sphi 0, %s17
      %p14 = scmp.ge.s32.totalorder %s13, 5
      %s20 = sphi 0, %s32
      %s21 = sphi 0, %s28
      %s22 = sphi 0, %s20
      %s23 = sphi 0, %s21
      %s24 = sphi 0, %s22
      %s25 = sphi 0, %s23
      %s35 = sphi 0, %s37
      %s38 = sphi 0, %s35
      %s39 = sphi 0, %s38
      %s55 = sphi 0, %s39
      %s61 = sphi 0, %s63
      %s64 = sphi 0, %s61
      %s65 = sphi 0, %s64
      %s81 = sphi 0, %s65
      %s87 = sphi 0, %s89
      %s90 = sphi 0, %s87
      %s91 = sphi 0, %s90
      %s107 = sphi 0, %s91
      %s115 = sphi 0, %s117
      %s118 = sphi 0, %s115
      %s119 = sphi 0, %s118
      %s135 = sphi 0, %s119
    $region4: #{encoder_layer.4} parent=1 // loop_header_branch
      %16 = sbr.rel (%p14) target = $region8
    $region5: #{encoder_layer.4} parent=1 // loop_body
      %s18 = ssub.s32 %s13, 1
      %s19 = ssub.s32 %s13, 2
      %s26 = sadd.s32 1, %s21
      %p27 = scmp.ge.s32.totalorder %s26, 3
      %s28 = scalar_select %p27, 0, %s26
      %s29 = sadd.s32 1, %s20
      %s30 = scalar_select %p27, %s29, %s20
      %p31 = scmp.ge.s32.totalorder %s30, 1
      %s32 = scalar_select %p31, 0, %s30
      %s33 = ssub.s32 %s20, %s32
      %p34 = scmp.eq.s32.totalorder %s33, 0
      %s36 = sadd.s32 %s35, 1
      %s37 = scalar_select %p34, %s35, %s36
      %p40 = pneg %p34
      %p41 = scmp.eq.s32.totalorder %s13, 2
      %p42 = por %p40, %p41
      %p43 = scmp.ne.s32.totalorder %s35, %s38
      %p44 = scmp.eq.s32.totalorder %s13, 0
      %p45 = por %p43, %p44
      %p46 = scmp.ne.s32.totalorder %s35, %s38
      %p47 = scmp.eq.s32.totalorder %s18, 2
      %p48 = por %p46, %p47
      %p49 = scmp.ne.s32.totalorder %s38, %s39
      %p50 = scmp.eq.s32.totalorder %s18, 0
      %p51 = por %p49, %p50
      %p52 = scmp.ne.s32.totalorder %s38, %s39
      %p53 = scmp.eq.s32.totalorder %s19, 2
      %p54 = por %p52, %p53
      %p56 = scmp.ne.s32.totalorder %s39, %s55
      %p57 = scmp.eq.s32.totalorder %s19, 0
      %p58 = por %p56, %p57
      %s59 = ssub.s32 %s21, %s28
      %p60 = scmp.eq.s32.totalorder %s59, 0
      %s62 = sadd.s32 %s61, 1
      %s63 = scalar_select %p60, %s61, %s62
      %p66 = pneg %p60
      %p67 = scmp.eq.s32.totalorder %s13, 2
      %p68 = por %p66, %p67
      %p69 = scmp.ne.s32.totalorder %s61, %s64
      %p70 = scmp.eq.s32.totalorder %s13, 0
      %p71 = por %p69, %p70
      %p72 = scmp.ne.s32.totalorder %s61, %s64
      %p73 = scmp.eq.s32.totalorder %s18, 2
      %p74 = por %p72, %p73
      %p75 = scmp.ne.s32.totalorder %s64, %s65
      %p76 = scmp.eq.s32.totalorder %s18, 0
      %p77 = por %p75, %p76
      %p78 = scmp.ne.s32.totalorder %s64, %s65
      %p79 = scmp.eq.s32.totalorder %s19, 2
      %p80 = por %p78, %p79
      %p82 = scmp.ne.s32.totalorder %s65, %s81
      %p83 = scmp.eq.s32.totalorder %s19, 0
      %p84 = por %p82, %p83
      %s85 = ssub.s32 %s21, %s28
      %p86 = scmp.eq.s32.totalorder %s85, 0
      %s88 = sadd.s32 %s87, 1
      %s89 = scalar_select %p86, %s87, %s88
      %p92 = pneg %p86
      %p93 = scmp.eq.s32.totalorder %s13, 2
      %p94 = por %p92, %p93
      %p95 = scmp.ne.s32.totalorder %s87, %s90
      %p96 = scmp.eq.s32.totalorder %s13, 0
      %p97 = por %p95, %p96
      %p98 = scmp.ne.s32.totalorder %s87, %s90
      %p99 = scmp.eq.s32.totalorder %s18, 2
      %p100 = por %p98, %p99
      %p101 = scmp.ne.s32.totalorder %s90, %s91
      %p102 = scmp.eq.s32.totalorder %s18, 0
      %p103 = por %p101, %p102
      %p104 = scmp.ne.s32.totalorder %s90, %s91
      %p105 = scmp.eq.s32.totalorder %s19, 2
      %p106 = por %p104, %p105
      %p108 = scmp.ne.s32.totalorder %s91, %s107
      %p109 = scmp.eq.s32.totalorder %s19, 0
      %p110 = por %p108, %p109
      %s111 = ssub.s32 %s20, %s32
      %s112 = ssub.s32 %s21, %s28
      %s113 = sor.u32 %s111, %s112
      %p114 = scmp.eq.s32.totalorder %s113, 0
      %s116 = sadd.s32 %s115, 1
      %s117 = scalar_select %p114, %s115, %s116
      %p120 = pneg %p114
      %p121 = scmp.eq.s32.totalorder %s13, 2
      %p122 = por %p120, %p121
      %p123 = scmp.ne.s32.totalorder %s115, %s118
      %p124 = scmp.eq.s32.totalorder %s13, 0
      %p125 = por %p123, %p124
      %p126 = scmp.ne.s32.totalorder %s115, %s118
      %p127 = scmp.eq.s32.totalorder %s18, 2
      %p128 = por %p126, %p127
      %p129 = scmp.ne.s32.totalorder %s118, %s119
      %p130 = scmp.eq.s32.totalorder %s18, 0
      %p131 = por %p129, %p130
      %p132 = scmp.ne.s32.totalorder %s118, %s119
      %p133 = scmp.eq.s32.totalorder %s19, 2
      %p134 = por %p132, %p133
      %p136 = scmp.ne.s32.totalorder %s119, %s135
      %p137 = scmp.eq.s32.totalorder %s19, 0
      %p138 = por %p136, %p137
      %p139 = scmp.le.s32.totalorder 1, %s13
      %p140 = scmp.lt.s32.totalorder %s13, 4
      %p141 = pnand %p139, %p140
      %p142 = pneg %p141
      // Predicated region
      $region9: #{encoder_layer.4} parent=5 // pred_check
        _
      $region10: #{encoder_layer.4} parent=5 // pred_check_branch
        %144 = sbr.rel (%p141) target = $region12
      $region11: #{encoder_layer.4} parent=5 // pred_region
        %s145 = ssub.s32 %s13, 1
        // Predicated region
        $region13: #{encoder_layer.4} parent=11 // pred_check
          %p146 = pneg %p51
        $region14: #{encoder_layer.4} parent=11 // pred_check_branch
          %148 = sbr.rel (%p146) target = $region16
        $region15: #{encoder_layer.4} parent=11 // pred_region
          %s149 = smul.u32 2, %s22
          %s151 = ssub.s32 1536, 1536
          %152 = vsyncadd [#allocation3], %s151
          %s153 = smul.addr %s149, 6
          %s154 = smul.addr %s153, 128
          %s155 = scalar_lea.hbm %s0, %s154
          %s156 = sshll.u32 [#allocation2], 4
          %s157 = int_to_ptr.vmem [resolvable:$true] %s156
          %162 = dma.hbm_to_vmem [thread:$0]  %s155, 1536, %s157, [#allocation3], 768, 768, 48
        $region16: #{encoder_layer.4} parent=11 // pred_fallthru
          _
      $region12: #{encoder_layer.4} parent=5 // pred_fallthru
        _
      %p163 = scmp.lt.s32.totalorder %s13, 3
      // Predicated region
      $region17: #{encoder_layer.4} parent=5 // pred_check
        %p164 = pneg %p163
      $region18: #{encoder_layer.4} parent=5 // pred_check_branch
        %166 = sbr.rel (%p164) target = $region20
      $region19: #{encoder_layer.4} parent=5 // pred_region
        // Predicated region
        $region21: #{encoder_layer.4} parent=19 // pred_check
          %p167 = pneg %p71
        $region22: #{encoder_layer.4} parent=19 // pred_check_branch
          %169 = sbr.rel (%p167) target = $region24
        $region23: #{encoder_layer.4} parent=19 // pred_region
          %s170 = sand.u32 %s61, 1
          %s171 = scalar_lea.sflag [#allocation5], %s170
          %s172 = sand.u32 %s61, 1
          %s173 = smul.addr %s172, 4608
          %s174 = scalar_lea.vmem [#allocation4], %s173
          %s175 = smul.u32 6, %s21
          %s177 = ssub.s32 73728, 73728
          %178 = vsyncadd %s171, %s177
          %s179 = smul.addr %s175, 128
          %s180 = scalar_lea.hbm %s1, %s179
          %s181 = sshll.u32 %s174, 4
          %s182 = int_to_ptr.vmem [resolvable:$true] %s181
          %187 = dma.hbm_to_vmem [thread:$0]  %s180, 73728, %s182, %s171, 2304, 768, 48
        $region24: #{encoder_layer.4} parent=19 // pred_fallthru
          _
        // Predicated region
        $region25: #{encoder_layer.4} parent=19 // pred_check
          %p188 = pneg %p97
        $region26: #{encoder_layer.4} parent=19 // pred_check_branch
          %190 = sbr.rel (%p188) target = $region28
        $region27: #{encoder_layer.4} parent=19 // pred_region
          %s191 = smul.u32 6, %s21
          %p192 = scmp.lt.s32.totalorder %s191, 17
          %s193 = scalar_select %p192, %s191, 17
          %s194 = scalar_lea.vmem %s2, %s193
          %s195 = smul.u32 6, %s21
        $region28: #{encoder_layer.4} parent=19 // pred_fallthru
          _
      $region20: #{encoder_layer.4} parent=5 // pred_fallthru
        _
      %p196 = scmp.le.s32.totalorder 1, %s13
      %p197 = scmp.lt.s32.totalorder %s13, 4
      %p198 = pnand %p196, %p197
      %p199 = pneg %p198
      // Predicated region
      $region29: #{encoder_layer.4} parent=5 // pred_check
        _
      $region30: #{encoder_layer.4} parent=5 // pred_check_branch
        %201 = sbr.rel (%p198) target = $region32
      $region31: #{encoder_layer.4} parent=5 // pred_region
        %s202 = ssub.s32 %s13, 1
        // Predicated region
        $region33: #{encoder_layer.4} parent=31 // pred_check
          %p203 = pneg %p51
        $region34: #{encoder_layer.4} parent=31 // pred_check_branch
          %205 = sbr.rel (%p203) target = $region36
        $region35: #{encoder_layer.4} parent=31 // pred_region
          %206 = dma.done [#allocation3], 1536
        $region36: #{encoder_layer.4} parent=31 // pred_fallthru
          _
        %s207 = sand.u32 %s64, 1
        %s208 = scalar_lea.sflag [#allocation5], %s207
        %s209 = sand.u32 %s64, 1
        %s210 = smul.addr %s209, 4608
        %s211 = scalar_lea.vmem [#allocation4], %s210
        // Predicated region
        $region37: #{encoder_layer.4} parent=31 // pred_check
          %p212 = pneg %p77
        $region38: #{encoder_layer.4} parent=31 // pred_check_branch
          %214 = sbr.rel (%p212) target = $region40
        $region39: #{encoder_layer.4} parent=31 // pred_region
          %215 = dma.done %s208, 73728
        $region40: #{encoder_layer.4} parent=31 // pred_fallthru
          _
        %p216 = pneg %p51
        %p217 = pneg %p48
        %s218 = sand.u32 %s64, 1
        %s219 = scalar_lea.sflag [#allocation5], %s218
        %s220 = sand.u32 %s64, 1
        %s221 = smul.addr %s220, 4608
        %s222 = scalar_lea.vmem [#allocation4], %s221
        %p223 = pneg %p77
        %p224 = pneg %p74
        %s225 = smul.u32 6, %s23
        %p226 = scmp.lt.s32.totalorder %s225, 17
        %s227 = scalar_select %p226, %s225, 17
        %s228 = scalar_lea.vmem %s2, %s227
        %p229 = pneg %p103
        %p230 = pneg %p100
        %p231 = pneg %p131
        %p232 = pneg %p128
        %s233 = sand.u32 %s118, 1
        %s234 = sand.u32 %s118, 1
        %s235 = smul.addr %s234, 96
        %s236 = scalar_lea.vmem [#allocation6], %s235
        %s237 = smul.u32 2, %s22
        %s238 = smul.u32 6, %s23
        %s239 = smul.u32 6, %s23
        %p240 = scmp.lt.s32.totalorder %s239, 17
        %s241 = scalar_select %p240, %s239, 17
        %s242 = scalar_lea.vmem %s2, %s241
        %s243 = smul.u32 6, %s23
        %s244 = smul.u32 2, %s22
        %s245 = smul.u32 6, %s23
        %v246 = vld [vmem:[#allocation2] sm:$0xff]
        %v247 = vld [vmem:[#allocation2 + $0x8] sm:$0xff]
        %v248 = vld [vmem:[#allocation2 + $0x10] sm:$0xff]
        %v249 = vld [vmem:[#allocation2 + $0x18] sm:$0xff]
        %v250 = vld [vmem:[#allocation2 + $0x20] sm:$0xff]
        %v251 = vld [vmem:[#allocation2 + $0x28] sm:$0xff]
        %v252 = vld [vmem:[#allocation2 + $0x30] sm:$0xff]
        %v253 = vld [vmem:[#allocation2 + $0x38] sm:$0xff]
        %v254 = vld [vmem:[#allocation2 + $0x40] sm:$0xff]
        %v255 = vld [vmem:[#allocation2 + $0x48] sm:$0xff]
        %v256 = vld [vmem:[#allocation2 + $0x50] sm:$0xff]
        %v257 = vld [vmem:[#allocation2 + $0x58] sm:$0xff]
        %v258 = vld [vmem:[%s211] sm:$0xff]
        %v259 = vld [vmem:[%s211 + $0x8] sm:$0xff]
        %v260 = vld [vmem:[%s211 + $0x10] sm:$0xff]
        %v261 = vld [vmem:[%s211 + $0x18] sm:$0xff]
        %v262 = vld [vmem:[%s211 + $0x20] sm:$0xff]
        %v263 = vld [vmem:[%s211 + $0x28] sm:$0xff]
        %v264 = vld [vmem:[%s211 + $0x30] sm:$0xff]
        %v265 = vld [vmem:[%s211 + $0x38] sm:$0xff]
        %v266 = vld [vmem:[%s211 + $0x40] sm:$0xff]
        %v267 = vld [vmem:[%s211 + $0x48] sm:$0xff]
        %v268 = vld [vmem:[%s211 + $0x50] sm:$0xff]
        %v269 = vld [vmem:[%s211 + $0x58] sm:$0xff]
        %v270 = vld [vmem:[%s211 + $0x60] sm:$0xff]
        %v271 = vld [vmem:[%s211 + $0x68] sm:$0xff]
        %v272 = vld [vmem:[%s211 + $0x70] sm:$0xff]
        %v273 = vld [vmem:[%s211 + $0x78] sm:$0xff]
        %v274 = vld [vmem:[%s211 + $0x80] sm:$0xff]
        %v275 = vld [vmem:[%s211 + $0x88] sm:$0xff]
        %v276 = vld [vmem:[%s211 + $0x90] sm:$0xff]
        %v277 = vld [vmem:[%s211 + $0x98] sm:$0xff]
        %v278 = vld [vmem:[%s211 + $0xa0] sm:$0xff]
        %v279 = vld [vmem:[%s211 + $0xa8] sm:$0xff]
        %v280 = vld [vmem:[%s211 + $0xb0] sm:$0xff]
        %v281 = vld [vmem:[%s211 + $0xb8] sm:$0xff]
        %v282 = vld [vmem:[%s211 + $0xc0] sm:$0xff]
        %v283 = vld [vmem:[%s211 + $0xc8] sm:$0xff]
        %v284 = vld [vmem:[%s211 + $0xd0] sm:$0xff]
        %v285 = vld [vmem:[%s211 + $0xd8] sm:$0xff]
        %v286 = vld [vmem:[%s211 + $0xe0] sm:$0xff]
        %v287 = vld [vmem:[%s211 + $0xe8] sm:$0xff]
        %v288 = vld [vmem:[%s211 + $0xf0] sm:$0xff]
        %v289 = vld [vmem:[%s211 + $0xf8] sm:$0xff]
        %v290 = vld [vmem:[%s211 + $0x100] sm:$0xff]
        %v291 = vld [vmem:[%s211 + $0x108] sm:$0xff]
        %v292 = vld [vmem:[%s211 + $0x110] sm:$0xff]
        %v293 = vld [vmem:[%s211 + $0x118] sm:$0xff]
        %v294 = vld [vmem:[%s211 + $0x120] sm:$0xff]
        %v295 = vld [vmem:[%s211 + $0x128] sm:$0xff]
        %v296 = vld [vmem:[%s211 + $0x130] sm:$0xff]
        %v297 = vld [vmem:[%s211 + $0x138] sm:$0xff]
        %v298 = vld [vmem:[%s211 + $0x140] sm:$0xff]
        %v299 = vld [vmem:[%s211 + $0x148] sm:$0xff]
        %v300 = vld [vmem:[%s211 + $0x150] sm:$0xff]
        %v301 = vld [vmem:[%s211 + $0x158] sm:$0xff]
        %v302 = vld [vmem:[%s211 + $0x160] sm:$0xff]
        %v303 = vld [vmem:[%s211 + $0x168] sm:$0xff]
        %v304 = vld [vmem:[%s211 + $0x170] sm:$0xff]
        %v305 = vld [vmem:[%s211 + $0x178] sm:$0xff]
        %v306 = vld [vmem:[%s211 + $0x180] sm:$0xff]
        %v307 = vld [vmem:[%s211 + $0x188] sm:$0xff]
        %v308 = vld [vmem:[%s211 + $0x190] sm:$0xff]
        %v309 = vld [vmem:[%s211 + $0x198] sm:$0xff]
        %v310 = vld [vmem:[%s211 + $0x1a0] sm:$0xff]
        %v311 = vld [vmem:[%s211 + $0x1a8] sm:$0xff]
        %v312 = vld [vmem:[%s211 + $0x1b0] sm:$0xff]
        %v313 = vld [vmem:[%s211 + $0x1b8] sm:$0xff]
        %v314 = vld [vmem:[%s211 + $0x1c0] sm:$0xff]
        %v315 = vld [vmem:[%s211 + $0x1c8] sm:$0xff]
        %v316 = vld [vmem:[%s211 + $0x1d0] sm:$0xff]
        %v317 = vld [vmem:[%s211 + $0x1d8] sm:$0xff]
        %v318 = vld [vmem:[%s211 + $0x1e0] sm:$0xff]
        %v319 = vld [vmem:[%s211 + $0x1e8] sm:$0xff]
        %v320 = vld [vmem:[%s211 + $0x1f0] sm:$0xff]
        %v321 = vld [vmem:[%s211 + $0x1f8] sm:$0xff]
        %v322 = vld [vmem:[%s211 + $0x200] sm:$0xff]
        %v323 = vld [vmem:[%s211 + $0x208] sm:$0xff]
        %v324 = vld [vmem:[%s211 + $0x210] sm:$0xff]
        %v325 = vld [vmem:[%s211 + $0x218] sm:$0xff]
        %v326 = vld [vmem:[%s211 + $0x220] sm:$0xff]
        %v327 = vld [vmem:[%s211 + $0x228] sm:$0xff]
        %v328 = vld [vmem:[%s211 + $0x230] sm:$0xff]
        %v329 = vld [vmem:[%s211 + $0x238] sm:$0xff]
        %v330 = vld [vmem:[%s211 + $0x240] sm:$0xff]
        %v331 = vld [vmem:[%s211 + $0x248] sm:$0xff]
        %v332 = vld [vmem:[%s211 + $0x250] sm:$0xff]
        %v333 = vld [vmem:[%s211 + $0x258] sm:$0xff]
        %v334 = vld [vmem:[%s211 + $0x260] sm:$0xff]
        %v335 = vld [vmem:[%s211 + $0x268] sm:$0xff]
        %v336 = vld [vmem:[%s211 + $0x270] sm:$0xff]
        %v337 = vld [vmem:[%s211 + $0x278] sm:$0xff]
        %v338 = vld [vmem:[%s211 + $0x280] sm:$0xff]
        %v339 = vld [vmem:[%s211 + $0x288] sm:$0xff]
        %v340 = vld [vmem:[%s211 + $0x290] sm:$0xff]
        %v341 = vld [vmem:[%s211 + $0x298] sm:$0xff]
        %v342 = vld [vmem:[%s211 + $0x2a0] sm:$0xff]
        %v343 = vld [vmem:[%s211 + $0x2a8] sm:$0xff]
        %v344 = vld [vmem:[%s211 + $0x2b0] sm:$0xff]
        %v345 = vld [vmem:[%s211 + $0x2b8] sm:$0xff]
        %v346 = vld [vmem:[%s211 + $0x2c0] sm:$0xff]
        %v347 = vld [vmem:[%s211 + $0x2c8] sm:$0xff]
        %v348 = vld [vmem:[%s211 + $0x2d0] sm:$0xff]
        %v349 = vld [vmem:[%s211 + $0x2d8] sm:$0xff]
        %v350 = vld [vmem:[%s211 + $0x2e0] sm:$0xff]
        %v351 = vld [vmem:[%s211 + $0x2e8] sm:$0xff]
        %v352 = vld [vmem:[%s211 + $0x2f0] sm:$0xff]
        %v353 = vld [vmem:[%s211 + $0x2f8] sm:$0xff]
        %v354 = vld [vmem:[%s211 + $0x300] sm:$0xff]
        %v355 = vld [vmem:[%s211 + $0x308] sm:$0xff]
        %v356 = vld [vmem:[%s211 + $0x310] sm:$0xff]
        %v357 = vld [vmem:[%s211 + $0x318] sm:$0xff]
        %v358 = vld [vmem:[%s211 + $0x320] sm:$0xff]
        %v359 = vld [vmem:[%s211 + $0x328] sm:$0xff]
        %v360 = vld [vmem:[%s211 + $0x330] sm:$0xff]
        %v361 = vld [vmem:[%s211 + $0x338] sm:$0xff]
        %v362 = vld [vmem:[%s211 + $0x340] sm:$0xff]
        %v363 = vld [vmem:[%s211 + $0x348] sm:$0xff]
        %v364 = vld [vmem:[%s211 + $0x350] sm:$0xff]
        %v365 = vld [vmem:[%s211 + $0x358] sm:$0xff]
        %v366 = vld [vmem:[%s211 + $0x360] sm:$0xff]
        %v367 = vld [vmem:[%s211 + $0x368] sm:$0xff]
        %v368 = vld [vmem:[%s211 + $0x370] sm:$0xff]
        %v369 = vld [vmem:[%s211 + $0x378] sm:$0xff]
        %v370 = vld [vmem:[%s211 + $0x380] sm:$0xff]
        %v371 = vld [vmem:[%s211 + $0x388] sm:$0xff]
        %v372 = vld [vmem:[%s211 + $0x390] sm:$0xff]
        %v373 = vld [vmem:[%s211 + $0x398] sm:$0xff]
        %v374 = vld [vmem:[%s211 + $0x3a0] sm:$0xff]
        %v375 = vld [vmem:[%s211 + $0x3a8] sm:$0xff]
        %v376 = vld [vmem:[%s211 + $0x3b0] sm:$0xff]
        %v377 = vld [vmem:[%s211 + $0x3b8] sm:$0xff]
        %v378 = vld [vmem:[%s211 + $0x3c0] sm:$0xff]
        %v379 = vld [vmem:[%s211 + $0x3c8] sm:$0xff]
        %v380 = vld [vmem:[%s211 + $0x3d0] sm:$0xff]
        %v381 = vld [vmem:[%s211 + $0x3d8] sm:$0xff]
        %v382 = vld [vmem:[%s211 + $0x3e0] sm:$0xff]
        %v383 = vld [vmem:[%s211 + $0x3e8] sm:$0xff]
        %v384 = vld [vmem:[%s211 + $0x3f0] sm:$0xff]
        %v385 = vld [vmem:[%s211 + $0x3f8] sm:$0xff]
        %v386 = vld [vmem:[%s211 + $0x400] sm:$0xff]
        %v387 = vld [vmem:[%s211 + $0x408] sm:$0xff]
        %v388 = vld [vmem:[%s211 + $0x410] sm:$0xff]
        %v389 = vld [vmem:[%s211 + $0x418] sm:$0xff]
        %v390 = vld [vmem:[%s211 + $0x420] sm:$0xff]
        %v391 = vld [vmem:[%s211 + $0x428] sm:$0xff]
        %v392 = vld [vmem:[%s211 + $0x430] sm:$0xff]
        %v393 = vld [vmem:[%s211 + $0x438] sm:$0xff]
        %v394 = vld [vmem:[%s211 + $0x440] sm:$0xff]
        %v395 = vld [vmem:[%s211 + $0x448] sm:$0xff]
        %v396 = vld [vmem:[%s211 + $0x450] sm:$0xff]
        %v397 = vld [vmem:[%s211 + $0x458] sm:$0xff]
        %v398 = vld [vmem:[%s211 + $0x460] sm:$0xff]
        %v399 = vld [vmem:[%s211 + $0x468] sm:$0xff]
        %v400 = vld [vmem:[%s211 + $0x470] sm:$0xff]
        %v401 = vld [vmem:[%s211 + $0x478] sm:$0xff]
        %v402 = vld [vmem:[%s211 + $0x480] sm:$0xff]
        %v403 = vld [vmem:[%s211 + $0x488] sm:$0xff]
        %v404 = vld [vmem:[%s211 + $0x490] sm:$0xff]
        %v405 = vld [vmem:[%s211 + $0x498] sm:$0xff]
        %v406 = vld [vmem:[%s211 + $0x4a0] sm:$0xff]
        %v407 = vld [vmem:[%s211 + $0x4a8] sm:$0xff]
        %v408 = vld [vmem:[%s211 + $0x4b0] sm:$0xff]
        %v409 = vld [vmem:[%s211 + $0x4b8] sm:$0xff]
        %v410 = vld [vmem:[%s211 + $0x4c0] sm:$0xff]
        %v411 = vld [vmem:[%s211 + $0x4c8] sm:$0xff]
        %v412 = vld [vmem:[%s211 + $0x4d0] sm:$0xff]
        %v413 = vld [vmem:[%s211 + $0x4d8] sm:$0xff]
        %v414 = vld [vmem:[%s211 + $0x4e0] sm:$0xff]
        %v415 = vld [vmem:[%s211 + $0x4e8] sm:$0xff]
        %v416 = vld [vmem:[%s211 + $0x4f0] sm:$0xff]
        %v417 = vld [vmem:[%s211 + $0x4f8] sm:$0xff]
        %v418 = vld [vmem:[%s211 + $0x500] sm:$0xff]
        %v419 = vld [vmem:[%s211 + $0x508] sm:$0xff]
        %v420 = vld [vmem:[%s211 + $0x510] sm:$0xff]
        %v421 = vld [vmem:[%s211 + $0x518] sm:$0xff]
        %v422 = vld [vmem:[%s211 + $0x520] sm:$0xff]
        %v423 = vld [vmem:[%s211 + $0x528] sm:$0xff]
        %v424 = vld [vmem:[%s211 + $0x530] sm:$0xff]
        %v425 = vld [vmem:[%s211 + $0x538] sm:$0xff]
        %v426 = vld [vmem:[%s211 + $0x540] sm:$0xff]
        %v427 = vld [vmem:[%s211 + $0x548] sm:$0xff]
        %v428 = vld [vmem:[%s211 + $0x550] sm:$0xff]
        %v429 = vld [vmem:[%s211 + $0x558] sm:$0xff]
        %v430 = vld [vmem:[%s211 + $0x560] sm:$0xff]
        %v431 = vld [vmem:[%s211 + $0x568] sm:$0xff]
        %v432 = vld [vmem:[%s211 + $0x570] sm:$0xff]
        %v433 = vld [vmem:[%s211 + $0x578] sm:$0xff]
        %v434 = vld [vmem:[%s211 + $0x580] sm:$0xff]
        %v435 = vld [vmem:[%s211 + $0x588] sm:$0xff]
        %v436 = vld [vmem:[%s211 + $0x590] sm:$0xff]
        %v437 = vld [vmem:[%s211 + $0x598] sm:$0xff]
        %v438 = vld [vmem:[%s211 + $0x5a0] sm:$0xff]
        %v439 = vld [vmem:[%s211 + $0x5a8] sm:$0xff]
        %v440 = vld [vmem:[%s211 + $0x5b0] sm:$0xff]
        %v441 = vld [vmem:[%s211 + $0x5b8] sm:$0xff]
        %v442 = vld [vmem:[%s211 + $0x5c0] sm:$0xff]
        %v443 = vld [vmem:[%s211 + $0x5c8] sm:$0xff]
        %v444 = vld [vmem:[%s211 + $0x5d0] sm:$0xff]
        %v445 = vld [vmem:[%s211 + $0x5d8] sm:$0xff]
        %v446 = vld [vmem:[%s211 + $0x5e0] sm:$0xff]
        %v447 = vld [vmem:[%s211 + $0x5e8] sm:$0xff]
        %v448 = vld [vmem:[%s211 + $0x5f0] sm:$0xff]
        %v449 = vld [vmem:[%s211 + $0x5f8] sm:$0xff]
        %v450 = vld [vmem:[%s211 + $0x600] sm:$0xff]
        %v451 = vld [vmem:[%s211 + $0x608] sm:$0xff]
        %v452 = vld [vmem:[%s211 + $0x610] sm:$0xff]
        %v453 = vld [vmem:[%s211 + $0x618] sm:$0xff]
        %v454 = vld [vmem:[%s211 + $0x620] sm:$0xff]
        %v455 = vld [vmem:[%s211 + $0x628] sm:$0xff]
        %v456 = vld [vmem:[%s211 + $0x630] sm:$0xff]
        %v457 = vld [vmem:[%s211 + $0x638] sm:$0xff]
        %v458 = vld [vmem:[%s211 + $0x640] sm:$0xff]
        %v459 = vld [vmem:[%s211 + $0x648] sm:$0xff]
        %v460 = vld [vmem:[%s211 + $0x650] sm:$0xff]
        %v461 = vld [vmem:[%s211 + $0x658] sm:$0xff]
        %v462 = vld [vmem:[%s211 + $0x660] sm:$0xff]
        %v463 = vld [vmem:[%s211 + $0x668] sm:$0xff]
        %v464 = vld [vmem:[%s211 + $0x670] sm:$0xff]
        %v465 = vld [vmem:[%s211 + $0x678] sm:$0xff]
        %v466 = vld [vmem:[%s211 + $0x680] sm:$0xff]
        %v467 = vld [vmem:[%s211 + $0x688] sm:$0xff]
        %v468 = vld [vmem:[%s211 + $0x690] sm:$0xff]
        %v469 = vld [vmem:[%s211 + $0x698] sm:$0xff]
        %v470 = vld [vmem:[%s211 + $0x6a0] sm:$0xff]
        %v471 = vld [vmem:[%s211 + $0x6a8] sm:$0xff]
        %v472 = vld [vmem:[%s211 + $0x6b0] sm:$0xff]
        %v473 = vld [vmem:[%s211 + $0x6b8] sm:$0xff]
        %v474 = vld [vmem:[%s211 + $0x6c0] sm:$0xff]
        %v475 = vld [vmem:[%s211 + $0x6c8] sm:$0xff]
        %v476 = vld [vmem:[%s211 + $0x6d0] sm:$0xff]
        %v477 = vld [vmem:[%s211 + $0x6d8] sm:$0xff]
        %v478 = vld [vmem:[%s211 + $0x6e0] sm:$0xff]
        %v479 = vld [vmem:[%s211 + $0x6e8] sm:$0xff]
        %v480 = vld [vmem:[%s211 + $0x6f0] sm:$0xff]
        %v481 = vld [vmem:[%s211 + $0x6f8] sm:$0xff]
        %v482 = vld [vmem:[%s211 + $0x700] sm:$0xff]
        %v483 = vld [vmem:[%s211 + $0x708] sm:$0xff]
        %v484 = vld [vmem:[%s211 + $0x710] sm:$0xff]
        %v485 = vld [vmem:[%s211 + $0x718] sm:$0xff]
        %v486 = vld [vmem:[%s211 + $0x720] sm:$0xff]
        %v487 = vld [vmem:[%s211 + $0x728] sm:$0xff]
        %v488 = vld [vmem:[%s211 + $0x730] sm:$0xff]
        %v489 = vld [vmem:[%s211 + $0x738] sm:$0xff]
        %v490 = vld [vmem:[%s211 + $0x740] sm:$0xff]
        %v491 = vld [vmem:[%s211 + $0x748] sm:$0xff]
        %v492 = vld [vmem:[%s211 + $0x750] sm:$0xff]
        %v493 = vld [vmem:[%s211 + $0x758] sm:$0xff]
        %v494 = vld [vmem:[%s211 + $0x760] sm:$0xff]
        %v495 = vld [vmem:[%s211 + $0x768] sm:$0xff]
        %v496 = vld [vmem:[%s211 + $0x770] sm:$0xff]
        %v497 = vld [vmem:[%s211 + $0x778] sm:$0xff]
        %v498 = vld [vmem:[%s211 + $0x780] sm:$0xff]
        %v499 = vld [vmem:[%s211 + $0x788] sm:$0xff]
        %v500 = vld [vmem:[%s211 + $0x790] sm:$0xff]
        %v501 = vld [vmem:[%s211 + $0x798] sm:$0xff]
        %v502 = vld [vmem:[%s211 + $0x7a0] sm:$0xff]
        %v503 = vld [vmem:[%s211 + $0x7a8] sm:$0xff]
        %v504 = vld [vmem:[%s211 + $0x7b0] sm:$0xff]
        %v505 = vld [vmem:[%s211 + $0x7b8] sm:$0xff]
        %v506 = vld [vmem:[%s211 + $0x7c0] sm:$0xff]
        %v507 = vld [vmem:[%s211 + $0x7c8] sm:$0xff]
        %v508 = vld [vmem:[%s211 + $0x7d0] sm:$0xff]
        %v509 = vld [vmem:[%s211 + $0x7d8] sm:$0xff]
        %v510 = vld [vmem:[%s211 + $0x7e0] sm:$0xff]
        %v511 = vld [vmem:[%s211 + $0x7e8] sm:$0xff]
        %v512 = vld [vmem:[%s211 + $0x7f0] sm:$0xff]
        %v513 = vld [vmem:[%s211 + $0x7f8] sm:$0xff]
        %v514 = vld [vmem:[%s211 + $0x800] sm:$0xff]
        %v515 = vld [vmem:[%s211 + $0x808] sm:$0xff]
        %v516 = vld [vmem:[%s211 + $0x810] sm:$0xff]
        %v517 = vld [vmem:[%s211 + $0x818] sm:$0xff]
        %v518 = vld [vmem:[%s211 + $0x820] sm:$0xff]
        %v519 = vld [vmem:[%s211 + $0x828] sm:$0xff]
        %v520 = vld [vmem:[%s211 + $0x830] sm:$0xff]
        %v521 = vld [vmem:[%s211 + $0x838] sm:$0xff]
        %v522 = vld [vmem:[%s211 + $0x840] sm:$0xff]
        %v523 = vld [vmem:[%s211 + $0x848] sm:$0xff]
        %v524 = vld [vmem:[%s211 + $0x850] sm:$0xff]
        %v525 = vld [vmem:[%s211 + $0x858] sm:$0xff]
        %v526 = vld [vmem:[%s211 + $0x860] sm:$0xff]
        %v527 = vld [vmem:[%s211 + $0x868] sm:$0xff]
        %v528 = vld [vmem:[%s211 + $0x870] sm:$0xff]
        %v529 = vld [vmem:[%s211 + $0x878] sm:$0xff]
        %v530 = vld [vmem:[%s211 + $0x880] sm:$0xff]
        %v531 = vld [vmem:[%s211 + $0x888] sm:$0xff]
        %v532 = vld [vmem:[%s211 + $0x890] sm:$0xff]
        %v533 = vld [vmem:[%s211 + $0x898] sm:$0xff]
        %v534 = vld [vmem:[%s211 + $0x8a0] sm:$0xff]
        %v535 = vld [vmem:[%s211 + $0x8a8] sm:$0xff]
        %v536 = vld [vmem:[%s211 + $0x8b0] sm:$0xff]
        %v537 = vld [vmem:[%s211 + $0x8b8] sm:$0xff]
        %v538 = vld [vmem:[%s211 + $0x8c0] sm:$0xff]
        %v539 = vld [vmem:[%s211 + $0x8c8] sm:$0xff]
        %v540 = vld [vmem:[%s211 + $0x8d0] sm:$0xff]
        %v541 = vld [vmem:[%s211 + $0x8d8] sm:$0xff]
        %v542 = vld [vmem:[%s211 + $0x8e0] sm:$0xff]
        %v543 = vld [vmem:[%s211 + $0x8e8] sm:$0xff]
        %v544 = vld [vmem:[%s211 + $0x8f0] sm:$0xff]
        %v545 = vld [vmem:[%s211 + $0x8f8] sm:$0xff]
        %v546 = vld [vmem:[%s211 + $0x900] sm:$0xff]
        %v547 = vld [vmem:[%s211 + $0x908] sm:$0xff]
        %v548 = vld [vmem:[%s211 + $0x910] sm:$0xff]
        %v549 = vld [vmem:[%s211 + $0x918] sm:$0xff]
        %v550 = vld [vmem:[%s211 + $0x920] sm:$0xff]
        %v551 = vld [vmem:[%s211 + $0x928] sm:$0xff]
        %v552 = vld [vmem:[%s211 + $0x930] sm:$0xff]
        %v553 = vld [vmem:[%s211 + $0x938] sm:$0xff]
        %v554 = vld [vmem:[%s211 + $0x940] sm:$0xff]
        %v555 = vld [vmem:[%s211 + $0x948] sm:$0xff]
        %v556 = vld [vmem:[%s211 + $0x950] sm:$0xff]
        %v557 = vld [vmem:[%s211 + $0x958] sm:$0xff]
        %v558 = vld [vmem:[%s211 + $0x960] sm:$0xff]
        %v559 = vld [vmem:[%s211 + $0x968] sm:$0xff]
        %v560 = vld [vmem:[%s211 + $0x970] sm:$0xff]
        %v561 = vld [vmem:[%s211 + $0x978] sm:$0xff]
        %v562 = vld [vmem:[%s211 + $0x980] sm:$0xff]
        %v563 = vld [vmem:[%s211 + $0x988] sm:$0xff]
        %v564 = vld [vmem:[%s211 + $0x990] sm:$0xff]
        %v565 = vld [vmem:[%s211 + $0x998] sm:$0xff]
        %v566 = vld [vmem:[%s211 + $0x9a0] sm:$0xff]
        %v567 = vld [vmem:[%s211 + $0x9a8] sm:$0xff]
        %v568 = vld [vmem:[%s211 + $0x9b0] sm:$0xff]
        %v569 = vld [vmem:[%s211 + $0x9b8] sm:$0xff]
        %v570 = vld [vmem:[%s211 + $0x9c0] sm:$0xff]
        %v571 = vld [vmem:[%s211 + $0x9c8] sm:$0xff]
        %v572 = vld [vmem:[%s211 + $0x9d0] sm:$0xff]
        %v573 = vld [vmem:[%s211 + $0x9d8] sm:$0xff]
        %v574 = vld [vmem:[%s211 + $0x9e0] sm:$0xff]
        %v575 = vld [vmem:[%s211 + $0x9e8] sm:$0xff]
        %v576 = vld [vmem:[%s211 + $0x9f0] sm:$0xff]
        %v577 = vld [vmem:[%s211 + $0x9f8] sm:$0xff]
        %v578 = vld [vmem:[%s211 + $0xa00] sm:$0xff]
        %v579 = vld [vmem:[%s211 + $0xa08] sm:$0xff]
        %v580 = vld [vmem:[%s211 + $0xa10] sm:$0xff]
        %v581 = vld [vmem:[%s211 + $0xa18] sm:$0xff]
        %v582 = vld [vmem:[%s211 + $0xa20] sm:$0xff]
        %v583 = vld [vmem:[%s211 + $0xa28] sm:$0xff]
        %v584 = vld [vmem:[%s211 + $0xa30] sm:$0xff]
        %v585 = vld [vmem:[%s211 + $0xa38] sm:$0xff]
        %v586 = vld [vmem:[%s211 + $0xa40] sm:$0xff]
        %v587 = vld [vmem:[%s211 + $0xa48] sm:$0xff]
        %v588 = vld [vmem:[%s211 + $0xa50] sm:$0xff]
        %v589 = vld [vmem:[%s211 + $0xa58] sm:$0xff]
        %v590 = vld [vmem:[%s211 + $0xa60] sm:$0xff]
        %v591 = vld [vmem:[%s211 + $0xa68] sm:$0xff]
        %v592 = vld [vmem:[%s211 + $0xa70] sm:$0xff]
        %v593 = vld [vmem:[%s211 + $0xa78] sm:$0xff]
        %v594 = vld [vmem:[%s211 + $0xa80] sm:$0xff]
        %v595 = vld [vmem:[%s211 + $0xa88] sm:$0xff]
        %v596 = vld [vmem:[%s211 + $0xa90] sm:$0xff]
        %v597 = vld [vmem:[%s211 + $0xa98] sm:$0xff]
        %v598 = vld [vmem:[%s211 + $0xaa0] sm:$0xff]
        %v599 = vld [vmem:[%s211 + $0xaa8] sm:$0xff]
        %v600 = vld [vmem:[%s211 + $0xab0] sm:$0xff]
        %v601 = vld [vmem:[%s211 + $0xab8] sm:$0xff]
        %v602 = vld [vmem:[%s211 + $0xac0] sm:$0xff]
        %v603 = vld [vmem:[%s211 + $0xac8] sm:$0xff]
        %v604 = vld [vmem:[%s211 + $0xad0] sm:$0xff]
        %v605 = vld [vmem:[%s211 + $0xad8] sm:$0xff]
        %v606 = vld [vmem:[%s211 + $0xae0] sm:$0xff]
        %v607 = vld [vmem:[%s211 + $0xae8] sm:$0xff]
        %v608 = vld [vmem:[%s211 + $0xaf0] sm:$0xff]
        %v609 = vld [vmem:[%s211 + $0xaf8] sm:$0xff]
        %v610 = vld [vmem:[%s211 + $0xb00] sm:$0xff]
        %v611 = vld [vmem:[%s211 + $0xb08] sm:$0xff]
        %v612 = vld [vmem:[%s211 + $0xb10] sm:$0xff]
        %v613 = vld [vmem:[%s211 + $0xb18] sm:$0xff]
        %v614 = vld [vmem:[%s211 + $0xb20] sm:$0xff]
        %v615 = vld [vmem:[%s211 + $0xb28] sm:$0xff]
        %v616 = vld [vmem:[%s211 + $0xb30] sm:$0xff]
        %v617 = vld [vmem:[%s211 + $0xb38] sm:$0xff]
        %v618 = vld [vmem:[%s211 + $0xb40] sm:$0xff]
        %v619 = vld [vmem:[%s211 + $0xb48] sm:$0xff]
        %v620 = vld [vmem:[%s211 + $0xb50] sm:$0xff]
        %v621 = vld [vmem:[%s211 + $0xb58] sm:$0xff]
        %v622 = vld [vmem:[%s211 + $0xb60] sm:$0xff]
        %v623 = vld [vmem:[%s211 + $0xb68] sm:$0xff]
        %v624 = vld [vmem:[%s211 + $0xb70] sm:$0xff]
        %v625 = vld [vmem:[%s211 + $0xb78] sm:$0xff]
        %v626 = vld [vmem:[%s211 + $0xb80] sm:$0xff]
        %v627 = vld [vmem:[%s211 + $0xb88] sm:$0xff]
        %v628 = vld [vmem:[%s211 + $0xb90] sm:$0xff]
        %v629 = vld [vmem:[%s211 + $0xb98] sm:$0xff]
        %v630 = vld [vmem:[%s211 + $0xba0] sm:$0xff]
        %v631 = vld [vmem:[%s211 + $0xba8] sm:$0xff]
        %v632 = vld [vmem:[%s211 + $0xbb0] sm:$0xff]
        %v633 = vld [vmem:[%s211 + $0xbb8] sm:$0xff]
        %v634 = vld [vmem:[%s211 + $0xbc0] sm:$0xff]
        %v635 = vld [vmem:[%s211 + $0xbc8] sm:$0xff]
        %v636 = vld [vmem:[%s211 + $0xbd0] sm:$0xff]
        %v637 = vld [vmem:[%s211 + $0xbd8] sm:$0xff]
        %v638 = vld [vmem:[%s211 + $0xbe0] sm:$0xff]
        %v639 = vld [vmem:[%s211 + $0xbe8] sm:$0xff]
        %v640 = vld [vmem:[%s211 + $0xbf0] sm:$0xff]
        %v641 = vld [vmem:[%s211 + $0xbf8] sm:$0xff]
        %v642 = vld [vmem:[%s211 + $0xc00] sm:$0xff]
        %v643 = vld [vmem:[%s211 + $0xc08] sm:$0xff]
        %v644 = vld [vmem:[%s211 + $0xc10] sm:$0xff]
        %v645 = vld [vmem:[%s211 + $0xc18] sm:$0xff]
        %v646 = vld [vmem:[%s211 + $0xc20] sm:$0xff]
        %v647 = vld [vmem:[%s211 + $0xc28] sm:$0xff]
        %v648 = vld [vmem:[%s211 + $0xc30] sm:$0xff]
        %v649 = vld [vmem:[%s211 + $0xc38] sm:$0xff]
        %v650 = vld [vmem:[%s211 + $0xc40] sm:$0xff]
        %v651 = vld [vmem:[%s211 + $0xc48] sm:$0xff]
        %v652 = vld [vmem:[%s211 + $0xc50] sm:$0xff]
        %v653 = vld [vmem:[%s211 + $0xc58] sm:$0xff]
        %v654 = vld [vmem:[%s211 + $0xc60] sm:$0xff]
        %v655 = vld [vmem:[%s211 + $0xc68] sm:$0xff]
        %v656 = vld [vmem:[%s211 + $0xc70] sm:$0xff]
        %v657 = vld [vmem:[%s211 + $0xc78] sm:$0xff]
        %v658 = vld [vmem:[%s211 + $0xc80] sm:$0xff]
        %v659 = vld [vmem:[%s211 + $0xc88] sm:$0xff]
        %v660 = vld [vmem:[%s211 + $0xc90] sm:$0xff]
        %v661 = vld [vmem:[%s211 + $0xc98] sm:$0xff]
        %v662 = vld [vmem:[%s211 + $0xca0] sm:$0xff]
        %v663 = vld [vmem:[%s211 + $0xca8] sm:$0xff]
        %v664 = vld [vmem:[%s211 + $0xcb0] sm:$0xff]
        %v665 = vld [vmem:[%s211 + $0xcb8] sm:$0xff]
        %v666 = vld [vmem:[%s211 + $0xcc0] sm:$0xff]
        %v667 = vld [vmem:[%s211 + $0xcc8] sm:$0xff]
        %v668 = vld [vmem:[%s211 + $0xcd0] sm:$0xff]
        %v669 = vld [vmem:[%s211 + $0xcd8] sm:$0xff]
        %v670 = vld [vmem:[%s211 + $0xce0] sm:$0xff]
        %v671 = vld [vmem:[%s211 + $0xce8] sm:$0xff]
        %v672 = vld [vmem:[%s211 + $0xcf0] sm:$0xff]
        %v673 = vld [vmem:[%s211 + $0xcf8] sm:$0xff]
        %v674 = vld [vmem:[%s211 + $0xd00] sm:$0xff]
        %v675 = vld [vmem:[%s211 + $0xd08] sm:$0xff]
        %v676 = vld [vmem:[%s211 + $0xd10] sm:$0xff]
        %v677 = vld [vmem:[%s211 + $0xd18] sm:$0xff]
        %v678 = vld [vmem:[%s211 + $0xd20] sm:$0xff]
        %v679 = vld [vmem:[%s211 + $0xd28] sm:$0xff]
        %v680 = vld [vmem:[%s211 + $0xd30] sm:$0xff]
        %v681 = vld [vmem:[%s211 + $0xd38] sm:$0xff]
        %v682 = vld [vmem:[%s211 + $0xd40] sm:$0xff]
        %v683 = vld [vmem:[%s211 + $0xd48] sm:$0xff]
        %v684 = vld [vmem:[%s211 + $0xd50] sm:$0xff]
        %v685 = vld [vmem:[%s211 + $0xd58] sm:$0xff]
        %v686 = vld [vmem:[%s211 + $0xd60] sm:$0xff]
        %v687 = vld [vmem:[%s211 + $0xd68] sm:$0xff]
        %v688 = vld [vmem:[%s211 + $0xd70] sm:$0xff]
        %v689 = vld [vmem:[%s211 + $0xd78] sm:$0xff]
        %v690 = vld [vmem:[%s211 + $0xd80] sm:$0xff]
        %v691 = vld [vmem:[%s211 + $0xd88] sm:$0xff]
        %v692 = vld [vmem:[%s211 + $0xd90] sm:$0xff]
        %v693 = vld [vmem:[%s211 + $0xd98] sm:$0xff]
        %v694 = vld [vmem:[%s211 + $0xda0] sm:$0xff]
        %v695 = vld [vmem:[%s211 + $0xda8] sm:$0xff]
        %v696 = vld [vmem:[%s211 + $0xdb0] sm:$0xff]
        %v697 = vld [vmem:[%s211 + $0xdb8] sm:$0xff]
        %v698 = vld [vmem:[%s211 + $0xdc0] sm:$0xff]
        %v699 = vld [vmem:[%s211 + $0xdc8] sm:$0xff]
        %v700 = vld [vmem:[%s211 + $0xdd0] sm:$0xff]
        %v701 = vld [vmem:[%s211 + $0xdd8] sm:$0xff]
        %v702 = vld [vmem:[%s211 + $0xde0] sm:$0xff]
        %v703 = vld [vmem:[%s211 + $0xde8] sm:$0xff]
        %v704 = vld [vmem:[%s211 + $0xdf0] sm:$0xff]
        %v705 = vld [vmem:[%s211 + $0xdf8] sm:$0xff]
        %v706 = vld [vmem:[%s211 + $0xe00] sm:$0xff]
        %v707 = vld [vmem:[%s211 + $0xe08] sm:$0xff]
        %v708 = vld [vmem:[%s211 + $0xe10] sm:$0xff]
        %v709 = vld [vmem:[%s211 + $0xe18] sm:$0xff]
        %v710 = vld [vmem:[%s211 + $0xe20] sm:$0xff]
        %v711 = vld [vmem:[%s211 + $0xe28] sm:$0xff]
        %v712 = vld [vmem:[%s211 + $0xe30] sm:$0xff]
        %v713 = vld [vmem:[%s211 + $0xe38] sm:$0xff]
        %v714 = vld [vmem:[%s211 + $0xe40] sm:$0xff]
        %v715 = vld [vmem:[%s211 + $0xe48] sm:$0xff]
        %v716 = vld [vmem:[%s211 + $0xe50] sm:$0xff]
        %v717 = vld [vmem:[%s211 + $0xe58] sm:$0xff]
        %v718 = vld [vmem:[%s211 + $0xe60] sm:$0xff]
        %v719 = vld [vmem:[%s211 + $0xe68] sm:$0xff]
        %v720 = vld [vmem:[%s211 + $0xe70] sm:$0xff]
        %v721 = vld [vmem:[%s211 + $0xe78] sm:$0xff]
        %v722 = vld [vmem:[%s211 + $0xe80] sm:$0xff]
        %v723 = vld [vmem:[%s211 + $0xe88] sm:$0xff]
        %v724 = vld [vmem:[%s211 + $0xe90] sm:$0xff]
        %v725 = vld [vmem:[%s211 + $0xe98] sm:$0xff]
        %v726 = vld [vmem:[%s211 + $0xea0] sm:$0xff]
        %v727 = vld [vmem:[%s211 + $0xea8] sm:$0xff]
        %v728 = vld [vmem:[%s211 + $0xeb0] sm:$0xff]
        %v729 = vld [vmem:[%s211 + $0xeb8] sm:$0xff]
        %v730 = vld [vmem:[%s211 + $0xec0] sm:$0xff]
        %v731 = vld [vmem:[%s211 + $0xec8] sm:$0xff]
        %v732 = vld [vmem:[%s211 + $0xed0] sm:$0xff]
        %v733 = vld [vmem:[%s211 + $0xed8] sm:$0xff]
        %v734 = vld [vmem:[%s211 + $0xee0] sm:$0xff]
        %v735 = vld [vmem:[%s211 + $0xee8] sm:$0xff]
        %v736 = vld [vmem:[%s211 + $0xef0] sm:$0xff]
        %v737 = vld [vmem:[%s211 + $0xef8] sm:$0xff]
        %v738 = vld [vmem:[%s211 + $0xf00] sm:$0xff]
        %v739 = vld [vmem:[%s211 + $0xf08] sm:$0xff]
        %v740 = vld [vmem:[%s211 + $0xf10] sm:$0xff]
        %v741 = vld [vmem:[%s211 + $0xf18] sm:$0xff]
        %v742 = vld [vmem:[%s211 + $0xf20] sm:$0xff]
        %v743 = vld [vmem:[%s211 + $0xf28] sm:$0xff]
        %v744 = vld [vmem:[%s211 + $0xf30] sm:$0xff]
        %v745 = vld [vmem:[%s211 + $0xf38] sm:$0xff]
        %v746 = vld [vmem:[%s211 + $0xf40] sm:$0xff]
        %v747 = vld [vmem:[%s211 + $0xf48] sm:$0xff]
        %v748 = vld [vmem:[%s211 + $0xf50] sm:$0xff]
        %v749 = vld [vmem:[%s211 + $0xf58] sm:$0xff]
        %v750 = vld [vmem:[%s211 + $0xf60] sm:$0xff]
        %v751 = vld [vmem:[%s211 + $0xf68] sm:$0xff]
        %v752 = vld [vmem:[%s211 + $0xf70] sm:$0xff]
        %v753 = vld [vmem:[%s211 + $0xf78] sm:$0xff]
        %v754 = vld [vmem:[%s211 + $0xf80] sm:$0xff]
        %v755 = vld [vmem:[%s211 + $0xf88] sm:$0xff]
        %v756 = vld [vmem:[%s211 + $0xf90] sm:$0xff]
        %v757 = vld [vmem:[%s211 + $0xf98] sm:$0xff]
        %v758 = vld [vmem:[%s211 + $0xfa0] sm:$0xff]
        %v759 = vld [vmem:[%s211 + $0xfa8] sm:$0xff]
        %v760 = vld [vmem:[%s211 + $0xfb0] sm:$0xff]
        %v761 = vld [vmem:[%s211 + $0xfb8] sm:$0xff]
        %v762 = vld [vmem:[%s211 + $0xfc0] sm:$0xff]
        %v763 = vld [vmem:[%s211 + $0xfc8] sm:$0xff]
        %v764 = vld [vmem:[%s211 + $0xfd0] sm:$0xff]
        %v765 = vld [vmem:[%s211 + $0xfd8] sm:$0xff]
        %v766 = vld [vmem:[%s211 + $0xfe0] sm:$0xff]
        %v767 = vld [vmem:[%s211 + $0xfe8] sm:$0xff]
        %v768 = vld [vmem:[%s211 + $0xff0] sm:$0xff]
        %v769 = vld [vmem:[%s211 + $0xff8] sm:$0xff]
        %v770 = vld [vmem:[%s211 + $0x1000] sm:$0xff]
        %v771 = vld [vmem:[%s211 + $0x1008] sm:$0xff]
        %v772 = vld [vmem:[%s211 + $0x1010] sm:$0xff]
        %v773 = vld [vmem:[%s211 + $0x1018] sm:$0xff]
        %v774 = vld [vmem:[%s211 + $0x1020] sm:$0xff]
        %v775 = vld [vmem:[%s211 + $0x1028] sm:$0xff]
        %v776 = vld [vmem:[%s211 + $0x1030] sm:$0xff]
        %v777 = vld [vmem:[%s211 + $0x1038] sm:$0xff]
        %v778 = vld [vmem:[%s211 + $0x1040] sm:$0xff]
        %v779 = vld [vmem:[%s211 + $0x1048] sm:$0xff]
        %v780 = vld [vmem:[%s211 + $0x1050] sm:$0xff]
        %v781 = vld [vmem:[%s211 + $0x1058] sm:$0xff]
        %v782 = vld [vmem:[%s211 + $0x1060] sm:$0xff]
        %v783 = vld [vmem:[%s211 + $0x1068] sm:$0xff]
        %v784 = vld [vmem:[%s211 + $0x1070] sm:$0xff]
        %v785 = vld [vmem:[%s211 + $0x1078] sm:$0xff]
        %v786 = vld [vmem:[%s211 + $0x1080] sm:$0xff]
        %v787 = vld [vmem:[%s211 + $0x1088] sm:$0xff]
        %v788 = vld [vmem:[%s211 + $0x1090] sm:$0xff]
        %v789 = vld [vmem:[%s211 + $0x1098] sm:$0xff]
        %v790 = vld [vmem:[%s211 + $0x10a0] sm:$0xff]
        %v791 = vld [vmem:[%s211 + $0x10a8] sm:$0xff]
        %v792 = vld [vmem:[%s211 + $0x10b0] sm:$0xff]
        %v793 = vld [vmem:[%s211 + $0x10b8] sm:$0xff]
        %v794 = vld [vmem:[%s211 + $0x10c0] sm:$0xff]
        %v795 = vld [vmem:[%s211 + $0x10c8] sm:$0xff]
        %v796 = vld [vmem:[%s211 + $0x10d0] sm:$0xff]
        %v797 = vld [vmem:[%s211 + $0x10d8] sm:$0xff]
        %v798 = vld [vmem:[%s211 + $0x10e0] sm:$0xff]
        %v799 = vld [vmem:[%s211 + $0x10e8] sm:$0xff]
        %v800 = vld [vmem:[%s211 + $0x10f0] sm:$0xff]
        %v801 = vld [vmem:[%s211 + $0x10f8] sm:$0xff]
        %v802 = vld [vmem:[%s211 + $0x1100] sm:$0xff]
        %v803 = vld [vmem:[%s211 + $0x1108] sm:$0xff]
        %v804 = vld [vmem:[%s211 + $0x1110] sm:$0xff]
        %v805 = vld [vmem:[%s211 + $0x1118] sm:$0xff]
        %v806 = vld [vmem:[%s211 + $0x1120] sm:$0xff]
        %v807 = vld [vmem:[%s211 + $0x1128] sm:$0xff]
        %v808 = vld [vmem:[%s211 + $0x1130] sm:$0xff]
        %v809 = vld [vmem:[%s211 + $0x1138] sm:$0xff]
        %v810 = vld [vmem:[%s211 + $0x1140] sm:$0xff]
        %v811 = vld [vmem:[%s211 + $0x1148] sm:$0xff]
        %v812 = vld [vmem:[%s211 + $0x1150] sm:$0xff]
        %v813 = vld [vmem:[%s211 + $0x1158] sm:$0xff]
        %v814 = vld [vmem:[%s211 + $0x1160] sm:$0xff]
        %v815 = vld [vmem:[%s211 + $0x1168] sm:$0xff]
        %v816 = vld [vmem:[%s211 + $0x1170] sm:$0xff]
        %v817 = vld [vmem:[%s211 + $0x1178] sm:$0xff]
        %v818 = vld [vmem:[%s211 + $0x1180] sm:$0xff]
        %v819 = vld [vmem:[%s211 + $0x1188] sm:$0xff]
        %v820 = vld [vmem:[%s211 + $0x1190] sm:$0xff]
        %v821 = vld [vmem:[%s211 + $0x1198] sm:$0xff]
        %v822 = vld [vmem:[%s211 + $0x11a0] sm:$0xff]
        %v823 = vld [vmem:[%s211 + $0x11a8] sm:$0xff]
        %v824 = vld [vmem:[%s211 + $0x11b0] sm:$0xff]
        %v825 = vld [vmem:[%s211 + $0x11b8] sm:$0xff]
        %v826 = vld [vmem:[%s211 + $0x11c0] sm:$0xff]
        %v827 = vld [vmem:[%s211 + $0x11c8] sm:$0xff]
        %v828 = vld [vmem:[%s211 + $0x11d0] sm:$0xff]
        %v829 = vld [vmem:[%s211 + $0x11d8] sm:$0xff]
        %v830 = vld [vmem:[%s211 + $0x11e0] sm:$0xff]
        %v831 = vld [vmem:[%s211 + $0x11e8] sm:$0xff]
        %v832 = vld [vmem:[%s211 + $0x11f0] sm:$0xff]
        %v833 = vld [vmem:[%s211 + $0x11f8] sm:$0xff]
        %v834 = vld [vmem:[%s242] sm:$0x3f]
        %v836 = vlaneseq
        %v837 = vshrl.u32 %v836, 7
        %v838 = vsub.s32 0, %v837
        %v839 = vrot.slane %v834, %v838
        %v840 = vlaneseq
        %v841 = vshrl.u32 %v840, 7
        %v842 = vsub.s32 1, %v841
        %v843 = vrot.slane %v834, %v842
        %v844 = vlaneseq
        %v845 = vshrl.u32 %v844, 7
        %v846 = vsub.s32 2, %v845
        %v847 = vrot.slane %v834, %v846
        %v848 = vlaneseq
        %v849 = vshrl.u32 %v848, 7
        %v850 = vsub.s32 3, %v849
        %v851 = vrot.slane %v834, %v850
        %v852 = vlaneseq
        %v853 = vshrl.u32 %v852, 7
        %v854 = vsub.s32 4, %v853
        %v855 = vrot.slane %v834, %v854
        %v856 = vlaneseq
        %v857 = vshrl.u32 %v856, 7
        %v858 = vsub.s32 5, %v857
        %v859 = vrot.slane %v834, %v858
        %866 = vmatprep.subr.mxu0 %v259
        %867 = vmatpush1.msra.mxu0 %v258
        %868 = vmatprep.subr.mxu0 %v265
        %869 = vmatpush1.msra.mxu0 %v264
        %870 = vmatprep.subr.mxu0 %v271
        %871 = vmatpush1.msra.mxu0 %v270
        %872 = vmatprep.subr.mxu0 %v277
        %873 = vmatpush1.msra.mxu0 %v276
        %874 = vmatprep.subr.mxu0 %v283
        %875 = vmatpush1.msra.mxu0 %v282
        %876 = vmatprep.subr.mxu0 %v289
        %877 = vmatpush1.msra.mxu0 %v288
        %878 = vmatprep.subr.mxu0 %v295
        %879 = vmatpush1.msra.mxu0 %v294
        %880 = vmatprep.subr.mxu0 %v301
        %881 = vmatpush1.msra.mxu0 %v300
        %882 = vmatprep.subr.mxu0 %v307
        %883 = vmatpush1.msra.mxu0 %v306
        %884 = vmatprep.subr.mxu0 %v313
        %885 = vmatpush1.msra.mxu0 %v312
        %886 = vmatprep.subr.mxu0 %v319
        %887 = vmatpush1.msra.mxu0 %v318
        %888 = vmatprep.subr.mxu0 %v325
        %889 = vmatpush1.msra.mxu0 %v324
        %890 = vmatprep.subr.mxu0 %v331
        %891 = vmatpush1.msra.mxu0 %v330
        %892 = vmatprep.subr.mxu0 %v337
        %893 = vmatpush1.msra.mxu0 %v336
        %894 = vmatprep.subr.mxu0 %v343
        %895 = vmatpush1.msra.mxu0 %v342
        %896 = vmatprep.subr.mxu0 %v349
        %897 = vmatpush1.msra.mxu0 %v348
        %898 = vmatprep.subr.mxu0 %v355
        %899 = vmatpush1.msra.mxu0 %v354
        %900 = vmatprep.subr.mxu0 %v361
        %901 = vmatpush1.msra.mxu0 %v360
        %902 = vmatprep.subr.mxu0 %v367
        %903 = vmatpush1.msra.mxu0 %v366
        %904 = vmatprep.subr.mxu0 %v373
        %905 = vmatpush1.msra.mxu0 %v372
        %906 = vmatprep.subr.mxu0 %v379
        %907 = vmatpush1.msra.mxu0 %v378
        %908 = vmatprep.subr.mxu0 %v385
        %909 = vmatpush1.msra.mxu0 %v384
        %910 = vmatprep.subr.mxu0 %v391
        %911 = vmatpush1.msra.mxu0 %v390
        %912 = vmatprep.subr.mxu0 %v397
        %913 = vmatpush1.msra.mxu0 %v396
        %914 = vmatprep.subr.mxu0 %v403
        %915 = vmatpush1.msra.mxu0 %v402
        %916 = vmatprep.subr.mxu0 %v409
        %917 = vmatpush1.msra.mxu0 %v408
        %918 = vmatprep.subr.mxu0 %v415
        %919 = vmatpush1.msra.mxu0 %v414
        %920 = vmatprep.subr.mxu0 %v421
        %921 = vmatpush1.msra.mxu0 %v420
        %922 = vmatprep.subr.mxu0 %v427
        %923 = vmatpush1.msra.mxu0 %v426
        %924 = vmatprep.subr.mxu0 %v433
        %925 = vmatpush1.msra.mxu0 %v432
        %926 = vmatprep.subr.mxu0 %v439
        %927 = vmatpush1.msra.mxu0 %v438
        %928 = vmatprep.subr.mxu0 %v445
        %929 = vmatpush1.msra.mxu0 %v444
        %930 = vmatprep.mubr.f32.mxu0 %v247
        %931 = vmatmul.mubr.f32.gmra.mrb[0].mxu0 %v246
        %v932 = vpop.f32.mrb[0].mxu0
        %v933 = vadd.f32 %v839, %v932
        %v934 = vpop.f32.mrb[0].mxu0
        %v935 = vadd.f32 %v843, %v934
        %936 = vmatprep.mubr.f32.mxu0 %v253
        %937 = vmatmul.mubr.f32.gmra.mrb[0].mxu0 %v252
        %v938 = vpop.f32.mrb[0].mxu0
        %v939 = vadd.f32 %v839, %v938
        %v940 = vpop.f32.mrb[0].mxu0
        %v941 = vadd.f32 %v843, %v940
        %942 = vdwg.mxu0
        %943 = vmatprep.subr.mxu0 %v451
        %944 = vmatpush1.msra.mxu0 %v450
        %945 = vmatprep.subr.mxu0 %v457
        %946 = vmatpush1.msra.mxu0 %v456
        %947 = vmatprep.subr.mxu0 %v463
        %948 = vmatpush1.msra.mxu0 %v462
        %949 = vmatprep.subr.mxu0 %v469
        %950 = vmatpush1.msra.mxu0 %v468
        %951 = vmatprep.subr.mxu0 %v475
        %952 = vmatpush1.msra.mxu0 %v474
        %953 = vmatprep.subr.mxu0 %v481
        %954 = vmatpush1.msra.mxu0 %v480
        %955 = vmatprep.subr.mxu0 %v487
        %956 = vmatpush1.msra.mxu0 %v486
        %957 = vmatprep.subr.mxu0 %v493
        %958 = vmatpush1.msra.mxu0 %v492
        %959 = vmatprep.subr.mxu0 %v499
        %960 = vmatpush1.msra.mxu0 %v498
        %961 = vmatprep.subr.mxu0 %v505
        %962 = vmatpush1.msra.mxu0 %v504
        %963 = vmatprep.subr.mxu0 %v511
        %964 = vmatpush1.msra.mxu0 %v510
        %965 = vmatprep.subr.mxu0 %v517
        %966 = vmatpush1.msra.mxu0 %v516
        %967 = vmatprep.subr.mxu0 %v523
        %968 = vmatpush1.msra.mxu0 %v522
        %969 = vmatprep.subr.mxu0 %v529
        %970 = vmatpush1.msra.mxu0 %v528
        %971 = vmatprep.subr.mxu0 %v535
        %972 = vmatpush1.msra.mxu0 %v534
        %973 = vmatprep.subr.mxu0 %v541
        %974 = vmatpush1.msra.mxu0 %v540
        %975 = vmatprep.subr.mxu0 %v547
        %976 = vmatpush1.msra.mxu0 %v546
        %977 = vmatprep.subr.mxu0 %v553
        %978 = vmatpush1.msra.mxu0 %v552
        %979 = vmatprep.subr.mxu0 %v559
        %980 = vmatpush1.msra.mxu0 %v558
        %981 = vmatprep.subr.mxu0 %v565
        %982 = vmatpush1.msra.mxu0 %v564
        %983 = vmatprep.subr.mxu0 %v571
        %984 = vmatpush1.msra.mxu0 %v570
        %985 = vmatprep.subr.mxu0 %v577
        %986 = vmatpush1.msra.mxu0 %v576
        %987 = vmatprep.subr.mxu0 %v583
        %988 = vmatpush1.msra.mxu0 %v582
        %989 = vmatprep.subr.mxu0 %v589
        %990 = vmatpush1.msra.mxu0 %v588
        %991 = vmatprep.subr.mxu0 %v595
        %992 = vmatpush1.msra.mxu0 %v594
        %993 = vmatprep.subr.mxu0 %v601
        %994 = vmatpush1.msra.mxu0 %v600
        %995 = vmatprep.subr.mxu0 %v607
        %996 = vmatpush1.msra.mxu0 %v606
        %997 = vmatprep.subr.mxu0 %v613
        %998 = vmatpush1.msra.mxu0 %v612
        %999 = vmatprep.subr.mxu0 %v619
        %1000 = vmatpush1.msra.mxu0 %v618
        %1001 = vmatprep.subr.mxu0 %v625
        %1002 = vmatpush1.msra.mxu0 %v624
        %1003 = vmatprep.subr.mxu0 %v631
        %1004 = vmatpush1.msra.mxu0 %v630
        %1005 = vmatprep.subr.mxu0 %v637
        %1006 = vmatpush1.msra.mxu0 %v636
        %1007 = vmatprep.mubr.f32.mxu0 %v249
        %1008 = vmatmul.mubr.f32.gmra.mrb[0].mxu0 %v248
        %v1009 = vpop.f32.mrb[0].mxu0
        %v1010 = vadd.f32 %v933, %v1009
        %v1011 = vpop.f32.mrb[0].mxu0
        %v1012 = vadd.f32 %v935, %v1011
        %1013 = vmatprep.mubr.f32.mxu0 %v255
        %1014 = vmatmul.mubr.f32.gmra.mrb[0].mxu0 %v254
        %v1015 = vpop.f32.mrb[0].mxu0
        %v1016 = vadd.f32 %v939, %v1015
        %v1017 = vpop.f32.mrb[0].mxu0
        %v1018 = vadd.f32 %v941, %v1017
        %1019 = vdwg.mxu0
        %1020 = vmatprep.subr.mxu0 %v643
        %1021 = vmatpush1.msra.mxu0 %v642
        %1022 = vmatprep.subr.mxu0 %v649
        %1023 = vmatpush1.msra.mxu0 %v648
        %1024 = vmatprep.subr.mxu0 %v655
        %1025 = vmatpush1.msra.mxu0 %v654
        %1026 = vmatprep.subr.mxu0 %v661
        %1027 = vmatpush1.msra.mxu0 %v660
        %1028 = vmatprep.subr.mxu0 %v667
        %1029 = vmatpush1.msra.mxu0 %v666
        %1030 = vmatprep.subr.mxu0 %v673
        %1031 = vmatpush1.msra.mxu0 %v672
        %1032 = vmatprep.subr.mxu0 %v679
        %1033 = vmatpush1.msra.mxu0 %v678
        %1034 = vmatprep.subr.mxu0 %v685
        %1035 = vmatpush1.msra.mxu0 %v684
        %1036 = vmatprep.subr.mxu0 %v691
        %1037 = vmatpush1.msra.mxu0 %v690
        %1038 = vmatprep.subr.mxu0 %v697
        %1039 = vmatpush1.msra.mxu0 %v696
        %1040 = vmatprep.subr.mxu0 %v703
        %1041 = vmatpush1.msra.mxu0 %v702
        %1042 = vmatprep.subr.mxu0 %v709
        %1043 = vmatpush1.msra.mxu0 %v708
        %1044 = vmatprep.subr.mxu0 %v715
        %1045 = vmatpush1.msra.mxu0 %v714
        %1046 = vmatprep.subr.mxu0 %v721
        %1047 = vmatpush1.msra.mxu0 %v720
        %1048 = vmatprep.subr.mxu0 %v727
        %1049 = vmatpush1.msra.mxu0 %v726
        %1050 = vmatprep.subr.mxu0 %v733
        %1051 = vmatpush1.msra.mxu0 %v732
        %1052 = vmatprep.subr.mxu0 %v739
        %1053 = vmatpush1.msra.mxu0 %v738
        %1054 = vmatprep.subr.mxu0 %v745
        %1055 = vmatpush1.msra.mxu0 %v744
        %1056 = vmatprep.subr.mxu0 %v751
        %1057 = vmatpush1.msra.mxu0 %v750
        %1058 = vmatprep.subr.mxu0 %v757
        %1059 = vmatpush1.msra.mxu0 %v756
        %1060 = vmatprep.subr.mxu0 %v763
        %1061 = vmatpush1.msra.mxu0 %v762
        %1062 = vmatprep.subr.mxu0 %v769
        %1063 = vmatpush1.msra.mxu0 %v768
        %1064 = vmatprep.subr.mxu0 %v775
        %1065 = vmatpush1.msra.mxu0 %v774
        %1066 = vmatprep.subr.mxu0 %v781
        %1067 = vmatpush1.msra.mxu0 %v780
        %1068 = vmatprep.subr.mxu0 %v787
        %1069 = vmatpush1.msra.mxu0 %v786
        %1070 = vmatprep.subr.mxu0 %v793
        %1071 = vmatpush1.msra.mxu0 %v792
        %1072 = vmatprep.subr.mxu0 %v799
        %1073 = vmatpush1.msra.mxu0 %v798
        %1074 = vmatprep.subr.mxu0 %v805
        %1075 = vmatpush1.msra.mxu0 %v804
        %1076 = vmatprep.subr.mxu0 %v811
        %1077 = vmatpush1.msra.mxu0 %v810
        %1078 = vmatprep.subr.mxu0 %v817
        %1079 = vmatpush1.msra.mxu0 %v816
        %1080 = vmatprep.subr.mxu0 %v823
        %1081 = vmatpush1.msra.mxu0 %v822
        %1082 = vmatprep.subr.mxu0 %v829
        %1083 = vmatpush1.msra.mxu0 %v828
        %1084 = vmatprep.mubr.f32.mxu0 %v251
        %1085 = vmatmul.mubr.f32.gmra.mrb[0].mxu0 %v250
        %v1086 = vpop.f32.mrb[0].mxu0
        %v1087 = vadd.f32 %v1010, %v1086
        %v1088 = vpop.f32.mrb[0].mxu0
        %v1089 = vadd.f32 %v1012, %v1088
        %1090 = vmatprep.mubr.f32.mxu0 %v257
        %1091 = vmatmul.mubr.f32.gmra.mrb[0].mxu0 %v256
        %v1092 = vpop.f32.mrb[0].mxu0
        %v1093 = vadd.f32 %v1016, %v1092
        %v1094 = vpop.f32.mrb[0].mxu0
        %v1095 = vadd.f32 %v1018, %v1094
        %1096 = vdwg.mxu0
        %1097 = vmatprep.subr.mxu0 %v261
        %1098 = vmatpush1.msra.mxu0 %v260
        %1099 = vmatprep.subr.mxu0 %v267
        %1100 = vmatpush1.msra.mxu0 %v266
        %1101 = vmatprep.subr.mxu0 %v273
        %1102 = vmatpush1.msra.mxu0 %v272
        %1103 = vmatprep.subr.mxu0 %v279
        %1104 = vmatpush1.msra.mxu0 %v278
        %1105 = vmatprep.subr.mxu0 %v285
        %1106 = vmatpush1.msra.mxu0 %v284
        %1107 = vmatprep.subr.mxu0 %v291
        %1108 = vmatpush1.msra.mxu0 %v290
        %1109 = vmatprep.subr.mxu0 %v297
        %1110 = vmatpush1.msra.mxu0 %v296
        %1111 = vmatprep.subr.mxu0 %v303
        %1112 = vmatpush1.msra.mxu0 %v302
        %1113 = vmatprep.subr.mxu0 %v309
        %1114 = vmatpush1.msra.mxu0 %v308
        %1115 = vmatprep.subr.mxu0 %v315
        %1116 = vmatpush1.msra.mxu0 %v314
        %1117 = vmatprep.subr.mxu0 %v321
        %1118 = vmatpush1.msra.mxu0 %v320
        %1119 = vmatprep.subr.mxu0 %v327
        %1120 = vmatpush1.msra.mxu0 %v326
        %1121 = vmatprep.subr.mxu0 %v333
        %1122 = vmatpush1.msra.mxu0 %v332
        %1123 = vmatprep.subr.mxu0 %v339
        %1124 = vmatpush1.msra.mxu0 %v338
        %1125 = vmatprep.subr.mxu0 %v345
        %1126 = vmatpush1.msra.mxu0 %v344
        %1127 = vmatprep.subr.mxu0 %v351
        %1128 = vmatpush1.msra.mxu0 %v350
        %1129 = vmatprep.subr.mxu0 %v357
        %1130 = vmatpush1.msra.mxu0 %v356
        %1131 = vmatprep.subr.mxu0 %v363
        %1132 = vmatpush1.msra.mxu0 %v362
        %1133 = vmatprep.subr.mxu0 %v369
        %1134 = vmatpush1.msra.mxu0 %v368
        %1135 = vmatprep.subr.mxu0 %v375
        %1136 = vmatpush1.msra.mxu0 %v374
        %1137 = vmatprep.subr.mxu0 %v381
        %1138 = vmatpush1.msra.mxu0 %v380
        %1139 = vmatprep.subr.mxu0 %v387
        %1140 = vmatpush1.msra.mxu0 %v386
        %1141 = vmatprep.subr.mxu0 %v393
        %1142 = vmatpush1.msra.mxu0 %v392
        %1143 = vmatprep.subr.mxu0 %v399
        %1144 = vmatpush1.msra.mxu0 %v398
        %1145 = vmatprep.subr.mxu0 %v405
        %1146 = vmatpush1.msra.mxu0 %v404
        %1147 = vmatprep.subr.mxu0 %v411
        %1148 = vmatpush1.msra.mxu0 %v410
        %1149 = vmatprep.subr.mxu0 %v417
        %1150 = vmatpush1.msra.mxu0 %v416
        %1151 = vmatprep.subr.mxu0 %v423
        %1152 = vmatpush1.msra.mxu0 %v422
        %1153 = vmatprep.subr.mxu0 %v429
        %1154 = vmatpush1.msra.mxu0 %v428
        %1155 = vmatprep.subr.mxu0 %v435
        %1156 = vmatpush1.msra.mxu0 %v434
        %1157 = vmatprep.subr.mxu0 %v441
        %1158 = vmatpush1.msra.mxu0 %v440
        %1159 = vmatprep.subr.mxu0 %v447
        %1160 = vmatpush1.msra.mxu0 %v446
        %1161 = vmatprep.mubr.f32.mxu0 %v247
        %1162 = vmatmul.mubr.f32.gmra.mrb[0].mxu0 %v246
        %v1163 = vpop.f32.mrb[0].mxu0
        %v1164 = vadd.f32 %v847, %v1163
        %v1165 = vpop.f32.mrb[0].mxu0
        %v1166 = vadd.f32 %v851, %v1165
        %1167 = vmatprep.mubr.f32.mxu0 %v253
        %1168 = vmatmul.mubr.f32.gmra.mrb[0].mxu0 %v252
        %v1169 = vpop.f32.mrb[0].mxu0
        %v1170 = vadd.f32 %v847, %v1169
        %v1171 = vpop.f32.mrb[0].mxu0
        %v1172 = vadd.f32 %v851, %v1171
        %1173 = vdwg.mxu0
        %1174 = vmatprep.subr.mxu0 %v453
        %1175 = vmatpush1.msra.mxu0 %v452
        %1176 = vmatprep.subr.mxu0 %v459
        %1177 = vmatpush1.msra.mxu0 %v458
        %1178 = vmatprep.subr.mxu0 %v465
        %1179 = vmatpush1.msra.mxu0 %v464
        %1180 = vmatprep.subr.mxu0 %v471
        %1181 = vmatpush1.msra.mxu0 %v470
        %1182 = vmatprep.subr.mxu0 %v477
        %1183 = vmatpush1.msra.mxu0 %v476
        %1184 = vmatprep.subr.mxu0 %v483
        %1185 = vmatpush1.msra.mxu0 %v482
        %1186 = vmatprep.subr.mxu0 %v489
        %1187 = vmatpush1.msra.mxu0 %v488
        %1188 = vmatprep.subr.mxu0 %v495
        %1189 = vmatpush1.msra.mxu0 %v494
        %1190 = vmatprep.subr.mxu0 %v501
        %1191 = vmatpush1.msra.mxu0 %v500
        %1192 = vmatprep.subr.mxu0 %v507
        %1193 = vmatpush1.msra.mxu0 %v506
        %1194 = vmatprep.subr.mxu0 %v513
        %1195 = vmatpush1.msra.mxu0 %v512
        %1196 = vmatprep.subr.mxu0 %v519
        %1197 = vmatpush1.msra.mxu0 %v518
        %1198 = vmatprep.subr.mxu0 %v525
        %1199 = vmatpush1.msra.mxu0 %v524
        %1200 = vmatprep.subr.mxu0 %v531
        %1201 = vmatpush1.msra.mxu0 %v530
        %1202 = vmatprep.subr.mxu0 %v537
        %1203 = vmatpush1.msra.mxu0 %v536
        %1204 = vmatprep.subr.mxu0 %v543
        %1205 = vmatpush1.msra.mxu0 %v542
        %1206 = vmatprep.subr.mxu0 %v549
        %1207 = vmatpush1.msra.mxu0 %v548
        %1208 = vmatprep.subr.mxu0 %v555
        %1209 = vmatpush1.msra.mxu0 %v554
        %1210 = vmatprep.subr.mxu0 %v561
        %1211 = vmatpush1.msra.mxu0 %v560
        %1212 = vmatprep.subr.mxu0 %v567
        %1213 = vmatpush1.msra.mxu0 %v566
        %1214 = vmatprep.subr.mxu0 %v573
        %1215 = vmatpush1.msra.mxu0 %v572
        %1216 = vmatprep.subr.mxu0 %v579
        %1217 = vmatpush1.msra.mxu0 %v578
        %1218 = vmatprep.subr.mxu0 %v585
        %1219 = vmatpush1.msra.mxu0 %v584
        %1220 = vmatprep.subr.mxu0 %v591
        %1221 = vmatpush1.msra.mxu0 %v590
        %1222 = vmatprep.subr.mxu0 %v597
        %1223 = vmatpush1.msra.mxu0 %v596
        %1224 = vmatprep.subr.mxu0 %v603
        %1225 = vmatpush1.msra.mxu0 %v602
        %1226 = vmatprep.subr.mxu0 %v609
        %1227 = vmatpush1.msra.mxu0 %v608
        %1228 = vmatprep.subr.mxu0 %v615
        %1229 = vmatpush1.msra.mxu0 %v614
        %1230 = vmatprep.subr.mxu0 %v621
        %1231 = vmatpush1.msra.mxu0 %v620
        %1232 = vmatprep.subr.mxu0 %v627
        %1233 = vmatpush1.msra.mxu0 %v626
        %1234 = vmatprep.subr.mxu0 %v633
        %1235 = vmatpush1.msra.mxu0 %v632
        %1236 = vmatprep.subr.mxu0 %v639
        %1237 = vmatpush1.msra.mxu0 %v638
        %1238 = vmatprep.mubr.f32.mxu0 %v249
        %1239 = vmatmul.mubr.f32.gmra.mrb[0].mxu0 %v248
        %v1240 = vpop.f32.mrb[0].mxu0
        %v1241 = vadd.f32 %v1164, %v1240
        %v1242 = vpop.f32.mrb[0].mxu0
        %v1243 = vadd.f32 %v1166, %v1242
        %1244 = vmatprep.mubr.f32.mxu0 %v255
        %1245 = vmatmul.mubr.f32.gmra.mrb[0].mxu0 %v254
        %v1246 = vpop.f32.mrb[0].mxu0
        %v1247 = vadd.f32 %v1170, %v1246
        %v1248 = vpop.f32.mrb[0].mxu0
        %v1249 = vadd.f32 %v1172, %v1248
        %1250 = vdwg.mxu0
        %1251 = vmatprep.subr.mxu0 %v645
        %1252 = vmatpush1.msra.mxu0 %v644
        %1253 = vmatprep.subr.mxu0 %v651
        %1254 = vmatpush1.msra.mxu0 %v650
        %1255 = vmatprep.subr.mxu0 %v657
        %1256 = vmatpush1.msra.mxu0 %v656
        %1257 = vmatprep.subr.mxu0 %v663
        %1258 = vmatpush1.msra.mxu0 %v662
        %1259 = vmatprep.subr.mxu0 %v669
        %1260 = vmatpush1.msra.mxu0 %v668
        %1261 = vmatprep.subr.mxu0 %v675
        %1262 = vmatpush1.msra.mxu0 %v674
        %1263 = vmatprep.subr.mxu0 %v681
        %1264 = vmatpush1.msra.mxu0 %v680
        %1265 = vmatprep.subr.mxu0 %v687
        %1266 = vmatpush1.msra.mxu0 %v686
        %1267 = vmatprep.subr.mxu0 %v693
        %1268 = vmatpush1.msra.mxu0 %v692
        %1269 = vmatprep.subr.mxu0 %v699
        %1270 = vmatpush1.msra.mxu0 %v698
        %1271 = vmatprep.subr.mxu0 %v705
        %1272 = vmatpush1.msra.mxu0 %v704
        %1273 = vmatprep.subr.mxu0 %v711
        %1274 = vmatpush1.msra.mxu0 %v710
        %1275 = vmatprep.subr.mxu0 %v717
        %1276 = vmatpush1.msra.mxu0 %v716
        %1277 = vmatprep.subr.mxu0 %v723
        %1278 = vmatpush1.msra.mxu0 %v722
        %1279 = vmatprep.subr.mxu0 %v729
        %1280 = vmatpush1.msra.mxu0 %v728
        %1281 = vmatprep.subr.mxu0 %v735
        %1282 = vmatpush1.msra.mxu0 %v734
        %1283 = vmatprep.subr.mxu0 %v741
        %1284 = vmatpush1.msra.mxu0 %v740
        %1285 = vmatprep.subr.mxu0 %v747
        %1286 = vmatpush1.msra.mxu0 %v746
        %1287 = vmatprep.subr.mxu0 %v753
        %1288 = vmatpush1.msra.mxu0 %v752
        %1289 = vmatprep.subr.mxu0 %v759
        %1290 = vmatpush1.msra.mxu0 %v758
        %1291 = vmatprep.subr.mxu0 %v765
        %1292 = vmatpush1.msra.mxu0 %v764
        %1293 = vmatprep.subr.mxu0 %v771
        %1294 = vmatpush1.msra.mxu0 %v770
        %1295 = vmatprep.subr.mxu0 %v777
        %1296 = vmatpush1.msra.mxu0 %v776
        %1297 = vmatprep.subr.mxu0 %v783
        %1298 = vmatpush1.msra.mxu0 %v782
        %1299 = vmatprep.subr.mxu0 %v789
        %1300 = vmatpush1.msra.mxu0 %v788
        %1301 = vmatprep.subr.mxu0 %v795
        %1302 = vmatpush1.msra.mxu0 %v794
        %1303 = vmatprep.subr.mxu0 %v801
        %1304 = vmatpush1.msra.mxu0 %v800
        %1305 = vmatprep.subr.mxu0 %v807
        %1306 = vmatpush1.msra.mxu0 %v806
        %1307 = vmatprep.subr.mxu0 %v813
        %1308 = vmatpush1.msra.mxu0 %v812
        %1309 = vmatprep.subr.mxu0 %v819
        %1310 = vmatpush1.msra.mxu0 %v818
        %1311 = vmatprep.subr.mxu0 %v825
        %1312 = vmatpush1.msra.mxu0 %v824
        %1313 = vmatprep.subr.mxu0 %v831
        %1314 = vmatpush1.msra.mxu0 %v830
        %1315 = vmatprep.mubr.f32.mxu0 %v251
        %1316 = vmatmul.mubr.f32.gmra.mrb[0].mxu0 %v250
        %v1317 = vpop.f32.mrb[0].mxu0
        %v1318 = vadd.f32 %v1241, %v1317
        %v1319 = vpop.f32.mrb[0].mxu0
        %v1320 = vadd.f32 %v1243, %v1319
        %1321 = vmatprep.mubr.f32.mxu0 %v257
        %1322 = vmatmul.mubr.f32.gmra.mrb[0].mxu0 %v256
        %v1323 = vpop.f32.mrb[0].mxu0
        %v1324 = vadd.f32 %v1247, %v1323
        %v1325 = vpop.f32.mrb[0].mxu0
        %v1326 = vadd.f32 %v1249, %v1325
        %1327 = vdwg.mxu0
        %1328 = vmatprep.subr.mxu0 %v263
        %1329 = vmatpush1.msra.mxu0 %v262
        %1330 = vmatprep.subr.mxu0 %v269
        %1331 = vmatpush1.msra.mxu0 %v268
        %1332 = vmatprep.subr.mxu0 %v275
        %1333 = vmatpush1.msra.mxu0 %v274
        %1334 = vmatprep.subr.mxu0 %v281
        %1335 = vmatpush1.msra.mxu0 %v280
        %1336 = vmatprep.subr.mxu0 %v287
        %1337 = vmatpush1.msra.mxu0 %v286
        %1338 = vmatprep.subr.mxu0 %v293
        %1339 = vmatpush1.msra.mxu0 %v292
        %1340 = vmatprep.subr.mxu0 %v299
        %1341 = vmatpush1.msra.mxu0 %v298
        %1342 = vmatprep.subr.mxu0 %v305
        %1343 = vmatpush1.msra.mxu0 %v304
        %1344 = vmatprep.subr.mxu0 %v311
        %1345 = vmatpush1.msra.mxu0 %v310
        %1346 = vmatprep.subr.mxu0 %v317
        %1347 = vmatpush1.msra.mxu0 %v316
        %1348 = vmatprep.subr.mxu0 %v323
        %1349 = vmatpush1.msra.mxu0 %v322
        %1350 = vmatprep.subr.mxu0 %v329
        %1351 = vmatpush1.msra.mxu0 %v328
        %1352 = vmatprep.subr.mxu0 %v335
        %1353 = vmatpush1.msra.mxu0 %v334
        %1354 = vmatprep.subr.mxu0 %v341
        %1355 = vmatpush1.msra.mxu0 %v340
        %1356 = vmatprep.subr.mxu0 %v347
        %1357 = vmatpush1.msra.mxu0 %v346
        %1358 = vmatprep.subr.mxu0 %v353
        %1359 = vmatpush1.msra.mxu0 %v352
        %1360 = vmatprep.subr.mxu0 %v359
        %1361 = vmatpush1.msra.mxu0 %v358
        %1362 = vmatprep.subr.mxu0 %v365
        %1363 = vmatpush1.msra.mxu0 %v364
        %1364 = vmatprep.subr.mxu0 %v371
        %1365 = vmatpush1.msra.mxu0 %v370
        %1366 = vmatprep.subr.mxu0 %v377
        %1367 = vmatpush1.msra.mxu0 %v376
        %1368 = vmatprep.subr.mxu0 %v383
        %1369 = vmatpush1.msra.mxu0 %v382
        %1370 = vmatprep.subr.mxu0 %v389
        %1371 = vmatpush1.msra.mxu0 %v388
        %1372 = vmatprep.subr.mxu0 %v395
        %1373 = vmatpush1.msra.mxu0 %v394
        %1374 = vmatprep.subr.mxu0 %v401
        %1375 = vmatpush1.msra.mxu0 %v400
        %1376 = vmatprep.subr.mxu0 %v407
        %1377 = vmatpush1.msra.mxu0 %v406
        %1378 = vmatprep.subr.mxu0 %v413
        %1379 = vmatpush1.msra.mxu0 %v412
        %1380 = vmatprep.subr.mxu0 %v419
        %1381 = vmatpush1.msra.mxu0 %v418
        %1382 = vmatprep.subr.mxu0 %v425
        %1383 = vmatpush1.msra.mxu0 %v424
        %1384 = vmatprep.subr.mxu0 %v431
        %1385 = vmatpush1.msra.mxu0 %v430
        %1386 = vmatprep.subr.mxu0 %v437
        %1387 = vmatpush1.msra.mxu0 %v436
        %1388 = vmatprep.subr.mxu0 %v443
        %1389 = vmatpush1.msra.mxu0 %v442
        %1390 = vmatprep.subr.mxu0 %v449
        %1391 = vmatpush1.msra.mxu0 %v448
        %1392 = vmatprep.mubr.f32.mxu0 %v247
        %1393 = vmatmul.mubr.f32.gmra.mrb[0].mxu0 %v246
        %v1394 = vpop.f32.mrb[0].mxu0
        %v1395 = vadd.f32 %v855, %v1394
        %v1396 = vpop.f32.mrb[0].mxu0
        %v1397 = vadd.f32 %v859, %v1396
        %1398 = vmatprep.mubr.f32.mxu0 %v253
        %1399 = vmatmul.mubr.f32.gmra.mrb[0].mxu0 %v252
        %v1400 = vpop.f32.mrb[0].mxu0
        %v1401 = vadd.f32 %v855, %v1400
        %v1402 = vpop.f32.mrb[0].mxu0
        %v1403 = vadd.f32 %v859, %v1402
        %1404 = vdwg.mxu0
        %1405 = vmatprep.subr.mxu0 %v455
        %1406 = vmatpush1.msra.mxu0 %v454
        %1407 = vmatprep.subr.mxu0 %v461
        %1408 = vmatpush1.msra.mxu0 %v460
        %1409 = vmatprep.subr.mxu0 %v467
        %1410 = vmatpush1.msra.mxu0 %v466
        %1411 = vmatprep.subr.mxu0 %v473
        %1412 = vmatpush1.msra.mxu0 %v472
        %1413 = vmatprep.subr.mxu0 %v479
        %1414 = vmatpush1.msra.mxu0 %v478
        %1415 = vmatprep.subr.mxu0 %v485
        %1416 = vmatpush1.msra.mxu0 %v484
        %1417 = vmatprep.subr.mxu0 %v491
        %1418 = vmatpush1.msra.mxu0 %v490
        %1419 = vmatprep.subr.mxu0 %v497
        %1420 = vmatpush1.msra.mxu0 %v496
        %1421 = vmatprep.subr.mxu0 %v503
        %1422 = vmatpush1.msra.mxu0 %v502
        %1423 = vmatprep.subr.mxu0 %v509
        %1424 = vmatpush1.msra.mxu0 %v508
        %1425 = vmatprep.subr.mxu0 %v515
        %1426 = vmatpush1.msra.mxu0 %v514
        %1427 = vmatprep.subr.mxu0 %v521
        %1428 = vmatpush1.msra.mxu0 %v520
        %1429 = vmatprep.subr.mxu0 %v527
        %1430 = vmatpush1.msra.mxu0 %v526
        %1431 = vmatprep.subr.mxu0 %v533
        %1432 = vmatpush1.msra.mxu0 %v532
        %1433 = vmatprep.subr.mxu0 %v539
        %1434 = vmatpush1.msra.mxu0 %v538
        %1435 = vmatprep.subr.mxu0 %v545
        %1436 = vmatpush1.msra.mxu0 %v544
        %1437 = vmatprep.subr.mxu0 %v551
        %1438 = vmatpush1.msra.mxu0 %v550
        %1439 = vmatprep.subr.mxu0 %v557
        %1440 = vmatpush1.msra.mxu0 %v556
        %1441 = vmatprep.subr.mxu0 %v563
        %1442 = vmatpush1.msra.mxu0 %v562
        %1443 = vmatprep.subr.mxu0 %v569
        %1444 = vmatpush1.msra.mxu0 %v568
        %1445 = vmatprep.subr.mxu0 %v575
        %1446 = vmatpush1.msra.mxu0 %v574
        %1447 = vmatprep.subr.mxu0 %v581
        %1448 = vmatpush1.msra.mxu0 %v580
        %1449 = vmatprep.subr.mxu0 %v587
        %1450 = vmatpush1.msra.mxu0 %v586
        %1451 = vmatprep.subr.mxu0 %v593
        %1452 = vmatpush1.msra.mxu0 %v592
        %1453 = vmatprep.subr.mxu0 %v599
        %1454 = vmatpush1.msra.mxu0 %v598
        %1455 = vmatprep.subr.mxu0 %v605
        %1456 = vmatpush1.msra.mxu0 %v604
        %1457 = vmatprep.subr.mxu0 %v611
        %1458 = vmatpush1.msra.mxu0 %v610
        %1459 = vmatprep.subr.mxu0 %v617
        %1460 = vmatpush1.msra.mxu0 %v616
        %1461 = vmatprep.subr.mxu0 %v623
        %1462 = vmatpush1.msra.mxu0 %v622
        %1463 = vmatprep.subr.mxu0 %v629
        %1464 = vmatpush1.msra.mxu0 %v628
        %1465 = vmatprep.subr.mxu0 %v635
        %1466 = vmatpush1.msra.mxu0 %v634
        %1467 = vmatprep.subr.mxu0 %v641
        %1468 = vmatpush1.msra.mxu0 %v640
        %1469 = vmatprep.mubr.f32.mxu0 %v249
        %1470 = vmatmul.mubr.f32.gmra.mrb[0].mxu0 %v248
        %v1471 = vpop.f32.mrb[0].mxu0
        %v1472 = vadd.f32 %v1395, %v1471
        %v1473 = vpop.f32.mrb[0].mxu0
        %v1474 = vadd.f32 %v1397, %v1473
        %1475 = vmatprep.mubr.f32.mxu0 %v255
        %1476 = vmatmul.mubr.f32.gmra.mrb[0].mxu0 %v254
        %v1477 = vpop.f32.mrb[0].mxu0
        %v1478 = vadd.f32 %v1401, %v1477
        %v1479 = vpop.f32.mrb[0].mxu0
        %v1480 = vadd.f32 %v1403, %v1479
        %1481 = vdwg.mxu0
        %1482 = vmatprep.subr.mxu0 %v647
        %1483 = vmatpush1.msra.mxu0 %v646
        %1484 = vmatprep.subr.mxu0 %v653
        %1485 = vmatpush1.msra.mxu0 %v652
        %1486 = vmatprep.subr.mxu0 %v659
        %1487 = vmatpush1.msra.mxu0 %v658
        %1488 = vmatprep.subr.mxu0 %v665
        %1489 = vmatpush1.msra.mxu0 %v664
        %1490 = vmatprep.subr.mxu0 %v671
        %1491 = vmatpush1.msra.mxu0 %v670
        %1492 = vmatprep.subr.mxu0 %v677
        %1493 = vmatpush1.msra.mxu0 %v676
        %1494 = vmatprep.subr.mxu0 %v683
        %1495 = vmatpush1.msra.mxu0 %v682
        %1496 = vmatprep.subr.mxu0 %v689
        %1497 = vmatpush1.msra.mxu0 %v688
        %1498 = vmatprep.subr.mxu0 %v695
        %1499 = vmatpush1.msra.mxu0 %v694
        %1500 = vmatprep.subr.mxu0 %v701
        %1501 = vmatpush1.msra.mxu0 %v700
        %1502 = vmatprep.subr.mxu0 %v707
        %1503 = vmatpush1.msra.mxu0 %v706
        %1504 = vmatprep.subr.mxu0 %v713
        %1505 = vmatpush1.msra.mxu0 %v712
        %1506 = vmatprep.subr.mxu0 %v719
        %1507 = vmatpush1.msra.mxu0 %v718
        %1508 = vmatprep.subr.mxu0 %v725
        %1509 = vmatpush1.msra.mxu0 %v724
        %1510 = vmatprep.subr.mxu0 %v731
        %1511 = vmatpush1.msra.mxu0 %v730
        %1512 = vmatprep.subr.mxu0 %v737
        %1513 = vmatpush1.msra.mxu0 %v736
        %1514 = vmatprep.subr.mxu0 %v743
        %1515 = vmatpush1.msra.mxu0 %v742
        %1516 = vmatprep.subr.mxu0 %v749
        %1517 = vmatpush1.msra.mxu0 %v748
        %1518 = vmatprep.subr.mxu0 %v755
        %1519 = vmatpush1.msra.mxu0 %v754
        %1520 = vmatprep.subr.mxu0 %v761
        %1521 = vmatpush1.msra.mxu0 %v760
        %1522 = vmatprep.subr.mxu0 %v767
        %1523 = vmatpush1.msra.mxu0 %v766
        %1524 = vmatprep.subr.mxu0 %v773
        %1525 = vmatpush1.msra.mxu0 %v772
        %1526 = vmatprep.subr.mxu0 %v779
        %1527 = vmatpush1.msra.mxu0 %v778
        %1528 = vmatprep.subr.mxu0 %v785
        %1529 = vmatpush1.msra.mxu0 %v784
        %1530 = vmatprep.subr.mxu0 %v791
        %1531 = vmatpush1.msra.mxu0 %v790
        %1532 = vmatprep.subr.mxu0 %v797
        %1533 = vmatpush1.msra.mxu0 %v796
        %1534 = vmatprep.subr.mxu0 %v803
        %1535 = vmatpush1.msra.mxu0 %v802
        %1536 = vmatprep.subr.mxu0 %v809
        %1537 = vmatpush1.msra.mxu0 %v808
        %1538 = vmatprep.subr.mxu0 %v815
        %1539 = vmatpush1.msra.mxu0 %v814
        %1540 = vmatprep.subr.mxu0 %v821
        %1541 = vmatpush1.msra.mxu0 %v820
        %1542 = vmatprep.subr.mxu0 %v827
        %1543 = vmatpush1.msra.mxu0 %v826
        %1544 = vmatprep.subr.mxu0 %v833
        %1545 = vmatpush1.msra.mxu0 %v832
        %1546 = vmatprep.mubr.f32.mxu0 %v251
        %1547 = vmatmul.mubr.f32.gmra.mrb[0].mxu0 %v250
        %v1548 = vpop.f32.mrb[0].mxu0
        %v1549 = vadd.f32 %v1472, %v1548
        %v1550 = vpop.f32.mrb[0].mxu0
        %v1551 = vadd.f32 %v1474, %v1550
        %1552 = vmatprep.mubr.f32.mxu0 %v257
        %1553 = vmatmul.mubr.f32.gmra.mrb[0].mxu0 %v256
        %v1554 = vpop.f32.mrb[0].mxu0
        %v1555 = vadd.f32 %v1478, %v1554
        %v1556 = vpop.f32.mrb[0].mxu0
        %v1557 = vadd.f32 %v1480, %v1556
        %1558 = vdwg.mxu0
        %1559 = vst [vmem:[%s236] sm:$0xff] %v1087
        %1560 = vst [vmem:[%s236 + $0x8] sm:$0xff] %v1089
        %1561 = vst [vmem:[%s236 + $0x10] sm:$0xff] %v1318
        %1562 = vst [vmem:[%s236 + $0x18] sm:$0xff] %v1320
        %1563 = vst [vmem:[%s236 + $0x20] sm:$0xff] %v1549
        %1564 = vst [vmem:[%s236 + $0x28] sm:$0xff] %v1551
        %1565 = vst [vmem:[%s236 + $0x30] sm:$0xff] %v1093
        %1566 = vst [vmem:[%s236 + $0x38] sm:$0xff] %v1095
        %1567 = vst [vmem:[%s236 + $0x40] sm:$0xff] %v1324
        %1568 = vst [vmem:[%s236 + $0x48] sm:$0xff] %v1326
        %1569 = vst [vmem:[%s236 + $0x50] sm:$0xff] %v1555
        %1570 = vst [vmem:[%s236 + $0x58] sm:$0xff] %v1557
        %s1571 = sand.u32 %s118, 1
        %s1572 = sand.u32 %s118, 1
        %s1573 = smul.addr %s1572, 96
        %s1574 = scalar_lea.vmem [#allocation6], %s1573
        // Predicated region
        $region41: #{encoder_layer.4} parent=31 // pred_check
          %p1575 = pneg %p128
        $region42: #{encoder_layer.4} parent=31 // pred_check_branch
          %1577 = sbr.rel (%p1575) target = $region44
        $region43: #{encoder_layer.4} parent=31 // pred_region
          %s1578 = smul.u32 2, %s22
          %s1579 = smul.u32 6, %s23
          %s1580 = smul.addr %s1578, 18
          %s1581 = sadd.s32 %s1579, %s1580
          %s1582 = smul.addr %s1581, 8
          %s1583 = scalar_lea.vmem %s3, %s1582
          // Predicated region
          $region45: #{encoder_layer.4} parent=43 // pred_check
            _
          $region46: #{encoder_layer.4} parent=43 // pred_check_branch
            %1585 = sbr.rel (0) target = $region48
          $region47: #{encoder_layer.4} parent=43 // pred_region
            // Predicated region
            $region49: #{encoder_layer.4} parent=47 // pred_check
              _
            $region50: #{encoder_layer.4} parent=47 // pred_check_branch
              %1587 = sbr.rel (0) target = $region52
            $region51: #{encoder_layer.4} parent=47 // pred_region
              loop: start=0, step=1, limit=1
              $region53: #{encoder_layer.4} parent=51 // loop_pre_header
                _
              $region54: #{encoder_layer.4} parent=51 // loop_header
                %s1589 = sphi 0, %s1593
                %p1590 = scmp.ge.s32.totalorder %s1589, 1
                %s1594 = sphi %s1574, %s1574
                %s1595 = sphi %s1583, %s1583
              $region55: #{encoder_layer.4} parent=51 // loop_header_branch
                %1592 = sbr.rel (%p1590) target = $region59
              $region56: #{encoder_layer.4} parent=51 // loop_body
                %v1596 = vld [vmem:[%s1594] sm:$0xff]
                %1597 = vst [vmem:[%s1595] sm:$0xff] %v1596
                %v1598 = vld [vmem:[%s1594 + $0x8] sm:$0xff]
                %1599 = vst [vmem:[%s1595 + $0x8] sm:$0xff] %v1598
                %v1600 = vld [vmem:[%s1594 + $0x10] sm:$0xff]
                %1601 = vst [vmem:[%s1595 + $0x10] sm:$0xff] %v1600
                %v1602 = vld [vmem:[%s1594 + $0x18] sm:$0xff]
                %1603 = vst [vmem:[%s1595 + $0x18] sm:$0xff] %v1602
                %v1604 = vld [vmem:[%s1594 + $0x20] sm:$0xff]
                %1605 = vst [vmem:[%s1595 + $0x20] sm:$0xff] %v1604
                %v1606 = vld [vmem:[%s1594 + $0x28] sm:$0xff]
                %1607 = vst [vmem:[%s1595 + $0x28] sm:$0xff] %v1606
                %v1608 = vld [vmem:[%s1594 + $0x30] sm:$0xff]
                %1609 = vst [vmem:[%s1595 + $0x90] sm:$0xff] %v1608
                %v1610 = vld [vmem:[%s1594 + $0x38] sm:$0xff]
                %1611 = vst [vmem:[%s1595 + $0x98] sm:$0xff] %v1610
                %v1612 = vld [vmem:[%s1594 + $0x40] sm:$0xff]
                %1613 = vst [vmem:[%s1595 + $0xa0] sm:$0xff] %v1612
                %v1614 = vld [vmem:[%s1594 + $0x48] sm:$0xff]
                %1615 = vst [vmem:[%s1595 + $0xa8] sm:$0xff] %v1614
                %v1616 = vld [vmem:[%s1594 + $0x50] sm:$0xff]
                %1617 = vst [vmem:[%s1595 + $0xb0] sm:$0xff] %v1616
                %v1618 = vld [vmem:[%s1594 + $0x58] sm:$0xff]
                %1619 = vst [vmem:[%s1595 + $0xb8] sm:$0xff] %v1618
              $region57: #{encoder_layer.4} parent=51 // loop_footer
                %s1593 = sadd.s32 1, %s1589
              $region58: #{encoder_layer.4} parent=51 // loop_footer_branch
                %1588 = sbr.rel target = $region54
              $region59: #{encoder_layer.4} parent=51 // loop_exit
                _
            $region52: #{encoder_layer.4} parent=47 // pred_fallthru
              _
            // Predicated region
            $region60: #{encoder_layer.4} parent=47 // pred_check
              _
            $region61: #{encoder_layer.4} parent=47 // pred_check_branch
              %1621 = sbr.rel target = $region63
            $region62: #{encoder_layer.4} parent=47 // pred_region
              _
            $region63: #{encoder_layer.4} parent=47 // pred_fallthru
              _
          $region48: #{encoder_layer.4} parent=43 // pred_fallthru
            _
          %1622 = vnop
        $region44: #{encoder_layer.4} parent=31 // pred_fallthru
          _
      $region32: #{encoder_layer.4} parent=5 // pred_fallthru
        _
      %p1623 = scmp.le.s32.totalorder 2, %s13
      // Predicated region
      $region64: #{encoder_layer.4} parent=5 // pred_check
        %p1624 = pneg %p1623
      $region65: #{encoder_layer.4} parent=5 // pred_check_branch
        %1626 = sbr.rel (%p1624) target = $region67
      $region66: #{encoder_layer.4} parent=5 // pred_region
        %s1627 = ssub.s32 %s13, 2
        // Predicated region
        $region68: #{encoder_layer.4} parent=66 // pred_check
          %p1628 = pneg %p134
        $region69: #{encoder_layer.4} parent=66 // pred_check_branch
          %1630 = sbr.rel (%p1628) target = $region71
        $region70: #{encoder_layer.4} parent=66 // pred_region
          %s1631 = sand.u32 %s119, 1
          %s1632 = sand.u32 %s119, 1
          %s1633 = smul.addr %s1632, 96
          %s1634 = scalar_lea.vmem [#allocation6], %s1633
        $region71: #{encoder_layer.4} parent=66 // pred_fallthru
          _
      $region67: #{encoder_layer.4} parent=5 // pred_fallthru
        _
    $region6: #{encoder_layer.4} parent=1 // loop_footer
      %s17 = sadd.s32 1, %s13
    $region7: #{encoder_layer.4} parent=1 // loop_footer_branch
      %12 = sbr.rel target = $region3
    $region8: #{encoder_layer.4} parent=1 // loop_exit
      _
    %1635 = vsyncpa [#allocation3], 1
    %s1636 = scalar_lea.sflag [#allocation3], 1
    %1637 = vsyncpa %s1636, 1
    %1638 = vsyncpa [#allocation5], 1
    %s1639 = scalar_lea.sflag [#allocation5], 1
    %1640 = vsyncpa %s1639, 1

// kernel: encoder_layer.6
$region0: #{encoder_layer.6}
  #allocation0 [shape = 'u32[]', space=smem, size = 0x4, offset = 0x4, fixed_abs, tag = 'smem constant byte address 0x4 - core index']
  #allocation1 [shape = 'u32[144,128]{1,0:T(1,128)}', space=vmem, size = 0x12000, scoped, tag = 'internal scratch']
  %s0 = inlined_call_operand.vmem [shape: f32[16,768], index: 0, kind: input, shape index: {}]
  %s1 = inlined_call_operand.hbm [shape: f32[16,768], index: 1, kind: input, shape index: {}]
  %s2 = inlined_call_operand.hbm [shape: f32[768,768], index: 2, kind: input, shape index: {}]
  %s3 = inlined_call_operand.vmem [shape: f32[1,768], index: 3, kind: input, shape index: {}]
  %s4 = inlined_call_operand.vmem [shape: f32[1,768], index: 4, kind: input, shape index: {}]
  %s5 = inlined_call_operand.vmem [shape: f32[1,768], index: 5, kind: input, shape index: {}]
  %s6 = inlined_call_operand.vmem [shape: f32[16,768], index: 6, kind: output, shape index: {}]
  %s7 = sld [smem:[#allocation0]]
  $region42: #{encoder_layer.6} parent=0
    _
  %s9 = ssub.s32 1, %s7
  %s10 = scalar_select 0, %s9, %s7
  $region1: #{encoder_layer.6} parent=0
    #allocation2 [shape = 'u8[49152]{0}', space=vmem, size = 0xc000, scoped, tag = 'input window, operand 1, single buffered']
    #allocation3 [shape = 's32[1]{0}', space=sflag, size = 0x4, scoped, tag = 'scoped memory for encoder_layer.6']
    #allocation4 [shape = 'u8[2359296]{0}', space=vmem, size = 0x240000, scoped, tag = 'input window, operand 2, single buffered']
    #allocation5 [shape = 's32[1]{0}', space=sflag, size = 0x4, scoped, tag = 'scoped memory for encoder_layer.6']
    %11 = vsyncpa [#allocation3], 0
    %12 = vsyncpa [#allocation5], 0
    // Predicated region
    $region2: #{encoder_layer.6} parent=1 // pred_check
      _
    $region3: #{encoder_layer.6} parent=1 // pred_check_branch
      %14 = sbr.rel (0) target = $region5
    $region4: #{encoder_layer.6} parent=1 // pred_region
      _
    $region5: #{encoder_layer.6} parent=1 // pred_fallthru
      _
    // Predicated region
    $region6: #{encoder_layer.6} parent=1 // pred_check
      _
    $region7: #{encoder_layer.6} parent=1 // pred_check_branch
      %16 = sbr.rel (0) target = $region9
    $region8: #{encoder_layer.6} parent=1 // pred_region
      %s18 = ssub.s32 1536, 1536
      %19 = vsyncadd [#allocation3], %s18
      %s20 = sshll.u32 [#allocation2], 4
      %s21 = int_to_ptr.vmem [resolvable:$true] %s20
      %26 = dma.hbm_to_vmem [thread:$0]  %s1, 1536, %s21, [#allocation3], 768, 768, 48
    $region9: #{encoder_layer.6} parent=1 // pred_fallthru
      _
    // Predicated region
    $region10: #{encoder_layer.6} parent=1 // pred_check
      _
    $region11: #{encoder_layer.6} parent=1 // pred_check_branch
      %28 = sbr.rel (0) target = $region13
    $region12: #{encoder_layer.6} parent=1 // pred_region
      %s30 = ssub.s32 73728, 73728
      %31 = vsyncadd [#allocation5], %s30
      %s32 = sshll.u32 [#allocation4], 4
      %s33 = int_to_ptr.vmem [resolvable:$true] %s32
      %38 = dma.hbm_to_vmem [thread:$0]  %s2, 73728, %s33, [#allocation5], 768, 768, 48
    $region13: #{encoder_layer.6} parent=1 // pred_fallthru
      _
    // Predicated region
    $region14: #{encoder_layer.6} parent=1 // pred_check
      _
    $region15: #{encoder_layer.6} parent=1 // pred_check_branch
      %40 = sbr.rel (0) target = $region17
    $region16: #{encoder_layer.6} parent=1 // pred_region
      _
    $region17: #{encoder_layer.6} parent=1 // pred_fallthru
      _
    // Predicated region
    $region18: #{encoder_layer.6} parent=1 // pred_check
      _
    $region19: #{encoder_layer.6} parent=1 // pred_check_branch
      %42 = sbr.rel (0) target = $region21
    $region20: #{encoder_layer.6} parent=1 // pred_region
      _
    $region21: #{encoder_layer.6} parent=1 // pred_fallthru
      _
    // Predicated region
    $region22: #{encoder_layer.6} parent=1 // pred_check
      _
    $region23: #{encoder_layer.6} parent=1 // pred_check_branch
      %44 = sbr.rel (0) target = $region25
    $region24: #{encoder_layer.6} parent=1 // pred_region
      _
    $region25: #{encoder_layer.6} parent=1 // pred_fallthru
      _
    // Predicated region
    $region26: #{encoder_layer.6} parent=1 // pred_check
      _
    $region27: #{encoder_layer.6} parent=1 // pred_check_branch
      %46 = sbr.rel (0) target = $region29
    $region28: #{encoder_layer.6} parent=1 // pred_region
      %47 = dma.done [#allocation3], 1536
    $region29: #{encoder_layer.6} parent=1 // pred_fallthru
      _
    // Predicated region
    $region30: #{encoder_layer.6} parent=1 // pred_check
      _
    $region31: #{encoder_layer.6} parent=1 // pred_check_branch
      %49 = sbr.rel (0) target = $region33
    $region32: #{encoder_layer.6} parent=1 // pred_region
      %50 = dma.done [#allocation5], 73728
    $region33: #{encoder_layer.6} parent=1 // pred_fallthru
      _
    %v51 = vld [vmem:[%s0] sm:$0xff]
    %v52 = vld [vmem:[%s0 + $0x8] sm:$0xff]
    %v53 = vld [vmem:[%s0 + $0x10] sm:$0xff]
    %v54 = vld [vmem:[%s0 + $0x18] sm:$0xff]
    %v55 = vld [vmem:[%s0 + $0x20] sm:$0xff]
    %v56 = vld [vmem:[%s0 + $0x28] sm:$0xff]
    %v57 = vld [vmem:[%s0 + $0x30] sm:$0xff]
    %v58 = vld [vmem:[%s0 + $0x38] sm:$0xff]
    %v59 = vld [vmem:[%s0 + $0x40] sm:$0xff]
    %v60 = vld [vmem:[%s0 + $0x48] sm:$0xff]
    %v61 = vld [vmem:[%s0 + $0x50] sm:$0xff]
    %v62 = vld [vmem:[%s0 + $0x58] sm:$0xff]
    %v63 = vld [vmem:[#allocation4] sm:$0xff]
    %v64 = vld [vmem:[#allocation4 + $0x8] sm:$0xff]
    %v65 = vld [vmem:[#allocation4 + $0x10] sm:$0xff]
    %v66 = vld [vmem:[#allocation4 + $0x18] sm:$0xff]
    %v67 = vld [vmem:[#allocation4 + $0x20] sm:$0xff]
    %v68 = vld [vmem:[#allocation4 + $0x28] sm:$0xff]
    %v69 = vld [vmem:[#allocation4 + $0x30] sm:$0xff]
    %v70 = vld [vmem:[#allocation4 + $0x38] sm:$0xff]
    %v71 = vld [vmem:[#allocation4 + $0x40] sm:$0xff]
    %v72 = vld [vmem:[#allocation4 + $0x48] sm:$0xff]
    %v73 = vld [vmem:[#allocation4 + $0x50] sm:$0xff]
    %v74 = vld [vmem:[#allocation4 + $0x58] sm:$0xff]
    %v75 = vld [vmem:[#allocation4 + $0x60] sm:$0xff]
    %v76 = vld [vmem:[#allocation4 + $0x68] sm:$0xff]
    %v77 = vld [vmem:[#allocation4 + $0x70] sm:$0xff]
    %v78 = vld [vmem:[#allocation4 + $0x78] sm:$0xff]
    %v79 = vld [vmem:[#allocation4 + $0x80] sm:$0xff]
    %v80 = vld [vmem:[#allocation4 + $0x88] sm:$0xff]
    %v81 = vld [vmem:[#allocation4 + $0x90] sm:$0xff]
    %v82 = vld [vmem:[#allocation4 + $0x98] sm:$0xff]
    %v83 = vld [vmem:[#allocation4 + $0xa0] sm:$0xff]
    %v84 = vld [vmem:[#allocation4 + $0xa8] sm:$0xff]
    %v85 = vld [vmem:[#allocation4 + $0xb0] sm:$0xff]
    %v86 = vld [vmem:[#allocation4 + $0xb8] sm:$0xff]
    %v87 = vld [vmem:[#allocation4 + $0xc0] sm:$0xff]
    %v88 = vld [vmem:[#allocation4 + $0xc8] sm:$0xff]
    %v89 = vld [vmem:[#allocation4 + $0xd0] sm:$0xff]
    %v90 = vld [vmem:[#allocation4 + $0xd8] sm:$0xff]
    %v91 = vld [vmem:[#allocation4 + $0xe0] sm:$0xff]
    %v92 = vld [vmem:[#allocation4 + $0xe8] sm:$0xff]
    %v93 = vld [vmem:[#allocation4 + $0xf0] sm:$0xff]
    %v94 = vld [vmem:[#allocation4 + $0xf8] sm:$0xff]
    %v95 = vld [vmem:[#allocation4 + $0x100] sm:$0xff]
    %v96 = vld [vmem:[#allocation4 + $0x108] sm:$0xff]
    %v97 = vld [vmem:[#allocation4 + $0x110] sm:$0xff]
    %v98 = vld [vmem:[#allocation4 + $0x118] sm:$0xff]
    %v99 = vld [vmem:[#allocation4 + $0x120] sm:$0xff]
    %v100 = vld [vmem:[#allocation4 + $0x128] sm:$0xff]
    %v101 = vld [vmem:[#allocation4 + $0x130] sm:$0xff]
    %v102 = vld [vmem:[#allocation4 + $0x138] sm:$0xff]
    %v103 = vld [vmem:[#allocation4 + $0x140] sm:$0xff]
    %v104 = vld [vmem:[#allocation4 + $0x148] sm:$0xff]
    %v105 = vld [vmem:[#allocation4 + $0x150] sm:$0xff]
    %v106 = vld [vmem:[#allocation4 + $0x158] sm:$0xff]
    %v107 = vld [vmem:[#allocation4 + $0x160] sm:$0xff]
    %v108 = vld [vmem:[#allocation4 + $0x168] sm:$0xff]
    %v109 = vld [vmem:[#allocation4 + $0x170] sm:$0xff]
    %v110 = vld [vmem:[#allocation4 + $0x178] sm:$0xff]
    %v111 = vld [vmem:[#allocation4 + $0x180] sm:$0xff]
    %v112 = vld [vmem:[#allocation4 + $0x188] sm:$0xff]
    %v113 = vld [vmem:[#allocation4 + $0x190] sm:$0xff]
    %v114 = vld [vmem:[#allocation4 + $0x198] sm:$0xff]
    %v115 = vld [vmem:[#allocation4 + $0x1a0] sm:$0xff]
    %v116 = vld [vmem:[#allocation4 + $0x1a8] sm:$0xff]
    %v117 = vld [vmem:[#allocation4 + $0x1b0] sm:$0xff]
    %v118 = vld [vmem:[#allocation4 + $0x1b8] sm:$0xff]
    %v119 = vld [vmem:[#allocation4 + $0x1c0] sm:$0xff]
    %v120 = vld [vmem:[#allocation4 + $0x1c8] sm:$0xff]
    %v121 = vld [vmem:[#allocation4 + $0x1d0] sm:$0xff]
    %v122 = vld [vmem:[#allocation4 + $0x1d8] sm:$0xff]
    %v123 = vld [vmem:[#allocation4 + $0x1e0] sm:$0xff]
    %v124 = vld [vmem:[#allocation4 + $0x1e8] sm:$0xff]
    %v125 = vld [vmem:[#allocation4 + $0x1f0] sm:$0xff]
    %v126 = vld [vmem:[#allocation4 + $0x1f8] sm:$0xff]
    %v127 = vld [vmem:[#allocation4 + $0x200] sm:$0xff]
    %v128 = vld [vmem:[#allocation4 + $0x208] sm:$0xff]
    %v129 = vld [vmem:[#allocation4 + $0x210] sm:$0xff]
    %v130 = vld [vmem:[#allocation4 + $0x218] sm:$0xff]
    %v131 = vld [vmem:[#allocation4 + $0x220] sm:$0xff]
    %v132 = vld [vmem:[#allocation4 + $0x228] sm:$0xff]
    %v133 = vld [vmem:[#allocation4 + $0x230] sm:$0xff]
    %v134 = vld [vmem:[#allocation4 + $0x238] sm:$0xff]
    %v135 = vld [vmem:[#allocation4 + $0x240] sm:$0xff]
    %v136 = vld [vmem:[#allocation4 + $0x248] sm:$0xff]
    %v137 = vld [vmem:[#allocation4 + $0x250] sm:$0xff]
    %v138 = vld [vmem:[#allocation4 + $0x258] sm:$0xff]
    %v139 = vld [vmem:[#allocation4 + $0x260] sm:$0xff]
    %v140 = vld [vmem:[#allocation4 + $0x268] sm:$0xff]
    %v141 = vld [vmem:[#allocation4 + $0x270] sm:$0xff]
    %v142 = vld [vmem:[#allocation4 + $0x278] sm:$0xff]
    %v143 = vld [vmem:[#allocation4 + $0x280] sm:$0xff]
    %v144 = vld [vmem:[#allocation4 + $0x288] sm:$0xff]
    %v145 = vld [vmem:[#allocation4 + $0x290] sm:$0xff]
    %v146 = vld [vmem:[#allocation4 + $0x298] sm:$0xff]
    %v147 = vld [vmem:[#allocation4 + $0x2a0] sm:$0xff]
    %v148 = vld [vmem:[#allocation4 + $0x2a8] sm:$0xff]
    %v149 = vld [vmem:[#allocation4 + $0x2b0] sm:$0xff]
    %v150 = vld [vmem:[#allocation4 + $0x2b8] sm:$0xff]
    %v151 = vld [vmem:[#allocation4 + $0x2c0] sm:$0xff]
    %v152 = vld [vmem:[#allocation4 + $0x2c8] sm:$0xff]
    %v153 = vld [vmem:[#allocation4 + $0x2d0] sm:$0xff]
    %v154 = vld [vmem:[#allocation4 + $0x2d8] sm:$0xff]
    %v155 = vld [vmem:[#allocation4 + $0x2e0] sm:$0xff]
    %v156 = vld [vmem:[#allocation4 + $0x2e8] sm:$0xff]
    %v157 = vld [vmem:[#allocation4 + $0x2f0] sm:$0xff]
    %v158 = vld [vmem:[#allocation4 + $0x2f8] sm:$0xff]
    %v159 = vld [vmem:[#allocation4 + $0x300] sm:$0xff]
    %v160 = vld [vmem:[#allocation4 + $0x308] sm:$0xff]
    %v161 = vld [vmem:[#allocation4 + $0x310] sm:$0xff]
    %v162 = vld [vmem:[#allocation4 + $0x318] sm:$0xff]
    %v163 = vld [vmem:[#allocation4 + $0x320] sm:$0xff]
    %v164 = vld [vmem:[#allocation4 + $0x328] sm:$0xff]
    %v165 = vld [vmem:[#allocation4 + $0x330] sm:$0xff]
    %v166 = vld [vmem:[#allocation4 + $0x338] sm:$0xff]
    %v167 = vld [vmem:[#allocation4 + $0x340] sm:$0xff]
    %v168 = vld [vmem:[#allocation4 + $0x348] sm:$0xff]
    %v169 = vld [vmem:[#allocation4 + $0x350] sm:$0xff]
    %v170 = vld [vmem:[#allocation4 + $0x358] sm:$0xff]
    %v171 = vld [vmem:[#allocation4 + $0x360] sm:$0xff]
    %v172 = vld [vmem:[#allocation4 + $0x368] sm:$0xff]
    %v173 = vld [vmem:[#allocation4 + $0x370] sm:$0xff]
    %v174 = vld [vmem:[#allocation4 + $0x378] sm:$0xff]
    %v175 = vld [vmem:[#allocation4 + $0x380] sm:$0xff]
    %v176 = vld [vmem:[#allocation4 + $0x388] sm:$0xff]
    %v177 = vld [vmem:[#allocation4 + $0x390] sm:$0xff]
    %v178 = vld [vmem:[#allocation4 + $0x398] sm:$0xff]
    %v179 = vld [vmem:[#allocation4 + $0x3a0] sm:$0xff]
    %v180 = vld [vmem:[#allocation4 + $0x3a8] sm:$0xff]
    %v181 = vld [vmem:[#allocation4 + $0x3b0] sm:$0xff]
    %v182 = vld [vmem:[#allocation4 + $0x3b8] sm:$0xff]
    %v183 = vld [vmem:[#allocation4 + $0x3c0] sm:$0xff]
    %v184 = vld [vmem:[#allocation4 + $0x3c8] sm:$0xff]
    %v185 = vld [vmem:[#allocation4 + $0x3d0] sm:$0xff]
    %v186 = vld [vmem:[#allocation4 + $0x3d8] sm:$0xff]
    %v187 = vld [vmem:[#allocation4 + $0x3e0] sm:$0xff]
    %v188 = vld [vmem:[#allocation4 + $0x3e8] sm:$0xff]
    %v189 = vld [vmem:[#allocation4 + $0x3f0] sm:$0xff]
    %v190 = vld [vmem:[#allocation4 + $0x3f8] sm:$0xff]
    %v191 = vld [vmem:[#allocation4 + $0x400] sm:$0xff]
    %v192 = vld [vmem:[#allocation4 + $0x408] sm:$0xff]
    %v193 = vld [vmem:[#allocation4 + $0x410] sm:$0xff]
    %v194 = vld [vmem:[#allocation4 + $0x418] sm:$0xff]
    %v195 = vld [vmem:[#allocation4 + $0x420] sm:$0xff]
    %v196 = vld [vmem:[#allocation4 + $0x428] sm:$0xff]
    %v197 = vld [vmem:[#allocation4 + $0x430] sm:$0xff]
    %v198 = vld [vmem:[#allocation4 + $0x438] sm:$0xff]
    %v199 = vld [vmem:[#allocation4 + $0x440] sm:$0xff]
    %v200 = vld [vmem:[#allocation4 + $0x448] sm:$0xff]
    %v201 = vld [vmem:[#allocation4 + $0x450] sm:$0xff]
    %v202 = vld [vmem:[#allocation4 + $0x458] sm:$0xff]
    %v203 = vld [vmem:[#allocation4 + $0x460] sm:$0xff]
    %v204 = vld [vmem:[#allocation4 + $0x468] sm:$0xff]
    %v205 = vld [vmem:[#allocation4 + $0x470] sm:$0xff]
    %v206 = vld [vmem:[#allocation4 + $0x478] sm:$0xff]
    %v207 = vld [vmem:[#allocation4 + $0x480] sm:$0xff]
    %v208 = vld [vmem:[#allocation4 + $0x488] sm:$0xff]
    %v209 = vld [vmem:[#allocation4 + $0x490] sm:$0xff]
    %v210 = vld [vmem:[#allocation4 + $0x498] sm:$0xff]
    %v211 = vld [vmem:[#allocation4 + $0x4a0] sm:$0xff]
    %v212 = vld [vmem:[#allocation4 + $0x4a8] sm:$0xff]
    %v213 = vld [vmem:[#allocation4 + $0x4b0] sm:$0xff]
    %v214 = vld [vmem:[#allocation4 + $0x4b8] sm:$0xff]
    %v215 = vld [vmem:[#allocation4 + $0x4c0] sm:$0xff]
    %v216 = vld [vmem:[#allocation4 + $0x4c8] sm:$0xff]
    %v217 = vld [vmem:[#allocation4 + $0x4d0] sm:$0xff]
    %v218 = vld [vmem:[#allocation4 + $0x4d8] sm:$0xff]
    %v219 = vld [vmem:[#allocation4 + $0x4e0] sm:$0xff]
    %v220 = vld [vmem:[#allocation4 + $0x4e8] sm:$0xff]
    %v221 = vld [vmem:[#allocation4 + $0x4f0] sm:$0xff]
    %v222 = vld [vmem:[#allocation4 + $0x4f8] sm:$0xff]
    %v223 = vld [vmem:[#allocation4 + $0x500] sm:$0xff]
    %v224 = vld [vmem:[#allocation4 + $0x508] sm:$0xff]
    %v225 = vld [vmem:[#allocation4 + $0x510] sm:$0xff]
    %v226 = vld [vmem:[#allocation4 + $0x518] sm:$0xff]
    %v227 = vld [vmem:[#allocation4 + $0x520] sm:$0xff]
    %v228 = vld [vmem:[#allocation4 + $0x528] sm:$0xff]
    %v229 = vld [vmem:[#allocation4 + $0x530] sm:$0xff]
    %v230 = vld [vmem:[#allocation4 + $0x538] sm:$0xff]
    %v231 = vld [vmem:[#allocation4 + $0x540] sm:$0xff]
    %v232 = vld [vmem:[#allocation4 + $0x548] sm:$0xff]
    %v233 = vld [vmem:[#allocation4 + $0x550] sm:$0xff]
    %v234 = vld [vmem:[#allocation4 + $0x558] sm:$0xff]
    %v235 = vld [vmem:[#allocation4 + $0x560] sm:$0xff]
    %v236 = vld [vmem:[#allocation4 + $0x568] sm:$0xff]
    %v237 = vld [vmem:[#allocation4 + $0x570] sm:$0xff]
    %v238 = vld [vmem:[#allocation4 + $0x578] sm:$0xff]
    %v239 = vld [vmem:[#allocation4 + $0x580] sm:$0xff]
    %v240 = vld [vmem:[#allocation4 + $0x588] sm:$0xff]
    %v241 = vld [vmem:[#allocation4 + $0x590] sm:$0xff]
    %v242 = vld [vmem:[#allocation4 + $0x598] sm:$0xff]
    %v243 = vld [vmem:[#allocation4 + $0x5a0] sm:$0xff]
    %v244 = vld [vmem:[#allocation4 + $0x5a8] sm:$0xff]
    %v245 = vld [vmem:[#allocation4 + $0x5b0] sm:$0xff]
    %v246 = vld [vmem:[#allocation4 + $0x5b8] sm:$0xff]
    %v247 = vld [vmem:[#allocation4 + $0x5c0] sm:$0xff]
    %v248 = vld [vmem:[#allocation4 + $0x5c8] sm:$0xff]
    %v249 = vld [vmem:[#allocation4 + $0x5d0] sm:$0xff]
    %v250 = vld [vmem:[#allocation4 + $0x5d8] sm:$0xff]
    %v251 = vld [vmem:[#allocation4 + $0x5e0] sm:$0xff]
    %v252 = vld [vmem:[#allocation4 + $0x5e8] sm:$0xff]
    %v253 = vld [vmem:[#allocation4 + $0x5f0] sm:$0xff]
    %v254 = vld [vmem:[#allocation4 + $0x5f8] sm:$0xff]
    %v255 = vld [vmem:[#allocation4 + $0x600] sm:$0xff]
    %v256 = vld [vmem:[#allocation4 + $0x608] sm:$0xff]
    %v257 = vld [vmem:[#allocation4 + $0x610] sm:$0xff]
    %v258 = vld [vmem:[#allocation4 + $0x618] sm:$0xff]
    %v259 = vld [vmem:[#allocation4 + $0x620] sm:$0xff]
    %v260 = vld [vmem:[#allocation4 + $0x628] sm:$0xff]
    %v261 = vld [vmem:[#allocation4 + $0x630] sm:$0xff]
    %v262 = vld [vmem:[#allocation4 + $0x638] sm:$0xff]
    %v263 = vld [vmem:[#allocation4 + $0x640] sm:$0xff]
    %v264 = vld [vmem:[#allocation4 + $0x648] sm:$0xff]
    %v265 = vld [vmem:[#allocation4 + $0x650] sm:$0xff]
    %v266 = vld [vmem:[#allocation4 + $0x658] sm:$0xff]
    %v267 = vld [vmem:[#allocation4 + $0x660] sm:$0xff]
    %v268 = vld [vmem:[#allocation4 + $0x668] sm:$0xff]
    %v269 = vld [vmem:[#allocation4 + $0x670] sm:$0xff]
    %v270 = vld [vmem:[#allocation4 + $0x678] sm:$0xff]
    %v271 = vld [vmem:[#allocation4 + $0x680] sm:$0xff]
    %v272 = vld [vmem:[#allocation4 + $0x688] sm:$0xff]
    %v273 = vld [vmem:[#allocation4 + $0x690] sm:$0xff]
    %v274 = vld [vmem:[#allocation4 + $0x698] sm:$0xff]
    %v275 = vld [vmem:[#allocation4 + $0x6a0] sm:$0xff]
    %v276 = vld [vmem:[#allocation4 + $0x6a8] sm:$0xff]
    %v277 = vld [vmem:[#allocation4 + $0x6b0] sm:$0xff]
    %v278 = vld [vmem:[#allocation4 + $0x6b8] sm:$0xff]
    %v279 = vld [vmem:[#allocation4 + $0x6c0] sm:$0xff]
    %v280 = vld [vmem:[#allocation4 + $0x6c8] sm:$0xff]
    %v281 = vld [vmem:[#allocation4 + $0x6d0] sm:$0xff]
    %v282 = vld [vmem:[#allocation4 + $0x6d8] sm:$0xff]
    %v283 = vld [vmem:[#allocation4 + $0x6e0] sm:$0xff]
    %v284 = vld [vmem:[#allocation4 + $0x6e8] sm:$0xff]
    %v285 = vld [vmem:[#allocation4 + $0x6f0] sm:$0xff]
    %v286 = vld [vmem:[#allocation4 + $0x6f8] sm:$0xff]
    %v287 = vld [vmem:[#allocation4 + $0x700] sm:$0xff]
    %v288 = vld [vmem:[#allocation4 + $0x708] sm:$0xff]
    %v289 = vld [vmem:[#allocation4 + $0x710] sm:$0xff]
    %v290 = vld [vmem:[#allocation4 + $0x718] sm:$0xff]
    %v291 = vld [vmem:[#allocation4 + $0x720] sm:$0xff]
    %v292 = vld [vmem:[#allocation4 + $0x728] sm:$0xff]
    %v293 = vld [vmem:[#allocation4 + $0x730] sm:$0xff]
    %v294 = vld [vmem:[#allocation4 + $0x738] sm:$0xff]
    %v295 = vld [vmem:[#allocation4 + $0x740] sm:$0xff]
    %v296 = vld [vmem:[#allocation4 + $0x748] sm:$0xff]
    %v297 = vld [vmem:[#allocation4 + $0x750] sm:$0xff]
    %v298 = vld [vmem:[#allocation4 + $0x758] sm:$0xff]
    %v299 = vld [vmem:[#allocation4 + $0x760] sm:$0xff]
    %v300 = vld [vmem:[#allocation4 + $0x768] sm:$0xff]
    %v301 = vld [vmem:[#allocation4 + $0x770] sm:$0xff]
    %v302 = vld [vmem:[#allocation4 + $0x778] sm:$0xff]
    %v303 = vld [vmem:[#allocation4 + $0x780] sm:$0xff]
    %v304 = vld [vmem:[#allocation4 + $0x788] sm:$0xff]
    %v305 = vld [vmem:[#allocation4 + $0x790] sm:$0xff]
    %v306 = vld [vmem:[#allocation4 + $0x798] sm:$0xff]
    %v307 = vld [vmem:[#allocation4 + $0x7a0] sm:$0xff]
    %v308 = vld [vmem:[#allocation4 + $0x7a8] sm:$0xff]
    %v309 = vld [vmem:[#allocation4 + $0x7b0] sm:$0xff]
    %v310 = vld [vmem:[#allocation4 + $0x7b8] sm:$0xff]
    %v311 = vld [vmem:[#allocation4 + $0x7c0] sm:$0xff]
    %v312 = vld [vmem:[#allocation4 + $0x7c8] sm:$0xff]
    %v313 = vld [vmem:[#allocation4 + $0x7d0] sm:$0xff]
    %v314 = vld [vmem:[#allocation4 + $0x7d8] sm:$0xff]
    %v315 = vld [vmem:[#allocation4 + $0x7e0] sm:$0xff]
    %v316 = vld [vmem:[#allocation4 + $0x7e8] sm:$0xff]
    %v317 = vld [vmem:[#allocation4 + $0x7f0] sm:$0xff]
    %v318 = vld [vmem:[#allocation4 + $0x7f8] sm:$0xff]
    %v319 = vld [vmem:[#allocation4 + $0x800] sm:$0xff]
    %v320 = vld [vmem:[#allocation4 + $0x808] sm:$0xff]
    %v321 = vld [vmem:[#allocation4 + $0x810] sm:$0xff]
    %v322 = vld [vmem:[#allocation4 + $0x818] sm:$0xff]
    %v323 = vld [vmem:[#allocation4 + $0x820] sm:$0xff]
    %v324 = vld [vmem:[#allocation4 + $0x828] sm:$0xff]
    %v325 = vld [vmem:[#allocation4 + $0x830] sm:$0xff]
    %v326 = vld [vmem:[#allocation4 + $0x838] sm:$0xff]
    %v327 = vld [vmem:[#allocation4 + $0x840] sm:$0xff]
    %v328 = vld [vmem:[#allocation4 + $0x848] sm:$0xff]
    %v329 = vld [vmem:[#allocation4 + $0x850] sm:$0xff]
    %v330 = vld [vmem:[#allocation4 + $0x858] sm:$0xff]
    %v331 = vld [vmem:[#allocation4 + $0x860] sm:$0xff]
    %v332 = vld [vmem:[#allocation4 + $0x868] sm:$0xff]
    %v333 = vld [vmem:[#allocation4 + $0x870] sm:$0xff]
    %v334 = vld [vmem:[#allocation4 + $0x878] sm:$0xff]
    %v335 = vld [vmem:[#allocation4 + $0x880] sm:$0xff]
    %v336 = vld [vmem:[#allocation4 + $0x888] sm:$0xff]
    %v337 = vld [vmem:[#allocation4 + $0x890] sm:$0xff]
    %v338 = vld [vmem:[#allocation4 + $0x898] sm:$0xff]
    %v339 = vld [vmem:[#allocation4 + $0x8a0] sm:$0xff]
    %v340 = vld [vmem:[#allocation4 + $0x8a8] sm:$0xff]
    %v341 = vld [vmem:[#allocation4 + $0x8b0] sm:$0xff]
    %v342 = vld [vmem:[#allocation4 + $0x8b8] sm:$0xff]
    %v343 = vld [vmem:[#allocation4 + $0x8c0] sm:$0xff]
    %v344 = vld [vmem:[#allocation4 + $0x8c8] sm:$0xff]
    %v345 = vld [vmem:[#allocation4 + $0x8d0] sm:$0xff]
    %v346 = vld [vmem:[#allocation4 + $0x8d8] sm:$0xff]
    %v347 = vld [vmem:[#allocation4 + $0x8e0] sm:$0xff]
    %v348 = vld [vmem:[#allocation4 + $0x8e8] sm:$0xff]
    %v349 = vld [vmem:[#allocation4 + $0x8f0] sm:$0xff]
    %v350 = vld [vmem:[#allocation4 + $0x8f8] sm:$0xff]
    %v351 = vld [vmem:[#allocation4 + $0x900] sm:$0xff]
    %v352 = vld [vmem:[#allocation4 + $0x908] sm:$0xff]
    %v353 = vld [vmem:[#allocation4 + $0x910] sm:$0xff]
    %v354 = vld [vmem:[#allocation4 + $0x918] sm:$0xff]
    %v355 = vld [vmem:[#allocation4 + $0x920] sm:$0xff]
    %v356 = vld [vmem:[#allocation4 + $0x928] sm:$0xff]
    %v357 = vld [vmem:[#allocation4 + $0x930] sm:$0xff]
    %v358 = vld [vmem:[#allocation4 + $0x938] sm:$0xff]
    %v359 = vld [vmem:[#allocation4 + $0x940] sm:$0xff]
    %v360 = vld [vmem:[#allocation4 + $0x948] sm:$0xff]
    %v361 = vld [vmem:[#allocation4 + $0x950] sm:$0xff]
    %v362 = vld [vmem:[#allocation4 + $0x958] sm:$0xff]
    %v363 = vld [vmem:[#allocation4 + $0x960] sm:$0xff]
    %v364 = vld [vmem:[#allocation4 + $0x968] sm:$0xff]
    %v365 = vld [vmem:[#allocation4 + $0x970] sm:$0xff]
    %v366 = vld [vmem:[#allocation4 + $0x978] sm:$0xff]
    %v367 = vld [vmem:[#allocation4 + $0x980] sm:$0xff]
    %v368 = vld [vmem:[#allocation4 + $0x988] sm:$0xff]
    %v369 = vld [vmem:[#allocation4 + $0x990] sm:$0xff]
    %v370 = vld [vmem:[#allocation4 + $0x998] sm:$0xff]
    %v371 = vld [vmem:[#allocation4 + $0x9a0] sm:$0xff]
    %v372 = vld [vmem:[#allocation4 + $0x9a8] sm:$0xff]
    %v373 = vld [vmem:[#allocation4 + $0x9b0] sm:$0xff]
    %v374 = vld [vmem:[#allocation4 + $0x9b8] sm:$0xff]
    %v375 = vld [vmem:[#allocation4 + $0x9c0] sm:$0xff]
    %v376 = vld [vmem:[#allocation4 + $0x9c8] sm:$0xff]
    %v377 = vld [vmem:[#allocation4 + $0x9d0] sm:$0xff]
    %v378 = vld [vmem:[#allocation4 + $0x9d8] sm:$0xff]
    %v379 = vld [vmem:[#allocation4 + $0x9e0] sm:$0xff]
    %v380 = vld [vmem:[#allocation4 + $0x9e8] sm:$0xff]
    %v381 = vld [vmem:[#allocation4 + $0x9f0] sm:$0xff]
    %v382 = vld [vmem:[#allocation4 + $0x9f8] sm:$0xff]
    %v383 = vld [vmem:[#allocation4 + $0xa00] sm:$0xff]
    %v384 = vld [vmem:[#allocation4 + $0xa08] sm:$0xff]
    %v385 = vld [vmem:[#allocation4 + $0xa10] sm:$0xff]
    %v386 = vld [vmem:[#allocation4 + $0xa18] sm:$0xff]
    %v387 = vld [vmem:[#allocation4 + $0xa20] sm:$0xff]
    %v388 = vld [vmem:[#allocation4 + $0xa28] sm:$0xff]
    %v389 = vld [vmem:[#allocation4 + $0xa30] sm:$0xff]
    %v390 = vld [vmem:[#allocation4 + $0xa38] sm:$0xff]
    %v391 = vld [vmem:[#allocation4 + $0xa40] sm:$0xff]
    %v392 = vld [vmem:[#allocation4 + $0xa48] sm:$0xff]
    %v393 = vld [vmem:[#allocation4 + $0xa50] sm:$0xff]
    %v394 = vld [vmem:[#allocation4 + $0xa58] sm:$0xff]
    %v395 = vld [vmem:[#allocation4 + $0xa60] sm:$0xff]
    %v396 = vld [vmem:[#allocation4 + $0xa68] sm:$0xff]
    %v397 = vld [vmem:[#allocation4 + $0xa70] sm:$0xff]
    %v398 = vld [vmem:[#allocation4 + $0xa78] sm:$0xff]
    %v399 = vld [vmem:[#allocation4 + $0xa80] sm:$0xff]
    %v400 = vld [vmem:[#allocation4 + $0xa88] sm:$0xff]
    %v401 = vld [vmem:[#allocation4 + $0xa90] sm:$0xff]
    %v402 = vld [vmem:[#allocation4 + $0xa98] sm:$0xff]
    %v403 = vld [vmem:[#allocation4 + $0xaa0] sm:$0xff]
    %v404 = vld [vmem:[#allocation4 + $0xaa8] sm:$0xff]
    %v405 = vld [vmem:[#allocation4 + $0xab0] sm:$0xff]
    %v406 = vld [vmem:[#allocation4 + $0xab8] sm:$0xff]
    %v407 = vld [vmem:[#allocation4 + $0xac0] sm:$0xff]
    %v408 = vld [vmem:[#allocation4 + $0xac8] sm:$0xff]
    %v409 = vld [vmem:[#allocation4 + $0xad0] sm:$0xff]
    %v410 = vld [vmem:[#allocation4 + $0xad8] sm:$0xff]
    %v411 = vld [vmem:[#allocation4 + $0xae0] sm:$0xff]
    %v412 = vld [vmem:[#allocation4 + $0xae8] sm:$0xff]
    %v413 = vld [vmem:[#allocation4 + $0xaf0] sm:$0xff]
    %v414 = vld [vmem:[#allocation4 + $0xaf8] sm:$0xff]
    %v415 = vld [vmem:[#allocation4 + $0xb00] sm:$0xff]
    %v416 = vld [vmem:[#allocation4 + $0xb08] sm:$0xff]
    %v417 = vld [vmem:[#allocation4 + $0xb10] sm:$0xff]
    %v418 = vld [vmem:[#allocation4 + $0xb18] sm:$0xff]
    %v419 = vld [vmem:[#allocation4 + $0xb20] sm:$0xff]
    %v420 = vld [vmem:[#allocation4 + $0xb28] sm:$0xff]
    %v421 = vld [vmem:[#allocation4 + $0xb30] sm:$0xff]
    %v422 = vld [vmem:[#allocation4 + $0xb38] sm:$0xff]
    %v423 = vld [vmem:[#allocation4 + $0xb40] sm:$0xff]
    %v424 = vld [vmem:[#allocation4 + $0xb48] sm:$0xff]
    %v425 = vld [vmem:[#allocation4 + $0xb50] sm:$0xff]
    %v426 = vld [vmem:[#allocation4 + $0xb58] sm:$0xff]
    %v427 = vld [vmem:[#allocation4 + $0xb60] sm:$0xff]
    %v428 = vld [vmem:[#allocation4 + $0xb68] sm:$0xff]
    %v429 = vld [vmem:[#allocation4 + $0xb70] sm:$0xff]
    %v430 = vld [vmem:[#allocation4 + $0xb78] sm:$0xff]
    %v431 = vld [vmem:[#allocation4 + $0xb80] sm:$0xff]
    %v432 = vld [vmem:[#allocation4 + $0xb88] sm:$0xff]
    %v433 = vld [vmem:[#allocation4 + $0xb90] sm:$0xff]
    %v434 = vld [vmem:[#allocation4 + $0xb98] sm:$0xff]
    %v435 = vld [vmem:[#allocation4 + $0xba0] sm:$0xff]
    %v436 = vld [vmem:[#allocation4 + $0xba8] sm:$0xff]
    %v437 = vld [vmem:[#allocation4 + $0xbb0] sm:$0xff]
    %v438 = vld [vmem:[#allocation4 + $0xbb8] sm:$0xff]
    %v439 = vld [vmem:[#allocation4 + $0xbc0] sm:$0xff]
    %v440 = vld [vmem:[#allocation4 + $0xbc8] sm:$0xff]
    %v441 = vld [vmem:[#allocation4 + $0xbd0] sm:$0xff]
    %v442 = vld [vmem:[#allocation4 + $0xbd8] sm:$0xff]
    %v443 = vld [vmem:[#allocation4 + $0xbe0] sm:$0xff]
    %v444 = vld [vmem:[#allocation4 + $0xbe8] sm:$0xff]
    %v445 = vld [vmem:[#allocation4 + $0xbf0] sm:$0xff]
    %v446 = vld [vmem:[#allocation4 + $0xbf8] sm:$0xff]
    %v447 = vld [vmem:[#allocation4 + $0xc00] sm:$0xff]
    %v448 = vld [vmem:[#allocation4 + $0xc08] sm:$0xff]
    %v449 = vld [vmem:[#allocation4 + $0xc10] sm:$0xff]
    %v450 = vld [vmem:[#allocation4 + $0xc18] sm:$0xff]
    %v451 = vld [vmem:[#allocation4 + $0xc20] sm:$0xff]
    %v452 = vld [vmem:[#allocation4 + $0xc28] sm:$0xff]
    %v453 = vld [vmem:[#allocation4 + $0xc30] sm:$0xff]
    %v454 = vld [vmem:[#allocation4 + $0xc38] sm:$0xff]
    %v455 = vld [vmem:[#allocation4 + $0xc40] sm:$0xff]
    %v456 = vld [vmem:[#allocation4 + $0xc48] sm:$0xff]
    %v457 = vld [vmem:[#allocation4 + $0xc50] sm:$0xff]
    %v458 = vld [vmem:[#allocation4 + $0xc58] sm:$0xff]
    %v459 = vld [vmem:[#allocation4 + $0xc60] sm:$0xff]
    %v460 = vld [vmem:[#allocation4 + $0xc68] sm:$0xff]
    %v461 = vld [vmem:[#allocation4 + $0xc70] sm:$0xff]
    %v462 = vld [vmem:[#allocation4 + $0xc78] sm:$0xff]
    %v463 = vld [vmem:[#allocation4 + $0xc80] sm:$0xff]
    %v464 = vld [vmem:[#allocation4 + $0xc88] sm:$0xff]
    %v465 = vld [vmem:[#allocation4 + $0xc90] sm:$0xff]
    %v466 = vld [vmem:[#allocation4 + $0xc98] sm:$0xff]
    %v467 = vld [vmem:[#allocation4 + $0xca0] sm:$0xff]
    %v468 = vld [vmem:[#allocation4 + $0xca8] sm:$0xff]
    %v469 = vld [vmem:[#allocation4 + $0xcb0] sm:$0xff]
    %v470 = vld [vmem:[#allocation4 + $0xcb8] sm:$0xff]
    %v471 = vld [vmem:[#allocation4 + $0xcc0] sm:$0xff]
    %v472 = vld [vmem:[#allocation4 + $0xcc8] sm:$0xff]
    %v473 = vld [vmem:[#allocation4 + $0xcd0] sm:$0xff]
    %v474 = vld [vmem:[#allocation4 + $0xcd8] sm:$0xff]
    %v475 = vld [vmem:[#allocation4 + $0xce0] sm:$0xff]
    %v476 = vld [vmem:[#allocation4 + $0xce8] sm:$0xff]
    %v477 = vld [vmem:[#allocation4 + $0xcf0] sm:$0xff]
    %v478 = vld [vmem:[#allocation4 + $0xcf8] sm:$0xff]
    %v479 = vld [vmem:[#allocation4 + $0xd00] sm:$0xff]
    %v480 = vld [vmem:[#allocation4 + $0xd08] sm:$0xff]
    %v481 = vld [vmem:[#allocation4 + $0xd10] sm:$0xff]
    %v482 = vld [vmem:[#allocation4 + $0xd18] sm:$0xff]
    %v483 = vld [vmem:[#allocation4 + $0xd20] sm:$0xff]
    %v484 = vld [vmem:[#allocation4 + $0xd28] sm:$0xff]
    %v485 = vld [vmem:[#allocation4 + $0xd30] sm:$0xff]
    %v486 = vld [vmem:[#allocation4 + $0xd38] sm:$0xff]
    %v487 = vld [vmem:[#allocation4 + $0xd40] sm:$0xff]
    %v488 = vld [vmem:[#allocation4 + $0xd48] sm:$0xff]
    %v489 = vld [vmem:[#allocation4 + $0xd50] sm:$0xff]
    %v490 = vld [vmem:[#allocation4 + $0xd58] sm:$0xff]
    %v491 = vld [vmem:[#allocation4 + $0xd60] sm:$0xff]
    %v492 = vld [vmem:[#allocation4 + $0xd68] sm:$0xff]
    %v493 = vld [vmem:[#allocation4 + $0xd70] sm:$0xff]
    %v494 = vld [vmem:[#allocation4 + $0xd78] sm:$0xff]
    %v495 = vld [vmem:[#allocation4 + $0xd80] sm:$0xff]
    %v496 = vld [vmem:[#allocation4 + $0xd88] sm:$0xff]
    %v497 = vld [vmem:[#allocation4 + $0xd90] sm:$0xff]
    %v498 = vld [vmem:[#allocation4 + $0xd98] sm:$0xff]
    %v499 = vld [vmem:[#allocation4 + $0xda0] sm:$0xff]
    %v500 = vld [vmem:[#allocation4 + $0xda8] sm:$0xff]
    %v501 = vld [vmem:[#allocation4 + $0xdb0] sm:$0xff]
    %v502 = vld [vmem:[#allocation4 + $0xdb8] sm:$0xff]
    %v503 = vld [vmem:[#allocation4 + $0xdc0] sm:$0xff]
    %v504 = vld [vmem:[#allocation4 + $0xdc8] sm:$0xff]
    %v505 = vld [vmem:[#allocation4 + $0xdd0] sm:$0xff]
    %v506 = vld [vmem:[#allocation4 + $0xdd8] sm:$0xff]
    %v507 = vld [vmem:[#allocation4 + $0xde0] sm:$0xff]
    %v508 = vld [vmem:[#allocation4 + $0xde8] sm:$0xff]
    %v509 = vld [vmem:[#allocation4 + $0xdf0] sm:$0xff]
    %v510 = vld [vmem:[#allocation4 + $0xdf8] sm:$0xff]
    %v511 = vld [vmem:[#allocation4 + $0xe00] sm:$0xff]
    %v512 = vld [vmem:[#allocation4 + $0xe08] sm:$0xff]
    %v513 = vld [vmem:[#allocation4 + $0xe10] sm:$0xff]
    %v514 = vld [vmem:[#allocation4 + $0xe18] sm:$0xff]
    %v515 = vld [vmem:[#allocation4 + $0xe20] sm:$0xff]
    %v516 = vld [vmem:[#allocation4 + $0xe28] sm:$0xff]
    %v517 = vld [vmem:[#allocation4 + $0xe30] sm:$0xff]
    %v518 = vld [vmem:[#allocation4 + $0xe38] sm:$0xff]
    %v519 = vld [vmem:[#allocation4 + $0xe40] sm:$0xff]
    %v520 = vld [vmem:[#allocation4 + $0xe48] sm:$0xff]
    %v521 = vld [vmem:[#allocation4 + $0xe50] sm:$0xff]
    %v522 = vld [vmem:[#allocation4 + $0xe58] sm:$0xff]
    %v523 = vld [vmem:[#allocation4 + $0xe60] sm:$0xff]
    %v524 = vld [vmem:[#allocation4 + $0xe68] sm:$0xff]
    %v525 = vld [vmem:[#allocation4 + $0xe70] sm:$0xff]
    %v526 = vld [vmem:[#allocation4 + $0xe78] sm:$0xff]
    %v527 = vld [vmem:[#allocation4 + $0xe80] sm:$0xff]
    %v528 = vld [vmem:[#allocation4 + $0xe88] sm:$0xff]
    %v529 = vld [vmem:[#allocation4 + $0xe90] sm:$0xff]
    %v530 = vld [vmem:[#allocation4 + $0xe98] sm:$0xff]
    %v531 = vld [vmem:[#allocation4 + $0xea0] sm:$0xff]
    %v532 = vld [vmem:[#allocation4 + $0xea8] sm:$0xff]
    %v533 = vld [vmem:[#allocation4 + $0xeb0] sm:$0xff]
    %v534 = vld [vmem:[#allocation4 + $0xeb8] sm:$0xff]
    %v535 = vld [vmem:[#allocation4 + $0xec0] sm:$0xff]
    %v536 = vld [vmem:[#allocation4 + $0xec8] sm:$0xff]
    %v537 = vld [vmem:[#allocation4 + $0xed0] sm:$0xff]
    %v538 = vld [vmem:[#allocation4 + $0xed8] sm:$0xff]
    %v539 = vld [vmem:[#allocation4 + $0xee0] sm:$0xff]
    %v540 = vld [vmem:[#allocation4 + $0xee8] sm:$0xff]
    %v541 = vld [vmem:[#allocation4 + $0xef0] sm:$0xff]
    %v542 = vld [vmem:[#allocation4 + $0xef8] sm:$0xff]
    %v543 = vld [vmem:[#allocation4 + $0xf00] sm:$0xff]
    %v544 = vld [vmem:[#allocation4 + $0xf08] sm:$0xff]
    %v545 = vld [vmem:[#allocation4 + $0xf10] sm:$0xff]
    %v546 = vld [vmem:[#allocation4 + $0xf18] sm:$0xff]
    %v547 = vld [vmem:[#allocation4 + $0xf20] sm:$0xff]
    %v548 = vld [vmem:[#allocation4 + $0xf28] sm:$0xff]
    %v549 = vld [vmem:[#allocation4 + $0xf30] sm:$0xff]
    %v550 = vld [vmem:[#allocation4 + $0xf38] sm:$0xff]
    %v551 = vld [vmem:[#allocation4 + $0xf40] sm:$0xff]
    %v552 = vld [vmem:[#allocation4 + $0xf48] sm:$0xff]
    %v553 = vld [vmem:[#allocation4 + $0xf50] sm:$0xff]
    %v554 = vld [vmem:[#allocation4 + $0xf58] sm:$0xff]
    %v555 = vld [vmem:[#allocation4 + $0xf60] sm:$0xff]
    %v556 = vld [vmem:[#allocation4 + $0xf68] sm:$0xff]
    %v557 = vld [vmem:[#allocation4 + $0xf70] sm:$0xff]
    %v558 = vld [vmem:[#allocation4 + $0xf78] sm:$0xff]
    %v559 = vld [vmem:[#allocation4 + $0xf80] sm:$0xff]
    %v560 = vld [vmem:[#allocation4 + $0xf88] sm:$0xff]
    %v561 = vld [vmem:[#allocation4 + $0xf90] sm:$0xff]
    %v562 = vld [vmem:[#allocation4 + $0xf98] sm:$0xff]
    %v563 = vld [vmem:[#allocation4 + $0xfa0] sm:$0xff]
    %v564 = vld [vmem:[#allocation4 + $0xfa8] sm:$0xff]
    %v565 = vld [vmem:[#allocation4 + $0xfb0] sm:$0xff]
    %v566 = vld [vmem:[#allocation4 + $0xfb8] sm:$0xff]
    %v567 = vld [vmem:[#allocation4 + $0xfc0] sm:$0xff]
    %v568 = vld [vmem:[#allocation4 + $0xfc8] sm:$0xff]
    %v569 = vld [vmem:[#allocation4 + $0xfd0] sm:$0xff]
    %v570 = vld [vmem:[#allocation4 + $0xfd8] sm:$0xff]
    %v571 = vld [vmem:[#allocation4 + $0xfe0] sm:$0xff]
    %v572 = vld [vmem:[#allocation4 + $0xfe8] sm:$0xff]
    %v573 = vld [vmem:[#allocation4 + $0xff0] sm:$0xff]
    %v574 = vld [vmem:[#allocation4 + $0xff8] sm:$0xff]
    %v575 = vld [vmem:[#allocation4 + $0x1000] sm:$0xff]
    %v576 = vld [vmem:[#allocation4 + $0x1008] sm:$0xff]
    %v577 = vld [vmem:[#allocation4 + $0x1010] sm:$0xff]
    %v578 = vld [vmem:[#allocation4 + $0x1018] sm:$0xff]
    %v579 = vld [vmem:[#allocation4 + $0x1020] sm:$0xff]
    %v580 = vld [vmem:[#allocation4 + $0x1028] sm:$0xff]
    %v581 = vld [vmem:[#allocation4 + $0x1030] sm:$0xff]
    %v582 = vld [vmem:[#allocation4 + $0x1038] sm:$0xff]
    %v583 = vld [vmem:[#allocation4 + $0x1040] sm:$0xff]
    %v584 = vld [vmem:[#allocation4 + $0x1048] sm:$0xff]
    %v585 = vld [vmem:[#allocation4 + $0x1050] sm:$0xff]
    %v586 = vld [vmem:[#allocation4 + $0x1058] sm:$0xff]
    %v587 = vld [vmem:[#allocation4 + $0x1060] sm:$0xff]
    %v588 = vld [vmem:[#allocation4 + $0x1068] sm:$0xff]
    %v589 = vld [vmem:[#allocation4 + $0x1070] sm:$0xff]
    %v590 = vld [vmem:[#allocation4 + $0x1078] sm:$0xff]
    %v591 = vld [vmem:[#allocation4 + $0x1080] sm:$0xff]
    %v592 = vld [vmem:[#allocation4 + $0x1088] sm:$0xff]
    %v593 = vld [vmem:[#allocation4 + $0x1090] sm:$0xff]
    %v594 = vld [vmem:[#allocation4 + $0x1098] sm:$0xff]
    %v595 = vld [vmem:[#allocation4 + $0x10a0] sm:$0xff]
    %v596 = vld [vmem:[#allocation4 + $0x10a8] sm:$0xff]
    %v597 = vld [vmem:[#allocation4 + $0x10b0] sm:$0xff]
    %v598 = vld [vmem:[#allocation4 + $0x10b8] sm:$0xff]
    %v599 = vld [vmem:[#allocation4 + $0x10c0] sm:$0xff]
    %v600 = vld [vmem:[#allocation4 + $0x10c8] sm:$0xff]
    %v601 = vld [vmem:[#allocation4 + $0x10d0] sm:$0xff]
    %v602 = vld [vmem:[#allocation4 + $0x10d8] sm:$0xff]
    %v603 = vld [vmem:[#allocation4 + $0x10e0] sm:$0xff]
    %v604 = vld [vmem:[#allocation4 + $0x10e8] sm:$0xff]
    %v605 = vld [vmem:[#allocation4 + $0x10f0] sm:$0xff]
    %v606 = vld [vmem:[#allocation4 + $0x10f8] sm:$0xff]
    %v607 = vld [vmem:[#allocation4 + $0x1100] sm:$0xff]
    %v608 = vld [vmem:[#allocation4 + $0x1108] sm:$0xff]
    %v609 = vld [vmem:[#allocation4 + $0x1110] sm:$0xff]
    %v610 = vld [vmem:[#allocation4 + $0x1118] sm:$0xff]
    %v611 = vld [vmem:[#allocation4 + $0x1120] sm:$0xff]
    %v612 = vld [vmem:[#allocation4 + $0x1128] sm:$0xff]
    %v613 = vld [vmem:[#allocation4 + $0x1130] sm:$0xff]
    %v614 = vld [vmem:[#allocation4 + $0x1138] sm:$0xff]
    %v615 = vld [vmem:[#allocation4 + $0x1140] sm:$0xff]
    %v616 = vld [vmem:[#allocation4 + $0x1148] sm:$0xff]
    %v617 = vld [vmem:[#allocation4 + $0x1150] sm:$0xff]
    %v618 = vld [vmem:[#allocation4 + $0x1158] sm:$0xff]
    %v619 = vld [vmem:[#allocation4 + $0x1160] sm:$0xff]
    %v620 = vld [vmem:[#allocation4 + $0x1168] sm:$0xff]
    %v621 = vld [vmem:[#allocation4 + $0x1170] sm:$0xff]
    %v622 = vld [vmem:[#allocation4 + $0x1178] sm:$0xff]
    %v623 = vld [vmem:[#allocation4 + $0x1180] sm:$0xff]
    %v624 = vld [vmem:[#allocation4 + $0x1188] sm:$0xff]
    %v625 = vld [vmem:[#allocation4 + $0x1190] sm:$0xff]
    %v626 = vld [vmem:[#allocation4 + $0x1198] sm:$0xff]
    %v627 = vld [vmem:[#allocation4 + $0x11a0] sm:$0xff]
    %v628 = vld [vmem:[#allocation4 + $0x11a8] sm:$0xff]
    %v629 = vld [vmem:[#allocation4 + $0x11b0] sm:$0xff]
    %v630 = vld [vmem:[#allocation4 + $0x11b8] sm:$0xff]
    %v631 = vld [vmem:[#allocation4 + $0x11c0] sm:$0xff]
    %v632 = vld [vmem:[#allocation4 + $0x11c8] sm:$0xff]
    %v633 = vld [vmem:[#allocation4 + $0x11d0] sm:$0xff]
    %v634 = vld [vmem:[#allocation4 + $0x11d8] sm:$0xff]
    %v635 = vld [vmem:[#allocation4 + $0x11e0] sm:$0xff]
    %v636 = vld [vmem:[#allocation4 + $0x11e8] sm:$0xff]
    %v637 = vld [vmem:[#allocation4 + $0x11f0] sm:$0xff]
    %v638 = vld [vmem:[#allocation4 + $0x11f8] sm:$0xff]
    %v639 = vld [vmem:[%s3] sm:$0x3f]
    %v641 = vlaneseq
    %v642 = vshrl.u32 %v641, 7
    %v643 = vsub.s32 0, %v642
    %v644 = vrot.slane %v639, %v643
    %v645 = vlaneseq
    %v646 = vshrl.u32 %v645, 7
    %v647 = vsub.s32 1, %v646
    %v648 = vrot.slane %v639, %v647
    %v649 = vlaneseq
    %v650 = vshrl.u32 %v649, 7
    %v651 = vsub.s32 2, %v650
    %v652 = vrot.slane %v639, %v651
    %v653 = vlaneseq
    %v654 = vshrl.u32 %v653, 7
    %v655 = vsub.s32 3, %v654
    %v656 = vrot.slane %v639, %v655
    %v657 = vlaneseq
    %v658 = vshrl.u32 %v657, 7
    %v659 = vsub.s32 4, %v658
    %v660 = vrot.slane %v639, %v659
    %v661 = vlaneseq
    %v662 = vshrl.u32 %v661, 7
    %v663 = vsub.s32 5, %v662
    %v664 = vrot.slane %v639, %v663
    %671 = vmatprep.subr.mxu0 %v64
    %672 = vmatpush1.msra.mxu0 %v63
    %673 = vmatprep.subr.mxu0 %v70
    %674 = vmatpush1.msra.mxu0 %v69
    %675 = vmatprep.subr.mxu0 %v76
    %676 = vmatpush1.msra.mxu0 %v75
    %677 = vmatprep.subr.mxu0 %v82
    %678 = vmatpush1.msra.mxu0 %v81
    %679 = vmatprep.subr.mxu0 %v88
    %680 = vmatpush1.msra.mxu0 %v87
    %681 = vmatprep.subr.mxu0 %v94
    %682 = vmatpush1.msra.mxu0 %v93
    %683 = vmatprep.subr.mxu0 %v100
    %684 = vmatpush1.msra.mxu0 %v99
    %685 = vmatprep.subr.mxu0 %v106
    %686 = vmatpush1.msra.mxu0 %v105
    %687 = vmatprep.subr.mxu0 %v112
    %688 = vmatpush1.msra.mxu0 %v111
    %689 = vmatprep.subr.mxu0 %v118
    %690 = vmatpush1.msra.mxu0 %v117
    %691 = vmatprep.subr.mxu0 %v124
    %692 = vmatpush1.msra.mxu0 %v123
    %693 = vmatprep.subr.mxu0 %v130
    %694 = vmatpush1.msra.mxu0 %v129
    %695 = vmatprep.subr.mxu0 %v136
    %696 = vmatpush1.msra.mxu0 %v135
    %697 = vmatprep.subr.mxu0 %v142
    %698 = vmatpush1.msra.mxu0 %v141
    %699 = vmatprep.subr.mxu0 %v148
    %700 = vmatpush1.msra.mxu0 %v147
    %701 = vmatprep.subr.mxu0 %v154
    %702 = vmatpush1.msra.mxu0 %v153
    %703 = vmatprep.subr.mxu0 %v160
    %704 = vmatpush1.msra.mxu0 %v159
    %705 = vmatprep.subr.mxu0 %v166
    %706 = vmatpush1.msra.mxu0 %v165
    %707 = vmatprep.subr.mxu0 %v172
    %708 = vmatpush1.msra.mxu0 %v171
    %709 = vmatprep.subr.mxu0 %v178
    %710 = vmatpush1.msra.mxu0 %v177
    %711 = vmatprep.subr.mxu0 %v184
    %712 = vmatpush1.msra.mxu0 %v183
    %713 = vmatprep.subr.mxu0 %v190
    %714 = vmatpush1.msra.mxu0 %v189
    %715 = vmatprep.subr.mxu0 %v196
    %716 = vmatpush1.msra.mxu0 %v195
    %717 = vmatprep.subr.mxu0 %v202
    %718 = vmatpush1.msra.mxu0 %v201
    %719 = vmatprep.subr.mxu0 %v208
    %720 = vmatpush1.msra.mxu0 %v207
    %721 = vmatprep.subr.mxu0 %v214
    %722 = vmatpush1.msra.mxu0 %v213
    %723 = vmatprep.subr.mxu0 %v220
    %724 = vmatpush1.msra.mxu0 %v219
    %725 = vmatprep.subr.mxu0 %v226
    %726 = vmatpush1.msra.mxu0 %v225
    %727 = vmatprep.subr.mxu0 %v232
    %728 = vmatpush1.msra.mxu0 %v231
    %729 = vmatprep.subr.mxu0 %v238
    %730 = vmatpush1.msra.mxu0 %v237
    %731 = vmatprep.subr.mxu0 %v244
    %732 = vmatpush1.msra.mxu0 %v243
    %733 = vmatprep.subr.mxu0 %v250
    %734 = vmatpush1.msra.mxu0 %v249
    %735 = vmatprep.mubr.f32.mxu0 %v52
    %736 = vmatmul.mubr.f32.gmra.mrb[0].mxu0 %v51
    %v737 = vpop.f32.mrb[0].mxu0
    %v738 = vadd.f32 %v644, %v737
    %v739 = vpop.f32.mrb[0].mxu0
    %v740 = vadd.f32 %v648, %v739
    %741 = vmatprep.mubr.f32.mxu0 %v58
    %742 = vmatmul.mubr.f32.gmra.mrb[0].mxu0 %v57
    %v743 = vpop.f32.mrb[0].mxu0
    %v744 = vadd.f32 %v644, %v743
    %v745 = vpop.f32.mrb[0].mxu0
    %v746 = vadd.f32 %v648, %v745
    %747 = vdwg.mxu0
    %748 = vmatprep.subr.mxu0 %v256
    %749 = vmatpush1.msra.mxu0 %v255
    %750 = vmatprep.subr.mxu0 %v262
    %751 = vmatpush1.msra.mxu0 %v261
    %752 = vmatprep.subr.mxu0 %v268
    %753 = vmatpush1.msra.mxu0 %v267
    %754 = vmatprep.subr.mxu0 %v274
    %755 = vmatpush1.msra.mxu0 %v273
    %756 = vmatprep.subr.mxu0 %v280
    %757 = vmatpush1.msra.mxu0 %v279
    %758 = vmatprep.subr.mxu0 %v286
    %759 = vmatpush1.msra.mxu0 %v285
    %760 = vmatprep.subr.mxu0 %v292
    %761 = vmatpush1.msra.mxu0 %v291
    %762 = vmatprep.subr.mxu0 %v298
    %763 = vmatpush1.msra.mxu0 %v297
    %764 = vmatprep.subr.mxu0 %v304
    %765 = vmatpush1.msra.mxu0 %v303
    %766 = vmatprep.subr.mxu0 %v310
    %767 = vmatpush1.msra.mxu0 %v309
    %768 = vmatprep.subr.mxu0 %v316
    %769 = vmatpush1.msra.mxu0 %v315
    %770 = vmatprep.subr.mxu0 %v322
    %771 = vmatpush1.msra.mxu0 %v321
    %772 = vmatprep.subr.mxu0 %v328
    %773 = vmatpush1.msra.mxu0 %v327
    %774 = vmatprep.subr.mxu0 %v334
    %775 = vmatpush1.msra.mxu0 %v333
    %776 = vmatprep.subr.mxu0 %v340
    %777 = vmatpush1.msra.mxu0 %v339
    %778 = vmatprep.subr.mxu0 %v346
    %779 = vmatpush1.msra.mxu0 %v345
    %780 = vmatprep.subr.mxu0 %v352
    %781 = vmatpush1.msra.mxu0 %v351
    %782 = vmatprep.subr.mxu0 %v358
    %783 = vmatpush1.msra.mxu0 %v357
    %784 = vmatprep.subr.mxu0 %v364
    %785 = vmatpush1.msra.mxu0 %v363
    %786 = vmatprep.subr.mxu0 %v370
    %787 = vmatpush1.msra.mxu0 %v369
    %788 = vmatprep.subr.mxu0 %v376
    %789 = vmatpush1.msra.mxu0 %v375
    %790 = vmatprep.subr.mxu0 %v382
    %791 = vmatpush1.msra.mxu0 %v381
    %792 = vmatprep.subr.mxu0 %v388
    %793 = vmatpush1.msra.mxu0 %v387
    %794 = vmatprep.subr.mxu0 %v394
    %795 = vmatpush1.msra.mxu0 %v393
    %796 = vmatprep.subr.mxu0 %v400
    %797 = vmatpush1.msra.mxu0 %v399
    %798 = vmatprep.subr.mxu0 %v406
    %799 = vmatpush1.msra.mxu0 %v405
    %800 = vmatprep.subr.mxu0 %v412
    %801 = vmatpush1.msra.mxu0 %v411
    %802 = vmatprep.subr.mxu0 %v418
    %803 = vmatpush1.msra.mxu0 %v417
    %804 = vmatprep.subr.mxu0 %v424
    %805 = vmatpush1.msra.mxu0 %v423
    %806 = vmatprep.subr.mxu0 %v430
    %807 = vmatpush1.msra.mxu0 %v429
    %808 = vmatprep.subr.mxu0 %v436
    %809 = vmatpush1.msra.mxu0 %v435
    %810 = vmatprep.subr.mxu0 %v442
    %811 = vmatpush1.msra.mxu0 %v441
    %812 = vmatprep.mubr.f32.mxu0 %v54
    %813 = vmatmul.mubr.f32.gmra.mrb[0].mxu0 %v53
    %v814 = vpop.f32.mrb[0].mxu0
    %v815 = vadd.f32 %v738, %v814
    %v816 = vpop.f32.mrb[0].mxu0
    %v817 = vadd.f32 %v740, %v816
    %818 = vmatprep.mubr.f32.mxu0 %v60
    %819 = vmatmul.mubr.f32.gmra.mrb[0].mxu0 %v59
    %v820 = vpop.f32.mrb[0].mxu0
    %v821 = vadd.f32 %v744, %v820
    %v822 = vpop.f32.mrb[0].mxu0
    %v823 = vadd.f32 %v746, %v822
    %824 = vdwg.mxu0
    %825 = vmatprep.subr.mxu0 %v448
    %826 = vmatpush1.msra.mxu0 %v447
    %827 = vmatprep.subr.mxu0 %v454
    %828 = vmatpush1.msra.mxu0 %v453
    %829 = vmatprep.subr.mxu0 %v460
    %830 = vmatpush1.msra.mxu0 %v459
    %831 = vmatprep.subr.mxu0 %v466
    %832 = vmatpush1.msra.mxu0 %v465
    %833 = vmatprep.subr.mxu0 %v472
    %834 = vmatpush1.msra.mxu0 %v471
    %835 = vmatprep.subr.mxu0 %v478
    %836 = vmatpush1.msra.mxu0 %v477
    %837 = vmatprep.subr.mxu0 %v484
    %838 = vmatpush1.msra.mxu0 %v483
    %839 = vmatprep.subr.mxu0 %v490
    %840 = vmatpush1.msra.mxu0 %v489
    %841 = vmatprep.subr.mxu0 %v496
    %842 = vmatpush1.msra.mxu0 %v495
    %843 = vmatprep.subr.mxu0 %v502
    %844 = vmatpush1.msra.mxu0 %v501
    %845 = vmatprep.subr.mxu0 %v508
    %846 = vmatpush1.msra.mxu0 %v507
    %847 = vmatprep.subr.mxu0 %v514
    %848 = vmatpush1.msra.mxu0 %v513
    %849 = vmatprep.subr.mxu0 %v520
    %850 = vmatpush1.msra.mxu0 %v519
    %851 = vmatprep.subr.mxu0 %v526
    %852 = vmatpush1.msra.mxu0 %v525
    %853 = vmatprep.subr.mxu0 %v532
    %854 = vmatpush1.msra.mxu0 %v531
    %855 = vmatprep.subr.mxu0 %v538
    %856 = vmatpush1.msra.mxu0 %v537
    %857 = vmatprep.subr.mxu0 %v544
    %858 = vmatpush1.msra.mxu0 %v543
    %859 = vmatprep.subr.mxu0 %v550
    %860 = vmatpush1.msra.mxu0 %v549
    %861 = vmatprep.subr.mxu0 %v556
    %862 = vmatpush1.msra.mxu0 %v555
    %863 = vmatprep.subr.mxu0 %v562
    %864 = vmatpush1.msra.mxu0 %v561
    %865 = vmatprep.subr.mxu0 %v568
    %866 = vmatpush1.msra.mxu0 %v567
    %867 = vmatprep.subr.mxu0 %v574
    %868 = vmatpush1.msra.mxu0 %v573
    %869 = vmatprep.subr.mxu0 %v580
    %870 = vmatpush1.msra.mxu0 %v579
    %871 = vmatprep.subr.mxu0 %v586
    %872 = vmatpush1.msra.mxu0 %v585
    %873 = vmatprep.subr.mxu0 %v592
    %874 = vmatpush1.msra.mxu0 %v591
    %875 = vmatprep.subr.mxu0 %v598
    %876 = vmatpush1.msra.mxu0 %v597
    %877 = vmatprep.subr.mxu0 %v604
    %878 = vmatpush1.msra.mxu0 %v603
    %879 = vmatprep.subr.mxu0 %v610
    %880 = vmatpush1.msra.mxu0 %v609
    %881 = vmatprep.subr.mxu0 %v616
    %882 = vmatpush1.msra.mxu0 %v615
    %883 = vmatprep.subr.mxu0 %v622
    %884 = vmatpush1.msra.mxu0 %v621
    %885 = vmatprep.subr.mxu0 %v628
    %886 = vmatpush1.msra.mxu0 %v627
    %887 = vmatprep.subr.mxu0 %v634
    %888 = vmatpush1.msra.mxu0 %v633
    %889 = vmatprep.mubr.f32.mxu0 %v56
    %890 = vmatmul.mubr.f32.gmra.mrb[0].mxu0 %v55
    %v891 = vpop.f32.mrb[0].mxu0
    %v892 = vadd.f32 %v815, %v891
    %v893 = vpop.f32.mrb[0].mxu0
    %v894 = vadd.f32 %v817, %v893
    %895 = vmatprep.mubr.f32.mxu0 %v62
    %896 = vmatmul.mubr.f32.gmra.mrb[0].mxu0 %v61
    %v897 = vpop.f32.mrb[0].mxu0
    %v898 = vadd.f32 %v821, %v897
    %v899 = vpop.f32.mrb[0].mxu0
    %v900 = vadd.f32 %v823, %v899
    %901 = vdwg.mxu0
    %902 = vmatprep.subr.mxu0 %v66
    %903 = vmatpush1.msra.mxu0 %v65
    %904 = vmatprep.subr.mxu0 %v72
    %905 = vmatpush1.msra.mxu0 %v71
    %906 = vmatprep.subr.mxu0 %v78
    %907 = vmatpush1.msra.mxu0 %v77
    %908 = vmatprep.subr.mxu0 %v84
    %909 = vmatpush1.msra.mxu0 %v83
    %910 = vmatprep.subr.mxu0 %v90
    %911 = vmatpush1.msra.mxu0 %v89
    %912 = vmatprep.subr.mxu0 %v96
    %913 = vmatpush1.msra.mxu0 %v95
    %914 = vmatprep.subr.mxu0 %v102
    %915 = vmatpush1.msra.mxu0 %v101
    %916 = vmatprep.subr.mxu0 %v108
    %917 = vmatpush1.msra.mxu0 %v107
    %918 = vmatprep.subr.mxu0 %v114
    %919 = vmatpush1.msra.mxu0 %v113
    %920 = vmatprep.subr.mxu0 %v120
    %921 = vmatpush1.msra.mxu0 %v119
    %922 = vmatprep.subr.mxu0 %v126
    %923 = vmatpush1.msra.mxu0 %v125
    %924 = vmatprep.subr.mxu0 %v132
    %925 = vmatpush1.msra.mxu0 %v131
    %926 = vmatprep.subr.mxu0 %v138
    %927 = vmatpush1.msra.mxu0 %v137
    %928 = vmatprep.subr.mxu0 %v144
    %929 = vmatpush1.msra.mxu0 %v143
    %930 = vmatprep.subr.mxu0 %v150
    %931 = vmatpush1.msra.mxu0 %v149
    %932 = vmatprep.subr.mxu0 %v156
    %933 = vmatpush1.msra.mxu0 %v155
    %934 = vmatprep.subr.mxu0 %v162
    %935 = vmatpush1.msra.mxu0 %v161
    %936 = vmatprep.subr.mxu0 %v168
    %937 = vmatpush1.msra.mxu0 %v167
    %938 = vmatprep.subr.mxu0 %v174
    %939 = vmatpush1.msra.mxu0 %v173
    %940 = vmatprep.subr.mxu0 %v180
    %941 = vmatpush1.msra.mxu0 %v179
    %942 = vmatprep.subr.mxu0 %v186
    %943 = vmatpush1.msra.mxu0 %v185
    %944 = vmatprep.subr.mxu0 %v192
    %945 = vmatpush1.msra.mxu0 %v191
    %946 = vmatprep.subr.mxu0 %v198
    %947 = vmatpush1.msra.mxu0 %v197
    %948 = vmatprep.subr.mxu0 %v204
    %949 = vmatpush1.msra.mxu0 %v203
    %950 = vmatprep.subr.mxu0 %v210
    %951 = vmatpush1.msra.mxu0 %v209
    %952 = vmatprep.subr.mxu0 %v216
    %953 = vmatpush1.msra.mxu0 %v215
    %954 = vmatprep.subr.mxu0 %v222
    %955 = vmatpush1.msra.mxu0 %v221
    %956 = vmatprep.subr.mxu0 %v228
    %957 = vmatpush1.msra.mxu0 %v227
    %958 = vmatprep.subr.mxu0 %v234
    %959 = vmatpush1.msra.mxu0 %v233
    %960 = vmatprep.subr.mxu0 %v240
    %961 = vmatpush1.msra.mxu0 %v239
    %962 = vmatprep.subr.mxu0 %v246
    %963 = vmatpush1.msra.mxu0 %v245
    %964 = vmatprep.subr.mxu0 %v252
    %965 = vmatpush1.msra.mxu0 %v251
    %966 = vmatprep.mubr.f32.mxu0 %v52
    %967 = vmatmul.mubr.f32.gmra.mrb[0].mxu0 %v51
    %v968 = vpop.f32.mrb[0].mxu0
    %v969 = vadd.f32 %v652, %v968
    %v970 = vpop.f32.mrb[0].mxu0
    %v971 = vadd.f32 %v656, %v970
    %972 = vmatprep.mubr.f32.mxu0 %v58
    %973 = vmatmul.mubr.f32.gmra.mrb[0].mxu0 %v57
    %v974 = vpop.f32.mrb[0].mxu0
    %v975 = vadd.f32 %v652, %v974
    %v976 = vpop.f32.mrb[0].mxu0
    %v977 = vadd.f32 %v656, %v976
    %978 = vdwg.mxu0
    %979 = vmatprep.subr.mxu0 %v258
    %980 = vmatpush1.msra.mxu0 %v257
    %981 = vmatprep.subr.mxu0 %v264
    %982 = vmatpush1.msra.mxu0 %v263
    %983 = vmatprep.subr.mxu0 %v270
    %984 = vmatpush1.msra.mxu0 %v269
    %985 = vmatprep.subr.mxu0 %v276
    %986 = vmatpush1.msra.mxu0 %v275
    %987 = vmatprep.subr.mxu0 %v282
    %988 = vmatpush1.msra.mxu0 %v281
    %989 = vmatprep.subr.mxu0 %v288
    %990 = vmatpush1.msra.mxu0 %v287
    %991 = vmatprep.subr.mxu0 %v294
    %992 = vmatpush1.msra.mxu0 %v293
    %993 = vmatprep.subr.mxu0 %v300
    %994 = vmatpush1.msra.mxu0 %v299
    %995 = vmatprep.subr.mxu0 %v306
    %996 = vmatpush1.msra.mxu0 %v305
    %997 = vmatprep.subr.mxu0 %v312
    %998 = vmatpush1.msra.mxu0 %v311
    %999 = vmatprep.subr.mxu0 %v318
    %1000 = vmatpush1.msra.mxu0 %v317
    %1001 = vmatprep.subr.mxu0 %v324
    %1002 = vmatpush1.msra.mxu0 %v323
    %1003 = vmatprep.subr.mxu0 %v330
    %1004 = vmatpush1.msra.mxu0 %v329
    %1005 = vmatprep.subr.mxu0 %v336
    %1006 = vmatpush1.msra.mxu0 %v335
    %1007 = vmatprep.subr.mxu0 %v342
    %1008 = vmatpush1.msra.mxu0 %v341
    %1009 = vmatprep.subr.mxu0 %v348
    %1010 = vmatpush1.msra.mxu0 %v347
    %1011 = vmatprep.subr.mxu0 %v354
    %1012 = vmatpush1.msra.mxu0 %v353
    %1013 = vmatprep.subr.mxu0 %v360
    %1014 = vmatpush1.msra.mxu0 %v359
    %1015 = vmatprep.subr.mxu0 %v366
    %1016 = vmatpush1.msra.mxu0 %v365
    %1017 = vmatprep.subr.mxu0 %v372
    %1018 = vmatpush1.msra.mxu0 %v371
    %1019 = vmatprep.subr.mxu0 %v378
    %1020 = vmatpush1.msra.mxu0 %v377
    %1021 = vmatprep.subr.mxu0 %v384
    %1022 = vmatpush1.msra.mxu0 %v383
    %1023 = vmatprep.subr.mxu0 %v390
    %1024 = vmatpush1.msra.mxu0 %v389
    %1025 = vmatprep.subr.mxu0 %v396
    %1026 = vmatpush1.msra.mxu0 %v395
    %1027 = vmatprep.subr.mxu0 %v402
    %1028 = vmatpush1.msra.mxu0 %v401
    %1029 = vmatprep.subr.mxu0 %v408
    %1030 = vmatpush1.msra.mxu0 %v407
    %1031 = vmatprep.subr.mxu0 %v414
    %1032 = vmatpush1.msra.mxu0 %v413
    %1033 = vmatprep.subr.mxu0 %v420
    %1034 = vmatpush1.msra.mxu0 %v419
    %1035 = vmatprep.subr.mxu0 %v426
    %1036 = vmatpush1.msra.mxu0 %v425
    %1037 = vmatprep.subr.mxu0 %v432
    %1038 = vmatpush1.msra.mxu0 %v431
    %1039 = vmatprep.subr.mxu0 %v438
    %1040 = vmatpush1.msra.mxu0 %v437
    %1041 = vmatprep.subr.mxu0 %v444
    %1042 = vmatpush1.msra.mxu0 %v443
    %1043 = vmatprep.mubr.f32.mxu0 %v54
    %1044 = vmatmul.mubr.f32.gmra.mrb[0].mxu0 %v53
    %v1045 = vpop.f32.mrb[0].mxu0
    %v1046 = vadd.f32 %v969, %v1045
    %v1047 = vpop.f32.mrb[0].mxu0
    %v1048 = vadd.f32 %v971, %v1047
    %1049 = vmatprep.mubr.f32.mxu0 %v60
    %1050 = vmatmul.mubr.f32.gmra.mrb[0].mxu0 %v59
    %v1051 = vpop.f32.mrb[0].mxu0
    %v1052 = vadd.f32 %v975, %v1051
    %v1053 = vpop.f32.mrb[0].mxu0
    %v1054 = vadd.f32 %v977, %v1053
    %1055 = vdwg.mxu0
    %1056 = vmatprep.subr.mxu0 %v450
    %1057 = vmatpush1.msra.mxu0 %v449
    %1058 = vmatprep.subr.mxu0 %v456
    %1059 = vmatpush1.msra.mxu0 %v455
    %1060 = vmatprep.subr.mxu0 %v462
    %1061 = vmatpush1.msra.mxu0 %v461
    %1062 = vmatprep.subr.mxu0 %v468
    %1063 = vmatpush1.msra.mxu0 %v467
    %1064 = vmatprep.subr.mxu0 %v474
    %1065 = vmatpush1.msra.mxu0 %v473
    %1066 = vmatprep.subr.mxu0 %v480
    %1067 = vmatpush1.msra.mxu0 %v479
    %1068 = vmatprep.subr.mxu0 %v486
    %1069 = vmatpush1.msra.mxu0 %v485
    %1070 = vmatprep.subr.mxu0 %v492
    %1071 = vmatpush1.msra.mxu0 %v491
    %1072 = vmatprep.subr.mxu0 %v498
    %1073 = vmatpush1.msra.mxu0 %v497
    %1074 = vmatprep.subr.mxu0 %v504
    %1075 = vmatpush1.msra.mxu0 %v503
    %1076 = vmatprep.subr.mxu0 %v510
    %1077 = vmatpush1.msra.mxu0 %v509
    %1078 = vmatprep.subr.mxu0 %v516
    %1079 = vmatpush1.msra.mxu0 %v515
    %1080 = vmatprep.subr.mxu0 %v522
    %1081 = vmatpush1.msra.mxu0 %v521
    %1082 = vmatprep.subr.mxu0 %v528
    %1083 = vmatpush1.msra.mxu0 %v527
    %1084 = vmatprep.subr.mxu0 %v534
    %1085 = vmatpush1.msra.mxu0 %v533
    %1086 = vmatprep.subr.mxu0 %v540
    %1087 = vmatpush1.msra.mxu0 %v539
    %1088 = vmatprep.subr.mxu0 %v546
    %1089 = vmatpush1.msra.mxu0 %v545
    %1090 = vmatprep.subr.mxu0 %v552
    %1091 = vmatpush1.msra.mxu0 %v551
    %1092 = vmatprep.subr.mxu0 %v558
    %1093 = vmatpush1.msra.mxu0 %v557
    %1094 = vmatprep.subr.mxu0 %v564
    %1095 = vmatpush1.msra.mxu0 %v563
    %1096 = vmatprep.subr.mxu0 %v570
    %1097 = vmatpush1.msra.mxu0 %v569
    %1098 = vmatprep.subr.mxu0 %v576
    %1099 = vmatpush1.msra.mxu0 %v575
    %1100 = vmatprep.subr.mxu0 %v582
    %1101 = vmatpush1.msra.mxu0 %v581
    %1102 = vmatprep.subr.mxu0 %v588
    %1103 = vmatpush1.msra.mxu0 %v587
    %1104 = vmatprep.subr.mxu0 %v594
    %1105 = vmatpush1.msra.mxu0 %v593
    %1106 = vmatprep.subr.mxu0 %v600
    %1107 = vmatpush1.msra.mxu0 %v599
    %1108 = vmatprep.subr.mxu0 %v606
    %1109 = vmatpush1.msra.mxu0 %v605
    %1110 = vmatprep.subr.mxu0 %v612
    %1111 = vmatpush1.msra.mxu0 %v611
    %1112 = vmatprep.subr.mxu0 %v618
    %1113 = vmatpush1.msra.mxu0 %v617
    %1114 = vmatprep.subr.mxu0 %v624
    %1115 = vmatpush1.msra.mxu0 %v623
    %1116 = vmatprep.subr.mxu0 %v630
    %1117 = vmatpush1.msra.mxu0 %v629
    %1118 = vmatprep.subr.mxu0 %v636
    %1119 = vmatpush1.msra.mxu0 %v635
    %1120 = vmatprep.mubr.f32.mxu0 %v56
    %1121 = vmatmul.mubr.f32.gmra.mrb[0].mxu0 %v55
    %v1122 = vpop.f32.mrb[0].mxu0
    %v1123 = vadd.f32 %v1046, %v1122
    %v1124 = vpop.f32.mrb[0].mxu0
    %v1125 = vadd.f32 %v1048, %v1124
    %1126 = vmatprep.mubr.f32.mxu0 %v62
    %1127 = vmatmul.mubr.f32.gmra.mrb[0].mxu0 %v61
    %v1128 = vpop.f32.mrb[0].mxu0
    %v1129 = vadd.f32 %v1052, %v1128
    %v1130 = vpop.f32.mrb[0].mxu0
    %v1131 = vadd.f32 %v1054, %v1130
    %1132 = vdwg.mxu0
    %1133 = vmatprep.subr.mxu0 %v68
    %1134 = vmatpush1.msra.mxu0 %v67
    %1135 = vmatprep.subr.mxu0 %v74
    %1136 = vmatpush1.msra.mxu0 %v73
    %1137 = vmatprep.subr.mxu0 %v80
    %1138 = vmatpush1.msra.mxu0 %v79
    %1139 = vmatprep.subr.mxu0 %v86
    %1140 = vmatpush1.msra.mxu0 %v85
    %1141 = vmatprep.subr.mxu0 %v92
    %1142 = vmatpush1.msra.mxu0 %v91
    %1143 = vmatprep.subr.mxu0 %v98
    %1144 = vmatpush1.msra.mxu0 %v97
    %1145 = vmatprep.subr.mxu0 %v104
    %1146 = vmatpush1.msra.mxu0 %v103
    %1147 = vmatprep.subr.mxu0 %v110
    %1148 = vmatpush1.msra.mxu0 %v109
    %1149 = vmatprep.subr.mxu0 %v116
    %1150 = vmatpush1.msra.mxu0 %v115
    %1151 = vmatprep.subr.mxu0 %v122
    %1152 = vmatpush1.msra.mxu0 %v121
    %1153 = vmatprep.subr.mxu0 %v128
    %1154 = vmatpush1.msra.mxu0 %v127
    %1155 = vmatprep.subr.mxu0 %v134
    %1156 = vmatpush1.msra.mxu0 %v133
    %1157 = vmatprep.subr.mxu0 %v140
    %1158 = vmatpush1.msra.mxu0 %v139
    %1159 = vmatprep.subr.mxu0 %v146
    %1160 = vmatpush1.msra.mxu0 %v145
    %1161 = vmatprep.subr.mxu0 %v152
    %1162 = vmatpush1.msra.mxu0 %v151
    %1163 = vmatprep.subr.mxu0 %v158
    %1164 = vmatpush1.msra.mxu0 %v157
    %1165 = vmatprep.subr.mxu0 %v164
    %1166 = vmatpush1.msra.mxu0 %v163
    %1167 = vmatprep.subr.mxu0 %v170
    %1168 = vmatpush1.msra.mxu0 %v169
    %1169 = vmatprep.subr.mxu0 %v176
    %1170 = vmatpush1.msra.mxu0 %v175
    %1171 = vmatprep.subr.mxu0 %v182
    %1172 = vmatpush1.msra.mxu0 %v181
    %1173 = vmatprep.subr.mxu0 %v188
    %1174 = vmatpush1.msra.mxu0 %v187
    %1175 = vmatprep.subr.mxu0 %v194
    %1176 = vmatpush1.msra.mxu0 %v193
    %1177 = vmatprep.subr.mxu0 %v200
    %1178 = vmatpush1.msra.mxu0 %v199
    %1179 = vmatprep.subr.mxu0 %v206
    %1180 = vmatpush1.msra.mxu0 %v205
    %1181 = vmatprep.subr.mxu0 %v212
    %1182 = vmatpush1.msra.mxu0 %v211
    %1183 = vmatprep.subr.mxu0 %v218
    %1184 = vmatpush1.msra.mxu0 %v217
    %1185 = vmatprep.subr.mxu0 %v224
    %1186 = vmatpush1.msra.mxu0 %v223
    %1187 = vmatprep.subr.mxu0 %v230
    %1188 = vmatpush1.msra.mxu0 %v229
    %1189 = vmatprep.subr.mxu0 %v236
    %1190 = vmatpush1.msra.mxu0 %v235
    %1191 = vmatprep.subr.mxu0 %v242
    %1192 = vmatpush1.msra.mxu0 %v241
    %1193 = vmatprep.subr.mxu0 %v248
    %1194 = vmatpush1.msra.mxu0 %v247
    %1195 = vmatprep.subr.mxu0 %v254
    %1196 = vmatpush1.msra.mxu0 %v253
    %1197 = vmatprep.mubr.f32.mxu0 %v52
    %1198 = vmatmul.mubr.f32.gmra.mrb[0].mxu0 %v51
    %v1199 = vpop.f32.mrb[0].mxu0
    %v1200 = vadd.f32 %v660, %v1199
    %v1201 = vpop.f32.mrb[0].mxu0
    %v1202 = vadd.f32 %v664, %v1201
    %1203 = vmatprep.mubr.f32.mxu0 %v58
    %1204 = vmatmul.mubr.f32.gmra.mrb[0].mxu0 %v57
    %v1205 = vpop.f32.mrb[0].mxu0
    %v1206 = vadd.f32 %v660, %v1205
    %v1207 = vpop.f32.mrb[0].mxu0
    %v1208 = vadd.f32 %v664, %v1207
    %1209 = vdwg.mxu0
    %1210 = vmatprep.subr.mxu0 %v260
    %1211 = vmatpush1.msra.mxu0 %v259
    %1212 = vmatprep.subr.mxu0 %v266
    %1213 = vmatpush1.msra.mxu0 %v265
    %1214 = vmatprep.subr.mxu0 %v272
    %1215 = vmatpush1.msra.mxu0 %v271
    %1216 = vmatprep.subr.mxu0 %v278
    %1217 = vmatpush1.msra.mxu0 %v277
    %1218 = vmatprep.subr.mxu0 %v284
    %1219 = vmatpush1.msra.mxu0 %v283
    %1220 = vmatprep.subr.mxu0 %v290
    %1221 = vmatpush1.msra.mxu0 %v289
    %1222 = vmatprep.subr.mxu0 %v296
    %1223 = vmatpush1.msra.mxu0 %v295
    %1224 = vmatprep.subr.mxu0 %v302
    %1225 = vmatpush1.msra.mxu0 %v301
    %1226 = vmatprep.subr.mxu0 %v308
    %1227 = vmatpush1.msra.mxu0 %v307
    %1228 = vmatprep.subr.mxu0 %v314
    %1229 = vmatpush1.msra.mxu0 %v313
    %1230 = vmatprep.subr.mxu0 %v320
    %1231 = vmatpush1.msra.mxu0 %v319
    %1232 = vmatprep.subr.mxu0 %v326
    %1233 = vmatpush1.msra.mxu0 %v325
    %1234 = vmatprep.subr.mxu0 %v332
    %1235 = vmatpush1.msra.mxu0 %v331
    %1236 = vmatprep.subr.mxu0 %v338
    %1237 = vmatpush1.msra.mxu0 %v337
    %1238 = vmatprep.subr.mxu0 %v344
    %1239 = vmatpush1.msra.mxu0 %v343
    %1240 = vmatprep.subr.mxu0 %v350
    %1241 = vmatpush1.msra.mxu0 %v349
    %1242 = vmatprep.subr.mxu0 %v356
    %1243 = vmatpush1.msra.mxu0 %v355
    %1244 = vmatprep.subr.mxu0 %v362
    %1245 = vmatpush1.msra.mxu0 %v361
    %1246 = vmatprep.subr.mxu0 %v368
    %1247 = vmatpush1.msra.mxu0 %v367
    %1248 = vmatprep.subr.mxu0 %v374
    %1249 = vmatpush1.msra.mxu0 %v373
    %1250 = vmatprep.subr.mxu0 %v380
    %1251 = vmatpush1.msra.mxu0 %v379
    %1252 = vmatprep.subr.mxu0 %v386
    %1253 = vmatpush1.msra.mxu0 %v385
    %1254 = vmatprep.subr.mxu0 %v392
    %1255 = vmatpush1.msra.mxu0 %v391
    %1256 = vmatprep.subr.mxu0 %v398
    %1257 = vmatpush1.msra.mxu0 %v397
    %1258 = vmatprep.subr.mxu0 %v404
    %1259 = vmatpush1.msra.mxu0 %v403
    %1260 = vmatprep.subr.mxu0 %v410
    %1261 = vmatpush1.msra.mxu0 %v409
    %1262 = vmatprep.subr.mxu0 %v416
    %1263 = vmatpush1.msra.mxu0 %v415
    %1264 = vmatprep.subr.mxu0 %v422
    %1265 = vmatpush1.msra.mxu0 %v421
    %1266 = vmatprep.subr.mxu0 %v428
    %1267 = vmatpush1.msra.mxu0 %v427
    %1268 = vmatprep.subr.mxu0 %v434
    %1269 = vmatpush1.msra.mxu0 %v433
    %1270 = vmatprep.subr.mxu0 %v440
    %1271 = vmatpush1.msra.mxu0 %v439
    %1272 = vmatprep.subr.mxu0 %v446
    %1273 = vmatpush1.msra.mxu0 %v445
    %1274 = vmatprep.mubr.f32.mxu0 %v54
    %1275 = vmatmul.mubr.f32.gmra.mrb[0].mxu0 %v53
    %v1276 = vpop.f32.mrb[0].mxu0
    %v1277 = vadd.f32 %v1200, %v1276
    %v1278 = vpop.f32.mrb[0].mxu0
    %v1279 = vadd.f32 %v1202, %v1278
    %1280 = vmatprep.mubr.f32.mxu0 %v60
    %1281 = vmatmul.mubr.f32.gmra.mrb[0].mxu0 %v59
    %v1282 = vpop.f32.mrb[0].mxu0
    %v1283 = vadd.f32 %v1206, %v1282
    %v1284 = vpop.f32.mrb[0].mxu0
    %v1285 = vadd.f32 %v1208, %v1284
    %1286 = vdwg.mxu0
    %1287 = vmatprep.subr.mxu0 %v452
    %1288 = vmatpush1.msra.mxu0 %v451
    %1289 = vmatprep.subr.mxu0 %v458
    %1290 = vmatpush1.msra.mxu0 %v457
    %1291 = vmatprep.subr.mxu0 %v464
    %1292 = vmatpush1.msra.mxu0 %v463
    %1293 = vmatprep.subr.mxu0 %v470
    %1294 = vmatpush1.msra.mxu0 %v469
    %1295 = vmatprep.subr.mxu0 %v476
    %1296 = vmatpush1.msra.mxu0 %v475
    %1297 = vmatprep.subr.mxu0 %v482
    %1298 = vmatpush1.msra.mxu0 %v481
    %1299 = vmatprep.subr.mxu0 %v488
    %1300 = vmatpush1.msra.mxu0 %v487
    %1301 = vmatprep.subr.mxu0 %v494
    %1302 = vmatpush1.msra.mxu0 %v493
    %1303 = vmatprep.subr.mxu0 %v500
    %1304 = vmatpush1.msra.mxu0 %v499
    %1305 = vmatprep.subr.mxu0 %v506
    %1306 = vmatpush1.msra.mxu0 %v505
    %1307 = vmatprep.subr.mxu0 %v512
    %1308 = vmatpush1.msra.mxu0 %v511
    %1309 = vmatprep.subr.mxu0 %v518
    %1310 = vmatpush1.msra.mxu0 %v517
    %1311 = vmatprep.subr.mxu0 %v524
    %1312 = vmatpush1.msra.mxu0 %v523
    %1313 = vmatprep.subr.mxu0 %v530
    %1314 = vmatpush1.msra.mxu0 %v529
    %1315 = vmatprep.subr.mxu0 %v536
    %1316 = vmatpush1.msra.mxu0 %v535
    %1317 = vmatprep.subr.mxu0 %v542
    %1318 = vmatpush1.msra.mxu0 %v541
    %1319 = vmatprep.subr.mxu0 %v548
    %1320 = vmatpush1.msra.mxu0 %v547
    %1321 = vmatprep.subr.mxu0 %v554
    %1322 = vmatpush1.msra.mxu0 %v553
    %1323 = vmatprep.subr.mxu0 %v560
    %1324 = vmatpush1.msra.mxu0 %v559
    %1325 = vmatprep.subr.mxu0 %v566
    %1326 = vmatpush1.msra.mxu0 %v565
    %1327 = vmatprep.subr.mxu0 %v572
    %1328 = vmatpush1.msra.mxu0 %v571
    %1329 = vmatprep.subr.mxu0 %v578
    %1330 = vmatpush1.msra.mxu0 %v577
    %1331 = vmatprep.subr.mxu0 %v584
    %1332 = vmatpush1.msra.mxu0 %v583
    %1333 = vmatprep.subr.mxu0 %v590
    %1334 = vmatpush1.msra.mxu0 %v589
    %1335 = vmatprep.subr.mxu0 %v596
    %1336 = vmatpush1.msra.mxu0 %v595
    %1337 = vmatprep.subr.mxu0 %v602
    %1338 = vmatpush1.msra.mxu0 %v601
    %1339 = vmatprep.subr.mxu0 %v608
    %1340 = vmatpush1.msra.mxu0 %v607
    %1341 = vmatprep.subr.mxu0 %v614
    %1342 = vmatpush1.msra.mxu0 %v613
    %1343 = vmatprep.subr.mxu0 %v620
    %1344 = vmatpush1.msra.mxu0 %v619
    %1345 = vmatprep.subr.mxu0 %v626
    %1346 = vmatpush1.msra.mxu0 %v625
    %1347 = vmatprep.subr.mxu0 %v632
    %1348 = vmatpush1.msra.mxu0 %v631
    %1349 = vmatprep.subr.mxu0 %v638
    %1350 = vmatpush1.msra.mxu0 %v637
    %1351 = vmatprep.mubr.f32.mxu0 %v56
    %1352 = vmatmul.mubr.f32.gmra.mrb[0].mxu0 %v55
    %v1353 = vpop.f32.mrb[0].mxu0
    %v1354 = vadd.f32 %v1277, %v1353
    %v1355 = vpop.f32.mrb[0].mxu0
    %v1356 = vadd.f32 %v1279, %v1355
    %1357 = vmatprep.mubr.f32.mxu0 %v62
    %1358 = vmatmul.mubr.f32.gmra.mrb[0].mxu0 %v61
    %v1359 = vpop.f32.mrb[0].mxu0
    %v1360 = vadd.f32 %v1283, %v1359
    %v1361 = vpop.f32.mrb[0].mxu0
    %v1362 = vadd.f32 %v1285, %v1361
    %1363 = vdwg.mxu0
    %v1364 = vld [vmem:[#allocation2] sm:$0xff]
    %v1365 = vld [vmem:[#allocation2 + $0x8] sm:$0xff]
    %v1366 = vld [vmem:[#allocation2 + $0x10] sm:$0xff]
    %v1367 = vld [vmem:[#allocation2 + $0x18] sm:$0xff]
    %v1368 = vld [vmem:[#allocation2 + $0x20] sm:$0xff]
    %v1369 = vld [vmem:[#allocation2 + $0x28] sm:$0xff]
    %v1370 = vld [vmem:[#allocation2 + $0x30] sm:$0xff]
    %v1371 = vld [vmem:[#allocation2 + $0x38] sm:$0xff]
    %v1372 = vld [vmem:[#allocation2 + $0x40] sm:$0xff]
    %v1373 = vld [vmem:[#allocation2 + $0x48] sm:$0xff]
    %v1374 = vld [vmem:[#allocation2 + $0x50] sm:$0xff]
    %v1375 = vld [vmem:[#allocation2 + $0x58] sm:$0xff]
    %v1376 = vadd.f32 %v892, %v1364
    %v1377 = vadd.f32 %v894, %v1365
    %v1378 = vadd.f32 %v1123, %v1366
    %v1379 = vadd.f32 %v1125, %v1367
    %v1380 = vadd.f32 %v1354, %v1368
    %v1381 = vadd.f32 %v1356, %v1369
    %v1382 = vadd.f32 %v898, %v1370
    %v1383 = vadd.f32 %v900, %v1371
    %v1384 = vadd.f32 %v1129, %v1372
    %v1385 = vadd.f32 %v1131, %v1373
    %v1386 = vadd.f32 %v1360, %v1374
    %v1387 = vadd.f32 %v1362, %v1375
    %v1388 = vadd.f32 %v1376, %v1377
    %v1389 = vadd.f32 %v1388, %v1378
    %v1390 = vadd.f32 %v1389, %v1379
    %v1391 = vadd.f32 %v1390, %v1380
    %v1392 = vadd.f32 %v1391, %v1381
    %1393 = vadd.xlane.f32.xlu0 %v1392
    %v1394 = vpop.xlane.xlu0 %1393
    %v1395 = vadd.f32 %v1382, %v1383
    %v1396 = vadd.f32 %v1395, %v1384
    %v1397 = vadd.f32 %v1396, %v1385
    %v1398 = vadd.f32 %v1397, %v1386
    %v1399 = vadd.f32 %v1398, %v1387
    %1400 = vadd.xlane.f32.xlu0 %v1399
    %v1401 = vpop.xlane.xlu0 %1400
    %v1402 = vrcp.pop 768.0
    %v1403 = vmul.f32 %v1394, %v1402
    %v1404 = vmul.f32 %v1401, %v1402
    %v1405 = vsub.f32 %v1376, %v1403
    %v1406 = vsub.f32 %v1377, %v1403
    %v1407 = vsub.f32 %v1378, %v1403
    %v1408 = vsub.f32 %v1379, %v1403
    %v1409 = vsub.f32 %v1380, %v1403
    %v1410 = vsub.f32 %v1381, %v1403
    %v1411 = vsub.f32 %v1382, %v1404
    %v1412 = vsub.f32 %v1383, %v1404
    %v1413 = vsub.f32 %v1384, %v1404
    %v1414 = vsub.f32 %v1385, %v1404
    %v1415 = vsub.f32 %v1386, %v1404
    %v1416 = vsub.f32 %v1387, %v1404
    %v1417 = vmul.f32 %v1405, %v1405
    %v1418 = vmul.f32 %v1406, %v1406
    %v1419 = vmul.f32 %v1407, %v1407
    %v1420 = vmul.f32 %v1408, %v1408
    %v1421 = vmul.f32 %v1409, %v1409
    %v1422 = vmul.f32 %v1410, %v1410
    %v1423 = vmul.f32 %v1411, %v1411
    %v1424 = vmul.f32 %v1412, %v1412
    %v1425 = vmul.f32 %v1413, %v1413
    %v1426 = vmul.f32 %v1414, %v1414
    %v1427 = vmul.f32 %v1415, %v1415
    %v1428 = vmul.f32 %v1416, %v1416
    %v1429 = vadd.f32 %v1417, %v1418
    %v1430 = vadd.f32 %v1429, %v1419
    %v1431 = vadd.f32 %v1430, %v1420
    %v1432 = vadd.f32 %v1431, %v1421
    %v1433 = vadd.f32 %v1432, %v1422
    %1434 = vadd.xlane.f32.xlu0 %v1433
    %v1435 = vpop.xlane.xlu0 %1434
    %v1436 = vadd.f32 %v1423, %v1424
    %v1437 = vadd.f32 %v1436, %v1425
    %v1438 = vadd.f32 %v1437, %v1426
    %v1439 = vadd.f32 %v1438, %v1427
    %v1440 = vadd.f32 %v1439, %v1428
    %1441 = vadd.xlane.f32.xlu0 %v1440
    %v1442 = vpop.xlane.xlu0 %1441
    %v1443 = vmul.f32 %v1435, %v1402
    %v1444 = vmul.f32 %v1442, %v1402
    %v1445 = vadd.f32 %v1443, 1e-05
    %v1446 = vadd.f32 %v1444, 1e-05
    %v1447 = vrsqrt.pop %v1445
    %v1448 = vrsqrt.pop %v1446
    %v1449 = vmul.f32 %v1405, %v1447
    %v1450 = vmul.f32 %v1406, %v1447
    %v1451 = vmul.f32 %v1407, %v1447
    %v1452 = vmul.f32 %v1408, %v1447
    %v1453 = vmul.f32 %v1409, %v1447
    %v1454 = vmul.f32 %v1410, %v1447
    %v1455 = vmul.f32 %v1411, %v1448
    %v1456 = vmul.f32 %v1412, %v1448
    %v1457 = vmul.f32 %v1413, %v1448
    %v1458 = vmul.f32 %v1414, %v1448
    %v1459 = vmul.f32 %v1415, %v1448
    %v1460 = vmul.f32 %v1416, %v1448
    %v1461 = vld [vmem:[%s4] sm:$0x3f]
    %v1463 = vlaneseq
    %v1464 = vshrl.u32 %v1463, 7
    %v1465 = vsub.s32 0, %v1464
    %v1466 = vrot.slane %v1461, %v1465
    %v1467 = vlaneseq
    %v1468 = vshrl.u32 %v1467, 7
    %v1469 = vsub.s32 1, %v1468
    %v1470 = vrot.slane %v1461, %v1469
    %v1471 = vlaneseq
    %v1472 = vshrl.u32 %v1471, 7
    %v1473 = vsub.s32 2, %v1472
    %v1474 = vrot.slane %v1461, %v1473
    %v1475 = vlaneseq
    %v1476 = vshrl.u32 %v1475, 7
    %v1477 = vsub.s32 3, %v1476
    %v1478 = vrot.slane %v1461, %v1477
    %v1479 = vlaneseq
    %v1480 = vshrl.u32 %v1479, 7
    %v1481 = vsub.s32 4, %v1480
    %v1482 = vrot.slane %v1461, %v1481
    %v1483 = vlaneseq
    %v1484 = vshrl.u32 %v1483, 7
    %v1485 = vsub.s32 5, %v1484
    %v1486 = vrot.slane %v1461, %v1485
    %v1493 = vmul.f32 %v1449, %v1466
    %v1494 = vmul.f32 %v1450, %v1470
    %v1495 = vmul.f32 %v1451, %v1474
    %v1496 = vmul.f32 %v1452, %v1478
    %v1497 = vmul.f32 %v1453, %v1482
    %v1498 = vmul.f32 %v1454, %v1486
    %v1499 = vmul.f32 %v1455, %v1466
    %v1500 = vmul.f32 %v1456, %v1470
    %v1501 = vmul.f32 %v1457, %v1474
    %v1502 = vmul.f32 %v1458, %v1478
    %v1503 = vmul.f32 %v1459, %v1482
    %v1504 = vmul.f32 %v1460, %v1486
    %v1505 = vld [vmem:[%s5] sm:$0x3f]
    %v1507 = vlaneseq
    %v1508 = vshrl.u32 %v1507, 7
    %v1509 = vsub.s32 0, %v1508
    %v1510 = vrot.slane %v1505, %v1509
    %v1511 = vlaneseq
    %v1512 = vshrl.u32 %v1511, 7
    %v1513 = vsub.s32 1, %v1512
    %v1514 = vrot.slane %v1505, %v1513
    %v1515 = vlaneseq
    %v1516 = vshrl.u32 %v1515, 7
    %v1517 = vsub.s32 2, %v1516
    %v1518 = vrot.slane %v1505, %v1517
    %v1519 = vlaneseq
    %v1520 = vshrl.u32 %v1519, 7
    %v1521 = vsub.s32 3, %v1520
    %v1522 = vrot.slane %v1505, %v1521
    %v1523 = vlaneseq
    %v1524 = vshrl.u32 %v1523, 7
    %v1525 = vsub.s32 4, %v1524
    %v1526 = vrot.slane %v1505, %v1525
    %v1527 = vlaneseq
    %v1528 = vshrl.u32 %v1527, 7
    %v1529 = vsub.s32 5, %v1528
    %v1530 = vrot.slane %v1505, %v1529
    %v1537 = vadd.f32 %v1493, %v1510
    %v1538 = vadd.f32 %v1494, %v1514
    %v1539 = vadd.f32 %v1495, %v1518
    %v1540 = vadd.f32 %v1496, %v1522
    %v1541 = vadd.f32 %v1497, %v1526
    %v1542 = vadd.f32 %v1498, %v1530
    %v1543 = vadd.f32 %v1499, %v1510
    %v1544 = vadd.f32 %v1500, %v1514
    %v1545 = vadd.f32 %v1501, %v1518
    %v1546 = vadd.f32 %v1502, %v1522
    %v1547 = vadd.f32 %v1503, %v1526
    %v1548 = vadd.f32 %v1504, %v1530
    %1549 = vst [vmem:[%s6] sm:$0xff] %v1537
    %1550 = vst [vmem:[%s6 + $0x8] sm:$0xff] %v1538
    %1551 = vst [vmem:[%s6 + $0x10] sm:$0xff] %v1539
    %1552 = vst [vmem:[%s6 + $0x18] sm:$0xff] %v1540
    %1553 = vst [vmem:[%s6 + $0x20] sm:$0xff] %v1541
    %1554 = vst [vmem:[%s6 + $0x28] sm:$0xff] %v1542
    %1555 = vst [vmem:[%s6 + $0x30] sm:$0xff] %v1543
    %1556 = vst [vmem:[%s6 + $0x38] sm:$0xff] %v1544
    %1557 = vst [vmem:[%s6 + $0x40] sm:$0xff] %v1545
    %1558 = vst [vmem:[%s6 + $0x48] sm:$0xff] %v1546
    %1559 = vst [vmem:[%s6 + $0x50] sm:$0xff] %v1547
    %1560 = vst [vmem:[%s6 + $0x58] sm:$0xff] %v1548
    // Predicated region
    $region34: #{encoder_layer.6} parent=1 // pred_check
      _
    $region35: #{encoder_layer.6} parent=1 // pred_check_branch
      %1562 = sbr.rel (0) target = $region37
    $region36: #{encoder_layer.6} parent=1 // pred_region
      _
    $region37: #{encoder_layer.6} parent=1 // pred_fallthru
      _
    // Predicated region
    $region38: #{encoder_layer.6} parent=1 // pred_check
      _
    $region39: #{encoder_layer.6} parent=1 // pred_check_branch
      %1564 = sbr.rel (0) target = $region41
    $region40: #{encoder_layer.6} parent=1 // pred_region
      _
    $region41: #{encoder_layer.6} parent=1 // pred_fallthru
      _
    %1565 = vsyncpa [#allocation3], 1
    %1566 = vsyncpa [#allocation5], 1

// kernel: encoder_layer.7
$region0: #{encoder_layer.7}
  #allocation0 [shape = 'u32[]', space=smem, size = 0x4, offset = 0x4, fixed_abs, tag = 'smem constant byte address 0x4 - core index']
  #allocation1 [shape = 'u32[144,128]{1,0:T(1,128)}', space=vmem, size = 0x12000, scoped, tag = 'internal scratch']
  #allocation2 [shape = 'f32[16,768]{1,0:T(8,128)}', space=vmem, size = 0xc000, scoped, tag = 'scratch operand']
  %s0 = inlined_call_operand.vmem [shape: f32[16,768], index: 0, kind: input, shape index: {}]
  %s1 = inlined_call_operand.vmem [shape: f32[768,3072], index: 1, kind: input, shape index: {}]
  %s2 = inlined_call_operand.vmem [shape: f32[1,3072], index: 2, kind: input, shape index: {}]
  %s3 = inlined_call_operand.hbm [shape: f32[3072,768], index: 3, kind: input, shape index: {}]
  %s4 = inlined_call_operand.vmem [shape: f32[1,768], index: 4, kind: input, shape index: {}]
  %s5 = inlined_call_operand.vmem [shape: f32[1,768], index: 5, kind: input, shape index: {}]
  %s6 = inlined_call_operand.vmem [shape: f32[1,768], index: 6, kind: input, shape index: {}]
  %s7 = inlined_call_operand.hbm [shape: f32[16,768], index: 7, kind: output, shape index: {}]
  %s8 = sld [smem:[#allocation0]]
  $region96: #{encoder_layer.7} parent=0
    _
  %s10 = ssub.s32 1, %s8
  %s11 = scalar_select 0, %s10, %s8
  $region1: #{encoder_layer.7} parent=0
    #allocation3 [shape = 'u8[4718592]{0}', space=vmem, size = 0x480000, scoped, tag = 'input window, operand 1']
    #allocation4 [shape = 'u8[4718592]{0}', space=vmem, size = 0x480000, scoped, tag = 'input window, operand 3']
    #allocation5 [shape = 's32[2]{0}', space=sflag, size = 0x8, scoped, tag = 'scoped memory for encoder_layer.7']
    #allocation6 [shape = 's32[2]{0}', space=sflag, size = 0x8, scoped, tag = 'scoped memory for encoder_layer.7']
    #allocation7 [shape = 'u8[49152]{0}', space=vmem, size = 0xc000, scoped, tag = 'output window, operand 0, single buffered']
    %12 = vsyncpa [#allocation5], 0
    %s13 = scalar_lea.sflag [#allocation5], 1
    %14 = vsyncpa %s13, 0
    %15 = vsyncpa [#allocation6], 0
    loop: start=0, step=1, limit=6
    $region2: #{encoder_layer.7} parent=1 // loop_pre_header
      _
    $region3: #{encoder_layer.7} parent=1 // loop_header
      %s17 = sphi 0, %s21
      %p18 = scmp.ge.s32.totalorder %s17, 6
      %s24 = sphi 0, %s36
      %s25 = sphi 0, %s32
      %s26 = sphi 0, %s24
      %s27 = sphi 0, %s25
      %s28 = sphi 0, %s26
      %s29 = sphi 0, %s27
      %s39 = sphi 0, %s41
      %s42 = sphi 0, %s39
      %s43 = sphi 0, %s42
      %s59 = sphi 0, %s43
      %s65 = sphi 0, %s67
      %s68 = sphi 0, %s65
      %s69 = sphi 0, %s68
      %s85 = sphi 0, %s69
      %s91 = sphi 0, %s93
      %s94 = sphi 0, %s91
      %s95 = sphi 0, %s94
      %s111 = sphi 0, %s95
      %s117 = sphi 0, %s119
      %s120 = sphi 0, %s117
      %s121 = sphi 0, %s120
      %s137 = sphi 0, %s121
      %s141 = sphi 0, %s141
      %s143 = sphi 0, %s141
      %s144 = sphi 0, %s143
      %s158 = sphi 0, %s144
      %s162 = sphi 0, %s162
      %s164 = sphi 0, %s162
      %s165 = sphi 0, %s164
      %s179 = sphi 0, %s165
      %s183 = sphi 0, %s183
      %s185 = sphi 0, %s183
      %s186 = sphi 0, %s185
      %s200 = sphi 0, %s186
      %s206 = sphi 0, %s208
      %s209 = sphi 0, %s206
      %s210 = sphi 0, %s209
      %s226 = sphi 0, %s210
    $region4: #{encoder_layer.7} parent=1 // loop_header_branch
      %20 = sbr.rel (%p18) target = $region8
    $region5: #{encoder_layer.7} parent=1 // loop_body
      %s22 = ssub.s32 %s17, 1
      %s23 = ssub.s32 %s17, 2
      %s30 = sadd.s32 1, %s25
      %p31 = scmp.ge.s32.totalorder %s30, 4
      %s32 = scalar_select %p31, 0, %s30
      %s33 = sadd.s32 1, %s24
      %s34 = scalar_select %p31, %s33, %s24
      %p35 = scmp.ge.s32.totalorder %s34, 1
      %s36 = scalar_select %p35, 0, %s34
      %s37 = ssub.s32 %s24, %s36
      %p38 = scmp.eq.s32.totalorder %s37, 0
      %s40 = sadd.s32 %s39, 1
      %s41 = scalar_select %p38, %s39, %s40
      %p44 = pneg %p38
      %p45 = scmp.eq.s32.totalorder %s17, 3
      %p46 = por %p44, %p45
      %p47 = scmp.ne.s32.totalorder %s39, %s42
      %p48 = scmp.eq.s32.totalorder %s17, 0
      %p49 = por %p47, %p48
      %p50 = scmp.ne.s32.totalorder %s39, %s42
      %p51 = scmp.eq.s32.totalorder %s22, 3
      %p52 = por %p50, %p51
      %p53 = scmp.ne.s32.totalorder %s42, %s43
      %p54 = scmp.eq.s32.totalorder %s22, 0
      %p55 = por %p53, %p54
      %p56 = scmp.ne.s32.totalorder %s42, %s43
      %p57 = scmp.eq.s32.totalorder %s23, 3
      %p58 = por %p56, %p57
      %p60 = scmp.ne.s32.totalorder %s43, %s59
      %p61 = scmp.eq.s32.totalorder %s23, 0
      %p62 = por %p60, %p61
      %s63 = ssub.s32 %s25, %s32
      %p64 = scmp.eq.s32.totalorder %s63, 0
      %s66 = sadd.s32 %s65, 1
      %s67 = scalar_select %p64, %s65, %s66
      %p70 = pneg %p64
      %p71 = scmp.eq.s32.totalorder %s17, 3
      %p72 = por %p70, %p71
      %p73 = scmp.ne.s32.totalorder %s65, %s68
      %p74 = scmp.eq.s32.totalorder %s17, 0
      %p75 = por %p73, %p74
      %p76 = scmp.ne.s32.totalorder %s65, %s68
      %p77 = scmp.eq.s32.totalorder %s22, 3
      %p78 = por %p76, %p77
      %p79 = scmp.ne.s32.totalorder %s68, %s69
      %p80 = scmp.eq.s32.totalorder %s22, 0
      %p81 = por %p79, %p80
      %p82 = scmp.ne.s32.totalorder %s68, %s69
      %p83 = scmp.eq.s32.totalorder %s23, 3
      %p84 = por %p82, %p83
      %p86 = scmp.ne.s32.totalorder %s69, %s85
      %p87 = scmp.eq.s32.totalorder %s23, 0
      %p88 = por %p86, %p87
      %s89 = ssub.s32 %s25, %s32
      %p90 = scmp.eq.s32.totalorder %s89, 0
      %s92 = sadd.s32 %s91, 1
      %s93 = scalar_select %p90, %s91, %s92
      %p96 = pneg %p90
      %p97 = scmp.eq.s32.totalorder %s17, 3
      %p98 = por %p96, %p97
      %p99 = scmp.ne.s32.totalorder %s91, %s94
      %p100 = scmp.eq.s32.totalorder %s17, 0
      %p101 = por %p99, %p100
      %p102 = scmp.ne.s32.totalorder %s91, %s94
      %p103 = scmp.eq.s32.totalorder %s22, 3
      %p104 = por %p102, %p103
      %p105 = scmp.ne.s32.totalorder %s94, %s95
      %p106 = scmp.eq.s32.totalorder %s22, 0
      %p107 = por %p105, %p106
      %p108 = scmp.ne.s32.totalorder %s94, %s95
      %p109 = scmp.eq.s32.totalorder %s23, 3
      %p110 = por %p108, %p109
      %p112 = scmp.ne.s32.totalorder %s95, %s111
      %p113 = scmp.eq.s32.totalorder %s23, 0
      %p114 = por %p112, %p113
      %s115 = ssub.s32 %s25, %s32
      %p116 = scmp.eq.s32.totalorder %s115, 0
      %s118 = sadd.s32 %s117, 1
      %s119 = scalar_select %p116, %s117, %s118
      %p122 = pneg %p116
      %p123 = scmp.eq.s32.totalorder %s17, 3
      %p124 = por %p122, %p123
      %p125 = scmp.ne.s32.totalorder %s117, %s120
      %p126 = scmp.eq.s32.totalorder %s17, 0
      %p127 = por %p125, %p126
      %p128 = scmp.ne.s32.totalorder %s117, %s120
      %p129 = scmp.eq.s32.totalorder %s22, 3
      %p130 = por %p128, %p129
      %p131 = scmp.ne.s32.totalorder %s120, %s121
      %p132 = scmp.eq.s32.totalorder %s22, 0
      %p133 = por %p131, %p132
      %p134 = scmp.ne.s32.totalorder %s120, %s121
      %p135 = scmp.eq.s32.totalorder %s23, 3
      %p136 = por %p134, %p135
      %p138 = scmp.ne.s32.totalorder %s121, %s137
      %p139 = scmp.eq.s32.totalorder %s23, 0
      %p140 = por %p138, %p139
      %s142 = sadd.s32 %s141, 1
      %p145 = scmp.eq.s32.totalorder %s17, 3
      %p146 = scmp.ne.s32.totalorder %s141, %s143
      %p147 = scmp.eq.s32.totalorder %s17, 0
      %p148 = por %p146, %p147
      %p149 = scmp.ne.s32.totalorder %s141, %s143
      %p150 = scmp.eq.s32.totalorder %s22, 3
      %p151 = por %p149, %p150
      %p152 = scmp.ne.s32.totalorder %s143, %s144
      %p153 = scmp.eq.s32.totalorder %s22, 0
      %p154 = por %p152, %p153
      %p155 = scmp.ne.s32.totalorder %s143, %s144
      %p156 = scmp.eq.s32.totalorder %s23, 3
      %p157 = por %p155, %p156
      %p159 = scmp.ne.s32.totalorder %s144, %s158
      %p160 = scmp.eq.s32.totalorder %s23, 0
      %p161 = por %p159, %p160
      %s163 = sadd.s32 %s162, 1
      %p166 = scmp.eq.s32.totalorder %s17, 3
      %p167 = scmp.ne.s32.totalorder %s162, %s164
      %p168 = scmp.eq.s32.totalorder %s17, 0
      %p169 = por %p167, %p168
      %p170 = scmp.ne.s32.totalorder %s162, %s164
      %p171 = scmp.eq.s32.totalorder %s22, 3
      %p172 = por %p170, %p171
      %p173 = scmp.ne.s32.totalorder %s164, %s165
      %p174 = scmp.eq.s32.totalorder %s22, 0
      %p175 = por %p173, %p174
      %p176 = scmp.ne.s32.totalorder %s164, %s165
      %p177 = scmp.eq.s32.totalorder %s23, 3
      %p178 = por %p176, %p177
      %p180 = scmp.ne.s32.totalorder %s165, %s179
      %p181 = scmp.eq.s32.totalorder %s23, 0
      %p182 = por %p180, %p181
      %s184 = sadd.s32 %s183, 1
      %p187 = scmp.eq.s32.totalorder %s17, 3
      %p188 = scmp.ne.s32.totalorder %s183, %s185
      %p189 = scmp.eq.s32.totalorder %s17, 0
      %p190 = por %p188, %p189
      %p191 = scmp.ne.s32.totalorder %s183, %s185
      %p192 = scmp.eq.s32.totalorder %s22, 3
      %p193 = por %p191, %p192
      %p194 = scmp.ne.s32.totalorder %s185, %s186
      %p195 = scmp.eq.s32.totalorder %s22, 0
      %p196 = por %p194, %p195
      %p197 = scmp.ne.s32.totalorder %s185, %s186
      %p198 = scmp.eq.s32.totalorder %s23, 3
      %p199 = por %p197, %p198
      %p201 = scmp.ne.s32.totalorder %s186, %s200
      %p202 = scmp.eq.s32.totalorder %s23, 0
      %p203 = por %p201, %p202
      %s204 = ssub.s32 %s24, %s36
      %p205 = scmp.eq.s32.totalorder %s204, 0
      %s207 = sadd.s32 %s206, 1
      %s208 = scalar_select %p205, %s206, %s207
      %p211 = pneg %p205
      %p212 = scmp.eq.s32.totalorder %s17, 3
      %p213 = por %p211, %p212
      %p214 = scmp.ne.s32.totalorder %s206, %s209
      %p215 = scmp.eq.s32.totalorder %s17, 0
      %p216 = por %p214, %p215
      %p217 = scmp.ne.s32.totalorder %s206, %s209
      %p218 = scmp.eq.s32.totalorder %s22, 3
      %p219 = por %p217, %p218
      %p220 = scmp.ne.s32.totalorder %s209, %s210
      %p221 = scmp.eq.s32.totalorder %s22, 0
      %p222 = por %p220, %p221
      %p223 = scmp.ne.s32.totalorder %s209, %s210
      %p224 = scmp.eq.s32.totalorder %s23, 3
      %p225 = por %p223, %p224
      %p227 = scmp.ne.s32.totalorder %s210, %s226
      %p228 = scmp.eq.s32.totalorder %s23, 0
      %p229 = por %p227, %p228
      %p230 = scmp.le.s32.totalorder 1, %s17
      %p231 = scmp.lt.s32.totalorder %s17, 5
      %p232 = pnand %p230, %p231
      %p233 = pneg %p232
      // Predicated region
      $region9: #{encoder_layer.7} parent=5 // pred_check
        _
      $region10: #{encoder_layer.7} parent=5 // pred_check_branch
        %235 = sbr.rel (%p232) target = $region12
      $region11: #{encoder_layer.7} parent=5 // pred_region
        %s236 = ssub.s32 %s17, 1
        // Predicated region
        $region13: #{encoder_layer.7} parent=11 // pred_check
          %p237 = pneg %p55
        $region14: #{encoder_layer.7} parent=11 // pred_check_branch
          %239 = sbr.rel (%p237) target = $region16
        $region15: #{encoder_layer.7} parent=11 // pred_region
          %s240 = smul.u32 2, %s26
          %p241 = scmp.lt.s32.totalorder %s240, 1
          %s242 = scalar_select %p241, %s240, 1
          %s243 = smul.addr %s242, 6
          %s244 = smul.addr %s243, 8
          %s245 = scalar_lea.vmem %s0, %s244
          %s246 = smul.u32 2, %s26
        $region16: #{encoder_layer.7} parent=11 // pred_fallthru
          _
        // Predicated region
        $region17: #{encoder_layer.7} parent=11 // pred_check
          %p247 = pneg %p154
        $region18: #{encoder_layer.7} parent=11 // pred_check_branch
          %249 = sbr.rel (%p247) target = $region20
        $region19: #{encoder_layer.7} parent=11 // pred_region
          _
        $region20: #{encoder_layer.7} parent=11 // pred_fallthru
          _
        // Predicated region
        $region21: #{encoder_layer.7} parent=11 // pred_check
          %p250 = pneg %p175
        $region22: #{encoder_layer.7} parent=11 // pred_check_branch
          %252 = sbr.rel (%p250) target = $region24
        $region23: #{encoder_layer.7} parent=11 // pred_region
          _
        $region24: #{encoder_layer.7} parent=11 // pred_fallthru
          _
        // Predicated region
        $region25: #{encoder_layer.7} parent=11 // pred_check
          %p253 = pneg %p196
        $region26: #{encoder_layer.7} parent=11 // pred_check_branch
          %255 = sbr.rel (%p253) target = $region28
        $region27: #{encoder_layer.7} parent=11 // pred_region
          _
        $region28: #{encoder_layer.7} parent=11 // pred_fallthru
          _
      $region12: #{encoder_layer.7} parent=5 // pred_fallthru
        _
      %p256 = scmp.lt.s32.totalorder %s17, 4
      // Predicated region
      $region29: #{encoder_layer.7} parent=5 // pred_check
        %p257 = pneg %p256
      $region30: #{encoder_layer.7} parent=5 // pred_check_branch
        %259 = sbr.rel (%p257) target = $region32
      $region31: #{encoder_layer.7} parent=5 // pred_region
        // Predicated region
        $region33: #{encoder_layer.7} parent=31 // pred_check
          %p260 = pneg %p75
        $region34: #{encoder_layer.7} parent=31 // pred_check_branch
          %262 = sbr.rel (%p260) target = $region36
        $region35: #{encoder_layer.7} parent=31 // pred_region
          %s263 = sand.u32 %s65, 1
          %s264 = sand.u32 %s65, 1
          %s265 = smul.addr %s264, 4608
          %s266 = scalar_lea.vmem [#allocation3], %s265
          %s267 = smul.u32 6, %s25
          %s268 = smul.addr %s267, 8
          %s269 = scalar_lea.vmem %s1, %s268
          // Predicated region
          $region37: #{encoder_layer.7} parent=35 // pred_check
            _
          $region38: #{encoder_layer.7} parent=35 // pred_check_branch
            %271 = sbr.rel (0) target = $region40
          $region39: #{encoder_layer.7} parent=35 // pred_region
            // Predicated region
            $region41: #{encoder_layer.7} parent=39 // pred_check
              _
            $region42: #{encoder_layer.7} parent=39 // pred_check_branch
              %273 = sbr.rel (0) target = $region44
            $region43: #{encoder_layer.7} parent=39 // pred_region
              loop: start=0, step=1, limit=1
              $region45: #{encoder_layer.7} parent=43 // loop_pre_header
                _
              $region46: #{encoder_layer.7} parent=43 // loop_header
                %s275 = sphi 0, %s279
                %p276 = scmp.ge.s32.totalorder %s275, 1
                %s280 = sphi %s269, %s269
                %s281 = sphi %s266, %s266
              $region47: #{encoder_layer.7} parent=43 // loop_header_branch
                %278 = sbr.rel (%p276) target = $region51
              $region48: #{encoder_layer.7} parent=43 // loop_body
                %v282 = vld [vmem:[%s280] sm:$0xff]
                %283 = vst [vmem:[%s281] sm:$0xff] %v282
                %v284 = vld [vmem:[%s280 + $0x8] sm:$0xff]
                %285 = vst [vmem:[%s281 + $0x8] sm:$0xff] %v284
                %v286 = vld [vmem:[%s280 + $0x10] sm:$0xff]
                %287 = vst [vmem:[%s281 + $0x10] sm:$0xff] %v286
                %v288 = vld [vmem:[%s280 + $0x18] sm:$0xff]
                %289 = vst [vmem:[%s281 + $0x18] sm:$0xff] %v288
                %v290 = vld [vmem:[%s280 + $0x20] sm:$0xff]
                %291 = vst [vmem:[%s281 + $0x20] sm:$0xff] %v290
                %v292 = vld [vmem:[%s280 + $0x28] sm:$0xff]
                %293 = vst [vmem:[%s281 + $0x28] sm:$0xff] %v292
                %v294 = vld [vmem:[%s280 + $0xc0] sm:$0xff]
                %295 = vst [vmem:[%s281 + $0x30] sm:$0xff] %v294
                %v296 = vld [vmem:[%s280 + $0xc8] sm:$0xff]
                %297 = vst [vmem:[%s281 + $0x38] sm:$0xff] %v296
                %v298 = vld [vmem:[%s280 + $0xd0] sm:$0xff]
                %299 = vst [vmem:[%s281 + $0x40] sm:$0xff] %v298
                %v300 = vld [vmem:[%s280 + $0xd8] sm:$0xff]
                %301 = vst [vmem:[%s281 + $0x48] sm:$0xff] %v300
                %v302 = vld [vmem:[%s280 + $0xe0] sm:$0xff]
                %303 = vst [vmem:[%s281 + $0x50] sm:$0xff] %v302
                %v304 = vld [vmem:[%s280 + $0xe8] sm:$0xff]
                %305 = vst [vmem:[%s281 + $0x58] sm:$0xff] %v304
                %v306 = vld [vmem:[%s280 + $0x180] sm:$0xff]
                %307 = vst [vmem:[%s281 + $0x60] sm:$0xff] %v306
                %v308 = vld [vmem:[%s280 + $0x188] sm:$0xff]
                %309 = vst [vmem:[%s281 + $0x68] sm:$0xff] %v308
                %v310 = vld [vmem:[%s280 + $0x190] sm:$0xff]
                %311 = vst [vmem:[%s281 + $0x70] sm:$0xff] %v310
                %v312 = vld [vmem:[%s280 + $0x198] sm:$0xff]
                %313 = vst [vmem:[%s281 + $0x78] sm:$0xff] %v312
                %v314 = vld [vmem:[%s280 + $0x1a0] sm:$0xff]
                %315 = vst [vmem:[%s281 + $0x80] sm:$0xff] %v314
                %v316 = vld [vmem:[%s280 + $0x1a8] sm:$0xff]
                %317 = vst [vmem:[%s281 + $0x88] sm:$0xff] %v316
                %v318 = vld [vmem:[%s280 + $0x240] sm:$0xff]
                %319 = vst [vmem:[%s281 + $0x90] sm:$0xff] %v318
                %v320 = vld [vmem:[%s280 + $0x248] sm:$0xff]
                %321 = vst [vmem:[%s281 + $0x98] sm:$0xff] %v320
                %v322 = vld [vmem:[%s280 + $0x250] sm:$0xff]
                %323 = vst [vmem:[%s281 + $0xa0] sm:$0xff] %v322
                %v324 = vld [vmem:[%s280 + $0x258] sm:$0xff]
                %325 = vst [vmem:[%s281 + $0xa8] sm:$0xff] %v324
                %v326 = vld [vmem:[%s280 + $0x260] sm:$0xff]
                %327 = vst [vmem:[%s281 + $0xb0] sm:$0xff] %v326
                %v328 = vld [vmem:[%s280 + $0x268] sm:$0xff]
                %329 = vst [vmem:[%s281 + $0xb8] sm:$0xff] %v328
                %v330 = vld [vmem:[%s280 + $0x300] sm:$0xff]
                %331 = vst [vmem:[%s281 + $0xc0] sm:$0xff] %v330
                %v332 = vld [vmem:[%s280 + $0x308] sm:$0xff]
                %333 = vst [vmem:[%s281 + $0xc8] sm:$0xff] %v332
                %v334 = vld [vmem:[%s280 + $0x310] sm:$0xff]
                %335 = vst [vmem:[%s281 + $0xd0] sm:$0xff] %v334
                %v336 = vld [vmem:[%s280 + $0x318] sm:$0xff]
                %337 = vst [vmem:[%s281 + $0xd8] sm:$0xff] %v336
                %v338 = vld [vmem:[%s280 + $0x320] sm:$0xff]
                %339 = vst [vmem:[%s281 + $0xe0] sm:$0xff] %v338
                %v340 = vld [vmem:[%s280 + $0x328] sm:$0xff]
                %341 = vst [vmem:[%s281 + $0xe8] sm:$0xff] %v340
                %v342 = vld [vmem:[%s280 + $0x3c0] sm:$0xff]
                %343 = vst [vmem:[%s281 + $0xf0] sm:$0xff] %v342
                %v344 = vld [vmem:[%s280 + $0x3c8] sm:$0xff]
                %345 = vst [vmem:[%s281 + $0xf8] sm:$0xff] %v344
                %v346 = vld [vmem:[%s280 + $0x3d0] sm:$0xff]
                %347 = vst [vmem:[%s281 + $0x100] sm:$0xff] %v346
                %v348 = vld [vmem:[%s280 + $0x3d8] sm:$0xff]
                %349 = vst [vmem:[%s281 + $0x108] sm:$0xff] %v348
                %v350 = vld [vmem:[%s280 + $0x3e0] sm:$0xff]
                %351 = vst [vmem:[%s281 + $0x110] sm:$0xff] %v350
                %v352 = vld [vmem:[%s280 + $0x3e8] sm:$0xff]
                %353 = vst [vmem:[%s281 + $0x118] sm:$0xff] %v352
                %v354 = vld [vmem:[%s280 + $0x480] sm:$0xff]
                %355 = vst [vmem:[%s281 + $0x120] sm:$0xff] %v354
                %v356 = vld [vmem:[%s280 + $0x488] sm:$0xff]
                %357 = vst [vmem:[%s281 + $0x128] sm:$0xff] %v356
                %v358 = vld [vmem:[%s280 + $0x490] sm:$0xff]
                %359 = vst [vmem:[%s281 + $0x130] sm:$0xff] %v358
                %v360 = vld [vmem:[%s280 + $0x498] sm:$0xff]
                %361 = vst [vmem:[%s281 + $0x138] sm:$0xff] %v360
                %v362 = vld [vmem:[%s280 + $0x4a0] sm:$0xff]
                %363 = vst [vmem:[%s281 + $0x140] sm:$0xff] %v362
                %v364 = vld [vmem:[%s280 + $0x4a8] sm:$0xff]
                %365 = vst [vmem:[%s281 + $0x148] sm:$0xff] %v364
                %v366 = vld [vmem:[%s280 + $0x540] sm:$0xff]
                %367 = vst [vmem:[%s281 + $0x150] sm:$0xff] %v366
                %v368 = vld [vmem:[%s280 + $0x548] sm:$0xff]
                %369 = vst [vmem:[%s281 + $0x158] sm:$0xff] %v368
                %v370 = vld [vmem:[%s280 + $0x550] sm:$0xff]
                %371 = vst [vmem:[%s281 + $0x160] sm:$0xff] %v370
                %v372 = vld [vmem:[%s280 + $0x558] sm:$0xff]
                %373 = vst [vmem:[%s281 + $0x168] sm:$0xff] %v372
                %v374 = vld [vmem:[%s280 + $0x560] sm:$0xff]
                %375 = vst [vmem:[%s281 + $0x170] sm:$0xff] %v374
                %v376 = vld [vmem:[%s280 + $0x568] sm:$0xff]
                %377 = vst [vmem:[%s281 + $0x178] sm:$0xff] %v376
                %v378 = vld [vmem:[%s280 + $0x600] sm:$0xff]
                %379 = vst [vmem:[%s281 + $0x180] sm:$0xff] %v378
                %v380 = vld [vmem:[%s280 + $0x608] sm:$0xff]
                %381 = vst [vmem:[%s281 + $0x188] sm:$0xff] %v380
                %v382 = vld [vmem:[%s280 + $0x610] sm:$0xff]
                %383 = vst [vmem:[%s281 + $0x190] sm:$0xff] %v382
                %v384 = vld [vmem:[%s280 + $0x618] sm:$0xff]
                %385 = vst [vmem:[%s281 + $0x198] sm:$0xff] %v384
                %v386 = vld [vmem:[%s280 + $0x620] sm:$0xff]
                %387 = vst [vmem:[%s281 + $0x1a0] sm:$0xff] %v386
                %v388 = vld [vmem:[%s280 + $0x628] sm:$0xff]
                %389 = vst [vmem:[%s281 + $0x1a8] sm:$0xff] %v388
                %v390 = vld [vmem:[%s280 + $0x6c0] sm:$0xff]
                %391 = vst [vmem:[%s281 + $0x1b0] sm:$0xff] %v390
                %v392 = vld [vmem:[%s280 + $0x6c8] sm:$0xff]
                %393 = vst [vmem:[%s281 + $0x1b8] sm:$0xff] %v392
                %v394 = vld [vmem:[%s280 + $0x6d0] sm:$0xff]
                %395 = vst [vmem:[%s281 + $0x1c0] sm:$0xff] %v394
                %v396 = vld [vmem:[%s280 + $0x6d8] sm:$0xff]
                %397 = vst [vmem:[%s281 + $0x1c8] sm:$0xff] %v396
                %v398 = vld [vmem:[%s280 + $0x6e0] sm:$0xff]
                %399 = vst [vmem:[%s281 + $0x1d0] sm:$0xff] %v398
                %v400 = vld [vmem:[%s280 + $0x6e8] sm:$0xff]
                %401 = vst [vmem:[%s281 + $0x1d8] sm:$0xff] %v400
                %v402 = vld [vmem:[%s280 + $0x780] sm:$0xff]
                %403 = vst [vmem:[%s281 + $0x1e0] sm:$0xff] %v402
                %v404 = vld [vmem:[%s280 + $0x788] sm:$0xff]
                %405 = vst [vmem:[%s281 + $0x1e8] sm:$0xff] %v404
                %v406 = vld [vmem:[%s280 + $0x790] sm:$0xff]
                %407 = vst [vmem:[%s281 + $0x1f0] sm:$0xff] %v406
                %v408 = vld [vmem:[%s280 + $0x798] sm:$0xff]
                %409 = vst [vmem:[%s281 + $0x1f8] sm:$0xff] %v408
                %v410 = vld [vmem:[%s280 + $0x7a0] sm:$0xff]
                %411 = vst [vmem:[%s281 + $0x200] sm:$0xff] %v410
                %v412 = vld [vmem:[%s280 + $0x7a8] sm:$0xff]
                %413 = vst [vmem:[%s281 + $0x208] sm:$0xff] %v412
                %v414 = vld [vmem:[%s280 + $0x840] sm:$0xff]
                %415 = vst [vmem:[%s281 + $0x210] sm:$0xff] %v414
                %v416 = vld [vmem:[%s280 + $0x848] sm:$0xff]
                %417 = vst [vmem:[%s281 + $0x218] sm:$0xff] %v416
                %v418 = vld [vmem:[%s280 + $0x850] sm:$0xff]
                %419 = vst [vmem:[%s281 + $0x220] sm:$0xff] %v418
                %v420 = vld [vmem:[%s280 + $0x858] sm:$0xff]
                %421 = vst [vmem:[%s281 + $0x228] sm:$0xff] %v420
                %v422 = vld [vmem:[%s280 + $0x860] sm:$0xff]
                %423 = vst [vmem:[%s281 + $0x230] sm:$0xff] %v422
                %v424 = vld [vmem:[%s280 + $0x868] sm:$0xff]
                %425 = vst [vmem:[%s281 + $0x238] sm:$0xff] %v424
                %v426 = vld [vmem:[%s280 + $0x900] sm:$0xff]
                %427 = vst [vmem:[%s281 + $0x240] sm:$0xff] %v426
                %v428 = vld [vmem:[%s280 + $0x908] sm:$0xff]
                %429 = vst [vmem:[%s281 + $0x248] sm:$0xff] %v428
                %v430 = vld [vmem:[%s280 + $0x910] sm:$0xff]
                %431 = vst [vmem:[%s281 + $0x250] sm:$0xff] %v430
                %v432 = vld [vmem:[%s280 + $0x918] sm:$0xff]
                %433 = vst [vmem:[%s281 + $0x258] sm:$0xff] %v432
                %v434 = vld [vmem:[%s280 + $0x920] sm:$0xff]
                %435 = vst [vmem:[%s281 + $0x260] sm:$0xff] %v434
                %v436 = vld [vmem:[%s280 + $0x928] sm:$0xff]
                %437 = vst [vmem:[%s281 + $0x268] sm:$0xff] %v436
                %v438 = vld [vmem:[%s280 + $0x9c0] sm:$0xff]
                %439 = vst [vmem:[%s281 + $0x270] sm:$0xff] %v438
                %v440 = vld [vmem:[%s280 + $0x9c8] sm:$0xff]
                %441 = vst [vmem:[%s281 + $0x278] sm:$0xff] %v440
                %v442 = vld [vmem:[%s280 + $0x9d0] sm:$0xff]
                %443 = vst [vmem:[%s281 + $0x280] sm:$0xff] %v442
                %v444 = vld [vmem:[%s280 + $0x9d8] sm:$0xff]
                %445 = vst [vmem:[%s281 + $0x288] sm:$0xff] %v444
                %v446 = vld [vmem:[%s280 + $0x9e0] sm:$0xff]
                %447 = vst [vmem:[%s281 + $0x290] sm:$0xff] %v446
                %v448 = vld [vmem:[%s280 + $0x9e8] sm:$0xff]
                %449 = vst [vmem:[%s281 + $0x298] sm:$0xff] %v448
                %v450 = vld [vmem:[%s280 + $0xa80] sm:$0xff]
                %451 = vst [vmem:[%s281 + $0x2a0] sm:$0xff] %v450
                %v452 = vld [vmem:[%s280 + $0xa88] sm:$0xff]
                %453 = vst [vmem:[%s281 + $0x2a8] sm:$0xff] %v452
                %v454 = vld [vmem:[%s280 + $0xa90] sm:$0xff]
                %455 = vst [vmem:[%s281 + $0x2b0] sm:$0xff] %v454
                %v456 = vld [vmem:[%s280 + $0xa98] sm:$0xff]
                %457 = vst [vmem:[%s281 + $0x2b8] sm:$0xff] %v456
                %v458 = vld [vmem:[%s280 + $0xaa0] sm:$0xff]
                %459 = vst [vmem:[%s281 + $0x2c0] sm:$0xff] %v458
                %v460 = vld [vmem:[%s280 + $0xaa8] sm:$0xff]
                %461 = vst [vmem:[%s281 + $0x2c8] sm:$0xff] %v460
                %v462 = vld [vmem:[%s280 + $0xb40] sm:$0xff]
                %463 = vst [vmem:[%s281 + $0x2d0] sm:$0xff] %v462
                %v464 = vld [vmem:[%s280 + $0xb48] sm:$0xff]
                %465 = vst [vmem:[%s281 + $0x2d8] sm:$0xff] %v464
                %v466 = vld [vmem:[%s280 + $0xb50] sm:$0xff]
                %467 = vst [vmem:[%s281 + $0x2e0] sm:$0xff] %v466
                %v468 = vld [vmem:[%s280 + $0xb58] sm:$0xff]
                %469 = vst [vmem:[%s281 + $0x2e8] sm:$0xff] %v468
                %v470 = vld [vmem:[%s280 + $0xb60] sm:$0xff]
                %471 = vst [vmem:[%s281 + $0x2f0] sm:$0xff] %v470
                %v472 = vld [vmem:[%s280 + $0xb68] sm:$0xff]
                %473 = vst [vmem:[%s281 + $0x2f8] sm:$0xff] %v472
                %v474 = vld [vmem:[%s280 + $0xc00] sm:$0xff]
                %475 = vst [vmem:[%s281 + $0x300] sm:$0xff] %v474
                %v476 = vld [vmem:[%s280 + $0xc08] sm:$0xff]
                %477 = vst [vmem:[%s281 + $0x308] sm:$0xff] %v476
                %v478 = vld [vmem:[%s280 + $0xc10] sm:$0xff]
                %479 = vst [vmem:[%s281 + $0x310] sm:$0xff] %v478
                %v480 = vld [vmem:[%s280 + $0xc18] sm:$0xff]
                %481 = vst [vmem:[%s281 + $0x318] sm:$0xff] %v480
                %v482 = vld [vmem:[%s280 + $0xc20] sm:$0xff]
                %483 = vst [vmem:[%s281 + $0x320] sm:$0xff] %v482
                %v484 = vld [vmem:[%s280 + $0xc28] sm:$0xff]
                %485 = vst [vmem:[%s281 + $0x328] sm:$0xff] %v484
                %v486 = vld [vmem:[%s280 + $0xcc0] sm:$0xff]
                %487 = vst [vmem:[%s281 + $0x330] sm:$0xff] %v486
                %v488 = vld [vmem:[%s280 + $0xcc8] sm:$0xff]
                %489 = vst [vmem:[%s281 + $0x338] sm:$0xff] %v488
                %v490 = vld [vmem:[%s280 + $0xcd0] sm:$0xff]
                %491 = vst [vmem:[%s281 + $0x340] sm:$0xff] %v490
                %v492 = vld [vmem:[%s280 + $0xcd8] sm:$0xff]
                %493 = vst [vmem:[%s281 + $0x348] sm:$0xff] %v492
                %v494 = vld [vmem:[%s280 + $0xce0] sm:$0xff]
                %495 = vst [vmem:[%s281 + $0x350] sm:$0xff] %v494
                %v496 = vld [vmem:[%s280 + $0xce8] sm:$0xff]
                %497 = vst [vmem:[%s281 + $0x358] sm:$0xff] %v496
                %v498 = vld [vmem:[%s280 + $0xd80] sm:$0xff]
                %499 = vst [vmem:[%s281 + $0x360] sm:$0xff] %v498
                %v500 = vld [vmem:[%s280 + $0xd88] sm:$0xff]
                %501 = vst [vmem:[%s281 + $0x368] sm:$0xff] %v500
                %v502 = vld [vmem:[%s280 + $0xd90] sm:$0xff]
                %503 = vst [vmem:[%s281 + $0x370] sm:$0xff] %v502
                %v504 = vld [vmem:[%s280 + $0xd98] sm:$0xff]
                %505 = vst [vmem:[%s281 + $0x378] sm:$0xff] %v504
                %v506 = vld [vmem:[%s280 + $0xda0] sm:$0xff]
                %507 = vst [vmem:[%s281 + $0x380] sm:$0xff] %v506
                %v508 = vld [vmem:[%s280 + $0xda8] sm:$0xff]
                %509 = vst [vmem:[%s281 + $0x388] sm:$0xff] %v508
                %v510 = vld [vmem:[%s280 + $0xe40] sm:$0xff]
                %511 = vst [vmem:[%s281 + $0x390] sm:$0xff] %v510
                %v512 = vld [vmem:[%s280 + $0xe48] sm:$0xff]
                %513 = vst [vmem:[%s281 + $0x398] sm:$0xff] %v512
                %v514 = vld [vmem:[%s280 + $0xe50] sm:$0xff]
                %515 = vst [vmem:[%s281 + $0x3a0] sm:$0xff] %v514
                %v516 = vld [vmem:[%s280 + $0xe58] sm:$0xff]
                %517 = vst [vmem:[%s281 + $0x3a8] sm:$0xff] %v516
                %v518 = vld [vmem:[%s280 + $0xe60] sm:$0xff]
                %519 = vst [vmem:[%s281 + $0x3b0] sm:$0xff] %v518
                %v520 = vld [vmem:[%s280 + $0xe68] sm:$0xff]
                %521 = vst [vmem:[%s281 + $0x3b8] sm:$0xff] %v520
                %v522 = vld [vmem:[%s280 + $0xf00] sm:$0xff]
                %523 = vst [vmem:[%s281 + $0x3c0] sm:$0xff] %v522
                %v524 = vld [vmem:[%s280 + $0xf08] sm:$0xff]
                %525 = vst [vmem:[%s281 + $0x3c8] sm:$0xff] %v524
                %v526 = vld [vmem:[%s280 + $0xf10] sm:$0xff]
                %527 = vst [vmem:[%s281 + $0x3d0] sm:$0xff] %v526
                %v528 = vld [vmem:[%s280 + $0xf18] sm:$0xff]
                %529 = vst [vmem:[%s281 + $0x3d8] sm:$0xff] %v528
                %v530 = vld [vmem:[%s280 + $0xf20] sm:$0xff]
                %531 = vst [vmem:[%s281 + $0x3e0] sm:$0xff] %v530
                %v532 = vld [vmem:[%s280 + $0xf28] sm:$0xff]
                %533 = vst [vmem:[%s281 + $0x3e8] sm:$0xff] %v532
                %v534 = vld [vmem:[%s280 + $0xfc0] sm:$0xff]
                %535 = vst [vmem:[%s281 + $0x3f0] sm:$0xff] %v534
                %v536 = vld [vmem:[%s280 + $0xfc8] sm:$0xff]
                %537 = vst [vmem:[%s281 + $0x3f8] sm:$0xff] %v536
                %v538 = vld [vmem:[%s280 + $0xfd0] sm:$0xff]
                %539 = vst [vmem:[%s281 + $0x400] sm:$0xff] %v538
                %v540 = vld [vmem:[%s280 + $0xfd8] sm:$0xff]
                %541 = vst [vmem:[%s281 + $0x408] sm:$0xff] %v540
                %v542 = vld [vmem:[%s280 + $0xfe0] sm:$0xff]
                %543 = vst [vmem:[%s281 + $0x410] sm:$0xff] %v542
                %v544 = vld [vmem:[%s280 + $0xfe8] sm:$0xff]
                %545 = vst [vmem:[%s281 + $0x418] sm:$0xff] %v544
                %v546 = vld [vmem:[%s280 + $0x1080] sm:$0xff]
                %547 = vst [vmem:[%s281 + $0x420] sm:$0xff] %v546
                %v548 = vld [vmem:[%s280 + $0x1088] sm:$0xff]
                %549 = vst [vmem:[%s281 + $0x428] sm:$0xff] %v548
                %v550 = vld [vmem:[%s280 + $0x1090] sm:$0xff]
                %551 = vst [vmem:[%s281 + $0x430] sm:$0xff] %v550
                %v552 = vld [vmem:[%s280 + $0x1098] sm:$0xff]
                %553 = vst [vmem:[%s281 + $0x438] sm:$0xff] %v552
                %v554 = vld [vmem:[%s280 + $0x10a0] sm:$0xff]
                %555 = vst [vmem:[%s281 + $0x440] sm:$0xff] %v554
                %v556 = vld [vmem:[%s280 + $0x10a8] sm:$0xff]
                %557 = vst [vmem:[%s281 + $0x448] sm:$0xff] %v556
                %v558 = vld [vmem:[%s280 + $0x1140] sm:$0xff]
                %559 = vst [vmem:[%s281 + $0x450] sm:$0xff] %v558
                %v560 = vld [vmem:[%s280 + $0x1148] sm:$0xff]
                %561 = vst [vmem:[%s281 + $0x458] sm:$0xff] %v560
                %v562 = vld [vmem:[%s280 + $0x1150] sm:$0xff]
                %563 = vst [vmem:[%s281 + $0x460] sm:$0xff] %v562
                %v564 = vld [vmem:[%s280 + $0x1158] sm:$0xff]
                %565 = vst [vmem:[%s281 + $0x468] sm:$0xff] %v564
                %v566 = vld [vmem:[%s280 + $0x1160] sm:$0xff]
                %567 = vst [vmem:[%s281 + $0x470] sm:$0xff] %v566
                %v568 = vld [vmem:[%s280 + $0x1168] sm:$0xff]
                %569 = vst [vmem:[%s281 + $0x478] sm:$0xff] %v568
                %v570 = vld [vmem:[%s280 + $0x1200] sm:$0xff]
                %571 = vst [vmem:[%s281 + $0x480] sm:$0xff] %v570
                %v572 = vld [vmem:[%s280 + $0x1208] sm:$0xff]
                %573 = vst [vmem:[%s281 + $0x488] sm:$0xff] %v572
                %v574 = vld [vmem:[%s280 + $0x1210] sm:$0xff]
                %575 = vst [vmem:[%s281 + $0x490] sm:$0xff] %v574
                %v576 = vld [vmem:[%s280 + $0x1218] sm:$0xff]
                %577 = vst [vmem:[%s281 + $0x498] sm:$0xff] %v576
                %v578 = vld [vmem:[%s280 + $0x1220] sm:$0xff]
                %579 = vst [vmem:[%s281 + $0x4a0] sm:$0xff] %v578
                %v580 = vld [vmem:[%s280 + $0x1228] sm:$0xff]
                %581 = vst [vmem:[%s281 + $0x4a8] sm:$0xff] %v580
                %v582 = vld [vmem:[%s280 + $0x12c0] sm:$0xff]
                %583 = vst [vmem:[%s281 + $0x4b0] sm:$0xff] %v582
                %v584 = vld [vmem:[%s280 + $0x12c8] sm:$0xff]
                %585 = vst [vmem:[%s281 + $0x4b8] sm:$0xff] %v584
                %v586 = vld [vmem:[%s280 + $0x12d0] sm:$0xff]
                %587 = vst [vmem:[%s281 + $0x4c0] sm:$0xff] %v586
                %v588 = vld [vmem:[%s280 + $0x12d8] sm:$0xff]
                %589 = vst [vmem:[%s281 + $0x4c8] sm:$0xff] %v588
                %v590 = vld [vmem:[%s280 + $0x12e0] sm:$0xff]
                %591 = vst [vmem:[%s281 + $0x4d0] sm:$0xff] %v590
                %v592 = vld [vmem:[%s280 + $0x12e8] sm:$0xff]
                %593 = vst [vmem:[%s281 + $0x4d8] sm:$0xff] %v592
                %v594 = vld [vmem:[%s280 + $0x1380] sm:$0xff]
                %595 = vst [vmem:[%s281 + $0x4e0] sm:$0xff] %v594
                %v596 = vld [vmem:[%s280 + $0x1388] sm:$0xff]
                %597 = vst [vmem:[%s281 + $0x4e8] sm:$0xff] %v596
                %v598 = vld [vmem:[%s280 + $0x1390] sm:$0xff]
                %599 = vst [vmem:[%s281 + $0x4f0] sm:$0xff] %v598
                %v600 = vld [vmem:[%s280 + $0x1398] sm:$0xff]
                %601 = vst [vmem:[%s281 + $0x4f8] sm:$0xff] %v600
                %v602 = vld [vmem:[%s280 + $0x13a0] sm:$0xff]
                %603 = vst [vmem:[%s281 + $0x500] sm:$0xff] %v602
                %v604 = vld [vmem:[%s280 + $0x13a8] sm:$0xff]
                %605 = vst [vmem:[%s281 + $0x508] sm:$0xff] %v604
                %v606 = vld [vmem:[%s280 + $0x1440] sm:$0xff]
                %607 = vst [vmem:[%s281 + $0x510] sm:$0xff] %v606
                %v608 = vld [vmem:[%s280 + $0x1448] sm:$0xff]
                %609 = vst [vmem:[%s281 + $0x518] sm:$0xff] %v608
                %v610 = vld [vmem:[%s280 + $0x1450] sm:$0xff]
                %611 = vst [vmem:[%s281 + $0x520] sm:$0xff] %v610
                %v612 = vld [vmem:[%s280 + $0x1458] sm:$0xff]
                %613 = vst [vmem:[%s281 + $0x528] sm:$0xff] %v612
                %v614 = vld [vmem:[%s280 + $0x1460] sm:$0xff]
                %615 = vst [vmem:[%s281 + $0x530] sm:$0xff] %v614
                %v616 = vld [vmem:[%s280 + $0x1468] sm:$0xff]
                %617 = vst [vmem:[%s281 + $0x538] sm:$0xff] %v616
                %v618 = vld [vmem:[%s280 + $0x1500] sm:$0xff]
                %619 = vst [vmem:[%s281 + $0x540] sm:$0xff] %v618
                %v620 = vld [vmem:[%s280 + $0x1508] sm:$0xff]
                %621 = vst [vmem:[%s281 + $0x548] sm:$0xff] %v620
                %v622 = vld [vmem:[%s280 + $0x1510] sm:$0xff]
                %623 = vst [vmem:[%s281 + $0x550] sm:$0xff] %v622
                %v624 = vld [vmem:[%s280 + $0x1518] sm:$0xff]
                %625 = vst [vmem:[%s281 + $0x558] sm:$0xff] %v624
                %v626 = vld [vmem:[%s280 + $0x1520] sm:$0xff]
                %627 = vst [vmem:[%s281 + $0x560] sm:$0xff] %v626
                %v628 = vld [vmem:[%s280 + $0x1528] sm:$0xff]
                %629 = vst [vmem:[%s281 + $0x568] sm:$0xff] %v628
                %v630 = vld [vmem:[%s280 + $0x15c0] sm:$0xff]
                %631 = vst [vmem:[%s281 + $0x570] sm:$0xff] %v630
                %v632 = vld [vmem:[%s280 + $0x15c8] sm:$0xff]
                %633 = vst [vmem:[%s281 + $0x578] sm:$0xff] %v632
                %v634 = vld [vmem:[%s280 + $0x15d0] sm:$0xff]
                %635 = vst [vmem:[%s281 + $0x580] sm:$0xff] %v634
                %v636 = vld [vmem:[%s280 + $0x15d8] sm:$0xff]
                %637 = vst [vmem:[%s281 + $0x588] sm:$0xff] %v636
                %v638 = vld [vmem:[%s280 + $0x15e0] sm:$0xff]
                %639 = vst [vmem:[%s281 + $0x590] sm:$0xff] %v638
                %v640 = vld [vmem:[%s280 + $0x15e8] sm:$0xff]
                %641 = vst [vmem:[%s281 + $0x598] sm:$0xff] %v640
                %v642 = vld [vmem:[%s280 + $0x1680] sm:$0xff]
                %643 = vst [vmem:[%s281 + $0x5a0] sm:$0xff] %v642
                %v644 = vld [vmem:[%s280 + $0x1688] sm:$0xff]
                %645 = vst [vmem:[%s281 + $0x5a8] sm:$0xff] %v644
                %v646 = vld [vmem:[%s280 + $0x1690] sm:$0xff]
                %647 = vst [vmem:[%s281 + $0x5b0] sm:$0xff] %v646
                %v648 = vld [vmem:[%s280 + $0x1698] sm:$0xff]
                %649 = vst [vmem:[%s281 + $0x5b8] sm:$0xff] %v648
                %v650 = vld [vmem:[%s280 + $0x16a0] sm:$0xff]
                %651 = vst [vmem:[%s281 + $0x5c0] sm:$0xff] %v650
                %v652 = vld [vmem:[%s280 + $0x16a8] sm:$0xff]
                %653 = vst [vmem:[%s281 + $0x5c8] sm:$0xff] %v652
                %v654 = vld [vmem:[%s280 + $0x1740] sm:$0xff]
                %655 = vst [vmem:[%s281 + $0x5d0] sm:$0xff] %v654
                %v656 = vld [vmem:[%s280 + $0x1748] sm:$0xff]
                %657 = vst [vmem:[%s281 + $0x5d8] sm:$0xff] %v656
                %v658 = vld [vmem:[%s280 + $0x1750] sm:$0xff]
                %659 = vst [vmem:[%s281 + $0x5e0] sm:$0xff] %v658
                %v660 = vld [vmem:[%s280 + $0x1758] sm:$0xff]
                %661 = vst [vmem:[%s281 + $0x5e8] sm:$0xff] %v660
                %v662 = vld [vmem:[%s280 + $0x1760] sm:$0xff]
                %663 = vst [vmem:[%s281 + $0x5f0] sm:$0xff] %v662
                %v664 = vld [vmem:[%s280 + $0x1768] sm:$0xff]
                %665 = vst [vmem:[%s281 + $0x5f8] sm:$0xff] %v664
                %v666 = vld [vmem:[%s280 + $0x1800] sm:$0xff]
                %667 = vst [vmem:[%s281 + $0x600] sm:$0xff] %v666
                %v668 = vld [vmem:[%s280 + $0x1808] sm:$0xff]
                %669 = vst [vmem:[%s281 + $0x608] sm:$0xff] %v668
                %v670 = vld [vmem:[%s280 + $0x1810] sm:$0xff]
                %671 = vst [vmem:[%s281 + $0x610] sm:$0xff] %v670
                %v672 = vld [vmem:[%s280 + $0x1818] sm:$0xff]
                %673 = vst [vmem:[%s281 + $0x618] sm:$0xff] %v672
                %v674 = vld [vmem:[%s280 + $0x1820] sm:$0xff]
                %675 = vst [vmem:[%s281 + $0x620] sm:$0xff] %v674
                %v676 = vld [vmem:[%s280 + $0x1828] sm:$0xff]
                %677 = vst [vmem:[%s281 + $0x628] sm:$0xff] %v676
                %v678 = vld [vmem:[%s280 + $0x18c0] sm:$0xff]
                %679 = vst [vmem:[%s281 + $0x630] sm:$0xff] %v678
                %v680 = vld [vmem:[%s280 + $0x18c8] sm:$0xff]
                %681 = vst [vmem:[%s281 + $0x638] sm:$0xff] %v680
                %v682 = vld [vmem:[%s280 + $0x18d0] sm:$0xff]
                %683 = vst [vmem:[%s281 + $0x640] sm:$0xff] %v682
                %v684 = vld [vmem:[%s280 + $0x18d8] sm:$0xff]
                %685 = vst [vmem:[%s281 + $0x648] sm:$0xff] %v684
                %v686 = vld [vmem:[%s280 + $0x18e0] sm:$0xff]
                %687 = vst [vmem:[%s281 + $0x650] sm:$0xff] %v686
                %v688 = vld [vmem:[%s280 + $0x18e8] sm:$0xff]
                %689 = vst [vmem:[%s281 + $0x658] sm:$0xff] %v688
                %v690 = vld [vmem:[%s280 + $0x1980] sm:$0xff]
                %691 = vst [vmem:[%s281 + $0x660] sm:$0xff] %v690
                %v692 = vld [vmem:[%s280 + $0x1988] sm:$0xff]
                %693 = vst [vmem:[%s281 + $0x668] sm:$0xff] %v692
                %v694 = vld [vmem:[%s280 + $0x1990] sm:$0xff]
                %695 = vst [vmem:[%s281 + $0x670] sm:$0xff] %v694
                %v696 = vld [vmem:[%s280 + $0x1998] sm:$0xff]
                %697 = vst [vmem:[%s281 + $0x678] sm:$0xff] %v696
                %v698 = vld [vmem:[%s280 + $0x19a0] sm:$0xff]
                %699 = vst [vmem:[%s281 + $0x680] sm:$0xff] %v698
                %v700 = vld [vmem:[%s280 + $0x19a8] sm:$0xff]
                %701 = vst [vmem:[%s281 + $0x688] sm:$0xff] %v700
                %v702 = vld [vmem:[%s280 + $0x1a40] sm:$0xff]
                %703 = vst [vmem:[%s281 + $0x690] sm:$0xff] %v702
                %v704 = vld [vmem:[%s280 + $0x1a48] sm:$0xff]
                %705 = vst [vmem:[%s281 + $0x698] sm:$0xff] %v704
                %v706 = vld [vmem:[%s280 + $0x1a50] sm:$0xff]
                %707 = vst [vmem:[%s281 + $0x6a0] sm:$0xff] %v706
                %v708 = vld [vmem:[%s280 + $0x1a58] sm:$0xff]
                %709 = vst [vmem:[%s281 + $0x6a8] sm:$0xff] %v708
                %v710 = vld [vmem:[%s280 + $0x1a60] sm:$0xff]
                %711 = vst [vmem:[%s281 + $0x6b0] sm:$0xff] %v710
                %v712 = vld [vmem:[%s280 + $0x1a68] sm:$0xff]
                %713 = vst [vmem:[%s281 + $0x6b8] sm:$0xff] %v712
                %v714 = vld [vmem:[%s280 + $0x1b00] sm:$0xff]
                %715 = vst [vmem:[%s281 + $0x6c0] sm:$0xff] %v714
                %v716 = vld [vmem:[%s280 + $0x1b08] sm:$0xff]
                %717 = vst [vmem:[%s281 + $0x6c8] sm:$0xff] %v716
                %v718 = vld [vmem:[%s280 + $0x1b10] sm:$0xff]
                %719 = vst [vmem:[%s281 + $0x6d0] sm:$0xff] %v718
                %v720 = vld [vmem:[%s280 + $0x1b18] sm:$0xff]
                %721 = vst [vmem:[%s281 + $0x6d8] sm:$0xff] %v720
                %v722 = vld [vmem:[%s280 + $0x1b20] sm:$0xff]
                %723 = vst [vmem:[%s281 + $0x6e0] sm:$0xff] %v722
                %v724 = vld [vmem:[%s280 + $0x1b28] sm:$0xff]
                %725 = vst [vmem:[%s281 + $0x6e8] sm:$0xff] %v724
                %v726 = vld [vmem:[%s280 + $0x1bc0] sm:$0xff]
                %727 = vst [vmem:[%s281 + $0x6f0] sm:$0xff] %v726
                %v728 = vld [vmem:[%s280 + $0x1bc8] sm:$0xff]
                %729 = vst [vmem:[%s281 + $0x6f8] sm:$0xff] %v728
                %v730 = vld [vmem:[%s280 + $0x1bd0] sm:$0xff]
                %731 = vst [vmem:[%s281 + $0x700] sm:$0xff] %v730
                %v732 = vld [vmem:[%s280 + $0x1bd8] sm:$0xff]
                %733 = vst [vmem:[%s281 + $0x708] sm:$0xff] %v732
                %v734 = vld [vmem:[%s280 + $0x1be0] sm:$0xff]
                %735 = vst [vmem:[%s281 + $0x710] sm:$0xff] %v734
                %v736 = vld [vmem:[%s280 + $0x1be8] sm:$0xff]
                %737 = vst [vmem:[%s281 + $0x718] sm:$0xff] %v736
                %v738 = vld [vmem:[%s280 + $0x1c80] sm:$0xff]
                %739 = vst [vmem:[%s281 + $0x720] sm:$0xff] %v738
                %v740 = vld [vmem:[%s280 + $0x1c88] sm:$0xff]
                %741 = vst [vmem:[%s281 + $0x728] sm:$0xff] %v740
                %v742 = vld [vmem:[%s280 + $0x1c90] sm:$0xff]
                %743 = vst [vmem:[%s281 + $0x730] sm:$0xff] %v742
                %v744 = vld [vmem:[%s280 + $0x1c98] sm:$0xff]
                %745 = vst [vmem:[%s281 + $0x738] sm:$0xff] %v744
                %v746 = vld [vmem:[%s280 + $0x1ca0] sm:$0xff]
                %747 = vst [vmem:[%s281 + $0x740] sm:$0xff] %v746
                %v748 = vld [vmem:[%s280 + $0x1ca8] sm:$0xff]
                %749 = vst [vmem:[%s281 + $0x748] sm:$0xff] %v748
                %v750 = vld [vmem:[%s280 + $0x1d40] sm:$0xff]
                %751 = vst [vmem:[%s281 + $0x750] sm:$0xff] %v750
                %v752 = vld [vmem:[%s280 + $0x1d48] sm:$0xff]
                %753 = vst [vmem:[%s281 + $0x758] sm:$0xff] %v752
                %v754 = vld [vmem:[%s280 + $0x1d50] sm:$0xff]
                %755 = vst [vmem:[%s281 + $0x760] sm:$0xff] %v754
                %v756 = vld [vmem:[%s280 + $0x1d58] sm:$0xff]
                %757 = vst [vmem:[%s281 + $0x768] sm:$0xff] %v756
                %v758 = vld [vmem:[%s280 + $0x1d60] sm:$0xff]
                %759 = vst [vmem:[%s281 + $0x770] sm:$0xff] %v758
                %v760 = vld [vmem:[%s280 + $0x1d68] sm:$0xff]
                %761 = vst [vmem:[%s281 + $0x778] sm:$0xff] %v760
                %v762 = vld [vmem:[%s280 + $0x1e00] sm:$0xff]
                %763 = vst [vmem:[%s281 + $0x780] sm:$0xff] %v762
                %v764 = vld [vmem:[%s280 + $0x1e08] sm:$0xff]
                %765 = vst [vmem:[%s281 + $0x788] sm:$0xff] %v764
                %v766 = vld [vmem:[%s280 + $0x1e10] sm:$0xff]
                %767 = vst [vmem:[%s281 + $0x790] sm:$0xff] %v766
                %v768 = vld [vmem:[%s280 + $0x1e18] sm:$0xff]
                %769 = vst [vmem:[%s281 + $0x798] sm:$0xff] %v768
                %v770 = vld [vmem:[%s280 + $0x1e20] sm:$0xff]
                %771 = vst [vmem:[%s281 + $0x7a0] sm:$0xff] %v770
                %v772 = vld [vmem:[%s280 + $0x1e28] sm:$0xff]
                %773 = vst [vmem:[%s281 + $0x7a8] sm:$0xff] %v772
                %v774 = vld [vmem:[%s280 + $0x1ec0] sm:$0xff]
                %775 = vst [vmem:[%s281 + $0x7b0] sm:$0xff] %v774
                %v776 = vld [vmem:[%s280 + $0x1ec8] sm:$0xff]
                %777 = vst [vmem:[%s281 + $0x7b8] sm:$0xff] %v776
                %v778 = vld [vmem:[%s280 + $0x1ed0] sm:$0xff]
                %779 = vst [vmem:[%s281 + $0x7c0] sm:$0xff] %v778
                %v780 = vld [vmem:[%s280 + $0x1ed8] sm:$0xff]
                %781 = vst [vmem:[%s281 + $0x7c8] sm:$0xff] %v780
                %v782 = vld [vmem:[%s280 + $0x1ee0] sm:$0xff]
                %783 = vst [vmem:[%s281 + $0x7d0] sm:$0xff] %v782
                %v784 = vld [vmem:[%s280 + $0x1ee8] sm:$0xff]
                %785 = vst [vmem:[%s281 + $0x7d8] sm:$0xff] %v784
                %v786 = vld [vmem:[%s280 + $0x1f80] sm:$0xff]
                %787 = vst [vmem:[%s281 + $0x7e0] sm:$0xff] %v786
                %v788 = vld [vmem:[%s280 + $0x1f88] sm:$0xff]
                %789 = vst [vmem:[%s281 + $0x7e8] sm:$0xff] %v788
                %v790 = vld [vmem:[%s280 + $0x1f90] sm:$0xff]
                %791 = vst [vmem:[%s281 + $0x7f0] sm:$0xff] %v790
                %v792 = vld [vmem:[%s280 + $0x1f98] sm:$0xff]
                %793 = vst [vmem:[%s281 + $0x7f8] sm:$0xff] %v792
                %v794 = vld [vmem:[%s280 + $0x1fa0] sm:$0xff]
                %795 = vst [vmem:[%s281 + $0x800] sm:$0xff] %v794
                %v796 = vld [vmem:[%s280 + $0x1fa8] sm:$0xff]
                %797 = vst [vmem:[%s281 + $0x808] sm:$0xff] %v796
                %v798 = vld [vmem:[%s280 + $0x2040] sm:$0xff]
                %799 = vst [vmem:[%s281 + $0x810] sm:$0xff] %v798
                %v800 = vld [vmem:[%s280 + $0x2048] sm:$0xff]
                %801 = vst [vmem:[%s281 + $0x818] sm:$0xff] %v800
                %v802 = vld [vmem:[%s280 + $0x2050] sm:$0xff]
                %803 = vst [vmem:[%s281 + $0x820] sm:$0xff] %v802
                %v804 = vld [vmem:[%s280 + $0x2058] sm:$0xff]
                %805 = vst [vmem:[%s281 + $0x828] sm:$0xff] %v804
                %v806 = vld [vmem:[%s280 + $0x2060] sm:$0xff]
                %807 = vst [vmem:[%s281 + $0x830] sm:$0xff] %v806
                %v808 = vld [vmem:[%s280 + $0x2068] sm:$0xff]
                %809 = vst [vmem:[%s281 + $0x838] sm:$0xff] %v808
                %v810 = vld [vmem:[%s280 + $0x2100] sm:$0xff]
                %811 = vst [vmem:[%s281 + $0x840] sm:$0xff] %v810
                %v812 = vld [vmem:[%s280 + $0x2108] sm:$0xff]
                %813 = vst [vmem:[%s281 + $0x848] sm:$0xff] %v812
                %v814 = vld [vmem:[%s280 + $0x2110] sm:$0xff]
                %815 = vst [vmem:[%s281 + $0x850] sm:$0xff] %v814
                %v816 = vld [vmem:[%s280 + $0x2118] sm:$0xff]
                %817 = vst [vmem:[%s281 + $0x858] sm:$0xff] %v816
                %v818 = vld [vmem:[%s280 + $0x2120] sm:$0xff]
                %819 = vst [vmem:[%s281 + $0x860] sm:$0xff] %v818
                %v820 = vld [vmem:[%s280 + $0x2128] sm:$0xff]
                %821 = vst [vmem:[%s281 + $0x868] sm:$0xff] %v820
                %v822 = vld [vmem:[%s280 + $0x21c0] sm:$0xff]
                %823 = vst [vmem:[%s281 + $0x870] sm:$0xff] %v822
                %v824 = vld [vmem:[%s280 + $0x21c8] sm:$0xff]
                %825 = vst [vmem:[%s281 + $0x878] sm:$0xff] %v824
                %v826 = vld [vmem:[%s280 + $0x21d0] sm:$0xff]
                %827 = vst [vmem:[%s281 + $0x880] sm:$0xff] %v826
                %v828 = vld [vmem:[%s280 + $0x21d8] sm:$0xff]
                %829 = vst [vmem:[%s281 + $0x888] sm:$0xff] %v828
                %v830 = vld [vmem:[%s280 + $0x21e0] sm:$0xff]
                %831 = vst [vmem:[%s281 + $0x890] sm:$0xff] %v830
                %v832 = vld [vmem:[%s280 + $0x21e8] sm:$0xff]
                %833 = vst [vmem:[%s281 + $0x898] sm:$0xff] %v832
                %v834 = vld [vmem:[%s280 + $0x2280] sm:$0xff]
                %835 = vst [vmem:[%s281 + $0x8a0] sm:$0xff] %v834
                %v836 = vld [vmem:[%s280 + $0x2288] sm:$0xff]
                %837 = vst [vmem:[%s281 + $0x8a8] sm:$0xff] %v836
                %v838 = vld [vmem:[%s280 + $0x2290] sm:$0xff]
                %839 = vst [vmem:[%s281 + $0x8b0] sm:$0xff] %v838
                %v840 = vld [vmem:[%s280 + $0x2298] sm:$0xff]
                %841 = vst [vmem:[%s281 + $0x8b8] sm:$0xff] %v840
                %v842 = vld [vmem:[%s280 + $0x22a0] sm:$0xff]
                %843 = vst [vmem:[%s281 + $0x8c0] sm:$0xff] %v842
                %v844 = vld [vmem:[%s280 + $0x22a8] sm:$0xff]
                %845 = vst [vmem:[%s281 + $0x8c8] sm:$0xff] %v844
                %v846 = vld [vmem:[%s280 + $0x2340] sm:$0xff]
                %847 = vst [vmem:[%s281 + $0x8d0] sm:$0xff] %v846
                %v848 = vld [vmem:[%s280 + $0x2348] sm:$0xff]
                %849 = vst [vmem:[%s281 + $0x8d8] sm:$0xff] %v848
                %v850 = vld [vmem:[%s280 + $0x2350] sm:$0xff]
                %851 = vst [vmem:[%s281 + $0x8e0] sm:$0xff] %v850
                %v852 = vld [vmem:[%s280 + $0x2358] sm:$0xff]
                %853 = vst [vmem:[%s281 + $0x8e8] sm:$0xff] %v852
                %v854 = vld [vmem:[%s280 + $0x2360] sm:$0xff]
                %855 = vst [vmem:[%s281 + $0x8f0] sm:$0xff] %v854
                %v856 = vld [vmem:[%s280 + $0x2368] sm:$0xff]
                %857 = vst [vmem:[%s281 + $0x8f8] sm:$0xff] %v856
                %v858 = vld [vmem:[%s280 + $0x2400] sm:$0xff]
                %859 = vst [vmem:[%s281 + $0x900] sm:$0xff] %v858
                %v860 = vld [vmem:[%s280 + $0x2408] sm:$0xff]
                %861 = vst [vmem:[%s281 + $0x908] sm:$0xff] %v860
                %v862 = vld [vmem:[%s280 + $0x2410] sm:$0xff]
                %863 = vst [vmem:[%s281 + $0x910] sm:$0xff] %v862
                %v864 = vld [vmem:[%s280 + $0x2418] sm:$0xff]
                %865 = vst [vmem:[%s281 + $0x918] sm:$0xff] %v864
                %v866 = vld [vmem:[%s280 + $0x2420] sm:$0xff]
                %867 = vst [vmem:[%s281 + $0x920] sm:$0xff] %v866
                %v868 = vld [vmem:[%s280 + $0x2428] sm:$0xff]
                %869 = vst [vmem:[%s281 + $0x928] sm:$0xff] %v868
                %v870 = vld [vmem:[%s280 + $0x24c0] sm:$0xff]
                %871 = vst [vmem:[%s281 + $0x930] sm:$0xff] %v870
                %v872 = vld [vmem:[%s280 + $0x24c8] sm:$0xff]
                %873 = vst [vmem:[%s281 + $0x938] sm:$0xff] %v872
                %v874 = vld [vmem:[%s280 + $0x24d0] sm:$0xff]
                %875 = vst [vmem:[%s281 + $0x940] sm:$0xff] %v874
                %v876 = vld [vmem:[%s280 + $0x24d8] sm:$0xff]
                %877 = vst [vmem:[%s281 + $0x948] sm:$0xff] %v876
                %v878 = vld [vmem:[%s280 + $0x24e0] sm:$0xff]
                %879 = vst [vmem:[%s281 + $0x950] sm:$0xff] %v878
                %v880 = vld [vmem:[%s280 + $0x24e8] sm:$0xff]
                %881 = vst [vmem:[%s281 + $0x958] sm:$0xff] %v880
                %v882 = vld [vmem:[%s280 + $0x2580] sm:$0xff]
                %883 = vst [vmem:[%s281 + $0x960] sm:$0xff] %v882
                %v884 = vld [vmem:[%s280 + $0x2588] sm:$0xff]
                %885 = vst [vmem:[%s281 + $0x968] sm:$0xff] %v884
                %v886 = vld [vmem:[%s280 + $0x2590] sm:$0xff]
                %887 = vst [vmem:[%s281 + $0x970] sm:$0xff] %v886
                %v888 = vld [vmem:[%s280 + $0x2598] sm:$0xff]
                %889 = vst [vmem:[%s281 + $0x978] sm:$0xff] %v888
                %v890 = vld [vmem:[%s280 + $0x25a0] sm:$0xff]
                %891 = vst [vmem:[%s281 + $0x980] sm:$0xff] %v890
                %v892 = vld [vmem:[%s280 + $0x25a8] sm:$0xff]
                %893 = vst [vmem:[%s281 + $0x988] sm:$0xff] %v892
                %v894 = vld [vmem:[%s280 + $0x2640] sm:$0xff]
                %895 = vst [vmem:[%s281 + $0x990] sm:$0xff] %v894
                %v896 = vld [vmem:[%s280 + $0x2648] sm:$0xff]
                %897 = vst [vmem:[%s281 + $0x998] sm:$0xff] %v896
                %v898 = vld [vmem:[%s280 + $0x2650] sm:$0xff]
                %899 = vst [vmem:[%s281 + $0x9a0] sm:$0xff] %v898
                %v900 = vld [vmem:[%s280 + $0x2658] sm:$0xff]
                %901 = vst [vmem:[%s281 + $0x9a8] sm:$0xff] %v900
                %v902 = vld [vmem:[%s280 + $0x2660] sm:$0xff]
                %903 = vst [vmem:[%s281 + $0x9b0] sm:$0xff] %v902
                %v904 = vld [vmem:[%s280 + $0x2668] sm:$0xff]
                %905 = vst [vmem:[%s281 + $0x9b8] sm:$0xff] %v904
                %v906 = vld [vmem:[%s280 + $0x2700] sm:$0xff]
                %907 = vst [vmem:[%s281 + $0x9c0] sm:$0xff] %v906
                %v908 = vld [vmem:[%s280 + $0x2708] sm:$0xff]
                %909 = vst [vmem:[%s281 + $0x9c8] sm:$0xff] %v908
                %v910 = vld [vmem:[%s280 + $0x2710] sm:$0xff]
                %911 = vst [vmem:[%s281 + $0x9d0] sm:$0xff] %v910
                %v912 = vld [vmem:[%s280 + $0x2718] sm:$0xff]
                %913 = vst [vmem:[%s281 + $0x9d8] sm:$0xff] %v912
                %v914 = vld [vmem:[%s280 + $0x2720] sm:$0xff]
                %915 = vst [vmem:[%s281 + $0x9e0] sm:$0xff] %v914
                %v916 = vld [vmem:[%s280 + $0x2728] sm:$0xff]
                %917 = vst [vmem:[%s281 + $0x9e8] sm:$0xff] %v916
                %v918 = vld [vmem:[%s280 + $0x27c0] sm:$0xff]
                %919 = vst [vmem:[%s281 + $0x9f0] sm:$0xff] %v918
                %v920 = vld [vmem:[%s280 + $0x27c8] sm:$0xff]
                %921 = vst [vmem:[%s281 + $0x9f8] sm:$0xff] %v920
                %v922 = vld [vmem:[%s280 + $0x27d0] sm:$0xff]
                %923 = vst [vmem:[%s281 + $0xa00] sm:$0xff] %v922
                %v924 = vld [vmem:[%s280 + $0x27d8] sm:$0xff]
                %925 = vst [vmem:[%s281 + $0xa08] sm:$0xff] %v924
                %v926 = vld [vmem:[%s280 + $0x27e0] sm:$0xff]
                %927 = vst [vmem:[%s281 + $0xa10] sm:$0xff] %v926
                %v928 = vld [vmem:[%s280 + $0x27e8] sm:$0xff]
                %929 = vst [vmem:[%s281 + $0xa18] sm:$0xff] %v928
                %v930 = vld [vmem:[%s280 + $0x2880] sm:$0xff]
                %931 = vst [vmem:[%s281 + $0xa20] sm:$0xff] %v930
                %v932 = vld [vmem:[%s280 + $0x2888] sm:$0xff]
                %933 = vst [vmem:[%s281 + $0xa28] sm:$0xff] %v932
                %v934 = vld [vmem:[%s280 + $0x2890] sm:$0xff]
                %935 = vst [vmem:[%s281 + $0xa30] sm:$0xff] %v934
                %v936 = vld [vmem:[%s280 + $0x2898] sm:$0xff]
                %937 = vst [vmem:[%s281 + $0xa38] sm:$0xff] %v936
                %v938 = vld [vmem:[%s280 + $0x28a0] sm:$0xff]
                %939 = vst [vmem:[%s281 + $0xa40] sm:$0xff] %v938
                %v940 = vld [vmem:[%s280 + $0x28a8] sm:$0xff]
                %941 = vst [vmem:[%s281 + $0xa48] sm:$0xff] %v940
                %v942 = vld [vmem:[%s280 + $0x2940] sm:$0xff]
                %943 = vst [vmem:[%s281 + $0xa50] sm:$0xff] %v942
                %v944 = vld [vmem:[%s280 + $0x2948] sm:$0xff]
                %945 = vst [vmem:[%s281 + $0xa58] sm:$0xff] %v944
                %v946 = vld [vmem:[%s280 + $0x2950] sm:$0xff]
                %947 = vst [vmem:[%s281 + $0xa60] sm:$0xff] %v946
                %v948 = vld [vmem:[%s280 + $0x2958] sm:$0xff]
                %949 = vst [vmem:[%s281 + $0xa68] sm:$0xff] %v948
                %v950 = vld [vmem:[%s280 + $0x2960] sm:$0xff]
                %951 = vst [vmem:[%s281 + $0xa70] sm:$0xff] %v950
                %v952 = vld [vmem:[%s280 + $0x2968] sm:$0xff]
                %953 = vst [vmem:[%s281 + $0xa78] sm:$0xff] %v952
                %v954 = vld [vmem:[%s280 + $0x2a00] sm:$0xff]
                %955 = vst [vmem:[%s281 + $0xa80] sm:$0xff] %v954
                %v956 = vld [vmem:[%s280 + $0x2a08] sm:$0xff]
                %957 = vst [vmem:[%s281 + $0xa88] sm:$0xff] %v956
                %v958 = vld [vmem:[%s280 + $0x2a10] sm:$0xff]
                %959 = vst [vmem:[%s281 + $0xa90] sm:$0xff] %v958
                %v960 = vld [vmem:[%s280 + $0x2a18] sm:$0xff]
                %961 = vst [vmem:[%s281 + $0xa98] sm:$0xff] %v960
                %v962 = vld [vmem:[%s280 + $0x2a20] sm:$0xff]
                %963 = vst [vmem:[%s281 + $0xaa0] sm:$0xff] %v962
                %v964 = vld [vmem:[%s280 + $0x2a28] sm:$0xff]
                %965 = vst [vmem:[%s281 + $0xaa8] sm:$0xff] %v964
                %v966 = vld [vmem:[%s280 + $0x2ac0] sm:$0xff]
                %967 = vst [vmem:[%s281 + $0xab0] sm:$0xff] %v966
                %v968 = vld [vmem:[%s280 + $0x2ac8] sm:$0xff]
                %969 = vst [vmem:[%s281 + $0xab8] sm:$0xff] %v968
                %v970 = vld [vmem:[%s280 + $0x2ad0] sm:$0xff]
                %971 = vst [vmem:[%s281 + $0xac0] sm:$0xff] %v970
                %v972 = vld [vmem:[%s280 + $0x2ad8] sm:$0xff]
                %973 = vst [vmem:[%s281 + $0xac8] sm:$0xff] %v972
                %v974 = vld [vmem:[%s280 + $0x2ae0] sm:$0xff]
                %975 = vst [vmem:[%s281 + $0xad0] sm:$0xff] %v974
                %v976 = vld [vmem:[%s280 + $0x2ae8] sm:$0xff]
                %977 = vst [vmem:[%s281 + $0xad8] sm:$0xff] %v976
                %v978 = vld [vmem:[%s280 + $0x2b80] sm:$0xff]
                %979 = vst [vmem:[%s281 + $0xae0] sm:$0xff] %v978
                %v980 = vld [vmem:[%s280 + $0x2b88] sm:$0xff]
                %981 = vst [vmem:[%s281 + $0xae8] sm:$0xff] %v980
                %v982 = vld [vmem:[%s280 + $0x2b90] sm:$0xff]
                %983 = vst [vmem:[%s281 + $0xaf0] sm:$0xff] %v982
                %v984 = vld [vmem:[%s280 + $0x2b98] sm:$0xff]
                %985 = vst [vmem:[%s281 + $0xaf8] sm:$0xff] %v984
                %v986 = vld [vmem:[%s280 + $0x2ba0] sm:$0xff]
                %987 = vst [vmem:[%s281 + $0xb00] sm:$0xff] %v986
                %v988 = vld [vmem:[%s280 + $0x2ba8] sm:$0xff]
                %989 = vst [vmem:[%s281 + $0xb08] sm:$0xff] %v988
                %v990 = vld [vmem:[%s280 + $0x2c40] sm:$0xff]
                %991 = vst [vmem:[%s281 + $0xb10] sm:$0xff] %v990
                %v992 = vld [vmem:[%s280 + $0x2c48] sm:$0xff]
                %993 = vst [vmem:[%s281 + $0xb18] sm:$0xff] %v992
                %v994 = vld [vmem:[%s280 + $0x2c50] sm:$0xff]
                %995 = vst [vmem:[%s281 + $0xb20] sm:$0xff] %v994
                %v996 = vld [vmem:[%s280 + $0x2c58] sm:$0xff]
                %997 = vst [vmem:[%s281 + $0xb28] sm:$0xff] %v996
                %v998 = vld [vmem:[%s280 + $0x2c60] sm:$0xff]
                %999 = vst [vmem:[%s281 + $0xb30] sm:$0xff] %v998
                %v1000 = vld [vmem:[%s280 + $0x2c68] sm:$0xff]
                %1001 = vst [vmem:[%s281 + $0xb38] sm:$0xff] %v1000
                %v1002 = vld [vmem:[%s280 + $0x2d00] sm:$0xff]
                %1003 = vst [vmem:[%s281 + $0xb40] sm:$0xff] %v1002
                %v1004 = vld [vmem:[%s280 + $0x2d08] sm:$0xff]
                %1005 = vst [vmem:[%s281 + $0xb48] sm:$0xff] %v1004
                %v1006 = vld [vmem:[%s280 + $0x2d10] sm:$0xff]
                %1007 = vst [vmem:[%s281 + $0xb50] sm:$0xff] %v1006
                %v1008 = vld [vmem:[%s280 + $0x2d18] sm:$0xff]
                %1009 = vst [vmem:[%s281 + $0xb58] sm:$0xff] %v1008
                %v1010 = vld [vmem:[%s280 + $0x2d20] sm:$0xff]
                %1011 = vst [vmem:[%s281 + $0xb60] sm:$0xff] %v1010
                %v1012 = vld [vmem:[%s280 + $0x2d28] sm:$0xff]
                %1013 = vst [vmem:[%s281 + $0xb68] sm:$0xff] %v1012
                %v1014 = vld [vmem:[%s280 + $0x2dc0] sm:$0xff]
                %1015 = vst [vmem:[%s281 + $0xb70] sm:$0xff] %v1014
                %v1016 = vld [vmem:[%s280 + $0x2dc8] sm:$0xff]
                %1017 = vst [vmem:[%s281 + $0xb78] sm:$0xff] %v1016
                %v1018 = vld [vmem:[%s280 + $0x2dd0] sm:$0xff]
                %1019 = vst [vmem:[%s281 + $0xb80] sm:$0xff] %v1018
                %v1020 = vld [vmem:[%s280 + $0x2dd8] sm:$0xff]
                %1021 = vst [vmem:[%s281 + $0xb88] sm:$0xff] %v1020
                %v1022 = vld [vmem:[%s280 + $0x2de0] sm:$0xff]
                %1023 = vst [vmem:[%s281 + $0xb90] sm:$0xff] %v1022
                %v1024 = vld [vmem:[%s280 + $0x2de8] sm:$0xff]
                %1025 = vst [vmem:[%s281 + $0xb98] sm:$0xff] %v1024
                %v1026 = vld [vmem:[%s280 + $0x2e80] sm:$0xff]
                %1027 = vst [vmem:[%s281 + $0xba0] sm:$0xff] %v1026
                %v1028 = vld [vmem:[%s280 + $0x2e88] sm:$0xff]
                %1029 = vst [vmem:[%s281 + $0xba8] sm:$0xff] %v1028
                %v1030 = vld [vmem:[%s280 + $0x2e90] sm:$0xff]
                %1031 = vst [vmem:[%s281 + $0xbb0] sm:$0xff] %v1030
                %v1032 = vld [vmem:[%s280 + $0x2e98] sm:$0xff]
                %1033 = vst [vmem:[%s281 + $0xbb8] sm:$0xff] %v1032
                %v1034 = vld [vmem:[%s280 + $0x2ea0] sm:$0xff]
                %1035 = vst [vmem:[%s281 + $0xbc0] sm:$0xff] %v1034
                %v1036 = vld [vmem:[%s280 + $0x2ea8] sm:$0xff]
                %1037 = vst [vmem:[%s281 + $0xbc8] sm:$0xff] %v1036
                %v1038 = vld [vmem:[%s280 + $0x2f40] sm:$0xff]
                %1039 = vst [vmem:[%s281 + $0xbd0] sm:$0xff] %v1038
                %v1040 = vld [vmem:[%s280 + $0x2f48] sm:$0xff]
                %1041 = vst [vmem:[%s281 + $0xbd8] sm:$0xff] %v1040
                %v1042 = vld [vmem:[%s280 + $0x2f50] sm:$0xff]
                %1043 = vst [vmem:[%s281 + $0xbe0] sm:$0xff] %v1042
                %v1044 = vld [vmem:[%s280 + $0x2f58] sm:$0xff]
                %1045 = vst [vmem:[%s281 + $0xbe8] sm:$0xff] %v1044
                %v1046 = vld [vmem:[%s280 + $0x2f60] sm:$0xff]
                %1047 = vst [vmem:[%s281 + $0xbf0] sm:$0xff] %v1046
                %v1048 = vld [vmem:[%s280 + $0x2f68] sm:$0xff]
                %1049 = vst [vmem:[%s281 + $0xbf8] sm:$0xff] %v1048
                %v1050 = vld [vmem:[%s280 + $0x3000] sm:$0xff]
                %1051 = vst [vmem:[%s281 + $0xc00] sm:$0xff] %v1050
                %v1052 = vld [vmem:[%s280 + $0x3008] sm:$0xff]
                %1053 = vst [vmem:[%s281 + $0xc08] sm:$0xff] %v1052
                %v1054 = vld [vmem:[%s280 + $0x3010] sm:$0xff]
                %1055 = vst [vmem:[%s281 + $0xc10] sm:$0xff] %v1054
                %v1056 = vld [vmem:[%s280 + $0x3018] sm:$0xff]
                %1057 = vst [vmem:[%s281 + $0xc18] sm:$0xff] %v1056
                %v1058 = vld [vmem:[%s280 + $0x3020] sm:$0xff]
                %1059 = vst [vmem:[%s281 + $0xc20] sm:$0xff] %v1058
                %v1060 = vld [vmem:[%s280 + $0x3028] sm:$0xff]
                %1061 = vst [vmem:[%s281 + $0xc28] sm:$0xff] %v1060
                %v1062 = vld [vmem:[%s280 + $0x30c0] sm:$0xff]
                %1063 = vst [vmem:[%s281 + $0xc30] sm:$0xff] %v1062
                %v1064 = vld [vmem:[%s280 + $0x30c8] sm:$0xff]
                %1065 = vst [vmem:[%s281 + $0xc38] sm:$0xff] %v1064
                %v1066 = vld [vmem:[%s280 + $0x30d0] sm:$0xff]
                %1067 = vst [vmem:[%s281 + $0xc40] sm:$0xff] %v1066
                %v1068 = vld [vmem:[%s280 + $0x30d8] sm:$0xff]
                %1069 = vst [vmem:[%s281 + $0xc48] sm:$0xff] %v1068
                %v1070 = vld [vmem:[%s280 + $0x30e0] sm:$0xff]
                %1071 = vst [vmem:[%s281 + $0xc50] sm:$0xff] %v1070
                %v1072 = vld [vmem:[%s280 + $0x30e8] sm:$0xff]
                %1073 = vst [vmem:[%s281 + $0xc58] sm:$0xff] %v1072
                %v1074 = vld [vmem:[%s280 + $0x3180] sm:$0xff]
                %1075 = vst [vmem:[%s281 + $0xc60] sm:$0xff] %v1074
                %v1076 = vld [vmem:[%s280 + $0x3188] sm:$0xff]
                %1077 = vst [vmem:[%s281 + $0xc68] sm:$0xff] %v1076
                %v1078 = vld [vmem:[%s280 + $0x3190] sm:$0xff]
                %1079 = vst [vmem:[%s281 + $0xc70] sm:$0xff] %v1078
                %v1080 = vld [vmem:[%s280 + $0x3198] sm:$0xff]
                %1081 = vst [vmem:[%s281 + $0xc78] sm:$0xff] %v1080
                %v1082 = vld [vmem:[%s280 + $0x31a0] sm:$0xff]
                %1083 = vst [vmem:[%s281 + $0xc80] sm:$0xff] %v1082
                %v1084 = vld [vmem:[%s280 + $0x31a8] sm:$0xff]
                %1085 = vst [vmem:[%s281 + $0xc88] sm:$0xff] %v1084
                %v1086 = vld [vmem:[%s280 + $0x3240] sm:$0xff]
                %1087 = vst [vmem:[%s281 + $0xc90] sm:$0xff] %v1086
                %v1088 = vld [vmem:[%s280 + $0x3248] sm:$0xff]
                %1089 = vst [vmem:[%s281 + $0xc98] sm:$0xff] %v1088
                %v1090 = vld [vmem:[%s280 + $0x3250] sm:$0xff]
                %1091 = vst [vmem:[%s281 + $0xca0] sm:$0xff] %v1090
                %v1092 = vld [vmem:[%s280 + $0x3258] sm:$0xff]
                %1093 = vst [vmem:[%s281 + $0xca8] sm:$0xff] %v1092
                %v1094 = vld [vmem:[%s280 + $0x3260] sm:$0xff]
                %1095 = vst [vmem:[%s281 + $0xcb0] sm:$0xff] %v1094
                %v1096 = vld [vmem:[%s280 + $0x3268] sm:$0xff]
                %1097 = vst [vmem:[%s281 + $0xcb8] sm:$0xff] %v1096
                %v1098 = vld [vmem:[%s280 + $0x3300] sm:$0xff]
                %1099 = vst [vmem:[%s281 + $0xcc0] sm:$0xff] %v1098
                %v1100 = vld [vmem:[%s280 + $0x3308] sm:$0xff]
                %1101 = vst [vmem:[%s281 + $0xcc8] sm:$0xff] %v1100
                %v1102 = vld [vmem:[%s280 + $0x3310] sm:$0xff]
                %1103 = vst [vmem:[%s281 + $0xcd0] sm:$0xff] %v1102
                %v1104 = vld [vmem:[%s280 + $0x3318] sm:$0xff]
                %1105 = vst [vmem:[%s281 + $0xcd8] sm:$0xff] %v1104
                %v1106 = vld [vmem:[%s280 + $0x3320] sm:$0xff]
                %1107 = vst [vmem:[%s281 + $0xce0] sm:$0xff] %v1106
                %v1108 = vld [vmem:[%s280 + $0x3328] sm:$0xff]
                %1109 = vst [vmem:[%s281 + $0xce8] sm:$0xff] %v1108
                %v1110 = vld [vmem:[%s280 + $0x33c0] sm:$0xff]
                %1111 = vst [vmem:[%s281 + $0xcf0] sm:$0xff] %v1110
                %v1112 = vld [vmem:[%s280 + $0x33c8] sm:$0xff]
                %1113 = vst [vmem:[%s281 + $0xcf8] sm:$0xff] %v1112
                %v1114 = vld [vmem:[%s280 + $0x33d0] sm:$0xff]
                %1115 = vst [vmem:[%s281 + $0xd00] sm:$0xff] %v1114
                %v1116 = vld [vmem:[%s280 + $0x33d8] sm:$0xff]
                %1117 = vst [vmem:[%s281 + $0xd08] sm:$0xff] %v1116
                %v1118 = vld [vmem:[%s280 + $0x33e0] sm:$0xff]
                %1119 = vst [vmem:[%s281 + $0xd10] sm:$0xff] %v1118
                %v1120 = vld [vmem:[%s280 + $0x33e8] sm:$0xff]
                %1121 = vst [vmem:[%s281 + $0xd18] sm:$0xff] %v1120
                %v1122 = vld [vmem:[%s280 + $0x3480] sm:$0xff]
                %1123 = vst [vmem:[%s281 + $0xd20] sm:$0xff] %v1122
                %v1124 = vld [vmem:[%s280 + $0x3488] sm:$0xff]
                %1125 = vst [vmem:[%s281 + $0xd28] sm:$0xff] %v1124
                %v1126 = vld [vmem:[%s280 + $0x3490] sm:$0xff]
                %1127 = vst [vmem:[%s281 + $0xd30] sm:$0xff] %v1126
                %v1128 = vld [vmem:[%s280 + $0x3498] sm:$0xff]
                %1129 = vst [vmem:[%s281 + $0xd38] sm:$0xff] %v1128
                %v1130 = vld [vmem:[%s280 + $0x34a0] sm:$0xff]
                %1131 = vst [vmem:[%s281 + $0xd40] sm:$0xff] %v1130
                %v1132 = vld [vmem:[%s280 + $0x34a8] sm:$0xff]
                %1133 = vst [vmem:[%s281 + $0xd48] sm:$0xff] %v1132
                %v1134 = vld [vmem:[%s280 + $0x3540] sm:$0xff]
                %1135 = vst [vmem:[%s281 + $0xd50] sm:$0xff] %v1134
                %v1136 = vld [vmem:[%s280 + $0x3548] sm:$0xff]
                %1137 = vst [vmem:[%s281 + $0xd58] sm:$0xff] %v1136
                %v1138 = vld [vmem:[%s280 + $0x3550] sm:$0xff]
                %1139 = vst [vmem:[%s281 + $0xd60] sm:$0xff] %v1138
                %v1140 = vld [vmem:[%s280 + $0x3558] sm:$0xff]
                %1141 = vst [vmem:[%s281 + $0xd68] sm:$0xff] %v1140
                %v1142 = vld [vmem:[%s280 + $0x3560] sm:$0xff]
                %1143 = vst [vmem:[%s281 + $0xd70] sm:$0xff] %v1142
                %v1144 = vld [vmem:[%s280 + $0x3568] sm:$0xff]
                %1145 = vst [vmem:[%s281 + $0xd78] sm:$0xff] %v1144
                %v1146 = vld [vmem:[%s280 + $0x3600] sm:$0xff]
                %1147 = vst [vmem:[%s281 + $0xd80] sm:$0xff] %v1146
                %v1148 = vld [vmem:[%s280 + $0x3608] sm:$0xff]
                %1149 = vst [vmem:[%s281 + $0xd88] sm:$0xff] %v1148
                %v1150 = vld [vmem:[%s280 + $0x3610] sm:$0xff]
                %1151 = vst [vmem:[%s281 + $0xd90] sm:$0xff] %v1150
                %v1152 = vld [vmem:[%s280 + $0x3618] sm:$0xff]
                %1153 = vst [vmem:[%s281 + $0xd98] sm:$0xff] %v1152
                %v1154 = vld [vmem:[%s280 + $0x3620] sm:$0xff]
                %1155 = vst [vmem:[%s281 + $0xda0] sm:$0xff] %v1154
                %v1156 = vld [vmem:[%s280 + $0x3628] sm:$0xff]
                %1157 = vst [vmem:[%s281 + $0xda8] sm:$0xff] %v1156
                %v1158 = vld [vmem:[%s280 + $0x36c0] sm:$0xff]
                %1159 = vst [vmem:[%s281 + $0xdb0] sm:$0xff] %v1158
                %v1160 = vld [vmem:[%s280 + $0x36c8] sm:$0xff]
                %1161 = vst [vmem:[%s281 + $0xdb8] sm:$0xff] %v1160
                %v1162 = vld [vmem:[%s280 + $0x36d0] sm:$0xff]
                %1163 = vst [vmem:[%s281 + $0xdc0] sm:$0xff] %v1162
                %v1164 = vld [vmem:[%s280 + $0x36d8] sm:$0xff]
                %1165 = vst [vmem:[%s281 + $0xdc8] sm:$0xff] %v1164
                %v1166 = vld [vmem:[%s280 + $0x36e0] sm:$0xff]
                %1167 = vst [vmem:[%s281 + $0xdd0] sm:$0xff] %v1166
                %v1168 = vld [vmem:[%s280 + $0x36e8] sm:$0xff]
                %1169 = vst [vmem:[%s281 + $0xdd8] sm:$0xff] %v1168
                %v1170 = vld [vmem:[%s280 + $0x3780] sm:$0xff]
                %1171 = vst [vmem:[%s281 + $0xde0] sm:$0xff] %v1170
                %v1172 = vld [vmem:[%s280 + $0x3788] sm:$0xff]
                %1173 = vst [vmem:[%s281 + $0xde8] sm:$0xff] %v1172
                %v1174 = vld [vmem:[%s280 + $0x3790] sm:$0xff]
                %1175 = vst [vmem:[%s281 + $0xdf0] sm:$0xff] %v1174
                %v1176 = vld [vmem:[%s280 + $0x3798] sm:$0xff]
                %1177 = vst [vmem:[%s281 + $0xdf8] sm:$0xff] %v1176
                %v1178 = vld [vmem:[%s280 + $0x37a0] sm:$0xff]
                %1179 = vst [vmem:[%s281 + $0xe00] sm:$0xff] %v1178
                %v1180 = vld [vmem:[%s280 + $0x37a8] sm:$0xff]
                %1181 = vst [vmem:[%s281 + $0xe08] sm:$0xff] %v1180
                %v1182 = vld [vmem:[%s280 + $0x3840] sm:$0xff]
                %1183 = vst [vmem:[%s281 + $0xe10] sm:$0xff] %v1182
                %v1184 = vld [vmem:[%s280 + $0x3848] sm:$0xff]
                %1185 = vst [vmem:[%s281 + $0xe18] sm:$0xff] %v1184
                %v1186 = vld [vmem:[%s280 + $0x3850] sm:$0xff]
                %1187 = vst [vmem:[%s281 + $0xe20] sm:$0xff] %v1186
                %v1188 = vld [vmem:[%s280 + $0x3858] sm:$0xff]
                %1189 = vst [vmem:[%s281 + $0xe28] sm:$0xff] %v1188
                %v1190 = vld [vmem:[%s280 + $0x3860] sm:$0xff]
                %1191 = vst [vmem:[%s281 + $0xe30] sm:$0xff] %v1190
                %v1192 = vld [vmem:[%s280 + $0x3868] sm:$0xff]
                %1193 = vst [vmem:[%s281 + $0xe38] sm:$0xff] %v1192
                %v1194 = vld [vmem:[%s280 + $0x3900] sm:$0xff]
                %1195 = vst [vmem:[%s281 + $0xe40] sm:$0xff] %v1194
                %v1196 = vld [vmem:[%s280 + $0x3908] sm:$0xff]
                %1197 = vst [vmem:[%s281 + $0xe48] sm:$0xff] %v1196
                %v1198 = vld [vmem:[%s280 + $0x3910] sm:$0xff]
                %1199 = vst [vmem:[%s281 + $0xe50] sm:$0xff] %v1198
                %v1200 = vld [vmem:[%s280 + $0x3918] sm:$0xff]
                %1201 = vst [vmem:[%s281 + $0xe58] sm:$0xff] %v1200
                %v1202 = vld [vmem:[%s280 + $0x3920] sm:$0xff]
                %1203 = vst [vmem:[%s281 + $0xe60] sm:$0xff] %v1202
                %v1204 = vld [vmem:[%s280 + $0x3928] sm:$0xff]
                %1205 = vst [vmem:[%s281 + $0xe68] sm:$0xff] %v1204
                %v1206 = vld [vmem:[%s280 + $0x39c0] sm:$0xff]
                %1207 = vst [vmem:[%s281 + $0xe70] sm:$0xff] %v1206
                %v1208 = vld [vmem:[%s280 + $0x39c8] sm:$0xff]
                %1209 = vst [vmem:[%s281 + $0xe78] sm:$0xff] %v1208
                %v1210 = vld [vmem:[%s280 + $0x39d0] sm:$0xff]
                %1211 = vst [vmem:[%s281 + $0xe80] sm:$0xff] %v1210
                %v1212 = vld [vmem:[%s280 + $0x39d8] sm:$0xff]
                %1213 = vst [vmem:[%s281 + $0xe88] sm:$0xff] %v1212
                %v1214 = vld [vmem:[%s280 + $0x39e0] sm:$0xff]
                %1215 = vst [vmem:[%s281 + $0xe90] sm:$0xff] %v1214
                %v1216 = vld [vmem:[%s280 + $0x39e8] sm:$0xff]
                %1217 = vst [vmem:[%s281 + $0xe98] sm:$0xff] %v1216
                %v1218 = vld [vmem:[%s280 + $0x3a80] sm:$0xff]
                %1219 = vst [vmem:[%s281 + $0xea0] sm:$0xff] %v1218
                %v1220 = vld [vmem:[%s280 + $0x3a88] sm:$0xff]
                %1221 = vst [vmem:[%s281 + $0xea8] sm:$0xff] %v1220
                %v1222 = vld [vmem:[%s280 + $0x3a90] sm:$0xff]
                %1223 = vst [vmem:[%s281 + $0xeb0] sm:$0xff] %v1222
                %v1224 = vld [vmem:[%s280 + $0x3a98] sm:$0xff]
                %1225 = vst [vmem:[%s281 + $0xeb8] sm:$0xff] %v1224
                %v1226 = vld [vmem:[%s280 + $0x3aa0] sm:$0xff]
                %1227 = vst [vmem:[%s281 + $0xec0] sm:$0xff] %v1226
                %v1228 = vld [vmem:[%s280 + $0x3aa8] sm:$0xff]
                %1229 = vst [vmem:[%s281 + $0xec8] sm:$0xff] %v1228
                %v1230 = vld [vmem:[%s280 + $0x3b40] sm:$0xff]
                %1231 = vst [vmem:[%s281 + $0xed0] sm:$0xff] %v1230
                %v1232 = vld [vmem:[%s280 + $0x3b48] sm:$0xff]
                %1233 = vst [vmem:[%s281 + $0xed8] sm:$0xff] %v1232
                %v1234 = vld [vmem:[%s280 + $0x3b50] sm:$0xff]
                %1235 = vst [vmem:[%s281 + $0xee0] sm:$0xff] %v1234
                %v1236 = vld [vmem:[%s280 + $0x3b58] sm:$0xff]
                %1237 = vst [vmem:[%s281 + $0xee8] sm:$0xff] %v1236
                %v1238 = vld [vmem:[%s280 + $0x3b60] sm:$0xff]
                %1239 = vst [vmem:[%s281 + $0xef0] sm:$0xff] %v1238
                %v1240 = vld [vmem:[%s280 + $0x3b68] sm:$0xff]
                %1241 = vst [vmem:[%s281 + $0xef8] sm:$0xff] %v1240
                %v1242 = vld [vmem:[%s280 + $0x3c00] sm:$0xff]
                %1243 = vst [vmem:[%s281 + $0xf00] sm:$0xff] %v1242
                %v1244 = vld [vmem:[%s280 + $0x3c08] sm:$0xff]
                %1245 = vst [vmem:[%s281 + $0xf08] sm:$0xff] %v1244
                %v1246 = vld [vmem:[%s280 + $0x3c10] sm:$0xff]
                %1247 = vst [vmem:[%s281 + $0xf10] sm:$0xff] %v1246
                %v1248 = vld [vmem:[%s280 + $0x3c18] sm:$0xff]
                %1249 = vst [vmem:[%s281 + $0xf18] sm:$0xff] %v1248
                %v1250 = vld [vmem:[%s280 + $0x3c20] sm:$0xff]
                %1251 = vst [vmem:[%s281 + $0xf20] sm:$0xff] %v1250
                %v1252 = vld [vmem:[%s280 + $0x3c28] sm:$0xff]
                %1253 = vst [vmem:[%s281 + $0xf28] sm:$0xff] %v1252
                %v1254 = vld [vmem:[%s280 + $0x3cc0] sm:$0xff]
                %1255 = vst [vmem:[%s281 + $0xf30] sm:$0xff] %v1254
                %v1256 = vld [vmem:[%s280 + $0x3cc8] sm:$0xff]
                %1257 = vst [vmem:[%s281 + $0xf38] sm:$0xff] %v1256
                %v1258 = vld [vmem:[%s280 + $0x3cd0] sm:$0xff]
                %1259 = vst [vmem:[%s281 + $0xf40] sm:$0xff] %v1258
                %v1260 = vld [vmem:[%s280 + $0x3cd8] sm:$0xff]
                %1261 = vst [vmem:[%s281 + $0xf48] sm:$0xff] %v1260
                %v1262 = vld [vmem:[%s280 + $0x3ce0] sm:$0xff]
                %1263 = vst [vmem:[%s281 + $0xf50] sm:$0xff] %v1262
                %v1264 = vld [vmem:[%s280 + $0x3ce8] sm:$0xff]
                %1265 = vst [vmem:[%s281 + $0xf58] sm:$0xff] %v1264
                %v1266 = vld [vmem:[%s280 + $0x3d80] sm:$0xff]
                %1267 = vst [vmem:[%s281 + $0xf60] sm:$0xff] %v1266
                %v1268 = vld [vmem:[%s280 + $0x3d88] sm:$0xff]
                %1269 = vst [vmem:[%s281 + $0xf68] sm:$0xff] %v1268
                %v1270 = vld [vmem:[%s280 + $0x3d90] sm:$0xff]
                %1271 = vst [vmem:[%s281 + $0xf70] sm:$0xff] %v1270
                %v1272 = vld [vmem:[%s280 + $0x3d98] sm:$0xff]
                %1273 = vst [vmem:[%s281 + $0xf78] sm:$0xff] %v1272
                %v1274 = vld [vmem:[%s280 + $0x3da0] sm:$0xff]
                %1275 = vst [vmem:[%s281 + $0xf80] sm:$0xff] %v1274
                %v1276 = vld [vmem:[%s280 + $0x3da8] sm:$0xff]
                %1277 = vst [vmem:[%s281 + $0xf88] sm:$0xff] %v1276
                %v1278 = vld [vmem:[%s280 + $0x3e40] sm:$0xff]
                %1279 = vst [vmem:[%s281 + $0xf90] sm:$0xff] %v1278
                %v1280 = vld [vmem:[%s280 + $0x3e48] sm:$0xff]
                %1281 = vst [vmem:[%s281 + $0xf98] sm:$0xff] %v1280
                %v1282 = vld [vmem:[%s280 + $0x3e50] sm:$0xff]
                %1283 = vst [vmem:[%s281 + $0xfa0] sm:$0xff] %v1282
                %v1284 = vld [vmem:[%s280 + $0x3e58] sm:$0xff]
                %1285 = vst [vmem:[%s281 + $0xfa8] sm:$0xff] %v1284
                %v1286 = vld [vmem:[%s280 + $0x3e60] sm:$0xff]
                %1287 = vst [vmem:[%s281 + $0xfb0] sm:$0xff] %v1286
                %v1288 = vld [vmem:[%s280 + $0x3e68] sm:$0xff]
                %1289 = vst [vmem:[%s281 + $0xfb8] sm:$0xff] %v1288
                %v1290 = vld [vmem:[%s280 + $0x3f00] sm:$0xff]
                %1291 = vst [vmem:[%s281 + $0xfc0] sm:$0xff] %v1290
                %v1292 = vld [vmem:[%s280 + $0x3f08] sm:$0xff]
                %1293 = vst [vmem:[%s281 + $0xfc8] sm:$0xff] %v1292
                %v1294 = vld [vmem:[%s280 + $0x3f10] sm:$0xff]
                %1295 = vst [vmem:[%s281 + $0xfd0] sm:$0xff] %v1294
                %v1296 = vld [vmem:[%s280 + $0x3f18] sm:$0xff]
                %1297 = vst [vmem:[%s281 + $0xfd8] sm:$0xff] %v1296
                %v1298 = vld [vmem:[%s280 + $0x3f20] sm:$0xff]
                %1299 = vst [vmem:[%s281 + $0xfe0] sm:$0xff] %v1298
                %v1300 = vld [vmem:[%s280 + $0x3f28] sm:$0xff]
                %1301 = vst [vmem:[%s281 + $0xfe8] sm:$0xff] %v1300
                %v1302 = vld [vmem:[%s280 + $0x3fc0] sm:$0xff]
                %1303 = vst [vmem:[%s281 + $0xff0] sm:$0xff] %v1302
                %v1304 = vld [vmem:[%s280 + $0x3fc8] sm:$0xff]
                %1305 = vst [vmem:[%s281 + $0xff8] sm:$0xff] %v1304
                %v1306 = vld [vmem:[%s280 + $0x3fd0] sm:$0xff]
                %1307 = vst [vmem:[%s281 + $0x1000] sm:$0xff] %v1306
                %v1308 = vld [vmem:[%s280 + $0x3fd8] sm:$0xff]
                %1309 = vst [vmem:[%s281 + $0x1008] sm:$0xff] %v1308
                %v1310 = vld [vmem:[%s280 + $0x3fe0] sm:$0xff]
                %1311 = vst [vmem:[%s281 + $0x1010] sm:$0xff] %v1310
                %v1312 = vld [vmem:[%s280 + $0x3fe8] sm:$0xff]
                %1313 = vst [vmem:[%s281 + $0x1018] sm:$0xff] %v1312
                %v1314 = vld [vmem:[%s280 + $0x4080] sm:$0xff]
                %1315 = vst [vmem:[%s281 + $0x1020] sm:$0xff] %v1314
                %v1316 = vld [vmem:[%s280 + $0x4088] sm:$0xff]
                %1317 = vst [vmem:[%s281 + $0x1028] sm:$0xff] %v1316
                %v1318 = vld [vmem:[%s280 + $0x4090] sm:$0xff]
                %1319 = vst [vmem:[%s281 + $0x1030] sm:$0xff] %v1318
                %v1320 = vld [vmem:[%s280 + $0x4098] sm:$0xff]
                %1321 = vst [vmem:[%s281 + $0x1038] sm:$0xff] %v1320
                %v1322 = vld [vmem:[%s280 + $0x40a0] sm:$0xff]
                %1323 = vst [vmem:[%s281 + $0x1040] sm:$0xff] %v1322
                %v1324 = vld [vmem:[%s280 + $0x40a8] sm:$0xff]
                %1325 = vst [vmem:[%s281 + $0x1048] sm:$0xff] %v1324
                %v1326 = vld [vmem:[%s280 + $0x4140] sm:$0xff]
                %1327 = vst [vmem:[%s281 + $0x1050] sm:$0xff] %v1326
                %v1328 = vld [vmem:[%s280 + $0x4148] sm:$0xff]
                %1329 = vst [vmem:[%s281 + $0x1058] sm:$0xff] %v1328
                %v1330 = vld [vmem:[%s280 + $0x4150] sm:$0xff]
                %1331 = vst [vmem:[%s281 + $0x1060] sm:$0xff] %v1330
                %v1332 = vld [vmem:[%s280 + $0x4158] sm:$0xff]
                %1333 = vst [vmem:[%s281 + $0x1068] sm:$0xff] %v1332
                %v1334 = vld [vmem:[%s280 + $0x4160] sm:$0xff]
                %1335 = vst [vmem:[%s281 + $0x1070] sm:$0xff] %v1334
                %v1336 = vld [vmem:[%s280 + $0x4168] sm:$0xff]
                %1337 = vst [vmem:[%s281 + $0x1078] sm:$0xff] %v1336
                %v1338 = vld [vmem:[%s280 + $0x4200] sm:$0xff]
                %1339 = vst [vmem:[%s281 + $0x1080] sm:$0xff] %v1338
                %v1340 = vld [vmem:[%s280 + $0x4208] sm:$0xff]
                %1341 = vst [vmem:[%s281 + $0x1088] sm:$0xff] %v1340
                %v1342 = vld [vmem:[%s280 + $0x4210] sm:$0xff]
                %1343 = vst [vmem:[%s281 + $0x1090] sm:$0xff] %v1342
                %v1344 = vld [vmem:[%s280 + $0x4218] sm:$0xff]
                %1345 = vst [vmem:[%s281 + $0x1098] sm:$0xff] %v1344
                %v1346 = vld [vmem:[%s280 + $0x4220] sm:$0xff]
                %1347 = vst [vmem:[%s281 + $0x10a0] sm:$0xff] %v1346
                %v1348 = vld [vmem:[%s280 + $0x4228] sm:$0xff]
                %1349 = vst [vmem:[%s281 + $0x10a8] sm:$0xff] %v1348
                %v1350 = vld [vmem:[%s280 + $0x42c0] sm:$0xff]
                %1351 = vst [vmem:[%s281 + $0x10b0] sm:$0xff] %v1350
                %v1352 = vld [vmem:[%s280 + $0x42c8] sm:$0xff]
                %1353 = vst [vmem:[%s281 + $0x10b8] sm:$0xff] %v1352
                %v1354 = vld [vmem:[%s280 + $0x42d0] sm:$0xff]
                %1355 = vst [vmem:[%s281 + $0x10c0] sm:$0xff] %v1354
                %v1356 = vld [vmem:[%s280 + $0x42d8] sm:$0xff]
                %1357 = vst [vmem:[%s281 + $0x10c8] sm:$0xff] %v1356
                %v1358 = vld [vmem:[%s280 + $0x42e0] sm:$0xff]
                %1359 = vst [vmem:[%s281 + $0x10d0] sm:$0xff] %v1358
                %v1360 = vld [vmem:[%s280 + $0x42e8] sm:$0xff]
                %1361 = vst [vmem:[%s281 + $0x10d8] sm:$0xff] %v1360
                %v1362 = vld [vmem:[%s280 + $0x4380] sm:$0xff]
                %1363 = vst [vmem:[%s281 + $0x10e0] sm:$0xff] %v1362
                %v1364 = vld [vmem:[%s280 + $0x4388] sm:$0xff]
                %1365 = vst [vmem:[%s281 + $0x10e8] sm:$0xff] %v1364
                %v1366 = vld [vmem:[%s280 + $0x4390] sm:$0xff]
                %1367 = vst [vmem:[%s281 + $0x10f0] sm:$0xff] %v1366
                %v1368 = vld [vmem:[%s280 + $0x4398] sm:$0xff]
                %1369 = vst [vmem:[%s281 + $0x10f8] sm:$0xff] %v1368
                %v1370 = vld [vmem:[%s280 + $0x43a0] sm:$0xff]
                %1371 = vst [vmem:[%s281 + $0x1100] sm:$0xff] %v1370
                %v1372 = vld [vmem:[%s280 + $0x43a8] sm:$0xff]
                %1373 = vst [vmem:[%s281 + $0x1108] sm:$0xff] %v1372
                %v1374 = vld [vmem:[%s280 + $0x4440] sm:$0xff]
                %1375 = vst [vmem:[%s281 + $0x1110] sm:$0xff] %v1374
                %v1376 = vld [vmem:[%s280 + $0x4448] sm:$0xff]
                %1377 = vst [vmem:[%s281 + $0x1118] sm:$0xff] %v1376
                %v1378 = vld [vmem:[%s280 + $0x4450] sm:$0xff]
                %1379 = vst [vmem:[%s281 + $0x1120] sm:$0xff] %v1378
                %v1380 = vld [vmem:[%s280 + $0x4458] sm:$0xff]
                %1381 = vst [vmem:[%s281 + $0x1128] sm:$0xff] %v1380
                %v1382 = vld [vmem:[%s280 + $0x4460] sm:$0xff]
                %1383 = vst [vmem:[%s281 + $0x1130] sm:$0xff] %v1382
                %v1384 = vld [vmem:[%s280 + $0x4468] sm:$0xff]
                %1385 = vst [vmem:[%s281 + $0x1138] sm:$0xff] %v1384
                %v1386 = vld [vmem:[%s280 + $0x4500] sm:$0xff]
                %1387 = vst [vmem:[%s281 + $0x1140] sm:$0xff] %v1386
                %v1388 = vld [vmem:[%s280 + $0x4508] sm:$0xff]
                %1389 = vst [vmem:[%s281 + $0x1148] sm:$0xff] %v1388
                %v1390 = vld [vmem:[%s280 + $0x4510] sm:$0xff]
                %1391 = vst [vmem:[%s281 + $0x1150] sm:$0xff] %v1390
                %v1392 = vld [vmem:[%s280 + $0x4518] sm:$0xff]
                %1393 = vst [vmem:[%s281 + $0x1158] sm:$0xff] %v1392
                %v1394 = vld [vmem:[%s280 + $0x4520] sm:$0xff]
                %1395 = vst [vmem:[%s281 + $0x1160] sm:$0xff] %v1394
                %v1396 = vld [vmem:[%s280 + $0x4528] sm:$0xff]
                %1397 = vst [vmem:[%s281 + $0x1168] sm:$0xff] %v1396
                %v1398 = vld [vmem:[%s280 + $0x45c0] sm:$0xff]
                %1399 = vst [vmem:[%s281 + $0x1170] sm:$0xff] %v1398
                %v1400 = vld [vmem:[%s280 + $0x45c8] sm:$0xff]
                %1401 = vst [vmem:[%s281 + $0x1178] sm:$0xff] %v1400
                %v1402 = vld [vmem:[%s280 + $0x45d0] sm:$0xff]
                %1403 = vst [vmem:[%s281 + $0x1180] sm:$0xff] %v1402
                %v1404 = vld [vmem:[%s280 + $0x45d8] sm:$0xff]
                %1405 = vst [vmem:[%s281 + $0x1188] sm:$0xff] %v1404
                %v1406 = vld [vmem:[%s280 + $0x45e0] sm:$0xff]
                %1407 = vst [vmem:[%s281 + $0x1190] sm:$0xff] %v1406
                %v1408 = vld [vmem:[%s280 + $0x45e8] sm:$0xff]
                %1409 = vst [vmem:[%s281 + $0x1198] sm:$0xff] %v1408
                %v1410 = vld [vmem:[%s280 + $0x4680] sm:$0xff]
                %1411 = vst [vmem:[%s281 + $0x11a0] sm:$0xff] %v1410
                %v1412 = vld [vmem:[%s280 + $0x4688] sm:$0xff]
                %1413 = vst [vmem:[%s281 + $0x11a8] sm:$0xff] %v1412
                %v1414 = vld [vmem:[%s280 + $0x4690] sm:$0xff]
                %1415 = vst [vmem:[%s281 + $0x11b0] sm:$0xff] %v1414
                %v1416 = vld [vmem:[%s280 + $0x4698] sm:$0xff]
                %1417 = vst [vmem:[%s281 + $0x11b8] sm:$0xff] %v1416
                %v1418 = vld [vmem:[%s280 + $0x46a0] sm:$0xff]
                %1419 = vst [vmem:[%s281 + $0x11c0] sm:$0xff] %v1418
                %v1420 = vld [vmem:[%s280 + $0x46a8] sm:$0xff]
                %1421 = vst [vmem:[%s281 + $0x11c8] sm:$0xff] %v1420
                %v1422 = vld [vmem:[%s280 + $0x4740] sm:$0xff]
                %1423 = vst [vmem:[%s281 + $0x11d0] sm:$0xff] %v1422
                %v1424 = vld [vmem:[%s280 + $0x4748] sm:$0xff]
                %1425 = vst [vmem:[%s281 + $0x11d8] sm:$0xff] %v1424
                %v1426 = vld [vmem:[%s280 + $0x4750] sm:$0xff]
                %1427 = vst [vmem:[%s281 + $0x11e0] sm:$0xff] %v1426
                %v1428 = vld [vmem:[%s280 + $0x4758] sm:$0xff]
                %1429 = vst [vmem:[%s281 + $0x11e8] sm:$0xff] %v1428
                %v1430 = vld [vmem:[%s280 + $0x4760] sm:$0xff]
                %1431 = vst [vmem:[%s281 + $0x11f0] sm:$0xff] %v1430
                %v1432 = vld [vmem:[%s280 + $0x4768] sm:$0xff]
                %1433 = vst [vmem:[%s281 + $0x11f8] sm:$0xff] %v1432
              $region49: #{encoder_layer.7} parent=43 // loop_footer
                %s279 = sadd.s32 1, %s275
              $region50: #{encoder_layer.7} parent=43 // loop_footer_branch
                %274 = sbr.rel target = $region46
              $region51: #{encoder_layer.7} parent=43 // loop_exit
                _
            $region44: #{encoder_layer.7} parent=39 // pred_fallthru
              _
            // Predicated region
            $region52: #{encoder_layer.7} parent=39 // pred_check
              _
            $region53: #{encoder_layer.7} parent=39 // pred_check_branch
              %1435 = sbr.rel target = $region55
            $region54: #{encoder_layer.7} parent=39 // pred_region
              _
            $region55: #{encoder_layer.7} parent=39 // pred_fallthru
              _
          $region40: #{encoder_layer.7} parent=35 // pred_fallthru
            _
          %1436 = vnop
        $region36: #{encoder_layer.7} parent=31 // pred_fallthru
          _
        // Predicated region
        $region56: #{encoder_layer.7} parent=31 // pred_check
          %p1437 = pneg %p101
        $region57: #{encoder_layer.7} parent=31 // pred_check_branch
          %1439 = sbr.rel (%p1437) target = $region59
        $region58: #{encoder_layer.7} parent=31 // pred_region
          %s1440 = smul.u32 6, %s25
          %p1441 = scmp.lt.s32.totalorder %s1440, 23
          %s1442 = scalar_select %p1441, %s1440, 23
          %s1443 = scalar_lea.vmem %s2, %s1442
          %s1444 = smul.u32 6, %s25
        $region59: #{encoder_layer.7} parent=31 // pred_fallthru
          _
        // Predicated region
        $region60: #{encoder_layer.7} parent=31 // pred_check
          %p1445 = pneg %p127
        $region61: #{encoder_layer.7} parent=31 // pred_check_branch
          %1447 = sbr.rel (%p1445) target = $region63
        $region62: #{encoder_layer.7} parent=31 // pred_region
          %s1448 = sand.u32 %s117, 1
          %s1449 = scalar_lea.sflag [#allocation5], %s1448
          %s1450 = sand.u32 %s117, 1
          %s1451 = smul.addr %s1450, 4608
          %s1452 = scalar_lea.vmem [#allocation4], %s1451
          %s1453 = smul.u32 96, %s25
          %s1455 = ssub.s32 73728, 73728
          %1456 = vsyncadd %s1449, %s1455
          %s1457 = smul.addr %s1453, 6
          %s1458 = smul.addr %s1457, 128
          %s1459 = scalar_lea.hbm %s3, %s1458
          %s1460 = sshll.u32 %s1452, 4
          %s1461 = int_to_ptr.vmem [resolvable:$true] %s1460
          %1466 = dma.hbm_to_vmem [thread:$0]  %s1459, 73728, %s1461, %s1449, 768, 768, 48
        $region63: #{encoder_layer.7} parent=31 // pred_fallthru
          _
      $region32: #{encoder_layer.7} parent=5 // pred_fallthru
        _
      %p1467 = scmp.le.s32.totalorder 1, %s17
      %p1468 = scmp.lt.s32.totalorder %s17, 5
      %p1469 = pnand %p1467, %p1468
      %p1470 = pneg %p1469
      // Predicated region
      $region64: #{encoder_layer.7} parent=5 // pred_check
        _
      $region65: #{encoder_layer.7} parent=5 // pred_check_branch
        %1472 = sbr.rel (%p1469) target = $region67
      $region66: #{encoder_layer.7} parent=5 // pred_region
        %s1473 = ssub.s32 %s17, 1
        %s1474 = sand.u32 %s68, 1
        %s1475 = sand.u32 %s68, 1
        %s1476 = smul.addr %s1475, 4608
        %s1477 = scalar_lea.vmem [#allocation3], %s1476
        // Predicated region
        $region68: #{encoder_layer.7} parent=66 // pred_check
          %p1478 = pneg %p81
        $region69: #{encoder_layer.7} parent=66 // pred_check_branch
          %1480 = sbr.rel (%p1478) target = $region71
        $region70: #{encoder_layer.7} parent=66 // pred_region
          _
        $region71: #{encoder_layer.7} parent=66 // pred_fallthru
          _
        %s1481 = sand.u32 %s120, 1
        %s1482 = scalar_lea.sflag [#allocation5], %s1481
        %s1483 = sand.u32 %s120, 1
        %s1484 = smul.addr %s1483, 4608
        %s1485 = scalar_lea.vmem [#allocation4], %s1484
        // Predicated region
        $region72: #{encoder_layer.7} parent=66 // pred_check
          %p1486 = pneg %p133
        $region73: #{encoder_layer.7} parent=66 // pred_check_branch
          %1488 = sbr.rel (%p1486) target = $region75
        $region74: #{encoder_layer.7} parent=66 // pred_region
          %1489 = dma.done %s1482, 73728
        $region75: #{encoder_layer.7} parent=66 // pred_fallthru
          _
        %s1490 = smul.u32 2, %s26
        %p1491 = scmp.lt.s32.totalorder %s1490, 1
        %s1492 = scalar_select %p1491, %s1490, 1
        %s1493 = smul.addr %s1492, 6
        %s1494 = smul.addr %s1493, 8
        %s1495 = scalar_lea.vmem %s0, %s1494
        %p1496 = pneg %p55
        %p1497 = pneg %p52
        %s1498 = sand.u32 %s68, 1
        %s1499 = sand.u32 %s68, 1
        %s1500 = smul.addr %s1499, 4608
        %s1501 = scalar_lea.vmem [#allocation3], %s1500
        %p1502 = pneg %p81
        %p1503 = pneg %p78
        %s1504 = smul.u32 6, %s27
        %p1505 = scmp.lt.s32.totalorder %s1504, 23
        %s1506 = scalar_select %p1505, %s1504, 23
        %s1507 = scalar_lea.vmem %s2, %s1506
        %p1508 = pneg %p107
        %p1509 = pneg %p104
        %s1510 = sand.u32 %s120, 1
        %s1511 = scalar_lea.sflag [#allocation5], %s1510
        %s1512 = sand.u32 %s120, 1
        %s1513 = smul.addr %s1512, 4608
        %s1514 = scalar_lea.vmem [#allocation4], %s1513
        %p1515 = pneg %p133
        %p1516 = pneg %p130
        %p1517 = pneg %p154
        %p1518 = pneg %p151
        %p1519 = pneg %p175
        %p1520 = pneg %p172
        %p1521 = pneg %p196
        %p1522 = pneg %p193
        %p1523 = pneg %p222
        %p1524 = pneg %p219
        %s1525 = smul.u32 2, %s26
        %p1526 = scmp.lt.s32.totalorder %s1525, 1
        %s1527 = scalar_select %p1526, %s1525, 1
        %s1528 = smul.addr %s1527, 6
        %s1529 = smul.addr %s1528, 8
        %s1530 = scalar_lea.vmem %s0, %s1529
        %s1531 = smul.u32 2, %s26
        %s1532 = smul.u32 6, %s27
        %s1533 = smul.u32 6, %s27
        %p1534 = scmp.lt.s32.totalorder %s1533, 23
        %s1535 = scalar_select %p1534, %s1533, 23
        %s1536 = scalar_lea.vmem %s2, %s1535
        %s1537 = smul.u32 6, %s27
        %s1538 = smul.u32 96, %s27
        %s1539 = smul.u32 2, %s26
        %p1540 = scmp.eq.s32.totalorder %s27, 0
        // Predicated region
        $region76: #{encoder_layer.7} parent=66 // pred_check
          %p1541 = pneg %p1540
        $region77: #{encoder_layer.7} parent=66 // pred_check_branch
          %1543 = sbr.rel (%p1541) target = $region79
        $region78: #{encoder_layer.7} parent=66 // pred_region
          %1544 = vst [vmem:[#allocation2] sm:$0xff] 0.0
          %1545 = vst [vmem:[#allocation2 + $0x8] sm:$0xff] 0.0
          %1546 = vst [vmem:[#allocation2 + $0x10] sm:$0xff] 0.0
          %1547 = vst [vmem:[#allocation2 + $0x18] sm:$0xff] 0.0
          %1548 = vst [vmem:[#allocation2 + $0x20] sm:$0xff] 0.0
          %1549 = vst [vmem:[#allocation2 + $0x28] sm:$0xff] 0.0
          %1550 = vst [vmem:[#allocation2 + $0x30] sm:$0xff] 0.0
          %1551 = vst [vmem:[#allocation2 + $0x38] sm:$0xff] 0.0
          %1552 = vst [vmem:[#allocation2 + $0x40] sm:$0xff] 0.0
          %1553 = vst [vmem:[#allocation2 + $0x48] sm:$0xff] 0.0
          %1554 = vst [vmem:[#allocation2 + $0x50] sm:$0xff] 0.0
          %1555 = vst [vmem:[#allocation2 + $0x58] sm:$0xff] 0.0
        $region79: #{encoder_layer.7} parent=66 // pred_fallthru
          _
        %v1556 = vld [vmem:[%s1530] sm:$0xff]
        %v1557 = vld [vmem:[%s1530 + $0x8] sm:$0xff]
        %v1558 = vld [vmem:[%s1530 + $0x10] sm:$0xff]
        %v1559 = vld [vmem:[%s1530 + $0x18] sm:$0xff]
        %v1560 = vld [vmem:[%s1530 + $0x20] sm:$0xff]
        %v1561 = vld [vmem:[%s1530 + $0x28] sm:$0xff]
        %v1562 = vld [vmem:[%s1530 + $0x30] sm:$0xff]
        %v1563 = vld [vmem:[%s1530 + $0x38] sm:$0xff]
        %v1564 = vld [vmem:[%s1530 + $0x40] sm:$0xff]
        %v1565 = vld [vmem:[%s1530 + $0x48] sm:$0xff]
        %v1566 = vld [vmem:[%s1530 + $0x50] sm:$0xff]
        %v1567 = vld [vmem:[%s1530 + $0x58] sm:$0xff]
        %v1568 = vld [vmem:[%s1477] sm:$0xff]
        %v1569 = vld [vmem:[%s1477 + $0x8] sm:$0xff]
        %v1570 = vld [vmem:[%s1477 + $0x10] sm:$0xff]
        %v1571 = vld [vmem:[%s1477 + $0x18] sm:$0xff]
        %v1572 = vld [vmem:[%s1477 + $0x20] sm:$0xff]
        %v1573 = vld [vmem:[%s1477 + $0x28] sm:$0xff]
        %v1574 = vld [vmem:[%s1477 + $0x30] sm:$0xff]
        %v1575 = vld [vmem:[%s1477 + $0x38] sm:$0xff]
        %v1576 = vld [vmem:[%s1477 + $0x40] sm:$0xff]
        %v1577 = vld [vmem:[%s1477 + $0x48] sm:$0xff]
        %v1578 = vld [vmem:[%s1477 + $0x50] sm:$0xff]
        %v1579 = vld [vmem:[%s1477 + $0x58] sm:$0xff]
        %v1580 = vld [vmem:[%s1477 + $0x60] sm:$0xff]
        %v1581 = vld [vmem:[%s1477 + $0x68] sm:$0xff]
        %v1582 = vld [vmem:[%s1477 + $0x70] sm:$0xff]
        %v1583 = vld [vmem:[%s1477 + $0x78] sm:$0xff]
        %v1584 = vld [vmem:[%s1477 + $0x80] sm:$0xff]
        %v1585 = vld [vmem:[%s1477 + $0x88] sm:$0xff]
        %v1586 = vld [vmem:[%s1477 + $0x90] sm:$0xff]
        %v1587 = vld [vmem:[%s1477 + $0x98] sm:$0xff]
        %v1588 = vld [vmem:[%s1477 + $0xa0] sm:$0xff]
        %v1589 = vld [vmem:[%s1477 + $0xa8] sm:$0xff]
        %v1590 = vld [vmem:[%s1477 + $0xb0] sm:$0xff]
        %v1591 = vld [vmem:[%s1477 + $0xb8] sm:$0xff]
        %v1592 = vld [vmem:[%s1477 + $0xc0] sm:$0xff]
        %v1593 = vld [vmem:[%s1477 + $0xc8] sm:$0xff]
        %v1594 = vld [vmem:[%s1477 + $0xd0] sm:$0xff]
        %v1595 = vld [vmem:[%s1477 + $0xd8] sm:$0xff]
        %v1596 = vld [vmem:[%s1477 + $0xe0] sm:$0xff]
        %v1597 = vld [vmem:[%s1477 + $0xe8] sm:$0xff]
        %v1598 = vld [vmem:[%s1477 + $0xf0] sm:$0xff]
        %v1599 = vld [vmem:[%s1477 + $0xf8] sm:$0xff]
        %v1600 = vld [vmem:[%s1477 + $0x100] sm:$0xff]
        %v1601 = vld [vmem:[%s1477 + $0x108] sm:$0xff]
        %v1602 = vld [vmem:[%s1477 + $0x110] sm:$0xff]
        %v1603 = vld [vmem:[%s1477 + $0x118] sm:$0xff]
        %v1604 = vld [vmem:[%s1477 + $0x120] sm:$0xff]
        %v1605 = vld [vmem:[%s1477 + $0x128] sm:$0xff]
        %v1606 = vld [vmem:[%s1477 + $0x130] sm:$0xff]
        %v1607 = vld [vmem:[%s1477 + $0x138] sm:$0xff]
        %v1608 = vld [vmem:[%s1477 + $0x140] sm:$0xff]
        %v1609 = vld [vmem:[%s1477 + $0x148] sm:$0xff]
        %v1610 = vld [vmem:[%s1477 + $0x150] sm:$0xff]
        %v1611 = vld [vmem:[%s1477 + $0x158] sm:$0xff]
        %v1612 = vld [vmem:[%s1477 + $0x160] sm:$0xff]
        %v1613 = vld [vmem:[%s1477 + $0x168] sm:$0xff]
        %v1614 = vld [vmem:[%s1477 + $0x170] sm:$0xff]
        %v1615 = vld [vmem:[%s1477 + $0x178] sm:$0xff]
        %v1616 = vld [vmem:[%s1477 + $0x180] sm:$0xff]
        %v1617 = vld [vmem:[%s1477 + $0x188] sm:$0xff]
        %v1618 = vld [vmem:[%s1477 + $0x190] sm:$0xff]
        %v1619 = vld [vmem:[%s1477 + $0x198] sm:$0xff]
        %v1620 = vld [vmem:[%s1477 + $0x1a0] sm:$0xff]
        %v1621 = vld [vmem:[%s1477 + $0x1a8] sm:$0xff]
        %v1622 = vld [vmem:[%s1477 + $0x1b0] sm:$0xff]
        %v1623 = vld [vmem:[%s1477 + $0x1b8] sm:$0xff]
        %v1624 = vld [vmem:[%s1477 + $0x1c0] sm:$0xff]
        %v1625 = vld [vmem:[%s1477 + $0x1c8] sm:$0xff]
        %v1626 = vld [vmem:[%s1477 + $0x1d0] sm:$0xff]
        %v1627 = vld [vmem:[%s1477 + $0x1d8] sm:$0xff]
        %v1628 = vld [vmem:[%s1477 + $0x1e0] sm:$0xff]
        %v1629 = vld [vmem:[%s1477 + $0x1e8] sm:$0xff]
        %v1630 = vld [vmem:[%s1477 + $0x1f0] sm:$0xff]
        %v1631 = vld [vmem:[%s1477 + $0x1f8] sm:$0xff]
        %v1632 = vld [vmem:[%s1477 + $0x200] sm:$0xff]
        %v1633 = vld [vmem:[%s1477 + $0x208] sm:$0xff]
        %v1634 = vld [vmem:[%s1477 + $0x210] sm:$0xff]
        %v1635 = vld [vmem:[%s1477 + $0x218] sm:$0xff]
        %v1636 = vld [vmem:[%s1477 + $0x220] sm:$0xff]
        %v1637 = vld [vmem:[%s1477 + $0x228] sm:$0xff]
        %v1638 = vld [vmem:[%s1477 + $0x230] sm:$0xff]
        %v1639 = vld [vmem:[%s1477 + $0x238] sm:$0xff]
        %v1640 = vld [vmem:[%s1477 + $0x240] sm:$0xff]
        %v1641 = vld [vmem:[%s1477 + $0x248] sm:$0xff]
        %v1642 = vld [vmem:[%s1477 + $0x250] sm:$0xff]
        %v1643 = vld [vmem:[%s1477 + $0x258] sm:$0xff]
        %v1644 = vld [vmem:[%s1477 + $0x260] sm:$0xff]
        %v1645 = vld [vmem:[%s1477 + $0x268] sm:$0xff]
        %v1646 = vld [vmem:[%s1477 + $0x270] sm:$0xff]
        %v1647 = vld [vmem:[%s1477 + $0x278] sm:$0xff]
        %v1648 = vld [vmem:[%s1477 + $0x280] sm:$0xff]
        %v1649 = vld [vmem:[%s1477 + $0x288] sm:$0xff]
        %v1650 = vld [vmem:[%s1477 + $0x290] sm:$0xff]
        %v1651 = vld [vmem:[%s1477 + $0x298] sm:$0xff]
        %v1652 = vld [vmem:[%s1477 + $0x2a0] sm:$0xff]
        %v1653 = vld [vmem:[%s1477 + $0x2a8] sm:$0xff]
        %v1654 = vld [vmem:[%s1477 + $0x2b0] sm:$0xff]
        %v1655 = vld [vmem:[%s1477 + $0x2b8] sm:$0xff]
        %v1656 = vld [vmem:[%s1477 + $0x2c0] sm:$0xff]
        %v1657 = vld [vmem:[%s1477 + $0x2c8] sm:$0xff]
        %v1658 = vld [vmem:[%s1477 + $0x2d0] sm:$0xff]
        %v1659 = vld [vmem:[%s1477 + $0x2d8] sm:$0xff]
        %v1660 = vld [vmem:[%s1477 + $0x2e0] sm:$0xff]
        %v1661 = vld [vmem:[%s1477 + $0x2e8] sm:$0xff]
        %v1662 = vld [vmem:[%s1477 + $0x2f0] sm:$0xff]
        %v1663 = vld [vmem:[%s1477 + $0x2f8] sm:$0xff]
        %v1664 = vld [vmem:[%s1477 + $0x300] sm:$0xff]
        %v1665 = vld [vmem:[%s1477 + $0x308] sm:$0xff]
        %v1666 = vld [vmem:[%s1477 + $0x310] sm:$0xff]
        %v1667 = vld [vmem:[%s1477 + $0x318] sm:$0xff]
        %v1668 = vld [vmem:[%s1477 + $0x320] sm:$0xff]
        %v1669 = vld [vmem:[%s1477 + $0x328] sm:$0xff]
        %v1670 = vld [vmem:[%s1477 + $0x330] sm:$0xff]
        %v1671 = vld [vmem:[%s1477 + $0x338] sm:$0xff]
        %v1672 = vld [vmem:[%s1477 + $0x340] sm:$0xff]
        %v1673 = vld [vmem:[%s1477 + $0x348] sm:$0xff]
        %v1674 = vld [vmem:[%s1477 + $0x350] sm:$0xff]
        %v1675 = vld [vmem:[%s1477 + $0x358] sm:$0xff]
        %v1676 = vld [vmem:[%s1477 + $0x360] sm:$0xff]
        %v1677 = vld [vmem:[%s1477 + $0x368] sm:$0xff]
        %v1678 = vld [vmem:[%s1477 + $0x370] sm:$0xff]
        %v1679 = vld [vmem:[%s1477 + $0x378] sm:$0xff]
        %v1680 = vld [vmem:[%s1477 + $0x380] sm:$0xff]
        %v1681 = vld [vmem:[%s1477 + $0x388] sm:$0xff]
        %v1682 = vld [vmem:[%s1477 + $0x390] sm:$0xff]
        %v1683 = vld [vmem:[%s1477 + $0x398] sm:$0xff]
        %v1684 = vld [vmem:[%s1477 + $0x3a0] sm:$0xff]
        %v1685 = vld [vmem:[%s1477 + $0x3a8] sm:$0xff]
        %v1686 = vld [vmem:[%s1477 + $0x3b0] sm:$0xff]
        %v1687 = vld [vmem:[%s1477 + $0x3b8] sm:$0xff]
        %v1688 = vld [vmem:[%s1477 + $0x3c0] sm:$0xff]
        %v1689 = vld [vmem:[%s1477 + $0x3c8] sm:$0xff]
        %v1690 = vld [vmem:[%s1477 + $0x3d0] sm:$0xff]
        %v1691 = vld [vmem:[%s1477 + $0x3d8] sm:$0xff]
        %v1692 = vld [vmem:[%s1477 + $0x3e0] sm:$0xff]
        %v1693 = vld [vmem:[%s1477 + $0x3e8] sm:$0xff]
        %v1694 = vld [vmem:[%s1477 + $0x3f0] sm:$0xff]
        %v1695 = vld [vmem:[%s1477 + $0x3f8] sm:$0xff]
        %v1696 = vld [vmem:[%s1477 + $0x400] sm:$0xff]
        %v1697 = vld [vmem:[%s1477 + $0x408] sm:$0xff]
        %v1698 = vld [vmem:[%s1477 + $0x410] sm:$0xff]
        %v1699 = vld [vmem:[%s1477 + $0x418] sm:$0xff]
        %v1700 = vld [vmem:[%s1477 + $0x420] sm:$0xff]
        %v1701 = vld [vmem:[%s1477 + $0x428] sm:$0xff]
        %v1702 = vld [vmem:[%s1477 + $0x430] sm:$0xff]
        %v1703 = vld [vmem:[%s1477 + $0x438] sm:$0xff]
        %v1704 = vld [vmem:[%s1477 + $0x440] sm:$0xff]
        %v1705 = vld [vmem:[%s1477 + $0x448] sm:$0xff]
        %v1706 = vld [vmem:[%s1477 + $0x450] sm:$0xff]
        %v1707 = vld [vmem:[%s1477 + $0x458] sm:$0xff]
        %v1708 = vld [vmem:[%s1477 + $0x460] sm:$0xff]
        %v1709 = vld [vmem:[%s1477 + $0x468] sm:$0xff]
        %v1710 = vld [vmem:[%s1477 + $0x470] sm:$0xff]
        %v1711 = vld [vmem:[%s1477 + $0x478] sm:$0xff]
        %v1712 = vld [vmem:[%s1477 + $0x480] sm:$0xff]
        %v1713 = vld [vmem:[%s1477 + $0x488] sm:$0xff]
        %v1714 = vld [vmem:[%s1477 + $0x490] sm:$0xff]
        %v1715 = vld [vmem:[%s1477 + $0x498] sm:$0xff]
        %v1716 = vld [vmem:[%s1477 + $0x4a0] sm:$0xff]
        %v1717 = vld [vmem:[%s1477 + $0x4a8] sm:$0xff]
        %v1718 = vld [vmem:[%s1477 + $0x4b0] sm:$0xff]
        %v1719 = vld [vmem:[%s1477 + $0x4b8] sm:$0xff]
        %v1720 = vld [vmem:[%s1477 + $0x4c0] sm:$0xff]
        %v1721 = vld [vmem:[%s1477 + $0x4c8] sm:$0xff]
        %v1722 = vld [vmem:[%s1477 + $0x4d0] sm:$0xff]
        %v1723 = vld [vmem:[%s1477 + $0x4d8] sm:$0xff]
        %v1724 = vld [vmem:[%s1477 + $0x4e0] sm:$0xff]
        %v1725 = vld [vmem:[%s1477 + $0x4e8] sm:$0xff]
        %v1726 = vld [vmem:[%s1477 + $0x4f0] sm:$0xff]
        %v1727 = vld [vmem:[%s1477 + $0x4f8] sm:$0xff]
        %v1728 = vld [vmem:[%s1477 + $0x500] sm:$0xff]
        %v1729 = vld [vmem:[%s1477 + $0x508] sm:$0xff]
        %v1730 = vld [vmem:[%s1477 + $0x510] sm:$0xff]
        %v1731 = vld [vmem:[%s1477 + $0x518] sm:$0xff]
        %v1732 = vld [vmem:[%s1477 + $0x520] sm:$0xff]
        %v1733 = vld [vmem:[%s1477 + $0x528] sm:$0xff]
        %v1734 = vld [vmem:[%s1477 + $0x530] sm:$0xff]
        %v1735 = vld [vmem:[%s1477 + $0x538] sm:$0xff]
        %v1736 = vld [vmem:[%s1477 + $0x540] sm:$0xff]
        %v1737 = vld [vmem:[%s1477 + $0x548] sm:$0xff]
        %v1738 = vld [vmem:[%s1477 + $0x550] sm:$0xff]
        %v1739 = vld [vmem:[%s1477 + $0x558] sm:$0xff]
        %v1740 = vld [vmem:[%s1477 + $0x560] sm:$0xff]
        %v1741 = vld [vmem:[%s1477 + $0x568] sm:$0xff]
        %v1742 = vld [vmem:[%s1477 + $0x570] sm:$0xff]
        %v1743 = vld [vmem:[%s1477 + $0x578] sm:$0xff]
        %v1744 = vld [vmem:[%s1477 + $0x580] sm:$0xff]
        %v1745 = vld [vmem:[%s1477 + $0x588] sm:$0xff]
        %v1746 = vld [vmem:[%s1477 + $0x590] sm:$0xff]
        %v1747 = vld [vmem:[%s1477 + $0x598] sm:$0xff]
        %v1748 = vld [vmem:[%s1477 + $0x5a0] sm:$0xff]
        %v1749 = vld [vmem:[%s1477 + $0x5a8] sm:$0xff]
        %v1750 = vld [vmem:[%s1477 + $0x5b0] sm:$0xff]
        %v1751 = vld [vmem:[%s1477 + $0x5b8] sm:$0xff]
        %v1752 = vld [vmem:[%s1477 + $0x5c0] sm:$0xff]
        %v1753 = vld [vmem:[%s1477 + $0x5c8] sm:$0xff]
        %v1754 = vld [vmem:[%s1477 + $0x5d0] sm:$0xff]
        %v1755 = vld [vmem:[%s1477 + $0x5d8] sm:$0xff]
        %v1756 = vld [vmem:[%s1477 + $0x5e0] sm:$0xff]
        %v1757 = vld [vmem:[%s1477 + $0x5e8] sm:$0xff]
        %v1758 = vld [vmem:[%s1477 + $0x5f0] sm:$0xff]
        %v1759 = vld [vmem:[%s1477 + $0x5f8] sm:$0xff]
        %v1760 = vld [vmem:[%s1477 + $0x600] sm:$0xff]
        %v1761 = vld [vmem:[%s1477 + $0x608] sm:$0xff]
        %v1762 = vld [vmem:[%s1477 + $0x610] sm:$0xff]
        %v1763 = vld [vmem:[%s1477 + $0x618] sm:$0xff]
        %v1764 = vld [vmem:[%s1477 + $0x620] sm:$0xff]
        %v1765 = vld [vmem:[%s1477 + $0x628] sm:$0xff]
        %v1766 = vld [vmem:[%s1477 + $0x630] sm:$0xff]
        %v1767 = vld [vmem:[%s1477 + $0x638] sm:$0xff]
        %v1768 = vld [vmem:[%s1477 + $0x640] sm:$0xff]
        %v1769 = vld [vmem:[%s1477 + $0x648] sm:$0xff]
        %v1770 = vld [vmem:[%s1477 + $0x650] sm:$0xff]
        %v1771 = vld [vmem:[%s1477 + $0x658] sm:$0xff]
        %v1772 = vld [vmem:[%s1477 + $0x660] sm:$0xff]
        %v1773 = vld [vmem:[%s1477 + $0x668] sm:$0xff]
        %v1774 = vld [vmem:[%s1477 + $0x670] sm:$0xff]
        %v1775 = vld [vmem:[%s1477 + $0x678] sm:$0xff]
        %v1776 = vld [vmem:[%s1477 + $0x680] sm:$0xff]
        %v1777 = vld [vmem:[%s1477 + $0x688] sm:$0xff]
        %v1778 = vld [vmem:[%s1477 + $0x690] sm:$0xff]
        %v1779 = vld [vmem:[%s1477 + $0x698] sm:$0xff]
        %v1780 = vld [vmem:[%s1477 + $0x6a0] sm:$0xff]
        %v1781 = vld [vmem:[%s1477 + $0x6a8] sm:$0xff]
        %v1782 = vld [vmem:[%s1477 + $0x6b0] sm:$0xff]
        %v1783 = vld [vmem:[%s1477 + $0x6b8] sm:$0xff]
        %v1784 = vld [vmem:[%s1477 + $0x6c0] sm:$0xff]
        %v1785 = vld [vmem:[%s1477 + $0x6c8] sm:$0xff]
        %v1786 = vld [vmem:[%s1477 + $0x6d0] sm:$0xff]
        %v1787 = vld [vmem:[%s1477 + $0x6d8] sm:$0xff]
        %v1788 = vld [vmem:[%s1477 + $0x6e0] sm:$0xff]
        %v1789 = vld [vmem:[%s1477 + $0x6e8] sm:$0xff]
        %v1790 = vld [vmem:[%s1477 + $0x6f0] sm:$0xff]
        %v1791 = vld [vmem:[%s1477 + $0x6f8] sm:$0xff]
        %v1792 = vld [vmem:[%s1477 + $0x700] sm:$0xff]
        %v1793 = vld [vmem:[%s1477 + $0x708] sm:$0xff]
        %v1794 = vld [vmem:[%s1477 + $0x710] sm:$0xff]
        %v1795 = vld [vmem:[%s1477 + $0x718] sm:$0xff]
        %v1796 = vld [vmem:[%s1477 + $0x720] sm:$0xff]
        %v1797 = vld [vmem:[%s1477 + $0x728] sm:$0xff]
        %v1798 = vld [vmem:[%s1477 + $0x730] sm:$0xff]
        %v1799 = vld [vmem:[%s1477 + $0x738] sm:$0xff]
        %v1800 = vld [vmem:[%s1477 + $0x740] sm:$0xff]
        %v1801 = vld [vmem:[%s1477 + $0x748] sm:$0xff]
        %v1802 = vld [vmem:[%s1477 + $0x750] sm:$0xff]
        %v1803 = vld [vmem:[%s1477 + $0x758] sm:$0xff]
        %v1804 = vld [vmem:[%s1477 + $0x760] sm:$0xff]
        %v1805 = vld [vmem:[%s1477 + $0x768] sm:$0xff]
        %v1806 = vld [vmem:[%s1477 + $0x770] sm:$0xff]
        %v1807 = vld [vmem:[%s1477 + $0x778] sm:$0xff]
        %v1808 = vld [vmem:[%s1477 + $0x780] sm:$0xff]
        %v1809 = vld [vmem:[%s1477 + $0x788] sm:$0xff]
        %v1810 = vld [vmem:[%s1477 + $0x790] sm:$0xff]
        %v1811 = vld [vmem:[%s1477 + $0x798] sm:$0xff]
        %v1812 = vld [vmem:[%s1477 + $0x7a0] sm:$0xff]
        %v1813 = vld [vmem:[%s1477 + $0x7a8] sm:$0xff]
        %v1814 = vld [vmem:[%s1477 + $0x7b0] sm:$0xff]
        %v1815 = vld [vmem:[%s1477 + $0x7b8] sm:$0xff]
        %v1816 = vld [vmem:[%s1477 + $0x7c0] sm:$0xff]
        %v1817 = vld [vmem:[%s1477 + $0x7c8] sm:$0xff]
        %v1818 = vld [vmem:[%s1477 + $0x7d0] sm:$0xff]
        %v1819 = vld [vmem:[%s1477 + $0x7d8] sm:$0xff]
        %v1820 = vld [vmem:[%s1477 + $0x7e0] sm:$0xff]
        %v1821 = vld [vmem:[%s1477 + $0x7e8] sm:$0xff]
        %v1822 = vld [vmem:[%s1477 + $0x7f0] sm:$0xff]
        %v1823 = vld [vmem:[%s1477 + $0x7f8] sm:$0xff]
        %v1824 = vld [vmem:[%s1477 + $0x800] sm:$0xff]
        %v1825 = vld [vmem:[%s1477 + $0x808] sm:$0xff]
        %v1826 = vld [vmem:[%s1477 + $0x810] sm:$0xff]
        %v1827 = vld [vmem:[%s1477 + $0x818] sm:$0xff]
        %v1828 = vld [vmem:[%s1477 + $0x820] sm:$0xff]
        %v1829 = vld [vmem:[%s1477 + $0x828] sm:$0xff]
        %v1830 = vld [vmem:[%s1477 + $0x830] sm:$0xff]
        %v1831 = vld [vmem:[%s1477 + $0x838] sm:$0xff]
        %v1832 = vld [vmem:[%s1477 + $0x840] sm:$0xff]
        %v1833 = vld [vmem:[%s1477 + $0x848] sm:$0xff]
        %v1834 = vld [vmem:[%s1477 + $0x850] sm:$0xff]
        %v1835 = vld [vmem:[%s1477 + $0x858] sm:$0xff]
        %v1836 = vld [vmem:[%s1477 + $0x860] sm:$0xff]
        %v1837 = vld [vmem:[%s1477 + $0x868] sm:$0xff]
        %v1838 = vld [vmem:[%s1477 + $0x870] sm:$0xff]
        %v1839 = vld [vmem:[%s1477 + $0x878] sm:$0xff]
        %v1840 = vld [vmem:[%s1477 + $0x880] sm:$0xff]
        %v1841 = vld [vmem:[%s1477 + $0x888] sm:$0xff]
        %v1842 = vld [vmem:[%s1477 + $0x890] sm:$0xff]
        %v1843 = vld [vmem:[%s1477 + $0x898] sm:$0xff]
        %v1844 = vld [vmem:[%s1477 + $0x8a0] sm:$0xff]
        %v1845 = vld [vmem:[%s1477 + $0x8a8] sm:$0xff]
        %v1846 = vld [vmem:[%s1477 + $0x8b0] sm:$0xff]
        %v1847 = vld [vmem:[%s1477 + $0x8b8] sm:$0xff]
        %v1848 = vld [vmem:[%s1477 + $0x8c0] sm:$0xff]
        %v1849 = vld [vmem:[%s1477 + $0x8c8] sm:$0xff]
        %v1850 = vld [vmem:[%s1477 + $0x8d0] sm:$0xff]
        %v1851 = vld [vmem:[%s1477 + $0x8d8] sm:$0xff]
        %v1852 = vld [vmem:[%s1477 + $0x8e0] sm:$0xff]
        %v1853 = vld [vmem:[%s1477 + $0x8e8] sm:$0xff]
        %v1854 = vld [vmem:[%s1477 + $0x8f0] sm:$0xff]
        %v1855 = vld [vmem:[%s1477 + $0x8f8] sm:$0xff]
        %v1856 = vld [vmem:[%s1477 + $0x900] sm:$0xff]
        %v1857 = vld [vmem:[%s1477 + $0x908] sm:$0xff]
        %v1858 = vld [vmem:[%s1477 + $0x910] sm:$0xff]
        %v1859 = vld [vmem:[%s1477 + $0x918] sm:$0xff]
        %v1860 = vld [vmem:[%s1477 + $0x920] sm:$0xff]
        %v1861 = vld [vmem:[%s1477 + $0x928] sm:$0xff]
        %v1862 = vld [vmem:[%s1477 + $0x930] sm:$0xff]
        %v1863 = vld [vmem:[%s1477 + $0x938] sm:$0xff]
        %v1864 = vld [vmem:[%s1477 + $0x940] sm:$0xff]
        %v1865 = vld [vmem:[%s1477 + $0x948] sm:$0xff]
        %v1866 = vld [vmem:[%s1477 + $0x950] sm:$0xff]
        %v1867 = vld [vmem:[%s1477 + $0x958] sm:$0xff]
        %v1868 = vld [vmem:[%s1477 + $0x960] sm:$0xff]
        %v1869 = vld [vmem:[%s1477 + $0x968] sm:$0xff]
        %v1870 = vld [vmem:[%s1477 + $0x970] sm:$0xff]
        %v1871 = vld [vmem:[%s1477 + $0x978] sm:$0xff]
        %v1872 = vld [vmem:[%s1477 + $0x980] sm:$0xff]
        %v1873 = vld [vmem:[%s1477 + $0x988] sm:$0xff]
        %v1874 = vld [vmem:[%s1477 + $0x990] sm:$0xff]
        %v1875 = vld [vmem:[%s1477 + $0x998] sm:$0xff]
        %v1876 = vld [vmem:[%s1477 + $0x9a0] sm:$0xff]
        %v1877 = vld [vmem:[%s1477 + $0x9a8] sm:$0xff]
        %v1878 = vld [vmem:[%s1477 + $0x9b0] sm:$0xff]
        %v1879 = vld [vmem:[%s1477 + $0x9b8] sm:$0xff]
        %v1880 = vld [vmem:[%s1477 + $0x9c0] sm:$0xff]
        %v1881 = vld [vmem:[%s1477 + $0x9c8] sm:$0xff]
        %v1882 = vld [vmem:[%s1477 + $0x9d0] sm:$0xff]
        %v1883 = vld [vmem:[%s1477 + $0x9d8] sm:$0xff]
        %v1884 = vld [vmem:[%s1477 + $0x9e0] sm:$0xff]
        %v1885 = vld [vmem:[%s1477 + $0x9e8] sm:$0xff]
        %v1886 = vld [vmem:[%s1477 + $0x9f0] sm:$0xff]
        %v1887 = vld [vmem:[%s1477 + $0x9f8] sm:$0xff]
        %v1888 = vld [vmem:[%s1477 + $0xa00] sm:$0xff]
        %v1889 = vld [vmem:[%s1477 + $0xa08] sm:$0xff]
        %v1890 = vld [vmem:[%s1477 + $0xa10] sm:$0xff]
        %v1891 = vld [vmem:[%s1477 + $0xa18] sm:$0xff]
        %v1892 = vld [vmem:[%s1477 + $0xa20] sm:$0xff]
        %v1893 = vld [vmem:[%s1477 + $0xa28] sm:$0xff]
        %v1894 = vld [vmem:[%s1477 + $0xa30] sm:$0xff]
        %v1895 = vld [vmem:[%s1477 + $0xa38] sm:$0xff]
        %v1896 = vld [vmem:[%s1477 + $0xa40] sm:$0xff]
        %v1897 = vld [vmem:[%s1477 + $0xa48] sm:$0xff]
        %v1898 = vld [vmem:[%s1477 + $0xa50] sm:$0xff]
        %v1899 = vld [vmem:[%s1477 + $0xa58] sm:$0xff]
        %v1900 = vld [vmem:[%s1477 + $0xa60] sm:$0xff]
        %v1901 = vld [vmem:[%s1477 + $0xa68] sm:$0xff]
        %v1902 = vld [vmem:[%s1477 + $0xa70] sm:$0xff]
        %v1903 = vld [vmem:[%s1477 + $0xa78] sm:$0xff]
        %v1904 = vld [vmem:[%s1477 + $0xa80] sm:$0xff]
        %v1905 = vld [vmem:[%s1477 + $0xa88] sm:$0xff]
        %v1906 = vld [vmem:[%s1477 + $0xa90] sm:$0xff]
        %v1907 = vld [vmem:[%s1477 + $0xa98] sm:$0xff]
        %v1908 = vld [vmem:[%s1477 + $0xaa0] sm:$0xff]
        %v1909 = vld [vmem:[%s1477 + $0xaa8] sm:$0xff]
        %v1910 = vld [vmem:[%s1477 + $0xab0] sm:$0xff]
        %v1911 = vld [vmem:[%s1477 + $0xab8] sm:$0xff]
        %v1912 = vld [vmem:[%s1477 + $0xac0] sm:$0xff]
        %v1913 = vld [vmem:[%s1477 + $0xac8] sm:$0xff]
        %v1914 = vld [vmem:[%s1477 + $0xad0] sm:$0xff]
        %v1915 = vld [vmem:[%s1477 + $0xad8] sm:$0xff]
        %v1916 = vld [vmem:[%s1477 + $0xae0] sm:$0xff]
        %v1917 = vld [vmem:[%s1477 + $0xae8] sm:$0xff]
        %v1918 = vld [vmem:[%s1477 + $0xaf0] sm:$0xff]
        %v1919 = vld [vmem:[%s1477 + $0xaf8] sm:$0xff]
        %v1920 = vld [vmem:[%s1477 + $0xb00] sm:$0xff]
        %v1921 = vld [vmem:[%s1477 + $0xb08] sm:$0xff]
        %v1922 = vld [vmem:[%s1477 + $0xb10] sm:$0xff]
        %v1923 = vld [vmem:[%s1477 + $0xb18] sm:$0xff]
        %v1924 = vld [vmem:[%s1477 + $0xb20] sm:$0xff]
        %v1925 = vld [vmem:[%s1477 + $0xb28] sm:$0xff]
        %v1926 = vld [vmem:[%s1477 + $0xb30] sm:$0xff]
        %v1927 = vld [vmem:[%s1477 + $0xb38] sm:$0xff]
        %v1928 = vld [vmem:[%s1477 + $0xb40] sm:$0xff]
        %v1929 = vld [vmem:[%s1477 + $0xb48] sm:$0xff]
        %v1930 = vld [vmem:[%s1477 + $0xb50] sm:$0xff]
        %v1931 = vld [vmem:[%s1477 + $0xb58] sm:$0xff]
        %v1932 = vld [vmem:[%s1477 + $0xb60] sm:$0xff]
        %v1933 = vld [vmem:[%s1477 + $0xb68] sm:$0xff]
        %v1934 = vld [vmem:[%s1477 + $0xb70] sm:$0xff]
        %v1935 = vld [vmem:[%s1477 + $0xb78] sm:$0xff]
        %v1936 = vld [vmem:[%s1477 + $0xb80] sm:$0xff]
        %v1937 = vld [vmem:[%s1477 + $0xb88] sm:$0xff]
        %v1938 = vld [vmem:[%s1477 + $0xb90] sm:$0xff]
        %v1939 = vld [vmem:[%s1477 + $0xb98] sm:$0xff]
        %v1940 = vld [vmem:[%s1477 + $0xba0] sm:$0xff]
        %v1941 = vld [vmem:[%s1477 + $0xba8] sm:$0xff]
        %v1942 = vld [vmem:[%s1477 + $0xbb0] sm:$0xff]
        %v1943 = vld [vmem:[%s1477 + $0xbb8] sm:$0xff]
        %v1944 = vld [vmem:[%s1477 + $0xbc0] sm:$0xff]
        %v1945 = vld [vmem:[%s1477 + $0xbc8] sm:$0xff]
        %v1946 = vld [vmem:[%s1477 + $0xbd0] sm:$0xff]
        %v1947 = vld [vmem:[%s1477 + $0xbd8] sm:$0xff]
        %v1948 = vld [vmem:[%s1477 + $0xbe0] sm:$0xff]
        %v1949 = vld [vmem:[%s1477 + $0xbe8] sm:$0xff]
        %v1950 = vld [vmem:[%s1477 + $0xbf0] sm:$0xff]
        %v1951 = vld [vmem:[%s1477 + $0xbf8] sm:$0xff]
        %v1952 = vld [vmem:[%s1477 + $0xc00] sm:$0xff]
        %v1953 = vld [vmem:[%s1477 + $0xc08] sm:$0xff]
        %v1954 = vld [vmem:[%s1477 + $0xc10] sm:$0xff]
        %v1955 = vld [vmem:[%s1477 + $0xc18] sm:$0xff]
        %v1956 = vld [vmem:[%s1477 + $0xc20] sm:$0xff]
        %v1957 = vld [vmem:[%s1477 + $0xc28] sm:$0xff]
        %v1958 = vld [vmem:[%s1477 + $0xc30] sm:$0xff]
        %v1959 = vld [vmem:[%s1477 + $0xc38] sm:$0xff]
        %v1960 = vld [vmem:[%s1477 + $0xc40] sm:$0xff]
        %v1961 = vld [vmem:[%s1477 + $0xc48] sm:$0xff]
        %v1962 = vld [vmem:[%s1477 + $0xc50] sm:$0xff]
        %v1963 = vld [vmem:[%s1477 + $0xc58] sm:$0xff]
        %v1964 = vld [vmem:[%s1477 + $0xc60] sm:$0xff]
        %v1965 = vld [vmem:[%s1477 + $0xc68] sm:$0xff]
        %v1966 = vld [vmem:[%s1477 + $0xc70] sm:$0xff]
        %v1967 = vld [vmem:[%s1477 + $0xc78] sm:$0xff]
        %v1968 = vld [vmem:[%s1477 + $0xc80] sm:$0xff]
        %v1969 = vld [vmem:[%s1477 + $0xc88] sm:$0xff]
        %v1970 = vld [vmem:[%s1477 + $0xc90] sm:$0xff]
        %v1971 = vld [vmem:[%s1477 + $0xc98] sm:$0xff]
        %v1972 = vld [vmem:[%s1477 + $0xca0] sm:$0xff]
        %v1973 = vld [vmem:[%s1477 + $0xca8] sm:$0xff]
        %v1974 = vld [vmem:[%s1477 + $0xcb0] sm:$0xff]
        %v1975 = vld [vmem:[%s1477 + $0xcb8] sm:$0xff]
        %v1976 = vld [vmem:[%s1477 + $0xcc0] sm:$0xff]
        %v1977 = vld [vmem:[%s1477 + $0xcc8] sm:$0xff]
        %v1978 = vld [vmem:[%s1477 + $0xcd0] sm:$0xff]
        %v1979 = vld [vmem:[%s1477 + $0xcd8] sm:$0xff]
        %v1980 = vld [vmem:[%s1477 + $0xce0] sm:$0xff]
        %v1981 = vld [vmem:[%s1477 + $0xce8] sm:$0xff]
        %v1982 = vld [vmem:[%s1477 + $0xcf0] sm:$0xff]
        %v1983 = vld [vmem:[%s1477 + $0xcf8] sm:$0xff]
        %v1984 = vld [vmem:[%s1477 + $0xd00] sm:$0xff]
        %v1985 = vld [vmem:[%s1477 + $0xd08] sm:$0xff]
        %v1986 = vld [vmem:[%s1477 + $0xd10] sm:$0xff]
        %v1987 = vld [vmem:[%s1477 + $0xd18] sm:$0xff]
        %v1988 = vld [vmem:[%s1477 + $0xd20] sm:$0xff]
        %v1989 = vld [vmem:[%s1477 + $0xd28] sm:$0xff]
        %v1990 = vld [vmem:[%s1477 + $0xd30] sm:$0xff]
        %v1991 = vld [vmem:[%s1477 + $0xd38] sm:$0xff]
        %v1992 = vld [vmem:[%s1477 + $0xd40] sm:$0xff]
        %v1993 = vld [vmem:[%s1477 + $0xd48] sm:$0xff]
        %v1994 = vld [vmem:[%s1477 + $0xd50] sm:$0xff]
        %v1995 = vld [vmem:[%s1477 + $0xd58] sm:$0xff]
        %v1996 = vld [vmem:[%s1477 + $0xd60] sm:$0xff]
        %v1997 = vld [vmem:[%s1477 + $0xd68] sm:$0xff]
        %v1998 = vld [vmem:[%s1477 + $0xd70] sm:$0xff]
        %v1999 = vld [vmem:[%s1477 + $0xd78] sm:$0xff]
        %v2000 = vld [vmem:[%s1477 + $0xd80] sm:$0xff]
        %v2001 = vld [vmem:[%s1477 + $0xd88] sm:$0xff]
        %v2002 = vld [vmem:[%s1477 + $0xd90] sm:$0xff]
        %v2003 = vld [vmem:[%s1477 + $0xd98] sm:$0xff]
        %v2004 = vld [vmem:[%s1477 + $0xda0] sm:$0xff]
        %v2005 = vld [vmem:[%s1477 + $0xda8] sm:$0xff]
        %v2006 = vld [vmem:[%s1477 + $0xdb0] sm:$0xff]
        %v2007 = vld [vmem:[%s1477 + $0xdb8] sm:$0xff]
        %v2008 = vld [vmem:[%s1477 + $0xdc0] sm:$0xff]
        %v2009 = vld [vmem:[%s1477 + $0xdc8] sm:$0xff]
        %v2010 = vld [vmem:[%s1477 + $0xdd0] sm:$0xff]
        %v2011 = vld [vmem:[%s1477 + $0xdd8] sm:$0xff]
        %v2012 = vld [vmem:[%s1477 + $0xde0] sm:$0xff]
        %v2013 = vld [vmem:[%s1477 + $0xde8] sm:$0xff]
        %v2014 = vld [vmem:[%s1477 + $0xdf0] sm:$0xff]
        %v2015 = vld [vmem:[%s1477 + $0xdf8] sm:$0xff]
        %v2016 = vld [vmem:[%s1477 + $0xe00] sm:$0xff]
        %v2017 = vld [vmem:[%s1477 + $0xe08] sm:$0xff]
        %v2018 = vld [vmem:[%s1477 + $0xe10] sm:$0xff]
        %v2019 = vld [vmem:[%s1477 + $0xe18] sm:$0xff]
        %v2020 = vld [vmem:[%s1477 + $0xe20] sm:$0xff]
        %v2021 = vld [vmem:[%s1477 + $0xe28] sm:$0xff]
        %v2022 = vld [vmem:[%s1477 + $0xe30] sm:$0xff]
        %v2023 = vld [vmem:[%s1477 + $0xe38] sm:$0xff]
        %v2024 = vld [vmem:[%s1477 + $0xe40] sm:$0xff]
        %v2025 = vld [vmem:[%s1477 + $0xe48] sm:$0xff]
        %v2026 = vld [vmem:[%s1477 + $0xe50] sm:$0xff]
        %v2027 = vld [vmem:[%s1477 + $0xe58] sm:$0xff]
        %v2028 = vld [vmem:[%s1477 + $0xe60] sm:$0xff]
        %v2029 = vld [vmem:[%s1477 + $0xe68] sm:$0xff]
        %v2030 = vld [vmem:[%s1477 + $0xe70] sm:$0xff]
        %v2031 = vld [vmem:[%s1477 + $0xe78] sm:$0xff]
        %v2032 = vld [vmem:[%s1477 + $0xe80] sm:$0xff]
        %v2033 = vld [vmem:[%s1477 + $0xe88] sm:$0xff]
        %v2034 = vld [vmem:[%s1477 + $0xe90] sm:$0xff]
        %v2035 = vld [vmem:[%s1477 + $0xe98] sm:$0xff]
        %v2036 = vld [vmem:[%s1477 + $0xea0] sm:$0xff]
        %v2037 = vld [vmem:[%s1477 + $0xea8] sm:$0xff]
        %v2038 = vld [vmem:[%s1477 + $0xeb0] sm:$0xff]
        %v2039 = vld [vmem:[%s1477 + $0xeb8] sm:$0xff]
        %v2040 = vld [vmem:[%s1477 + $0xec0] sm:$0xff]
        %v2041 = vld [vmem:[%s1477 + $0xec8] sm:$0xff]
        %v2042 = vld [vmem:[%s1477 + $0xed0] sm:$0xff]
        %v2043 = vld [vmem:[%s1477 + $0xed8] sm:$0xff]
        %v2044 = vld [vmem:[%s1477 + $0xee0] sm:$0xff]
        %v2045 = vld [vmem:[%s1477 + $0xee8] sm:$0xff]
        %v2046 = vld [vmem:[%s1477 + $0xef0] sm:$0xff]
        %v2047 = vld [vmem:[%s1477 + $0xef8] sm:$0xff]
        %v2048 = vld [vmem:[%s1477 + $0xf00] sm:$0xff]
        %v2049 = vld [vmem:[%s1477 + $0xf08] sm:$0xff]
        %v2050 = vld [vmem:[%s1477 + $0xf10] sm:$0xff]
        %v2051 = vld [vmem:[%s1477 + $0xf18] sm:$0xff]
        %v2052 = vld [vmem:[%s1477 + $0xf20] sm:$0xff]
        %v2053 = vld [vmem:[%s1477 + $0xf28] sm:$0xff]
        %v2054 = vld [vmem:[%s1477 + $0xf30] sm:$0xff]
        %v2055 = vld [vmem:[%s1477 + $0xf38] sm:$0xff]
        %v2056 = vld [vmem:[%s1477 + $0xf40] sm:$0xff]
        %v2057 = vld [vmem:[%s1477 + $0xf48] sm:$0xff]
        %v2058 = vld [vmem:[%s1477 + $0xf50] sm:$0xff]
        %v2059 = vld [vmem:[%s1477 + $0xf58] sm:$0xff]
        %v2060 = vld [vmem:[%s1477 + $0xf60] sm:$0xff]
        %v2061 = vld [vmem:[%s1477 + $0xf68] sm:$0xff]
        %v2062 = vld [vmem:[%s1477 + $0xf70] sm:$0xff]
        %v2063 = vld [vmem:[%s1477 + $0xf78] sm:$0xff]
        %v2064 = vld [vmem:[%s1477 + $0xf80] sm:$0xff]
        %v2065 = vld [vmem:[%s1477 + $0xf88] sm:$0xff]
        %v2066 = vld [vmem:[%s1477 + $0xf90] sm:$0xff]
        %v2067 = vld [vmem:[%s1477 + $0xf98] sm:$0xff]
        %v2068 = vld [vmem:[%s1477 + $0xfa0] sm:$0xff]
        %v2069 = vld [vmem:[%s1477 + $0xfa8] sm:$0xff]
        %v2070 = vld [vmem:[%s1477 + $0xfb0] sm:$0xff]
        %v2071 = vld [vmem:[%s1477 + $0xfb8] sm:$0xff]
        %v2072 = vld [vmem:[%s1477 + $0xfc0] sm:$0xff]
        %v2073 = vld [vmem:[%s1477 + $0xfc8] sm:$0xff]
        %v2074 = vld [vmem:[%s1477 + $0xfd0] sm:$0xff]
        %v2075 = vld [vmem:[%s1477 + $0xfd8] sm:$0xff]
        %v2076 = vld [vmem:[%s1477 + $0xfe0] sm:$0xff]
        %v2077 = vld [vmem:[%s1477 + $0xfe8] sm:$0xff]
        %v2078 = vld [vmem:[%s1477 + $0xff0] sm:$0xff]
        %v2079 = vld [vmem:[%s1477 + $0xff8] sm:$0xff]
        %v2080 = vld [vmem:[%s1477 + $0x1000] sm:$0xff]
        %v2081 = vld [vmem:[%s1477 + $0x1008] sm:$0xff]
        %v2082 = vld [vmem:[%s1477 + $0x1010] sm:$0xff]
        %v2083 = vld [vmem:[%s1477 + $0x1018] sm:$0xff]
        %v2084 = vld [vmem:[%s1477 + $0x1020] sm:$0xff]
        %v2085 = vld [vmem:[%s1477 + $0x1028] sm:$0xff]
        %v2086 = vld [vmem:[%s1477 + $0x1030] sm:$0xff]
        %v2087 = vld [vmem:[%s1477 + $0x1038] sm:$0xff]
        %v2088 = vld [vmem:[%s1477 + $0x1040] sm:$0xff]
        %v2089 = vld [vmem:[%s1477 + $0x1048] sm:$0xff]
        %v2090 = vld [vmem:[%s1477 + $0x1050] sm:$0xff]
        %v2091 = vld [vmem:[%s1477 + $0x1058] sm:$0xff]
        %v2092 = vld [vmem:[%s1477 + $0x1060] sm:$0xff]
        %v2093 = vld [vmem:[%s1477 + $0x1068] sm:$0xff]
        %v2094 = vld [vmem:[%s1477 + $0x1070] sm:$0xff]
        %v2095 = vld [vmem:[%s1477 + $0x1078] sm:$0xff]
        %v2096 = vld [vmem:[%s1477 + $0x1080] sm:$0xff]
        %v2097 = vld [vmem:[%s1477 + $0x1088] sm:$0xff]
        %v2098 = vld [vmem:[%s1477 + $0x1090] sm:$0xff]
        %v2099 = vld [vmem:[%s1477 + $0x1098] sm:$0xff]
        %v2100 = vld [vmem:[%s1477 + $0x10a0] sm:$0xff]
        %v2101 = vld [vmem:[%s1477 + $0x10a8] sm:$0xff]
        %v2102 = vld [vmem:[%s1477 + $0x10b0] sm:$0xff]
        %v2103 = vld [vmem:[%s1477 + $0x10b8] sm:$0xff]
        %v2104 = vld [vmem:[%s1477 + $0x10c0] sm:$0xff]
        %v2105 = vld [vmem:[%s1477 + $0x10c8] sm:$0xff]
        %v2106 = vld [vmem:[%s1477 + $0x10d0] sm:$0xff]
        %v2107 = vld [vmem:[%s1477 + $0x10d8] sm:$0xff]
        %v2108 = vld [vmem:[%s1477 + $0x10e0] sm:$0xff]
        %v2109 = vld [vmem:[%s1477 + $0x10e8] sm:$0xff]
        %v2110 = vld [vmem:[%s1477 + $0x10f0] sm:$0xff]
        %v2111 = vld [vmem:[%s1477 + $0x10f8] sm:$0xff]
        %v2112 = vld [vmem:[%s1477 + $0x1100] sm:$0xff]
        %v2113 = vld [vmem:[%s1477 + $0x1108] sm:$0xff]
        %v2114 = vld [vmem:[%s1477 + $0x1110] sm:$0xff]
        %v2115 = vld [vmem:[%s1477 + $0x1118] sm:$0xff]
        %v2116 = vld [vmem:[%s1477 + $0x1120] sm:$0xff]
        %v2117 = vld [vmem:[%s1477 + $0x1128] sm:$0xff]
        %v2118 = vld [vmem:[%s1477 + $0x1130] sm:$0xff]
        %v2119 = vld [vmem:[%s1477 + $0x1138] sm:$0xff]
        %v2120 = vld [vmem:[%s1477 + $0x1140] sm:$0xff]
        %v2121 = vld [vmem:[%s1477 + $0x1148] sm:$0xff]
        %v2122 = vld [vmem:[%s1477 + $0x1150] sm:$0xff]
        %v2123 = vld [vmem:[%s1477 + $0x1158] sm:$0xff]
        %v2124 = vld [vmem:[%s1477 + $0x1160] sm:$0xff]
        %v2125 = vld [vmem:[%s1477 + $0x1168] sm:$0xff]
        %v2126 = vld [vmem:[%s1477 + $0x1170] sm:$0xff]
        %v2127 = vld [vmem:[%s1477 + $0x1178] sm:$0xff]
        %v2128 = vld [vmem:[%s1477 + $0x1180] sm:$0xff]
        %v2129 = vld [vmem:[%s1477 + $0x1188] sm:$0xff]
        %v2130 = vld [vmem:[%s1477 + $0x1190] sm:$0xff]
        %v2131 = vld [vmem:[%s1477 + $0x1198] sm:$0xff]
        %v2132 = vld [vmem:[%s1477 + $0x11a0] sm:$0xff]
        %v2133 = vld [vmem:[%s1477 + $0x11a8] sm:$0xff]
        %v2134 = vld [vmem:[%s1477 + $0x11b0] sm:$0xff]
        %v2135 = vld [vmem:[%s1477 + $0x11b8] sm:$0xff]
        %v2136 = vld [vmem:[%s1477 + $0x11c0] sm:$0xff]
        %v2137 = vld [vmem:[%s1477 + $0x11c8] sm:$0xff]
        %v2138 = vld [vmem:[%s1477 + $0x11d0] sm:$0xff]
        %v2139 = vld [vmem:[%s1477 + $0x11d8] sm:$0xff]
        %v2140 = vld [vmem:[%s1477 + $0x11e0] sm:$0xff]
        %v2141 = vld [vmem:[%s1477 + $0x11e8] sm:$0xff]
        %v2142 = vld [vmem:[%s1477 + $0x11f0] sm:$0xff]
        %v2143 = vld [vmem:[%s1477 + $0x11f8] sm:$0xff]
        %v2144 = vld [vmem:[%s1536] sm:$0x3f]
        %v2146 = vlaneseq
        %v2147 = vshrl.u32 %v2146, 7
        %v2148 = vsub.s32 0, %v2147
        %v2149 = vrot.slane %v2144, %v2148
        %v2150 = vlaneseq
        %v2151 = vshrl.u32 %v2150, 7
        %v2152 = vsub.s32 1, %v2151
        %v2153 = vrot.slane %v2144, %v2152
        %v2154 = vlaneseq
        %v2155 = vshrl.u32 %v2154, 7
        %v2156 = vsub.s32 2, %v2155
        %v2157 = vrot.slane %v2144, %v2156
        %v2158 = vlaneseq
        %v2159 = vshrl.u32 %v2158, 7
        %v2160 = vsub.s32 3, %v2159
        %v2161 = vrot.slane %v2144, %v2160
        %v2162 = vlaneseq
        %v2163 = vshrl.u32 %v2162, 7
        %v2164 = vsub.s32 4, %v2163
        %v2165 = vrot.slane %v2144, %v2164
        %v2166 = vlaneseq
        %v2167 = vshrl.u32 %v2166, 7
        %v2168 = vsub.s32 5, %v2167
        %v2169 = vrot.slane %v2144, %v2168
        %2176 = vmatprep.subr.mxu0 %v1569
        %2177 = vmatpush1.msra.mxu0 %v1568
        %2178 = vmatprep.subr.mxu0 %v1575
        %2179 = vmatpush1.msra.mxu0 %v1574
        %2180 = vmatprep.subr.mxu0 %v1581
        %2181 = vmatpush1.msra.mxu0 %v1580
        %2182 = vmatprep.subr.mxu0 %v1587
        %2183 = vmatpush1.msra.mxu0 %v1586
        %2184 = vmatprep.subr.mxu0 %v1593
        %2185 = vmatpush1.msra.mxu0 %v1592
        %2186 = vmatprep.subr.mxu0 %v1599
        %2187 = vmatpush1.msra.mxu0 %v1598
        %2188 = vmatprep.subr.mxu0 %v1605
        %2189 = vmatpush1.msra.mxu0 %v1604
        %2190 = vmatprep.subr.mxu0 %v1611
        %2191 = vmatpush1.msra.mxu0 %v1610
        %2192 = vmatprep.subr.mxu0 %v1617
        %2193 = vmatpush1.msra.mxu0 %v1616
        %2194 = vmatprep.subr.mxu0 %v1623
        %2195 = vmatpush1.msra.mxu0 %v1622
        %2196 = vmatprep.subr.mxu0 %v1629
        %2197 = vmatpush1.msra.mxu0 %v1628
        %2198 = vmatprep.subr.mxu0 %v1635
        %2199 = vmatpush1.msra.mxu0 %v1634
        %2200 = vmatprep.subr.mxu0 %v1641
        %2201 = vmatpush1.msra.mxu0 %v1640
        %2202 = vmatprep.subr.mxu0 %v1647
        %2203 = vmatpush1.msra.mxu0 %v1646
        %2204 = vmatprep.subr.mxu0 %v1653
        %2205 = vmatpush1.msra.mxu0 %v1652
        %2206 = vmatprep.subr.mxu0 %v1659
        %2207 = vmatpush1.msra.mxu0 %v1658
        %2208 = vmatprep.subr.mxu0 %v1665
        %2209 = vmatpush1.msra.mxu0 %v1664
        %2210 = vmatprep.subr.mxu0 %v1671
        %2211 = vmatpush1.msra.mxu0 %v1670
        %2212 = vmatprep.subr.mxu0 %v1677
        %2213 = vmatpush1.msra.mxu0 %v1676
        %2214 = vmatprep.subr.mxu0 %v1683
        %2215 = vmatpush1.msra.mxu0 %v1682
        %2216 = vmatprep.subr.mxu0 %v1689
        %2217 = vmatpush1.msra.mxu0 %v1688
        %2218 = vmatprep.subr.mxu0 %v1695
        %2219 = vmatpush1.msra.mxu0 %v1694
        %2220 = vmatprep.subr.mxu0 %v1701
        %2221 = vmatpush1.msra.mxu0 %v1700
        %2222 = vmatprep.subr.mxu0 %v1707
        %2223 = vmatpush1.msra.mxu0 %v1706
        %2224 = vmatprep.subr.mxu0 %v1713
        %2225 = vmatpush1.msra.mxu0 %v1712
        %2226 = vmatprep.subr.mxu0 %v1719
        %2227 = vmatpush1.msra.mxu0 %v1718
        %2228 = vmatprep.subr.mxu0 %v1725
        %2229 = vmatpush1.msra.mxu0 %v1724
        %2230 = vmatprep.subr.mxu0 %v1731
        %2231 = vmatpush1.msra.mxu0 %v1730
        %2232 = vmatprep.subr.mxu0 %v1737
        %2233 = vmatpush1.msra.mxu0 %v1736
        %2234 = vmatprep.subr.mxu0 %v1743
        %2235 = vmatpush1.msra.mxu0 %v1742
        %2236 = vmatprep.subr.mxu0 %v1749
        %2237 = vmatpush1.msra.mxu0 %v1748
        %2238 = vmatprep.subr.mxu0 %v1755
        %2239 = vmatpush1.msra.mxu0 %v1754
        %2240 = vmatprep.mubr.f32.mxu0 %v1557
        %2241 = vmatmul.mubr.f32.gmra.mrb[0].mxu0 %v1556
        %v2242 = vpop.f32.mrb[0].mxu0
        %v2243 = vadd.f32 %v2149, %v2242
        %v2244 = vpop.f32.mrb[0].mxu0
        %v2245 = vadd.f32 %v2153, %v2244
        %2246 = vmatprep.mubr.f32.mxu0 %v1563
        %2247 = vmatmul.mubr.f32.gmra.mrb[0].mxu0 %v1562
        %v2248 = vpop.f32.mrb[0].mxu0
        %v2249 = vadd.f32 %v2149, %v2248
        %v2250 = vpop.f32.mrb[0].mxu0
        %v2251 = vadd.f32 %v2153, %v2250
        %2252 = vdwg.mxu0
        %2253 = vmatprep.subr.mxu0 %v1761
        %2254 = vmatpush1.msra.mxu0 %v1760
        %2255 = vmatprep.subr.mxu0 %v1767
        %2256 = vmatpush1.msra.mxu0 %v1766
        %2257 = vmatprep.subr.mxu0 %v1773
        %2258 = vmatpush1.msra.mxu0 %v1772
        %2259 = vmatprep.subr.mxu0 %v1779
        %2260 = vmatpush1.msra.mxu0 %v1778
        %2261 = vmatprep.subr.mxu0 %v1785
        %2262 = vmatpush1.msra.mxu0 %v1784
        %2263 = vmatprep.subr.mxu0 %v1791
        %2264 = vmatpush1.msra.mxu0 %v1790
        %2265 = vmatprep.subr.mxu0 %v1797
        %2266 = vmatpush1.msra.mxu0 %v1796
        %2267 = vmatprep.subr.mxu0 %v1803
        %2268 = vmatpush1.msra.mxu0 %v1802
        %2269 = vmatprep.subr.mxu0 %v1809
        %2270 = vmatpush1.msra.mxu0 %v1808
        %2271 = vmatprep.subr.mxu0 %v1815
        %2272 = vmatpush1.msra.mxu0 %v1814
        %2273 = vmatprep.subr.mxu0 %v1821
        %2274 = vmatpush1.msra.mxu0 %v1820
        %2275 = vmatprep.subr.mxu0 %v1827
        %2276 = vmatpush1.msra.mxu0 %v1826
        %2277 = vmatprep.subr.mxu0 %v1833
        %2278 = vmatpush1.msra.mxu0 %v1832
        %2279 = vmatprep.subr.mxu0 %v1839
        %2280 = vmatpush1.msra.mxu0 %v1838
        %2281 = vmatprep.subr.mxu0 %v1845
        %2282 = vmatpush1.msra.mxu0 %v1844
        %2283 = vmatprep.subr.mxu0 %v1851
        %2284 = vmatpush1.msra.mxu0 %v1850
        %2285 = vmatprep.subr.mxu0 %v1857
        %2286 = vmatpush1.msra.mxu0 %v1856
        %2287 = vmatprep.subr.mxu0 %v1863
        %2288 = vmatpush1.msra.mxu0 %v1862
        %2289 = vmatprep.subr.mxu0 %v1869
        %2290 = vmatpush1.msra.mxu0 %v1868
        %2291 = vmatprep.subr.mxu0 %v1875
        %2292 = vmatpush1.msra.mxu0 %v1874
        %2293 = vmatprep.subr.mxu0 %v1881
        %2294 = vmatpush1.msra.mxu0 %v1880
        %2295 = vmatprep.subr.mxu0 %v1887
        %2296 = vmatpush1.msra.mxu0 %v1886
        %2297 = vmatprep.subr.mxu0 %v1893
        %2298 = vmatpush1.msra.mxu0 %v1892
        %2299 = vmatprep.subr.mxu0 %v1899
        %2300 = vmatpush1.msra.mxu0 %v1898
        %2301 = vmatprep.subr.mxu0 %v1905
        %2302 = vmatpush1.msra.mxu0 %v1904
        %2303 = vmatprep.subr.mxu0 %v1911
        %2304 = vmatpush1.msra.mxu0 %v1910
        %2305 = vmatprep.subr.mxu0 %v1917
        %2306 = vmatpush1.msra.mxu0 %v1916
        %2307 = vmatprep.subr.mxu0 %v1923
        %2308 = vmatpush1.msra.mxu0 %v1922
        %2309 = vmatprep.subr.mxu0 %v1929
        %2310 = vmatpush1.msra.mxu0 %v1928
        %2311 = vmatprep.subr.mxu0 %v1935
        %2312 = vmatpush1.msra.mxu0 %v1934
        %2313 = vmatprep.subr.mxu0 %v1941
        %2314 = vmatpush1.msra.mxu0 %v1940
        %2315 = vmatprep.subr.mxu0 %v1947
        %2316 = vmatpush1.msra.mxu0 %v1946
        %2317 = vmatprep.mubr.f32.mxu0 %v1559
        %2318 = vmatmul.mubr.f32.gmra.mrb[0].mxu0 %v1558
        %v2319 = vpop.f32.mrb[0].mxu0
        %v2320 = vadd.f32 %v2243, %v2319
        %v2321 = vpop.f32.mrb[0].mxu0
        %v2322 = vadd.f32 %v2245, %v2321
        %2323 = vmatprep.mubr.f32.mxu0 %v1565
        %2324 = vmatmul.mubr.f32.gmra.mrb[0].mxu0 %v1564
        %v2325 = vpop.f32.mrb[0].mxu0
        %v2326 = vadd.f32 %v2249, %v2325
        %v2327 = vpop.f32.mrb[0].mxu0
        %v2328 = vadd.f32 %v2251, %v2327
        %2329 = vdwg.mxu0
        %2330 = vmatprep.subr.mxu0 %v1953
        %2331 = vmatpush1.msra.mxu0 %v1952
        %2332 = vmatprep.subr.mxu0 %v1959
        %2333 = vmatpush1.msra.mxu0 %v1958
        %2334 = vmatprep.subr.mxu0 %v1965
        %2335 = vmatpush1.msra.mxu0 %v1964
        %2336 = vmatprep.subr.mxu0 %v1971
        %2337 = vmatpush1.msra.mxu0 %v1970
        %2338 = vmatprep.subr.mxu0 %v1977
        %2339 = vmatpush1.msra.mxu0 %v1976
        %2340 = vmatprep.subr.mxu0 %v1983
        %2341 = vmatpush1.msra.mxu0 %v1982
        %2342 = vmatprep.subr.mxu0 %v1989
        %2343 = vmatpush1.msra.mxu0 %v1988
        %2344 = vmatprep.subr.mxu0 %v1995
        %2345 = vmatpush1.msra.mxu0 %v1994
        %2346 = vmatprep.subr.mxu0 %v2001
        %2347 = vmatpush1.msra.mxu0 %v2000
        %2348 = vmatprep.subr.mxu0 %v2007
        %2349 = vmatpush1.msra.mxu0 %v2006
        %2350 = vmatprep.subr.mxu0 %v2013
        %2351 = vmatpush1.msra.mxu0 %v2012
        %2352 = vmatprep.subr.mxu0 %v2019
        %2353 = vmatpush1.msra.mxu0 %v2018
        %2354 = vmatprep.subr.mxu0 %v2025
        %2355 = vmatpush1.msra.mxu0 %v2024
        %2356 = vmatprep.subr.mxu0 %v2031
        %2357 = vmatpush1.msra.mxu0 %v2030
        %2358 = vmatprep.subr.mxu0 %v2037
        %2359 = vmatpush1.msra.mxu0 %v2036
        %2360 = vmatprep.subr.mxu0 %v2043
        %2361 = vmatpush1.msra.mxu0 %v2042
        %2362 = vmatprep.subr.mxu0 %v2049
        %2363 = vmatpush1.msra.mxu0 %v2048
        %2364 = vmatprep.subr.mxu0 %v2055
        %2365 = vmatpush1.msra.mxu0 %v2054
        %2366 = vmatprep.subr.mxu0 %v2061
        %2367 = vmatpush1.msra.mxu0 %v2060
        %2368 = vmatprep.subr.mxu0 %v2067
        %2369 = vmatpush1.msra.mxu0 %v2066
        %2370 = vmatprep.subr.mxu0 %v2073
        %2371 = vmatpush1.msra.mxu0 %v2072
        %2372 = vmatprep.subr.mxu0 %v2079
        %2373 = vmatpush1.msra.mxu0 %v2078
        %2374 = vmatprep.subr.mxu0 %v2085
        %2375 = vmatpush1.msra.mxu0 %v2084
        %2376 = vmatprep.subr.mxu0 %v2091
        %2377 = vmatpush1.msra.mxu0 %v2090
        %2378 = vmatprep.subr.mxu0 %v2097
        %2379 = vmatpush1.msra.mxu0 %v2096
        %2380 = vmatprep.subr.mxu0 %v2103
        %2381 = vmatpush1.msra.mxu0 %v2102
        %2382 = vmatprep.subr.mxu0 %v2109
        %2383 = vmatpush1.msra.mxu0 %v2108
        %2384 = vmatprep.subr.mxu0 %v2115
        %2385 = vmatpush1.msra.mxu0 %v2114
        %2386 = vmatprep.subr.mxu0 %v2121
        %2387 = vmatpush1.msra.mxu0 %v2120
        %2388 = vmatprep.subr.mxu0 %v2127
        %2389 = vmatpush1.msra.mxu0 %v2126
        %2390 = vmatprep.subr.mxu0 %v2133
        %2391 = vmatpush1.msra.mxu0 %v2132
        %2392 = vmatprep.subr.mxu0 %v2139
        %2393 = vmatpush1.msra.mxu0 %v2138
        %2394 = vmatprep.mubr.f32.mxu0 %v1561
        %2395 = vmatmul.mubr.f32.gmra.mrb[0].mxu0 %v1560
        %v2396 = vpop.f32.mrb[0].mxu0
        %v2397 = vadd.f32 %v2320, %v2396
        %v2398 = vpop.f32.mrb[0].mxu0
        %v2399 = vadd.f32 %v2322, %v2398
        %2400 = vmatprep.mubr.f32.mxu0 %v1567
        %2401 = vmatmul.mubr.f32.gmra.mrb[0].mxu0 %v1566
        %v2402 = vpop.f32.mrb[0].mxu0
        %v2403 = vadd.f32 %v2326, %v2402
        %v2404 = vpop.f32.mrb[0].mxu0
        %v2405 = vadd.f32 %v2328, %v2404
        %2406 = vdwg.mxu0
        %2407 = vmatprep.subr.mxu0 %v1571
        %2408 = vmatpush1.msra.mxu0 %v1570
        %2409 = vmatprep.subr.mxu0 %v1577
        %2410 = vmatpush1.msra.mxu0 %v1576
        %2411 = vmatprep.subr.mxu0 %v1583
        %2412 = vmatpush1.msra.mxu0 %v1582
        %2413 = vmatprep.subr.mxu0 %v1589
        %2414 = vmatpush1.msra.mxu0 %v1588
        %2415 = vmatprep.subr.mxu0 %v1595
        %2416 = vmatpush1.msra.mxu0 %v1594
        %2417 = vmatprep.subr.mxu0 %v1601
        %2418 = vmatpush1.msra.mxu0 %v1600
        %2419 = vmatprep.subr.mxu0 %v1607
        %2420 = vmatpush1.msra.mxu0 %v1606
        %2421 = vmatprep.subr.mxu0 %v1613
        %2422 = vmatpush1.msra.mxu0 %v1612
        %2423 = vmatprep.subr.mxu0 %v1619
        %2424 = vmatpush1.msra.mxu0 %v1618
        %2425 = vmatprep.subr.mxu0 %v1625
        %2426 = vmatpush1.msra.mxu0 %v1624
        %2427 = vmatprep.subr.mxu0 %v1631
        %2428 = vmatpush1.msra.mxu0 %v1630
        %2429 = vmatprep.subr.mxu0 %v1637
        %2430 = vmatpush1.msra.mxu0 %v1636
        %2431 = vmatprep.subr.mxu0 %v1643
        %2432 = vmatpush1.msra.mxu0 %v1642
        %2433 = vmatprep.subr.mxu0 %v1649
        %2434 = vmatpush1.msra.mxu0 %v1648
        %2435 = vmatprep.subr.mxu0 %v1655
        %2436 = vmatpush1.msra.mxu0 %v1654
        %2437 = vmatprep.subr.mxu0 %v1661
        %2438 = vmatpush1.msra.mxu0 %v1660
        %2439 = vmatprep.subr.mxu0 %v1667
        %2440 = vmatpush1.msra.mxu0 %v1666
        %2441 = vmatprep.subr.mxu0 %v1673
        %2442 = vmatpush1.msra.mxu0 %v1672
        %2443 = vmatprep.subr.mxu0 %v1679
        %2444 = vmatpush1.msra.mxu0 %v1678
        %2445 = vmatprep.subr.mxu0 %v1685
        %2446 = vmatpush1.msra.mxu0 %v1684
        %2447 = vmatprep.subr.mxu0 %v1691
        %2448 = vmatpush1.msra.mxu0 %v1690
        %2449 = vmatprep.subr.mxu0 %v1697
        %2450 = vmatpush1.msra.mxu0 %v1696
        %2451 = vmatprep.subr.mxu0 %v1703
        %2452 = vmatpush1.msra.mxu0 %v1702
        %2453 = vmatprep.subr.mxu0 %v1709
        %2454 = vmatpush1.msra.mxu0 %v1708
        %2455 = vmatprep.subr.mxu0 %v1715
        %2456 = vmatpush1.msra.mxu0 %v1714
        %2457 = vmatprep.subr.mxu0 %v1721
        %2458 = vmatpush1.msra.mxu0 %v1720
        %2459 = vmatprep.subr.mxu0 %v1727
        %2460 = vmatpush1.msra.mxu0 %v1726
        %2461 = vmatprep.subr.mxu0 %v1733
        %2462 = vmatpush1.msra.mxu0 %v1732
        %2463 = vmatprep.subr.mxu0 %v1739
        %2464 = vmatpush1.msra.mxu0 %v1738
        %2465 = vmatprep.subr.mxu0 %v1745
        %2466 = vmatpush1.msra.mxu0 %v1744
        %2467 = vmatprep.subr.mxu0 %v1751
        %2468 = vmatpush1.msra.mxu0 %v1750
        %2469 = vmatprep.subr.mxu0 %v1757
        %2470 = vmatpush1.msra.mxu0 %v1756
        %2471 = vmatprep.mubr.f32.mxu0 %v1557
        %2472 = vmatmul.mubr.f32.gmra.mrb[0].mxu0 %v1556
        %v2473 = vpop.f32.mrb[0].mxu0
        %v2474 = vadd.f32 %v2157, %v2473
        %v2475 = vpop.f32.mrb[0].mxu0
        %v2476 = vadd.f32 %v2161, %v2475
        %2477 = vmatprep.mubr.f32.mxu0 %v1563
        %2478 = vmatmul.mubr.f32.gmra.mrb[0].mxu0 %v1562
        %v2479 = vpop.f32.mrb[0].mxu0
        %v2480 = vadd.f32 %v2157, %v2479
        %v2481 = vpop.f32.mrb[0].mxu0
        %v2482 = vadd.f32 %v2161, %v2481
        %2483 = vdwg.mxu0
        %2484 = vmatprep.subr.mxu0 %v1763
        %2485 = vmatpush1.msra.mxu0 %v1762
        %2486 = vmatprep.subr.mxu0 %v1769
        %2487 = vmatpush1.msra.mxu0 %v1768
        %2488 = vmatprep.subr.mxu0 %v1775
        %2489 = vmatpush1.msra.mxu0 %v1774
        %2490 = vmatprep.subr.mxu0 %v1781
        %2491 = vmatpush1.msra.mxu0 %v1780
        %2492 = vmatprep.subr.mxu0 %v1787
        %2493 = vmatpush1.msra.mxu0 %v1786
        %2494 = vmatprep.subr.mxu0 %v1793
        %2495 = vmatpush1.msra.mxu0 %v1792
        %2496 = vmatprep.subr.mxu0 %v1799
        %2497 = vmatpush1.msra.mxu0 %v1798
        %2498 = vmatprep.subr.mxu0 %v1805
        %2499 = vmatpush1.msra.mxu0 %v1804
        %2500 = vmatprep.subr.mxu0 %v1811
        %2501 = vmatpush1.msra.mxu0 %v1810
        %2502 = vmatprep.subr.mxu0 %v1817
        %2503 = vmatpush1.msra.mxu0 %v1816
        %2504 = vmatprep.subr.mxu0 %v1823
        %2505 = vmatpush1.msra.mxu0 %v1822
        %2506 = vmatprep.subr.mxu0 %v1829
        %2507 = vmatpush1.msra.mxu0 %v1828
        %2508 = vmatprep.subr.mxu0 %v1835
        %2509 = vmatpush1.msra.mxu0 %v1834
        %2510 = vmatprep.subr.mxu0 %v1841
        %2511 = vmatpush1.msra.mxu0 %v1840
        %2512 = vmatprep.subr.mxu0 %v1847
        %2513 = vmatpush1.msra.mxu0 %v1846
        %2514 = vmatprep.subr.mxu0 %v1853
        %2515 = vmatpush1.msra.mxu0 %v1852
        %2516 = vmatprep.subr.mxu0 %v1859
        %2517 = vmatpush1.msra.mxu0 %v1858
        %2518 = vmatprep.subr.mxu0 %v1865
        %2519 = vmatpush1.msra.mxu0 %v1864
        %2520 = vmatprep.subr.mxu0 %v1871
        %2521 = vmatpush1.msra.mxu0 %v1870
        %2522 = vmatprep.subr.mxu0 %v1877
        %2523 = vmatpush1.msra.mxu0 %v1876
        %2524 = vmatprep.subr.mxu0 %v1883
        %2525 = vmatpush1.msra.mxu0 %v1882
        %2526 = vmatprep.subr.mxu0 %v1889
        %2527 = vmatpush1.msra.mxu0 %v1888
        %2528 = vmatprep.subr.mxu0 %v1895
        %2529 = vmatpush1.msra.mxu0 %v1894
        %2530 = vmatprep.subr.mxu0 %v1901
        %2531 = vmatpush1.msra.mxu0 %v1900
        %2532 = vmatprep.subr.mxu0 %v1907
        %2533 = vmatpush1.msra.mxu0 %v1906
        %2534 = vmatprep.subr.mxu0 %v1913
        %2535 = vmatpush1.msra.mxu0 %v1912
        %2536 = vmatprep.subr.mxu0 %v1919
        %2537 = vmatpush1.msra.mxu0 %v1918
        %2538 = vmatprep.subr.mxu0 %v1925
        %2539 = vmatpush1.msra.mxu0 %v1924
        %2540 = vmatprep.subr.mxu0 %v1931
        %2541 = vmatpush1.msra.mxu0 %v1930
        %2542 = vmatprep.subr.mxu0 %v1937
        %2543 = vmatpush1.msra.mxu0 %v1936
        %2544 = vmatprep.subr.mxu0 %v1943
        %2545 = vmatpush1.msra.mxu0 %v1942
        %2546 = vmatprep.subr.mxu0 %v1949
        %2547 = vmatpush1.msra.mxu0 %v1948
        %2548 = vmatprep.mubr.f32.mxu0 %v1559
        %2549 = vmatmul.mubr.f32.gmra.mrb[0].mxu0 %v1558
        %v2550 = vpop.f32.mrb[0].mxu0
        %v2551 = vadd.f32 %v2474, %v2550
        %v2552 = vpop.f32.mrb[0].mxu0
        %v2553 = vadd.f32 %v2476, %v2552
        %2554 = vmatprep.mubr.f32.mxu0 %v1565
        %2555 = vmatmul.mubr.f32.gmra.mrb[0].mxu0 %v1564
        %v2556 = vpop.f32.mrb[0].mxu0
        %v2557 = vadd.f32 %v2480, %v2556
        %v2558 = vpop.f32.mrb[0].mxu0
        %v2559 = vadd.f32 %v2482, %v2558
        %2560 = vdwg.mxu0
        %2561 = vmatprep.subr.mxu0 %v1955
        %2562 = vmatpush1.msra.mxu0 %v1954
        %2563 = vmatprep.subr.mxu0 %v1961
        %2564 = vmatpush1.msra.mxu0 %v1960
        %2565 = vmatprep.subr.mxu0 %v1967
        %2566 = vmatpush1.msra.mxu0 %v1966
        %2567 = vmatprep.subr.mxu0 %v1973
        %2568 = vmatpush1.msra.mxu0 %v1972
        %2569 = vmatprep.subr.mxu0 %v1979
        %2570 = vmatpush1.msra.mxu0 %v1978
        %2571 = vmatprep.subr.mxu0 %v1985
        %2572 = vmatpush1.msra.mxu0 %v1984
        %2573 = vmatprep.subr.mxu0 %v1991
        %2574 = vmatpush1.msra.mxu0 %v1990
        %2575 = vmatprep.subr.mxu0 %v1997
        %2576 = vmatpush1.msra.mxu0 %v1996
        %2577 = vmatprep.subr.mxu0 %v2003
        %2578 = vmatpush1.msra.mxu0 %v2002
        %2579 = vmatprep.subr.mxu0 %v2009
        %2580 = vmatpush1.msra.mxu0 %v2008
        %2581 = vmatprep.subr.mxu0 %v2015
        %2582 = vmatpush1.msra.mxu0 %v2014
        %2583 = vmatprep.subr.mxu0 %v2021
        %2584 = vmatpush1.msra.mxu0 %v2020
        %2585 = vmatprep.subr.mxu0 %v2027
        %2586 = vmatpush1.msra.mxu0 %v2026
        %2587 = vmatprep.subr.mxu0 %v2033
        %2588 = vmatpush1.msra.mxu0 %v2032
        %2589 = vmatprep.subr.mxu0 %v2039
        %2590 = vmatpush1.msra.mxu0 %v2038
        %2591 = vmatprep.subr.mxu0 %v2045
        %2592 = vmatpush1.msra.mxu0 %v2044
        %2593 = vmatprep.subr.mxu0 %v2051
        %2594 = vmatpush1.msra.mxu0 %v2050
        %2595 = vmatprep.subr.mxu0 %v2057
        %2596 = vmatpush1.msra.mxu0 %v2056
        %2597 = vmatprep.subr.mxu0 %v2063
        %2598 = vmatpush1.msra.mxu0 %v2062
        %2599 = vmatprep.subr.mxu0 %v2069
        %2600 = vmatpush1.msra.mxu0 %v2068
        %2601 = vmatprep.subr.mxu0 %v2075
        %2602 = vmatpush1.msra.mxu0 %v2074
        %2603 = vmatprep.subr.mxu0 %v2081
        %2604 = vmatpush1.msra.mxu0 %v2080
        %2605 = vmatprep.subr.mxu0 %v2087
        %2606 = vmatpush1.msra.mxu0 %v2086
        %2607 = vmatprep.subr.mxu0 %v2093
        %2608 = vmatpush1.msra.mxu0 %v2092
        %2609 = vmatprep.subr.mxu0 %v2099
        %2610 = vmatpush1.msra.mxu0 %v2098
        %2611 = vmatprep.subr.mxu0 %v2105
        %2612 = vmatpush1.msra.mxu0 %v2104
        %2613 = vmatprep.subr.mxu0 %v2111
        %2614 = vmatpush1.msra.mxu0 %v2110
        %2615 = vmatprep.subr.mxu0 %v2117
        %2616 = vmatpush1.msra.mxu0 %v2116
        %2617 = vmatprep.subr.mxu0 %v2123
        %2618 = vmatpush1.msra.mxu0 %v2122
        %2619 = vmatprep.subr.mxu0 %v2129
        %2620 = vmatpush1.msra.mxu0 %v2128
        %2621 = vmatprep.subr.mxu0 %v2135
        %2622 = vmatpush1.msra.mxu0 %v2134
        %2623 = vmatprep.subr.mxu0 %v2141
        %2624 = vmatpush1.msra.mxu0 %v2140
        %2625 = vmatprep.mubr.f32.mxu0 %v1561
        %2626 = vmatmul.mubr.f32.gmra.mrb[0].mxu0 %v1560
        %v2627 = vpop.f32.mrb[0].mxu0
        %v2628 = vadd.f32 %v2551, %v2627
        %v2629 = vpop.f32.mrb[0].mxu0
        %v2630 = vadd.f32 %v2553, %v2629
        %2631 = vmatprep.mubr.f32.mxu0 %v1567
        %2632 = vmatmul.mubr.f32.gmra.mrb[0].mxu0 %v1566
        %v2633 = vpop.f32.mrb[0].mxu0
        %v2634 = vadd.f32 %v2557, %v2633
        %v2635 = vpop.f32.mrb[0].mxu0
        %v2636 = vadd.f32 %v2559, %v2635
        %2637 = vdwg.mxu0
        %2638 = vmatprep.subr.mxu0 %v1573
        %2639 = vmatpush1.msra.mxu0 %v1572
        %2640 = vmatprep.subr.mxu0 %v1579
        %2641 = vmatpush1.msra.mxu0 %v1578
        %2642 = vmatprep.subr.mxu0 %v1585
        %2643 = vmatpush1.msra.mxu0 %v1584
        %2644 = vmatprep.subr.mxu0 %v1591
        %2645 = vmatpush1.msra.mxu0 %v1590
        %2646 = vmatprep.subr.mxu0 %v1597
        %2647 = vmatpush1.msra.mxu0 %v1596
        %2648 = vmatprep.subr.mxu0 %v1603
        %2649 = vmatpush1.msra.mxu0 %v1602
        %2650 = vmatprep.subr.mxu0 %v1609
        %2651 = vmatpush1.msra.mxu0 %v1608
        %2652 = vmatprep.subr.mxu0 %v1615
        %2653 = vmatpush1.msra.mxu0 %v1614
        %2654 = vmatprep.subr.mxu0 %v1621
        %2655 = vmatpush1.msra.mxu0 %v1620
        %2656 = vmatprep.subr.mxu0 %v1627
        %2657 = vmatpush1.msra.mxu0 %v1626
        %2658 = vmatprep.subr.mxu0 %v1633
        %2659 = vmatpush1.msra.mxu0 %v1632
        %2660 = vmatprep.subr.mxu0 %v1639
        %2661 = vmatpush1.msra.mxu0 %v1638
        %2662 = vmatprep.subr.mxu0 %v1645
        %2663 = vmatpush1.msra.mxu0 %v1644
        %2664 = vmatprep.subr.mxu0 %v1651
        %2665 = vmatpush1.msra.mxu0 %v1650
        %2666 = vmatprep.subr.mxu0 %v1657
        %2667 = vmatpush1.msra.mxu0 %v1656
        %2668 = vmatprep.subr.mxu0 %v1663
        %2669 = vmatpush1.msra.mxu0 %v1662
        %2670 = vmatprep.subr.mxu0 %v1669
        %2671 = vmatpush1.msra.mxu0 %v1668
        %2672 = vmatprep.subr.mxu0 %v1675
        %2673 = vmatpush1.msra.mxu0 %v1674
        %2674 = vmatprep.subr.mxu0 %v1681
        %2675 = vmatpush1.msra.mxu0 %v1680
        %2676 = vmatprep.subr.mxu0 %v1687
        %2677 = vmatpush1.msra.mxu0 %v1686
        %2678 = vmatprep.subr.mxu0 %v1693
        %2679 = vmatpush1.msra.mxu0 %v1692
        %2680 = vmatprep.subr.mxu0 %v1699
        %2681 = vmatpush1.msra.mxu0 %v1698
        %2682 = vmatprep.subr.mxu0 %v1705
        %2683 = vmatpush1.msra.mxu0 %v1704
        %2684 = vmatprep.subr.mxu0 %v1711
        %2685 = vmatpush1.msra.mxu0 %v1710
        %2686 = vmatprep.subr.mxu0 %v1717
        %2687 = vmatpush1.msra.mxu0 %v1716
        %2688 = vmatprep.subr.mxu0 %v1723
        %2689 = vmatpush1.msra.mxu0 %v1722
        %2690 = vmatprep.subr.mxu0 %v1729
        %2691 = vmatpush1.msra.mxu0 %v1728
        %2692 = vmatprep.subr.mxu0 %v1735
        %2693 = vmatpush1.msra.mxu0 %v1734
        %2694 = vmatprep.subr.mxu0 %v1741
        %2695 = vmatpush1.msra.mxu0 %v1740
        %2696 = vmatprep.subr.mxu0 %v1747
        %2697 = vmatpush1.msra.mxu0 %v1746
        %2698 = vmatprep.subr.mxu0 %v1753
        %2699 = vmatpush1.msra.mxu0 %v1752
        %2700 = vmatprep.subr.mxu0 %v1759
        %2701 = vmatpush1.msra.mxu0 %v1758
        %2702 = vmatprep.mubr.f32.mxu0 %v1557
        %2703 = vmatmul.mubr.f32.gmra.mrb[0].mxu0 %v1556
        %v2704 = vpop.f32.mrb[0].mxu0
        %v2705 = vadd.f32 %v2165, %v2704
        %v2706 = vpop.f32.mrb[0].mxu0
        %v2707 = vadd.f32 %v2169, %v2706
        %2708 = vmatprep.mubr.f32.mxu0 %v1563
        %2709 = vmatmul.mubr.f32.gmra.mrb[0].mxu0 %v1562
        %v2710 = vpop.f32.mrb[0].mxu0
        %v2711 = vadd.f32 %v2165, %v2710
        %v2712 = vpop.f32.mrb[0].mxu0
        %v2713 = vadd.f32 %v2169, %v2712
        %2714 = vdwg.mxu0
        %2715 = vmatprep.subr.mxu0 %v1765
        %2716 = vmatpush1.msra.mxu0 %v1764
        %2717 = vmatprep.subr.mxu0 %v1771
        %2718 = vmatpush1.msra.mxu0 %v1770
        %2719 = vmatprep.subr.mxu0 %v1777
        %2720 = vmatpush1.msra.mxu0 %v1776
        %2721 = vmatprep.subr.mxu0 %v1783
        %2722 = vmatpush1.msra.mxu0 %v1782
        %2723 = vmatprep.subr.mxu0 %v1789
        %2724 = vmatpush1.msra.mxu0 %v1788
        %2725 = vmatprep.subr.mxu0 %v1795
        %2726 = vmatpush1.msra.mxu0 %v1794
        %2727 = vmatprep.subr.mxu0 %v1801
        %2728 = vmatpush1.msra.mxu0 %v1800
        %2729 = vmatprep.subr.mxu0 %v1807
        %2730 = vmatpush1.msra.mxu0 %v1806
        %2731 = vmatprep.subr.mxu0 %v1813
        %2732 = vmatpush1.msra.mxu0 %v1812
        %2733 = vmatprep.subr.mxu0 %v1819
        %2734 = vmatpush1.msra.mxu0 %v1818
        %2735 = vmatprep.subr.mxu0 %v1825
        %2736 = vmatpush1.msra.mxu0 %v1824
        %2737 = vmatprep.subr.mxu0 %v1831
        %2738 = vmatpush1.msra.mxu0 %v1830
        %2739 = vmatprep.subr.mxu0 %v1837
        %2740 = vmatpush1.msra.mxu0 %v1836
        %2741 = vmatprep.subr.mxu0 %v1843
        %2742 = vmatpush1.msra.mxu0 %v1842
        %2743 = vmatprep.subr.mxu0 %v1849
        %2744 = vmatpush1.msra.mxu0 %v1848
        %2745 = vmatprep.subr.mxu0 %v1855
        %2746 = vmatpush1.msra.mxu0 %v1854
        %2747 = vmatprep.subr.mxu0 %v1861
        %2748 = vmatpush1.msra.mxu0 %v1860
        %2749 = vmatprep.subr.mxu0 %v1867
        %2750 = vmatpush1.msra.mxu0 %v1866
        %2751 = vmatprep.subr.mxu0 %v1873
        %2752 = vmatpush1.msra.mxu0 %v1872
        %2753 = vmatprep.subr.mxu0 %v1879
        %2754 = vmatpush1.msra.mxu0 %v1878
        %2755 = vmatprep.subr.mxu0 %v1885
        %2756 = vmatpush1.msra.mxu0 %v1884
        %2757 = vmatprep.subr.mxu0 %v1891
        %2758 = vmatpush1.msra.mxu0 %v1890
        %2759 = vmatprep.subr.mxu0 %v1897
        %2760 = vmatpush1.msra.mxu0 %v1896
        %2761 = vmatprep.subr.mxu0 %v1903
        %2762 = vmatpush1.msra.mxu0 %v1902
        %2763 = vmatprep.subr.mxu0 %v1909
        %2764 = vmatpush1.msra.mxu0 %v1908
        %2765 = vmatprep.subr.mxu0 %v1915
        %2766 = vmatpush1.msra.mxu0 %v1914
        %2767 = vmatprep.subr.mxu0 %v1921
        %2768 = vmatpush1.msra.mxu0 %v1920
        %2769 = vmatprep.subr.mxu0 %v1927
        %2770 = vmatpush1.msra.mxu0 %v1926
        %2771 = vmatprep.subr.mxu0 %v1933
        %2772 = vmatpush1.msra.mxu0 %v1932
        %2773 = vmatprep.subr.mxu0 %v1939
        %2774 = vmatpush1.msra.mxu0 %v1938
        %2775 = vmatprep.subr.mxu0 %v1945
        %2776 = vmatpush1.msra.mxu0 %v1944
        %2777 = vmatprep.subr.mxu0 %v1951
        %2778 = vmatpush1.msra.mxu0 %v1950
        %2779 = vmatprep.mubr.f32.mxu0 %v1559
        %2780 = vmatmul.mubr.f32.gmra.mrb[0].mxu0 %v1558
        %v2781 = vpop.f32.mrb[0].mxu0
        %v2782 = vadd.f32 %v2705, %v2781
        %v2783 = vpop.f32.mrb[0].mxu0
        %v2784 = vadd.f32 %v2707, %v2783
        %2785 = vmatprep.mubr.f32.mxu0 %v1565
        %2786 = vmatmul.mubr.f32.gmra.mrb[0].mxu0 %v1564
        %v2787 = vpop.f32.mrb[0].mxu0
        %v2788 = vadd.f32 %v2711, %v2787
        %v2789 = vpop.f32.mrb[0].mxu0
        %v2790 = vadd.f32 %v2713, %v2789
        %2791 = vdwg.mxu0
        %2792 = vmatprep.subr.mxu0 %v1957
        %2793 = vmatpush1.msra.mxu0 %v1956
        %2794 = vmatprep.subr.mxu0 %v1963
        %2795 = vmatpush1.msra.mxu0 %v1962
        %2796 = vmatprep.subr.mxu0 %v1969
        %2797 = vmatpush1.msra.mxu0 %v1968
        %2798 = vmatprep.subr.mxu0 %v1975
        %2799 = vmatpush1.msra.mxu0 %v1974
        %2800 = vmatprep.subr.mxu0 %v1981
        %2801 = vmatpush1.msra.mxu0 %v1980
        %2802 = vmatprep.subr.mxu0 %v1987
        %2803 = vmatpush1.msra.mxu0 %v1986
        %2804 = vmatprep.subr.mxu0 %v1993
        %2805 = vmatpush1.msra.mxu0 %v1992
        %2806 = vmatprep.subr.mxu0 %v1999
        %2807 = vmatpush1.msra.mxu0 %v1998
        %2808 = vmatprep.subr.mxu0 %v2005
        %2809 = vmatpush1.msra.mxu0 %v2004
        %2810 = vmatprep.subr.mxu0 %v2011
        %2811 = vmatpush1.msra.mxu0 %v2010
        %2812 = vmatprep.subr.mxu0 %v2017
        %2813 = vmatpush1.msra.mxu0 %v2016
        %2814 = vmatprep.subr.mxu0 %v2023
        %2815 = vmatpush1.msra.mxu0 %v2022
        %2816 = vmatprep.subr.mxu0 %v2029
        %2817 = vmatpush1.msra.mxu0 %v2028
        %2818 = vmatprep.subr.mxu0 %v2035
        %2819 = vmatpush1.msra.mxu0 %v2034
        %2820 = vmatprep.subr.mxu0 %v2041
        %2821 = vmatpush1.msra.mxu0 %v2040
        %2822 = vmatprep.subr.mxu0 %v2047
        %2823 = vmatpush1.msra.mxu0 %v2046
        %2824 = vmatprep.subr.mxu0 %v2053
        %2825 = vmatpush1.msra.mxu0 %v2052
        %2826 = vmatprep.subr.mxu0 %v2059
        %2827 = vmatpush1.msra.mxu0 %v2058
        %2828 = vmatprep.subr.mxu0 %v2065
        %2829 = vmatpush1.msra.mxu0 %v2064
        %2830 = vmatprep.subr.mxu0 %v2071
        %2831 = vmatpush1.msra.mxu0 %v2070
        %2832 = vmatprep.subr.mxu0 %v2077
        %2833 = vmatpush1.msra.mxu0 %v2076
        %2834 = vmatprep.subr.mxu0 %v2083
        %2835 = vmatpush1.msra.mxu0 %v2082
        %2836 = vmatprep.subr.mxu0 %v2089
        %2837 = vmatpush1.msra.mxu0 %v2088
        %2838 = vmatprep.subr.mxu0 %v2095
        %2839 = vmatpush1.msra.mxu0 %v2094
        %2840 = vmatprep.subr.mxu0 %v2101
        %2841 = vmatpush1.msra.mxu0 %v2100
        %2842 = vmatprep.subr.mxu0 %v2107
        %2843 = vmatpush1.msra.mxu0 %v2106
        %2844 = vmatprep.subr.mxu0 %v2113
        %2845 = vmatpush1.msra.mxu0 %v2112
        %2846 = vmatprep.subr.mxu0 %v2119
        %2847 = vmatpush1.msra.mxu0 %v2118
        %2848 = vmatprep.subr.mxu0 %v2125
        %2849 = vmatpush1.msra.mxu0 %v2124
        %2850 = vmatprep.subr.mxu0 %v2131
        %2851 = vmatpush1.msra.mxu0 %v2130
        %2852 = vmatprep.subr.mxu0 %v2137
        %2853 = vmatpush1.msra.mxu0 %v2136
        %2854 = vmatprep.subr.mxu0 %v2143
        %2855 = vmatpush1.msra.mxu0 %v2142
        %2856 = vmatprep.mubr.f32.mxu0 %v1561
        %2857 = vmatmul.mubr.f32.gmra.mrb[0].mxu0 %v1560
        %v2858 = vpop.f32.mrb[0].mxu0
        %v2859 = vadd.f32 %v2782, %v2858
        %v2860 = vpop.f32.mrb[0].mxu0
        %v2861 = vadd.f32 %v2784, %v2860
        %2862 = vmatprep.mubr.f32.mxu0 %v1567
        %2863 = vmatmul.mubr.f32.gmra.mrb[0].mxu0 %v1566
        %v2864 = vpop.f32.mrb[0].mxu0
        %v2865 = vadd.f32 %v2788, %v2864
        %v2866 = vpop.f32.mrb[0].mxu0
        %v2867 = vadd.f32 %v2790, %v2866
        %2868 = vdwg.mxu0
        %v2869 = vmax.f32 %v2397, 0.0
        %v2870 = vmax.f32 %v2399, 0.0
        %v2871 = vmax.f32 %v2628, 0.0
        %v2872 = vmax.f32 %v2630, 0.0
        %v2873 = vmax.f32 %v2859, 0.0
        %v2874 = vmax.f32 %v2861, 0.0
        %v2875 = vmax.f32 %v2403, 0.0
        %v2876 = vmax.f32 %v2405, 0.0
        %v2877 = vmax.f32 %v2634, 0.0
        %v2878 = vmax.f32 %v2636, 0.0
        %v2879 = vmax.f32 %v2865, 0.0
        %v2880 = vmax.f32 %v2867, 0.0
        %v2881 = vld [vmem:[#allocation2] sm:$0xff]
        %v2882 = vld [vmem:[#allocation2 + $0x8] sm:$0xff]
        %v2883 = vld [vmem:[#allocation2 + $0x10] sm:$0xff]
        %v2884 = vld [vmem:[#allocation2 + $0x18] sm:$0xff]
        %v2885 = vld [vmem:[#allocation2 + $0x20] sm:$0xff]
        %v2886 = vld [vmem:[#allocation2 + $0x28] sm:$0xff]
        %v2887 = vld [vmem:[#allocation2 + $0x30] sm:$0xff]
        %v2888 = vld [vmem:[#allocation2 + $0x38] sm:$0xff]
        %v2889 = vld [vmem:[#allocation2 + $0x40] sm:$0xff]
        %v2890 = vld [vmem:[#allocation2 + $0x48] sm:$0xff]
        %v2891 = vld [vmem:[#allocation2 + $0x50] sm:$0xff]
        %v2892 = vld [vmem:[#allocation2 + $0x58] sm:$0xff]
        %v2893 = vld [vmem:[%s1485] sm:$0xff]
        %v2894 = vld [vmem:[%s1485 + $0x8] sm:$0xff]
        %v2895 = vld [vmem:[%s1485 + $0x10] sm:$0xff]
        %v2896 = vld [vmem:[%s1485 + $0x18] sm:$0xff]
        %v2897 = vld [vmem:[%s1485 + $0x20] sm:$0xff]
        %v2898 = vld [vmem:[%s1485 + $0x28] sm:$0xff]
        %v2899 = vld [vmem:[%s1485 + $0x30] sm:$0xff]
        %v2900 = vld [vmem:[%s1485 + $0x38] sm:$0xff]
        %v2901 = vld [vmem:[%s1485 + $0x40] sm:$0xff]
        %v2902 = vld [vmem:[%s1485 + $0x48] sm:$0xff]
        %v2903 = vld [vmem:[%s1485 + $0x50] sm:$0xff]
        %v2904 = vld [vmem:[%s1485 + $0x58] sm:$0xff]
        %v2905 = vld [vmem:[%s1485 + $0x60] sm:$0xff]
        %v2906 = vld [vmem:[%s1485 + $0x68] sm:$0xff]
        %v2907 = vld [vmem:[%s1485 + $0x70] sm:$0xff]
        %v2908 = vld [vmem:[%s1485 + $0x78] sm:$0xff]
        %v2909 = vld [vmem:[%s1485 + $0x80] sm:$0xff]
        %v2910 = vld [vmem:[%s1485 + $0x88] sm:$0xff]
        %v2911 = vld [vmem:[%s1485 + $0x90] sm:$0xff]
        %v2912 = vld [vmem:[%s1485 + $0x98] sm:$0xff]
        %v2913 = vld [vmem:[%s1485 + $0xa0] sm:$0xff]
        %v2914 = vld [vmem:[%s1485 + $0xa8] sm:$0xff]
        %v2915 = vld [vmem:[%s1485 + $0xb0] sm:$0xff]
        %v2916 = vld [vmem:[%s1485 + $0xb8] sm:$0xff]
        %v2917 = vld [vmem:[%s1485 + $0xc0] sm:$0xff]
        %v2918 = vld [vmem:[%s1485 + $0xc8] sm:$0xff]
        %v2919 = vld [vmem:[%s1485 + $0xd0] sm:$0xff]
        %v2920 = vld [vmem:[%s1485 + $0xd8] sm:$0xff]
        %v2921 = vld [vmem:[%s1485 + $0xe0] sm:$0xff]
        %v2922 = vld [vmem:[%s1485 + $0xe8] sm:$0xff]
        %v2923 = vld [vmem:[%s1485 + $0xf0] sm:$0xff]
        %v2924 = vld [vmem:[%s1485 + $0xf8] sm:$0xff]
        %v2925 = vld [vmem:[%s1485 + $0x100] sm:$0xff]
        %v2926 = vld [vmem:[%s1485 + $0x108] sm:$0xff]
        %v2927 = vld [vmem:[%s1485 + $0x110] sm:$0xff]
        %v2928 = vld [vmem:[%s1485 + $0x118] sm:$0xff]
        %v2929 = vld [vmem:[%s1485 + $0x120] sm:$0xff]
        %v2930 = vld [vmem:[%s1485 + $0x128] sm:$0xff]
        %v2931 = vld [vmem:[%s1485 + $0x130] sm:$0xff]
        %v2932 = vld [vmem:[%s1485 + $0x138] sm:$0xff]
        %v2933 = vld [vmem:[%s1485 + $0x140] sm:$0xff]
        %v2934 = vld [vmem:[%s1485 + $0x148] sm:$0xff]
        %v2935 = vld [vmem:[%s1485 + $0x150] sm:$0xff]
        %v2936 = vld [vmem:[%s1485 + $0x158] sm:$0xff]
        %v2937 = vld [vmem:[%s1485 + $0x160] sm:$0xff]
        %v2938 = vld [vmem:[%s1485 + $0x168] sm:$0xff]
        %v2939 = vld [vmem:[%s1485 + $0x170] sm:$0xff]
        %v2940 = vld [vmem:[%s1485 + $0x178] sm:$0xff]
        %v2941 = vld [vmem:[%s1485 + $0x180] sm:$0xff]
        %v2942 = vld [vmem:[%s1485 + $0x188] sm:$0xff]
        %v2943 = vld [vmem:[%s1485 + $0x190] sm:$0xff]
        %v2944 = vld [vmem:[%s1485 + $0x198] sm:$0xff]
        %v2945 = vld [vmem:[%s1485 + $0x1a0] sm:$0xff]
        %v2946 = vld [vmem:[%s1485 + $0x1a8] sm:$0xff]
        %v2947 = vld [vmem:[%s1485 + $0x1b0] sm:$0xff]
        %v2948 = vld [vmem:[%s1485 + $0x1b8] sm:$0xff]
        %v2949 = vld [vmem:[%s1485 + $0x1c0] sm:$0xff]
        %v2950 = vld [vmem:[%s1485 + $0x1c8] sm:$0xff]
        %v2951 = vld [vmem:[%s1485 + $0x1d0] sm:$0xff]
        %v2952 = vld [vmem:[%s1485 + $0x1d8] sm:$0xff]
        %v2953 = vld [vmem:[%s1485 + $0x1e0] sm:$0xff]
        %v2954 = vld [vmem:[%s1485 + $0x1e8] sm:$0xff]
        %v2955 = vld [vmem:[%s1485 + $0x1f0] sm:$0xff]
        %v2956 = vld [vmem:[%s1485 + $0x1f8] sm:$0xff]
        %v2957 = vld [vmem:[%s1485 + $0x200] sm:$0xff]
        %v2958 = vld [vmem:[%s1485 + $0x208] sm:$0xff]
        %v2959 = vld [vmem:[%s1485 + $0x210] sm:$0xff]
        %v2960 = vld [vmem:[%s1485 + $0x218] sm:$0xff]
        %v2961 = vld [vmem:[%s1485 + $0x220] sm:$0xff]
        %v2962 = vld [vmem:[%s1485 + $0x228] sm:$0xff]
        %v2963 = vld [vmem:[%s1485 + $0x230] sm:$0xff]
        %v2964 = vld [vmem:[%s1485 + $0x238] sm:$0xff]
        %v2965 = vld [vmem:[%s1485 + $0x240] sm:$0xff]
        %v2966 = vld [vmem:[%s1485 + $0x248] sm:$0xff]
        %v2967 = vld [vmem:[%s1485 + $0x250] sm:$0xff]
        %v2968 = vld [vmem:[%s1485 + $0x258] sm:$0xff]
        %v2969 = vld [vmem:[%s1485 + $0x260] sm:$0xff]
        %v2970 = vld [vmem:[%s1485 + $0x268] sm:$0xff]
        %v2971 = vld [vmem:[%s1485 + $0x270] sm:$0xff]
        %v2972 = vld [vmem:[%s1485 + $0x278] sm:$0xff]
        %v2973 = vld [vmem:[%s1485 + $0x280] sm:$0xff]
        %v2974 = vld [vmem:[%s1485 + $0x288] sm:$0xff]
        %v2975 = vld [vmem:[%s1485 + $0x290] sm:$0xff]
        %v2976 = vld [vmem:[%s1485 + $0x298] sm:$0xff]
        %v2977 = vld [vmem:[%s1485 + $0x2a0] sm:$0xff]
        %v2978 = vld [vmem:[%s1485 + $0x2a8] sm:$0xff]
        %v2979 = vld [vmem:[%s1485 + $0x2b0] sm:$0xff]
        %v2980 = vld [vmem:[%s1485 + $0x2b8] sm:$0xff]
        %v2981 = vld [vmem:[%s1485 + $0x2c0] sm:$0xff]
        %v2982 = vld [vmem:[%s1485 + $0x2c8] sm:$0xff]
        %v2983 = vld [vmem:[%s1485 + $0x2d0] sm:$0xff]
        %v2984 = vld [vmem:[%s1485 + $0x2d8] sm:$0xff]
        %v2985 = vld [vmem:[%s1485 + $0x2e0] sm:$0xff]
        %v2986 = vld [vmem:[%s1485 + $0x2e8] sm:$0xff]
        %v2987 = vld [vmem:[%s1485 + $0x2f0] sm:$0xff]
        %v2988 = vld [vmem:[%s1485 + $0x2f8] sm:$0xff]
        %v2989 = vld [vmem:[%s1485 + $0x300] sm:$0xff]
        %v2990 = vld [vmem:[%s1485 + $0x308] sm:$0xff]
        %v2991 = vld [vmem:[%s1485 + $0x310] sm:$0xff]
        %v2992 = vld [vmem:[%s1485 + $0x318] sm:$0xff]
        %v2993 = vld [vmem:[%s1485 + $0x320] sm:$0xff]
        %v2994 = vld [vmem:[%s1485 + $0x328] sm:$0xff]
        %v2995 = vld [vmem:[%s1485 + $0x330] sm:$0xff]
        %v2996 = vld [vmem:[%s1485 + $0x338] sm:$0xff]
        %v2997 = vld [vmem:[%s1485 + $0x340] sm:$0xff]
        %v2998 = vld [vmem:[%s1485 + $0x348] sm:$0xff]
        %v2999 = vld [vmem:[%s1485 + $0x350] sm:$0xff]
        %v3000 = vld [vmem:[%s1485 + $0x358] sm:$0xff]
        %v3001 = vld [vmem:[%s1485 + $0x360] sm:$0xff]
        %v3002 = vld [vmem:[%s1485 + $0x368] sm:$0xff]
        %v3003 = vld [vmem:[%s1485 + $0x370] sm:$0xff]
        %v3004 = vld [vmem:[%s1485 + $0x378] sm:$0xff]
        %v3005 = vld [vmem:[%s1485 + $0x380] sm:$0xff]
        %v3006 = vld [vmem:[%s1485 + $0x388] sm:$0xff]
        %v3007 = vld [vmem:[%s1485 + $0x390] sm:$0xff]
        %v3008 = vld [vmem:[%s1485 + $0x398] sm:$0xff]
        %v3009 = vld [vmem:[%s1485 + $0x3a0] sm:$0xff]
        %v3010 = vld [vmem:[%s1485 + $0x3a8] sm:$0xff]
        %v3011 = vld [vmem:[%s1485 + $0x3b0] sm:$0xff]
        %v3012 = vld [vmem:[%s1485 + $0x3b8] sm:$0xff]
        %v3013 = vld [vmem:[%s1485 + $0x3c0] sm:$0xff]
        %v3014 = vld [vmem:[%s1485 + $0x3c8] sm:$0xff]
        %v3015 = vld [vmem:[%s1485 + $0x3d0] sm:$0xff]
        %v3016 = vld [vmem:[%s1485 + $0x3d8] sm:$0xff]
        %v3017 = vld [vmem:[%s1485 + $0x3e0] sm:$0xff]
        %v3018 = vld [vmem:[%s1485 + $0x3e8] sm:$0xff]
        %v3019 = vld [vmem:[%s1485 + $0x3f0] sm:$0xff]
        %v3020 = vld [vmem:[%s1485 + $0x3f8] sm:$0xff]
        %v3021 = vld [vmem:[%s1485 + $0x400] sm:$0xff]
        %v3022 = vld [vmem:[%s1485 + $0x408] sm:$0xff]
        %v3023 = vld [vmem:[%s1485 + $0x410] sm:$0xff]
        %v3024 = vld [vmem:[%s1485 + $0x418] sm:$0xff]
        %v3025 = vld [vmem:[%s1485 + $0x420] sm:$0xff]
        %v3026 = vld [vmem:[%s1485 + $0x428] sm:$0xff]
        %v3027 = vld [vmem:[%s1485 + $0x430] sm:$0xff]
        %v3028 = vld [vmem:[%s1485 + $0x438] sm:$0xff]
        %v3029 = vld [vmem:[%s1485 + $0x440] sm:$0xff]
        %v3030 = vld [vmem:[%s1485 + $0x448] sm:$0xff]
        %v3031 = vld [vmem:[%s1485 + $0x450] sm:$0xff]
        %v3032 = vld [vmem:[%s1485 + $0x458] sm:$0xff]
        %v3033 = vld [vmem:[%s1485 + $0x460] sm:$0xff]
        %v3034 = vld [vmem:[%s1485 + $0x468] sm:$0xff]
        %v3035 = vld [vmem:[%s1485 + $0x470] sm:$0xff]
        %v3036 = vld [vmem:[%s1485 + $0x478] sm:$0xff]
        %v3037 = vld [vmem:[%s1485 + $0x480] sm:$0xff]
        %v3038 = vld [vmem:[%s1485 + $0x488] sm:$0xff]
        %v3039 = vld [vmem:[%s1485 + $0x490] sm:$0xff]
        %v3040 = vld [vmem:[%s1485 + $0x498] sm:$0xff]
        %v3041 = vld [vmem:[%s1485 + $0x4a0] sm:$0xff]
        %v3042 = vld [vmem:[%s1485 + $0x4a8] sm:$0xff]
        %v3043 = vld [vmem:[%s1485 + $0x4b0] sm:$0xff]
        %v3044 = vld [vmem:[%s1485 + $0x4b8] sm:$0xff]
        %v3045 = vld [vmem:[%s1485 + $0x4c0] sm:$0xff]
        %v3046 = vld [vmem:[%s1485 + $0x4c8] sm:$0xff]
        %v3047 = vld [vmem:[%s1485 + $0x4d0] sm:$0xff]
        %v3048 = vld [vmem:[%s1485 + $0x4d8] sm:$0xff]
        %v3049 = vld [vmem:[%s1485 + $0x4e0] sm:$0xff]
        %v3050 = vld [vmem:[%s1485 + $0x4e8] sm:$0xff]
        %v3051 = vld [vmem:[%s1485 + $0x4f0] sm:$0xff]
        %v3052 = vld [vmem:[%s1485 + $0x4f8] sm:$0xff]
        %v3053 = vld [vmem:[%s1485 + $0x500] sm:$0xff]
        %v3054 = vld [vmem:[%s1485 + $0x508] sm:$0xff]
        %v3055 = vld [vmem:[%s1485 + $0x510] sm:$0xff]
        %v3056 = vld [vmem:[%s1485 + $0x518] sm:$0xff]
        %v3057 = vld [vmem:[%s1485 + $0x520] sm:$0xff]
        %v3058 = vld [vmem:[%s1485 + $0x528] sm:$0xff]
        %v3059 = vld [vmem:[%s1485 + $0x530] sm:$0xff]
        %v3060 = vld [vmem:[%s1485 + $0x538] sm:$0xff]
        %v3061 = vld [vmem:[%s1485 + $0x540] sm:$0xff]
        %v3062 = vld [vmem:[%s1485 + $0x548] sm:$0xff]
        %v3063 = vld [vmem:[%s1485 + $0x550] sm:$0xff]
        %v3064 = vld [vmem:[%s1485 + $0x558] sm:$0xff]
        %v3065 = vld [vmem:[%s1485 + $0x560] sm:$0xff]
        %v3066 = vld [vmem:[%s1485 + $0x568] sm:$0xff]
        %v3067 = vld [vmem:[%s1485 + $0x570] sm:$0xff]
        %v3068 = vld [vmem:[%s1485 + $0x578] sm:$0xff]
        %v3069 = vld [vmem:[%s1485 + $0x580] sm:$0xff]
        %v3070 = vld [vmem:[%s1485 + $0x588] sm:$0xff]
        %v3071 = vld [vmem:[%s1485 + $0x590] sm:$0xff]
        %v3072 = vld [vmem:[%s1485 + $0x598] sm:$0xff]
        %v3073 = vld [vmem:[%s1485 + $0x5a0] sm:$0xff]
        %v3074 = vld [vmem:[%s1485 + $0x5a8] sm:$0xff]
        %v3075 = vld [vmem:[%s1485 + $0x5b0] sm:$0xff]
        %v3076 = vld [vmem:[%s1485 + $0x5b8] sm:$0xff]
        %v3077 = vld [vmem:[%s1485 + $0x5c0] sm:$0xff]
        %v3078 = vld [vmem:[%s1485 + $0x5c8] sm:$0xff]
        %v3079 = vld [vmem:[%s1485 + $0x5d0] sm:$0xff]
        %v3080 = vld [vmem:[%s1485 + $0x5d8] sm:$0xff]
        %v3081 = vld [vmem:[%s1485 + $0x5e0] sm:$0xff]
        %v3082 = vld [vmem:[%s1485 + $0x5e8] sm:$0xff]
        %v3083 = vld [vmem:[%s1485 + $0x5f0] sm:$0xff]
        %v3084 = vld [vmem:[%s1485 + $0x5f8] sm:$0xff]
        %v3085 = vld [vmem:[%s1485 + $0x600] sm:$0xff]
        %v3086 = vld [vmem:[%s1485 + $0x608] sm:$0xff]
        %v3087 = vld [vmem:[%s1485 + $0x610] sm:$0xff]
        %v3088 = vld [vmem:[%s1485 + $0x618] sm:$0xff]
        %v3089 = vld [vmem:[%s1485 + $0x620] sm:$0xff]
        %v3090 = vld [vmem:[%s1485 + $0x628] sm:$0xff]
        %v3091 = vld [vmem:[%s1485 + $0x630] sm:$0xff]
        %v3092 = vld [vmem:[%s1485 + $0x638] sm:$0xff]
        %v3093 = vld [vmem:[%s1485 + $0x640] sm:$0xff]
        %v3094 = vld [vmem:[%s1485 + $0x648] sm:$0xff]
        %v3095 = vld [vmem:[%s1485 + $0x650] sm:$0xff]
        %v3096 = vld [vmem:[%s1485 + $0x658] sm:$0xff]
        %v3097 = vld [vmem:[%s1485 + $0x660] sm:$0xff]
        %v3098 = vld [vmem:[%s1485 + $0x668] sm:$0xff]
        %v3099 = vld [vmem:[%s1485 + $0x670] sm:$0xff]
        %v3100 = vld [vmem:[%s1485 + $0x678] sm:$0xff]
        %v3101 = vld [vmem:[%s1485 + $0x680] sm:$0xff]
        %v3102 = vld [vmem:[%s1485 + $0x688] sm:$0xff]
        %v3103 = vld [vmem:[%s1485 + $0x690] sm:$0xff]
        %v3104 = vld [vmem:[%s1485 + $0x698] sm:$0xff]
        %v3105 = vld [vmem:[%s1485 + $0x6a0] sm:$0xff]
        %v3106 = vld [vmem:[%s1485 + $0x6a8] sm:$0xff]
        %v3107 = vld [vmem:[%s1485 + $0x6b0] sm:$0xff]
        %v3108 = vld [vmem:[%s1485 + $0x6b8] sm:$0xff]
        %v3109 = vld [vmem:[%s1485 + $0x6c0] sm:$0xff]
        %v3110 = vld [vmem:[%s1485 + $0x6c8] sm:$0xff]
        %v3111 = vld [vmem:[%s1485 + $0x6d0] sm:$0xff]
        %v3112 = vld [vmem:[%s1485 + $0x6d8] sm:$0xff]
        %v3113 = vld [vmem:[%s1485 + $0x6e0] sm:$0xff]
        %v3114 = vld [vmem:[%s1485 + $0x6e8] sm:$0xff]
        %v3115 = vld [vmem:[%s1485 + $0x6f0] sm:$0xff]
        %v3116 = vld [vmem:[%s1485 + $0x6f8] sm:$0xff]
        %v3117 = vld [vmem:[%s1485 + $0x700] sm:$0xff]
        %v3118 = vld [vmem:[%s1485 + $0x708] sm:$0xff]
        %v3119 = vld [vmem:[%s1485 + $0x710] sm:$0xff]
        %v3120 = vld [vmem:[%s1485 + $0x718] sm:$0xff]
        %v3121 = vld [vmem:[%s1485 + $0x720] sm:$0xff]
        %v3122 = vld [vmem:[%s1485 + $0x728] sm:$0xff]
        %v3123 = vld [vmem:[%s1485 + $0x730] sm:$0xff]
        %v3124 = vld [vmem:[%s1485 + $0x738] sm:$0xff]
        %v3125 = vld [vmem:[%s1485 + $0x740] sm:$0xff]
        %v3126 = vld [vmem:[%s1485 + $0x748] sm:$0xff]
        %v3127 = vld [vmem:[%s1485 + $0x750] sm:$0xff]
        %v3128 = vld [vmem:[%s1485 + $0x758] sm:$0xff]
        %v3129 = vld [vmem:[%s1485 + $0x760] sm:$0xff]
        %v3130 = vld [vmem:[%s1485 + $0x768] sm:$0xff]
        %v3131 = vld [vmem:[%s1485 + $0x770] sm:$0xff]
        %v3132 = vld [vmem:[%s1485 + $0x778] sm:$0xff]
        %v3133 = vld [vmem:[%s1485 + $0x780] sm:$0xff]
        %v3134 = vld [vmem:[%s1485 + $0x788] sm:$0xff]
        %v3135 = vld [vmem:[%s1485 + $0x790] sm:$0xff]
        %v3136 = vld [vmem:[%s1485 + $0x798] sm:$0xff]
        %v3137 = vld [vmem:[%s1485 + $0x7a0] sm:$0xff]
        %v3138 = vld [vmem:[%s1485 + $0x7a8] sm:$0xff]
        %v3139 = vld [vmem:[%s1485 + $0x7b0] sm:$0xff]
        %v3140 = vld [vmem:[%s1485 + $0x7b8] sm:$0xff]
        %v3141 = vld [vmem:[%s1485 + $0x7c0] sm:$0xff]
        %v3142 = vld [vmem:[%s1485 + $0x7c8] sm:$0xff]
        %v3143 = vld [vmem:[%s1485 + $0x7d0] sm:$0xff]
        %v3144 = vld [vmem:[%s1485 + $0x7d8] sm:$0xff]
        %v3145 = vld [vmem:[%s1485 + $0x7e0] sm:$0xff]
        %v3146 = vld [vmem:[%s1485 + $0x7e8] sm:$0xff]
        %v3147 = vld [vmem:[%s1485 + $0x7f0] sm:$0xff]
        %v3148 = vld [vmem:[%s1485 + $0x7f8] sm:$0xff]
        %v3149 = vld [vmem:[%s1485 + $0x800] sm:$0xff]
        %v3150 = vld [vmem:[%s1485 + $0x808] sm:$0xff]
        %v3151 = vld [vmem:[%s1485 + $0x810] sm:$0xff]
        %v3152 = vld [vmem:[%s1485 + $0x818] sm:$0xff]
        %v3153 = vld [vmem:[%s1485 + $0x820] sm:$0xff]
        %v3154 = vld [vmem:[%s1485 + $0x828] sm:$0xff]
        %v3155 = vld [vmem:[%s1485 + $0x830] sm:$0xff]
        %v3156 = vld [vmem:[%s1485 + $0x838] sm:$0xff]
        %v3157 = vld [vmem:[%s1485 + $0x840] sm:$0xff]
        %v3158 = vld [vmem:[%s1485 + $0x848] sm:$0xff]
        %v3159 = vld [vmem:[%s1485 + $0x850] sm:$0xff]
        %v3160 = vld [vmem:[%s1485 + $0x858] sm:$0xff]
        %v3161 = vld [vmem:[%s1485 + $0x860] sm:$0xff]
        %v3162 = vld [vmem:[%s1485 + $0x868] sm:$0xff]
        %v3163 = vld [vmem:[%s1485 + $0x870] sm:$0xff]
        %v3164 = vld [vmem:[%s1485 + $0x878] sm:$0xff]
        %v3165 = vld [vmem:[%s1485 + $0x880] sm:$0xff]
        %v3166 = vld [vmem:[%s1485 + $0x888] sm:$0xff]
        %v3167 = vld [vmem:[%s1485 + $0x890] sm:$0xff]
        %v3168 = vld [vmem:[%s1485 + $0x898] sm:$0xff]
        %v3169 = vld [vmem:[%s1485 + $0x8a0] sm:$0xff]
        %v3170 = vld [vmem:[%s1485 + $0x8a8] sm:$0xff]
        %v3171 = vld [vmem:[%s1485 + $0x8b0] sm:$0xff]
        %v3172 = vld [vmem:[%s1485 + $0x8b8] sm:$0xff]
        %v3173 = vld [vmem:[%s1485 + $0x8c0] sm:$0xff]
        %v3174 = vld [vmem:[%s1485 + $0x8c8] sm:$0xff]
        %v3175 = vld [vmem:[%s1485 + $0x8d0] sm:$0xff]
        %v3176 = vld [vmem:[%s1485 + $0x8d8] sm:$0xff]
        %v3177 = vld [vmem:[%s1485 + $0x8e0] sm:$0xff]
        %v3178 = vld [vmem:[%s1485 + $0x8e8] sm:$0xff]
        %v3179 = vld [vmem:[%s1485 + $0x8f0] sm:$0xff]
        %v3180 = vld [vmem:[%s1485 + $0x8f8] sm:$0xff]
        %v3181 = vld [vmem:[%s1485 + $0x900] sm:$0xff]
        %v3182 = vld [vmem:[%s1485 + $0x908] sm:$0xff]
        %v3183 = vld [vmem:[%s1485 + $0x910] sm:$0xff]
        %v3184 = vld [vmem:[%s1485 + $0x918] sm:$0xff]
        %v3185 = vld [vmem:[%s1485 + $0x920] sm:$0xff]
        %v3186 = vld [vmem:[%s1485 + $0x928] sm:$0xff]
        %v3187 = vld [vmem:[%s1485 + $0x930] sm:$0xff]
        %v3188 = vld [vmem:[%s1485 + $0x938] sm:$0xff]
        %v3189 = vld [vmem:[%s1485 + $0x940] sm:$0xff]
        %v3190 = vld [vmem:[%s1485 + $0x948] sm:$0xff]
        %v3191 = vld [vmem:[%s1485 + $0x950] sm:$0xff]
        %v3192 = vld [vmem:[%s1485 + $0x958] sm:$0xff]
        %v3193 = vld [vmem:[%s1485 + $0x960] sm:$0xff]
        %v3194 = vld [vmem:[%s1485 + $0x968] sm:$0xff]
        %v3195 = vld [vmem:[%s1485 + $0x970] sm:$0xff]
        %v3196 = vld [vmem:[%s1485 + $0x978] sm:$0xff]
        %v3197 = vld [vmem:[%s1485 + $0x980] sm:$0xff]
        %v3198 = vld [vmem:[%s1485 + $0x988] sm:$0xff]
        %v3199 = vld [vmem:[%s1485 + $0x990] sm:$0xff]
        %v3200 = vld [vmem:[%s1485 + $0x998] sm:$0xff]
        %v3201 = vld [vmem:[%s1485 + $0x9a0] sm:$0xff]
        %v3202 = vld [vmem:[%s1485 + $0x9a8] sm:$0xff]
        %v3203 = vld [vmem:[%s1485 + $0x9b0] sm:$0xff]
        %v3204 = vld [vmem:[%s1485 + $0x9b8] sm:$0xff]
        %v3205 = vld [vmem:[%s1485 + $0x9c0] sm:$0xff]
        %v3206 = vld [vmem:[%s1485 + $0x9c8] sm:$0xff]
        %v3207 = vld [vmem:[%s1485 + $0x9d0] sm:$0xff]
        %v3208 = vld [vmem:[%s1485 + $0x9d8] sm:$0xff]
        %v3209 = vld [vmem:[%s1485 + $0x9e0] sm:$0xff]
        %v3210 = vld [vmem:[%s1485 + $0x9e8] sm:$0xff]
        %v3211 = vld [vmem:[%s1485 + $0x9f0] sm:$0xff]
        %v3212 = vld [vmem:[%s1485 + $0x9f8] sm:$0xff]
        %v3213 = vld [vmem:[%s1485 + $0xa00] sm:$0xff]
        %v3214 = vld [vmem:[%s1485 + $0xa08] sm:$0xff]
        %v3215 = vld [vmem:[%s1485 + $0xa10] sm:$0xff]
        %v3216 = vld [vmem:[%s1485 + $0xa18] sm:$0xff]
        %v3217 = vld [vmem:[%s1485 + $0xa20] sm:$0xff]
        %v3218 = vld [vmem:[%s1485 + $0xa28] sm:$0xff]
        %v3219 = vld [vmem:[%s1485 + $0xa30] sm:$0xff]
        %v3220 = vld [vmem:[%s1485 + $0xa38] sm:$0xff]
        %v3221 = vld [vmem:[%s1485 + $0xa40] sm:$0xff]
        %v3222 = vld [vmem:[%s1485 + $0xa48] sm:$0xff]
        %v3223 = vld [vmem:[%s1485 + $0xa50] sm:$0xff]
        %v3224 = vld [vmem:[%s1485 + $0xa58] sm:$0xff]
        %v3225 = vld [vmem:[%s1485 + $0xa60] sm:$0xff]
        %v3226 = vld [vmem:[%s1485 + $0xa68] sm:$0xff]
        %v3227 = vld [vmem:[%s1485 + $0xa70] sm:$0xff]
        %v3228 = vld [vmem:[%s1485 + $0xa78] sm:$0xff]
        %v3229 = vld [vmem:[%s1485 + $0xa80] sm:$0xff]
        %v3230 = vld [vmem:[%s1485 + $0xa88] sm:$0xff]
        %v3231 = vld [vmem:[%s1485 + $0xa90] sm:$0xff]
        %v3232 = vld [vmem:[%s1485 + $0xa98] sm:$0xff]
        %v3233 = vld [vmem:[%s1485 + $0xaa0] sm:$0xff]
        %v3234 = vld [vmem:[%s1485 + $0xaa8] sm:$0xff]
        %v3235 = vld [vmem:[%s1485 + $0xab0] sm:$0xff]
        %v3236 = vld [vmem:[%s1485 + $0xab8] sm:$0xff]
        %v3237 = vld [vmem:[%s1485 + $0xac0] sm:$0xff]
        %v3238 = vld [vmem:[%s1485 + $0xac8] sm:$0xff]
        %v3239 = vld [vmem:[%s1485 + $0xad0] sm:$0xff]
        %v3240 = vld [vmem:[%s1485 + $0xad8] sm:$0xff]
        %v3241 = vld [vmem:[%s1485 + $0xae0] sm:$0xff]
        %v3242 = vld [vmem:[%s1485 + $0xae8] sm:$0xff]
        %v3243 = vld [vmem:[%s1485 + $0xaf0] sm:$0xff]
        %v3244 = vld [vmem:[%s1485 + $0xaf8] sm:$0xff]
        %v3245 = vld [vmem:[%s1485 + $0xb00] sm:$0xff]
        %v3246 = vld [vmem:[%s1485 + $0xb08] sm:$0xff]
        %v3247 = vld [vmem:[%s1485 + $0xb10] sm:$0xff]
        %v3248 = vld [vmem:[%s1485 + $0xb18] sm:$0xff]
        %v3249 = vld [vmem:[%s1485 + $0xb20] sm:$0xff]
        %v3250 = vld [vmem:[%s1485 + $0xb28] sm:$0xff]
        %v3251 = vld [vmem:[%s1485 + $0xb30] sm:$0xff]
        %v3252 = vld [vmem:[%s1485 + $0xb38] sm:$0xff]
        %v3253 = vld [vmem:[%s1485 + $0xb40] sm:$0xff]
        %v3254 = vld [vmem:[%s1485 + $0xb48] sm:$0xff]
        %v3255 = vld [vmem:[%s1485 + $0xb50] sm:$0xff]
        %v3256 = vld [vmem:[%s1485 + $0xb58] sm:$0xff]
        %v3257 = vld [vmem:[%s1485 + $0xb60] sm:$0xff]
        %v3258 = vld [vmem:[%s1485 + $0xb68] sm:$0xff]
        %v3259 = vld [vmem:[%s1485 + $0xb70] sm:$0xff]
        %v3260 = vld [vmem:[%s1485 + $0xb78] sm:$0xff]
        %v3261 = vld [vmem:[%s1485 + $0xb80] sm:$0xff]
        %v3262 = vld [vmem:[%s1485 + $0xb88] sm:$0xff]
        %v3263 = vld [vmem:[%s1485 + $0xb90] sm:$0xff]
        %v3264 = vld [vmem:[%s1485 + $0xb98] sm:$0xff]
        %v3265 = vld [vmem:[%s1485 + $0xba0] sm:$0xff]
        %v3266 = vld [vmem:[%s1485 + $0xba8] sm:$0xff]
        %v3267 = vld [vmem:[%s1485 + $0xbb0] sm:$0xff]
        %v3268 = vld [vmem:[%s1485 + $0xbb8] sm:$0xff]
        %v3269 = vld [vmem:[%s1485 + $0xbc0] sm:$0xff]
        %v3270 = vld [vmem:[%s1485 + $0xbc8] sm:$0xff]
        %v3271 = vld [vmem:[%s1485 + $0xbd0] sm:$0xff]
        %v3272 = vld [vmem:[%s1485 + $0xbd8] sm:$0xff]
        %v3273 = vld [vmem:[%s1485 + $0xbe0] sm:$0xff]
        %v3274 = vld [vmem:[%s1485 + $0xbe8] sm:$0xff]
        %v3275 = vld [vmem:[%s1485 + $0xbf0] sm:$0xff]
        %v3276 = vld [vmem:[%s1485 + $0xbf8] sm:$0xff]
        %v3277 = vld [vmem:[%s1485 + $0xc00] sm:$0xff]
        %v3278 = vld [vmem:[%s1485 + $0xc08] sm:$0xff]
        %v3279 = vld [vmem:[%s1485 + $0xc10] sm:$0xff]
        %v3280 = vld [vmem:[%s1485 + $0xc18] sm:$0xff]
        %v3281 = vld [vmem:[%s1485 + $0xc20] sm:$0xff]
        %v3282 = vld [vmem:[%s1485 + $0xc28] sm:$0xff]
        %v3283 = vld [vmem:[%s1485 + $0xc30] sm:$0xff]
        %v3284 = vld [vmem:[%s1485 + $0xc38] sm:$0xff]
        %v3285 = vld [vmem:[%s1485 + $0xc40] sm:$0xff]
        %v3286 = vld [vmem:[%s1485 + $0xc48] sm:$0xff]
        %v3287 = vld [vmem:[%s1485 + $0xc50] sm:$0xff]
        %v3288 = vld [vmem:[%s1485 + $0xc58] sm:$0xff]
        %v3289 = vld [vmem:[%s1485 + $0xc60] sm:$0xff]
        %v3290 = vld [vmem:[%s1485 + $0xc68] sm:$0xff]
        %v3291 = vld [vmem:[%s1485 + $0xc70] sm:$0xff]
        %v3292 = vld [vmem:[%s1485 + $0xc78] sm:$0xff]
        %v3293 = vld [vmem:[%s1485 + $0xc80] sm:$0xff]
        %v3294 = vld [vmem:[%s1485 + $0xc88] sm:$0xff]
        %v3295 = vld [vmem:[%s1485 + $0xc90] sm:$0xff]
        %v3296 = vld [vmem:[%s1485 + $0xc98] sm:$0xff]
        %v3297 = vld [vmem:[%s1485 + $0xca0] sm:$0xff]
        %v3298 = vld [vmem:[%s1485 + $0xca8] sm:$0xff]
        %v3299 = vld [vmem:[%s1485 + $0xcb0] sm:$0xff]
        %v3300 = vld [vmem:[%s1485 + $0xcb8] sm:$0xff]
        %v3301 = vld [vmem:[%s1485 + $0xcc0] sm:$0xff]
        %v3302 = vld [vmem:[%s1485 + $0xcc8] sm:$0xff]
        %v3303 = vld [vmem:[%s1485 + $0xcd0] sm:$0xff]
        %v3304 = vld [vmem:[%s1485 + $0xcd8] sm:$0xff]
        %v3305 = vld [vmem:[%s1485 + $0xce0] sm:$0xff]
        %v3306 = vld [vmem:[%s1485 + $0xce8] sm:$0xff]
        %v3307 = vld [vmem:[%s1485 + $0xcf0] sm:$0xff]
        %v3308 = vld [vmem:[%s1485 + $0xcf8] sm:$0xff]
        %v3309 = vld [vmem:[%s1485 + $0xd00] sm:$0xff]
        %v3310 = vld [vmem:[%s1485 + $0xd08] sm:$0xff]
        %v3311 = vld [vmem:[%s1485 + $0xd10] sm:$0xff]
        %v3312 = vld [vmem:[%s1485 + $0xd18] sm:$0xff]
        %v3313 = vld [vmem:[%s1485 + $0xd20] sm:$0xff]
        %v3314 = vld [vmem:[%s1485 + $0xd28] sm:$0xff]
        %v3315 = vld [vmem:[%s1485 + $0xd30] sm:$0xff]
        %v3316 = vld [vmem:[%s1485 + $0xd38] sm:$0xff]
        %v3317 = vld [vmem:[%s1485 + $0xd40] sm:$0xff]
        %v3318 = vld [vmem:[%s1485 + $0xd48] sm:$0xff]
        %v3319 = vld [vmem:[%s1485 + $0xd50] sm:$0xff]
        %v3320 = vld [vmem:[%s1485 + $0xd58] sm:$0xff]
        %v3321 = vld [vmem:[%s1485 + $0xd60] sm:$0xff]
        %v3322 = vld [vmem:[%s1485 + $0xd68] sm:$0xff]
        %v3323 = vld [vmem:[%s1485 + $0xd70] sm:$0xff]
        %v3324 = vld [vmem:[%s1485 + $0xd78] sm:$0xff]
        %v3325 = vld [vmem:[%s1485 + $0xd80] sm:$0xff]
        %v3326 = vld [vmem:[%s1485 + $0xd88] sm:$0xff]
        %v3327 = vld [vmem:[%s1485 + $0xd90] sm:$0xff]
        %v3328 = vld [vmem:[%s1485 + $0xd98] sm:$0xff]
        %v3329 = vld [vmem:[%s1485 + $0xda0] sm:$0xff]
        %v3330 = vld [vmem:[%s1485 + $0xda8] sm:$0xff]
        %v3331 = vld [vmem:[%s1485 + $0xdb0] sm:$0xff]
        %v3332 = vld [vmem:[%s1485 + $0xdb8] sm:$0xff]
        %v3333 = vld [vmem:[%s1485 + $0xdc0] sm:$0xff]
        %v3334 = vld [vmem:[%s1485 + $0xdc8] sm:$0xff]
        %v3335 = vld [vmem:[%s1485 + $0xdd0] sm:$0xff]
        %v3336 = vld [vmem:[%s1485 + $0xdd8] sm:$0xff]
        %v3337 = vld [vmem:[%s1485 + $0xde0] sm:$0xff]
        %v3338 = vld [vmem:[%s1485 + $0xde8] sm:$0xff]
        %v3339 = vld [vmem:[%s1485 + $0xdf0] sm:$0xff]
        %v3340 = vld [vmem:[%s1485 + $0xdf8] sm:$0xff]
        %v3341 = vld [vmem:[%s1485 + $0xe00] sm:$0xff]
        %v3342 = vld [vmem:[%s1485 + $0xe08] sm:$0xff]
        %v3343 = vld [vmem:[%s1485 + $0xe10] sm:$0xff]
        %v3344 = vld [vmem:[%s1485 + $0xe18] sm:$0xff]
        %v3345 = vld [vmem:[%s1485 + $0xe20] sm:$0xff]
        %v3346 = vld [vmem:[%s1485 + $0xe28] sm:$0xff]
        %v3347 = vld [vmem:[%s1485 + $0xe30] sm:$0xff]
        %v3348 = vld [vmem:[%s1485 + $0xe38] sm:$0xff]
        %v3349 = vld [vmem:[%s1485 + $0xe40] sm:$0xff]
        %v3350 = vld [vmem:[%s1485 + $0xe48] sm:$0xff]
        %v3351 = vld [vmem:[%s1485 + $0xe50] sm:$0xff]
        %v3352 = vld [vmem:[%s1485 + $0xe58] sm:$0xff]
        %v3353 = vld [vmem:[%s1485 + $0xe60] sm:$0xff]
        %v3354 = vld [vmem:[%s1485 + $0xe68] sm:$0xff]
        %v3355 = vld [vmem:[%s1485 + $0xe70] sm:$0xff]
        %v3356 = vld [vmem:[%s1485 + $0xe78] sm:$0xff]
        %v3357 = vld [vmem:[%s1485 + $0xe80] sm:$0xff]
        %v3358 = vld [vmem:[%s1485 + $0xe88] sm:$0xff]
        %v3359 = vld [vmem:[%s1485 + $0xe90] sm:$0xff]
        %v3360 = vld [vmem:[%s1485 + $0xe98] sm:$0xff]
        %v3361 = vld [vmem:[%s1485 + $0xea0] sm:$0xff]
        %v3362 = vld [vmem:[%s1485 + $0xea8] sm:$0xff]
        %v3363 = vld [vmem:[%s1485 + $0xeb0] sm:$0xff]
        %v3364 = vld [vmem:[%s1485 + $0xeb8] sm:$0xff]
        %v3365 = vld [vmem:[%s1485 + $0xec0] sm:$0xff]
        %v3366 = vld [vmem:[%s1485 + $0xec8] sm:$0xff]
        %v3367 = vld [vmem:[%s1485 + $0xed0] sm:$0xff]
        %v3368 = vld [vmem:[%s1485 + $0xed8] sm:$0xff]
        %v3369 = vld [vmem:[%s1485 + $0xee0] sm:$0xff]
        %v3370 = vld [vmem:[%s1485 + $0xee8] sm:$0xff]
        %v3371 = vld [vmem:[%s1485 + $0xef0] sm:$0xff]
        %v3372 = vld [vmem:[%s1485 + $0xef8] sm:$0xff]
        %v3373 = vld [vmem:[%s1485 + $0xf00] sm:$0xff]
        %v3374 = vld [vmem:[%s1485 + $0xf08] sm:$0xff]
        %v3375 = vld [vmem:[%s1485 + $0xf10] sm:$0xff]
        %v3376 = vld [vmem:[%s1485 + $0xf18] sm:$0xff]
        %v3377 = vld [vmem:[%s1485 + $0xf20] sm:$0xff]
        %v3378 = vld [vmem:[%s1485 + $0xf28] sm:$0xff]
        %v3379 = vld [vmem:[%s1485 + $0xf30] sm:$0xff]
        %v3380 = vld [vmem:[%s1485 + $0xf38] sm:$0xff]
        %v3381 = vld [vmem:[%s1485 + $0xf40] sm:$0xff]
        %v3382 = vld [vmem:[%s1485 + $0xf48] sm:$0xff]
        %v3383 = vld [vmem:[%s1485 + $0xf50] sm:$0xff]
        %v3384 = vld [vmem:[%s1485 + $0xf58] sm:$0xff]
        %v3385 = vld [vmem:[%s1485 + $0xf60] sm:$0xff]
        %v3386 = vld [vmem:[%s1485 + $0xf68] sm:$0xff]
        %v3387 = vld [vmem:[%s1485 + $0xf70] sm:$0xff]
        %v3388 = vld [vmem:[%s1485 + $0xf78] sm:$0xff]
        %v3389 = vld [vmem:[%s1485 + $0xf80] sm:$0xff]
        %v3390 = vld [vmem:[%s1485 + $0xf88] sm:$0xff]
        %v3391 = vld [vmem:[%s1485 + $0xf90] sm:$0xff]
        %v3392 = vld [vmem:[%s1485 + $0xf98] sm:$0xff]
        %v3393 = vld [vmem:[%s1485 + $0xfa0] sm:$0xff]
        %v3394 = vld [vmem:[%s1485 + $0xfa8] sm:$0xff]
        %v3395 = vld [vmem:[%s1485 + $0xfb0] sm:$0xff]
        %v3396 = vld [vmem:[%s1485 + $0xfb8] sm:$0xff]
        %v3397 = vld [vmem:[%s1485 + $0xfc0] sm:$0xff]
        %v3398 = vld [vmem:[%s1485 + $0xfc8] sm:$0xff]
        %v3399 = vld [vmem:[%s1485 + $0xfd0] sm:$0xff]
        %v3400 = vld [vmem:[%s1485 + $0xfd8] sm:$0xff]
        %v3401 = vld [vmem:[%s1485 + $0xfe0] sm:$0xff]
        %v3402 = vld [vmem:[%s1485 + $0xfe8] sm:$0xff]
        %v3403 = vld [vmem:[%s1485 + $0xff0] sm:$0xff]
        %v3404 = vld [vmem:[%s1485 + $0xff8] sm:$0xff]
        %v3405 = vld [vmem:[%s1485 + $0x1000] sm:$0xff]
        %v3406 = vld [vmem:[%s1485 + $0x1008] sm:$0xff]
        %v3407 = vld [vmem:[%s1485 + $0x1010] sm:$0xff]
        %v3408 = vld [vmem:[%s1485 + $0x1018] sm:$0xff]
        %v3409 = vld [vmem:[%s1485 + $0x1020] sm:$0xff]
        %v3410 = vld [vmem:[%s1485 + $0x1028] sm:$0xff]
        %v3411 = vld [vmem:[%s1485 + $0x1030] sm:$0xff]
        %v3412 = vld [vmem:[%s1485 + $0x1038] sm:$0xff]
        %v3413 = vld [vmem:[%s1485 + $0x1040] sm:$0xff]
        %v3414 = vld [vmem:[%s1485 + $0x1048] sm:$0xff]
        %v3415 = vld [vmem:[%s1485 + $0x1050] sm:$0xff]
        %v3416 = vld [vmem:[%s1485 + $0x1058] sm:$0xff]
        %v3417 = vld [vmem:[%s1485 + $0x1060] sm:$0xff]
        %v3418 = vld [vmem:[%s1485 + $0x1068] sm:$0xff]
        %v3419 = vld [vmem:[%s1485 + $0x1070] sm:$0xff]
        %v3420 = vld [vmem:[%s1485 + $0x1078] sm:$0xff]
        %v3421 = vld [vmem:[%s1485 + $0x1080] sm:$0xff]
        %v3422 = vld [vmem:[%s1485 + $0x1088] sm:$0xff]
        %v3423 = vld [vmem:[%s1485 + $0x1090] sm:$0xff]
        %v3424 = vld [vmem:[%s1485 + $0x1098] sm:$0xff]
        %v3425 = vld [vmem:[%s1485 + $0x10a0] sm:$0xff]
        %v3426 = vld [vmem:[%s1485 + $0x10a8] sm:$0xff]
        %v3427 = vld [vmem:[%s1485 + $0x10b0] sm:$0xff]
        %v3428 = vld [vmem:[%s1485 + $0x10b8] sm:$0xff]
        %v3429 = vld [vmem:[%s1485 + $0x10c0] sm:$0xff]
        %v3430 = vld [vmem:[%s1485 + $0x10c8] sm:$0xff]
        %v3431 = vld [vmem:[%s1485 + $0x10d0] sm:$0xff]
        %v3432 = vld [vmem:[%s1485 + $0x10d8] sm:$0xff]
        %v3433 = vld [vmem:[%s1485 + $0x10e0] sm:$0xff]
        %v3434 = vld [vmem:[%s1485 + $0x10e8] sm:$0xff]
        %v3435 = vld [vmem:[%s1485 + $0x10f0] sm:$0xff]
        %v3436 = vld [vmem:[%s1485 + $0x10f8] sm:$0xff]
        %v3437 = vld [vmem:[%s1485 + $0x1100] sm:$0xff]
        %v3438 = vld [vmem:[%s1485 + $0x1108] sm:$0xff]
        %v3439 = vld [vmem:[%s1485 + $0x1110] sm:$0xff]
        %v3440 = vld [vmem:[%s1485 + $0x1118] sm:$0xff]
        %v3441 = vld [vmem:[%s1485 + $0x1120] sm:$0xff]
        %v3442 = vld [vmem:[%s1485 + $0x1128] sm:$0xff]
        %v3443 = vld [vmem:[%s1485 + $0x1130] sm:$0xff]
        %v3444 = vld [vmem:[%s1485 + $0x1138] sm:$0xff]
        %v3445 = vld [vmem:[%s1485 + $0x1140] sm:$0xff]
        %v3446 = vld [vmem:[%s1485 + $0x1148] sm:$0xff]
        %v3447 = vld [vmem:[%s1485 + $0x1150] sm:$0xff]
        %v3448 = vld [vmem:[%s1485 + $0x1158] sm:$0xff]
        %v3449 = vld [vmem:[%s1485 + $0x1160] sm:$0xff]
        %v3450 = vld [vmem:[%s1485 + $0x1168] sm:$0xff]
        %v3451 = vld [vmem:[%s1485 + $0x1170] sm:$0xff]
        %v3452 = vld [vmem:[%s1485 + $0x1178] sm:$0xff]
        %v3453 = vld [vmem:[%s1485 + $0x1180] sm:$0xff]
        %v3454 = vld [vmem:[%s1485 + $0x1188] sm:$0xff]
        %v3455 = vld [vmem:[%s1485 + $0x1190] sm:$0xff]
        %v3456 = vld [vmem:[%s1485 + $0x1198] sm:$0xff]
        %v3457 = vld [vmem:[%s1485 + $0x11a0] sm:$0xff]
        %v3458 = vld [vmem:[%s1485 + $0x11a8] sm:$0xff]
        %v3459 = vld [vmem:[%s1485 + $0x11b0] sm:$0xff]
        %v3460 = vld [vmem:[%s1485 + $0x11b8] sm:$0xff]
        %v3461 = vld [vmem:[%s1485 + $0x11c0] sm:$0xff]
        %v3462 = vld [vmem:[%s1485 + $0x11c8] sm:$0xff]
        %v3463 = vld [vmem:[%s1485 + $0x11d0] sm:$0xff]
        %v3464 = vld [vmem:[%s1485 + $0x11d8] sm:$0xff]
        %v3465 = vld [vmem:[%s1485 + $0x11e0] sm:$0xff]
        %v3466 = vld [vmem:[%s1485 + $0x11e8] sm:$0xff]
        %v3467 = vld [vmem:[%s1485 + $0x11f0] sm:$0xff]
        %v3468 = vld [vmem:[%s1485 + $0x11f8] sm:$0xff]
        %3469 = vmatprep.subr.mxu0 %v2894
        %3470 = vmatpush1.msra.mxu0 %v2893
        %3471 = vmatprep.subr.mxu0 %v2900
        %3472 = vmatpush1.msra.mxu0 %v2899
        %3473 = vmatprep.subr.mxu0 %v2906
        %3474 = vmatpush1.msra.mxu0 %v2905
        %3475 = vmatprep.subr.mxu0 %v2912
        %3476 = vmatpush1.msra.mxu0 %v2911
        %3477 = vmatprep.subr.mxu0 %v2918
        %3478 = vmatpush1.msra.mxu0 %v2917
        %3479 = vmatprep.subr.mxu0 %v2924
        %3480 = vmatpush1.msra.mxu0 %v2923
        %3481 = vmatprep.subr.mxu0 %v2930
        %3482 = vmatpush1.msra.mxu0 %v2929
        %3483 = vmatprep.subr.mxu0 %v2936
        %3484 = vmatpush1.msra.mxu0 %v2935
        %3485 = vmatprep.subr.mxu0 %v2942
        %3486 = vmatpush1.msra.mxu0 %v2941
        %3487 = vmatprep.subr.mxu0 %v2948
        %3488 = vmatpush1.msra.mxu0 %v2947
        %3489 = vmatprep.subr.mxu0 %v2954
        %3490 = vmatpush1.msra.mxu0 %v2953
        %3491 = vmatprep.subr.mxu0 %v2960
        %3492 = vmatpush1.msra.mxu0 %v2959
        %3493 = vmatprep.subr.mxu0 %v2966
        %3494 = vmatpush1.msra.mxu0 %v2965
        %3495 = vmatprep.subr.mxu0 %v2972
        %3496 = vmatpush1.msra.mxu0 %v2971
        %3497 = vmatprep.subr.mxu0 %v2978
        %3498 = vmatpush1.msra.mxu0 %v2977
        %3499 = vmatprep.subr.mxu0 %v2984
        %3500 = vmatpush1.msra.mxu0 %v2983
        %3501 = vmatprep.subr.mxu0 %v2990
        %3502 = vmatpush1.msra.mxu0 %v2989
        %3503 = vmatprep.subr.mxu0 %v2996
        %3504 = vmatpush1.msra.mxu0 %v2995
        %3505 = vmatprep.subr.mxu0 %v3002
        %3506 = vmatpush1.msra.mxu0 %v3001
        %3507 = vmatprep.subr.mxu0 %v3008
        %3508 = vmatpush1.msra.mxu0 %v3007
        %3509 = vmatprep.subr.mxu0 %v3014
        %3510 = vmatpush1.msra.mxu0 %v3013
        %3511 = vmatprep.subr.mxu0 %v3020
        %3512 = vmatpush1.msra.mxu0 %v3019
        %3513 = vmatprep.subr.mxu0 %v3026
        %3514 = vmatpush1.msra.mxu0 %v3025
        %3515 = vmatprep.subr.mxu0 %v3032
        %3516 = vmatpush1.msra.mxu0 %v3031
        %3517 = vmatprep.subr.mxu0 %v3038
        %3518 = vmatpush1.msra.mxu0 %v3037
        %3519 = vmatprep.subr.mxu0 %v3044
        %3520 = vmatpush1.msra.mxu0 %v3043
        %3521 = vmatprep.subr.mxu0 %v3050
        %3522 = vmatpush1.msra.mxu0 %v3049
        %3523 = vmatprep.subr.mxu0 %v3056
        %3524 = vmatpush1.msra.mxu0 %v3055
        %3525 = vmatprep.subr.mxu0 %v3062
        %3526 = vmatpush1.msra.mxu0 %v3061
        %3527 = vmatprep.subr.mxu0 %v3068
        %3528 = vmatpush1.msra.mxu0 %v3067
        %3529 = vmatprep.subr.mxu0 %v3074
        %3530 = vmatpush1.msra.mxu0 %v3073
        %3531 = vmatprep.subr.mxu0 %v3080
        %3532 = vmatpush1.msra.mxu0 %v3079
        %3533 = vmatprep.mubr.f32.mxu0 %v2870
        %3534 = vmatmul.mubr.f32.gmra.mrb[0].mxu0 %v2869
        %v3535 = vpop.f32.mrb[0].mxu0
        %v3536 = vadd.f32 0.0, %v3535
        %v3537 = vpop.f32.mrb[0].mxu0
        %v3538 = vadd.f32 0.0, %v3537
        %3539 = vmatprep.mubr.f32.mxu0 %v2876
        %3540 = vmatmul.mubr.f32.gmra.mrb[0].mxu0 %v2875
        %v3541 = vpop.f32.mrb[0].mxu0
        %v3542 = vadd.f32 0.0, %v3541
        %v3543 = vpop.f32.mrb[0].mxu0
        %v3544 = vadd.f32 0.0, %v3543
        %3545 = vdwg.mxu0
        %3546 = vmatprep.subr.mxu0 %v3086
        %3547 = vmatpush1.msra.mxu0 %v3085
        %3548 = vmatprep.subr.mxu0 %v3092
        %3549 = vmatpush1.msra.mxu0 %v3091
        %3550 = vmatprep.subr.mxu0 %v3098
        %3551 = vmatpush1.msra.mxu0 %v3097
        %3552 = vmatprep.subr.mxu0 %v3104
        %3553 = vmatpush1.msra.mxu0 %v3103
        %3554 = vmatprep.subr.mxu0 %v3110
        %3555 = vmatpush1.msra.mxu0 %v3109
        %3556 = vmatprep.subr.mxu0 %v3116
        %3557 = vmatpush1.msra.mxu0 %v3115
        %3558 = vmatprep.subr.mxu0 %v3122
        %3559 = vmatpush1.msra.mxu0 %v3121
        %3560 = vmatprep.subr.mxu0 %v3128
        %3561 = vmatpush1.msra.mxu0 %v3127
        %3562 = vmatprep.subr.mxu0 %v3134
        %3563 = vmatpush1.msra.mxu0 %v3133
        %3564 = vmatprep.subr.mxu0 %v3140
        %3565 = vmatpush1.msra.mxu0 %v3139
        %3566 = vmatprep.subr.mxu0 %v3146
        %3567 = vmatpush1.msra.mxu0 %v3145
        %3568 = vmatprep.subr.mxu0 %v3152
        %3569 = vmatpush1.msra.mxu0 %v3151
        %3570 = vmatprep.subr.mxu0 %v3158
        %3571 = vmatpush1.msra.mxu0 %v3157
        %3572 = vmatprep.subr.mxu0 %v3164
        %3573 = vmatpush1.msra.mxu0 %v3163
        %3574 = vmatprep.subr.mxu0 %v3170
        %3575 = vmatpush1.msra.mxu0 %v3169
        %3576 = vmatprep.subr.mxu0 %v3176
        %3577 = vmatpush1.msra.mxu0 %v3175
        %3578 = vmatprep.subr.mxu0 %v3182
        %3579 = vmatpush1.msra.mxu0 %v3181
        %3580 = vmatprep.subr.mxu0 %v3188
        %3581 = vmatpush1.msra.mxu0 %v3187
        %3582 = vmatprep.subr.mxu0 %v3194
        %3583 = vmatpush1.msra.mxu0 %v3193
        %3584 = vmatprep.subr.mxu0 %v3200
        %3585 = vmatpush1.msra.mxu0 %v3199
        %3586 = vmatprep.subr.mxu0 %v3206
        %3587 = vmatpush1.msra.mxu0 %v3205
        %3588 = vmatprep.subr.mxu0 %v3212
        %3589 = vmatpush1.msra.mxu0 %v3211
        %3590 = vmatprep.subr.mxu0 %v3218
        %3591 = vmatpush1.msra.mxu0 %v3217
        %3592 = vmatprep.subr.mxu0 %v3224
        %3593 = vmatpush1.msra.mxu0 %v3223
        %3594 = vmatprep.subr.mxu0 %v3230
        %3595 = vmatpush1.msra.mxu0 %v3229
        %3596 = vmatprep.subr.mxu0 %v3236
        %3597 = vmatpush1.msra.mxu0 %v3235
        %3598 = vmatprep.subr.mxu0 %v3242
        %3599 = vmatpush1.msra.mxu0 %v3241
        %3600 = vmatprep.subr.mxu0 %v3248
        %3601 = vmatpush1.msra.mxu0 %v3247
        %3602 = vmatprep.subr.mxu0 %v3254
        %3603 = vmatpush1.msra.mxu0 %v3253
        %3604 = vmatprep.subr.mxu0 %v3260
        %3605 = vmatpush1.msra.mxu0 %v3259
        %3606 = vmatprep.subr.mxu0 %v3266
        %3607 = vmatpush1.msra.mxu0 %v3265
        %3608 = vmatprep.subr.mxu0 %v3272
        %3609 = vmatpush1.msra.mxu0 %v3271
        %3610 = vmatprep.mubr.f32.mxu0 %v2872
        %3611 = vmatmul.mubr.f32.gmra.mrb[0].mxu0 %v2871
        %v3612 = vpop.f32.mrb[0].mxu0
        %v3613 = vadd.f32 %v3536, %v3612
        %v3614 = vpop.f32.mrb[0].mxu0
        %v3615 = vadd.f32 %v3538, %v3614
        %3616 = vmatprep.mubr.f32.mxu0 %v2878
        %3617 = vmatmul.mubr.f32.gmra.mrb[0].mxu0 %v2877
        %v3618 = vpop.f32.mrb[0].mxu0
        %v3619 = vadd.f32 %v3542, %v3618
        %v3620 = vpop.f32.mrb[0].mxu0
        %v3621 = vadd.f32 %v3544, %v3620
        %3622 = vdwg.mxu0
        %3623 = vmatprep.subr.mxu0 %v3278
        %3624 = vmatpush1.msra.mxu0 %v3277
        %3625 = vmatprep.subr.mxu0 %v3284
        %3626 = vmatpush1.msra.mxu0 %v3283
        %3627 = vmatprep.subr.mxu0 %v3290
        %3628 = vmatpush1.msra.mxu0 %v3289
        %3629 = vmatprep.subr.mxu0 %v3296
        %3630 = vmatpush1.msra.mxu0 %v3295
        %3631 = vmatprep.subr.mxu0 %v3302
        %3632 = vmatpush1.msra.mxu0 %v3301
        %3633 = vmatprep.subr.mxu0 %v3308
        %3634 = vmatpush1.msra.mxu0 %v3307
        %3635 = vmatprep.subr.mxu0 %v3314
        %3636 = vmatpush1.msra.mxu0 %v3313
        %3637 = vmatprep.subr.mxu0 %v3320
        %3638 = vmatpush1.msra.mxu0 %v3319
        %3639 = vmatprep.subr.mxu0 %v3326
        %3640 = vmatpush1.msra.mxu0 %v3325
        %3641 = vmatprep.subr.mxu0 %v3332
        %3642 = vmatpush1.msra.mxu0 %v3331
        %3643 = vmatprep.subr.mxu0 %v3338
        %3644 = vmatpush1.msra.mxu0 %v3337
        %3645 = vmatprep.subr.mxu0 %v3344
        %3646 = vmatpush1.msra.mxu0 %v3343
        %3647 = vmatprep.subr.mxu0 %v3350
        %3648 = vmatpush1.msra.mxu0 %v3349
        %3649 = vmatprep.subr.mxu0 %v3356
        %3650 = vmatpush1.msra.mxu0 %v3355
        %3651 = vmatprep.subr.mxu0 %v3362
        %3652 = vmatpush1.msra.mxu0 %v3361
        %3653 = vmatprep.subr.mxu0 %v3368
        %3654 = vmatpush1.msra.mxu0 %v3367
        %3655 = vmatprep.subr.mxu0 %v3374
        %3656 = vmatpush1.msra.mxu0 %v3373
        %3657 = vmatprep.subr.mxu0 %v3380
        %3658 = vmatpush1.msra.mxu0 %v3379
        %3659 = vmatprep.subr.mxu0 %v3386
        %3660 = vmatpush1.msra.mxu0 %v3385
        %3661 = vmatprep.subr.mxu0 %v3392
        %3662 = vmatpush1.msra.mxu0 %v3391
        %3663 = vmatprep.subr.mxu0 %v3398
        %3664 = vmatpush1.msra.mxu0 %v3397
        %3665 = vmatprep.subr.mxu0 %v3404
        %3666 = vmatpush1.msra.mxu0 %v3403
        %3667 = vmatprep.subr.mxu0 %v3410
        %3668 = vmatpush1.msra.mxu0 %v3409
        %3669 = vmatprep.subr.mxu0 %v3416
        %3670 = vmatpush1.msra.mxu0 %v3415
        %3671 = vmatprep.subr.mxu0 %v3422
        %3672 = vmatpush1.msra.mxu0 %v3421
        %3673 = vmatprep.subr.mxu0 %v3428
        %3674 = vmatpush1.msra.mxu0 %v3427
        %3675 = vmatprep.subr.mxu0 %v3434
        %3676 = vmatpush1.msra.mxu0 %v3433
        %3677 = vmatprep.subr.mxu0 %v3440
        %3678 = vmatpush1.msra.mxu0 %v3439
        %3679 = vmatprep.subr.mxu0 %v3446
        %3680 = vmatpush1.msra.mxu0 %v3445
        %3681 = vmatprep.subr.mxu0 %v3452
        %3682 = vmatpush1.msra.mxu0 %v3451
        %3683 = vmatprep.subr.mxu0 %v3458
        %3684 = vmatpush1.msra.mxu0 %v3457
        %3685 = vmatprep.subr.mxu0 %v3464
        %3686 = vmatpush1.msra.mxu0 %v3463
        %3687 = vmatprep.mubr.f32.mxu0 %v2874
        %3688 = vmatmul.mubr.f32.gmra.mrb[0].mxu0 %v2873
        %v3689 = vpop.f32.mrb[0].mxu0
        %v3690 = vadd.f32 %v3613, %v3689
        %v3691 = vpop.f32.mrb[0].mxu0
        %v3692 = vadd.f32 %v3615, %v3691
        %3693 = vmatprep.mubr.f32.mxu0 %v2880
        %3694 = vmatmul.mubr.f32.gmra.mrb[0].mxu0 %v2879
        %v3695 = vpop.f32.mrb[0].mxu0
        %v3696 = vadd.f32 %v3619, %v3695
        %v3697 = vpop.f32.mrb[0].mxu0
        %v3698 = vadd.f32 %v3621, %v3697
        %3699 = vdwg.mxu0
        %3700 = vmatprep.subr.mxu0 %v2896
        %3701 = vmatpush1.msra.mxu0 %v2895
        %3702 = vmatprep.subr.mxu0 %v2902
        %3703 = vmatpush1.msra.mxu0 %v2901
        %3704 = vmatprep.subr.mxu0 %v2908
        %3705 = vmatpush1.msra.mxu0 %v2907
        %3706 = vmatprep.subr.mxu0 %v2914
        %3707 = vmatpush1.msra.mxu0 %v2913
        %3708 = vmatprep.subr.mxu0 %v2920
        %3709 = vmatpush1.msra.mxu0 %v2919
        %3710 = vmatprep.subr.mxu0 %v2926
        %3711 = vmatpush1.msra.mxu0 %v2925
        %3712 = vmatprep.subr.mxu0 %v2932
        %3713 = vmatpush1.msra.mxu0 %v2931
        %3714 = vmatprep.subr.mxu0 %v2938
        %3715 = vmatpush1.msra.mxu0 %v2937
        %3716 = vmatprep.subr.mxu0 %v2944
        %3717 = vmatpush1.msra.mxu0 %v2943
        %3718 = vmatprep.subr.mxu0 %v2950
        %3719 = vmatpush1.msra.mxu0 %v2949
        %3720 = vmatprep.subr.mxu0 %v2956
        %3721 = vmatpush1.msra.mxu0 %v2955
        %3722 = vmatprep.subr.mxu0 %v2962
        %3723 = vmatpush1.msra.mxu0 %v2961
        %3724 = vmatprep.subr.mxu0 %v2968
        %3725 = vmatpush1.msra.mxu0 %v2967
        %3726 = vmatprep.subr.mxu0 %v2974
        %3727 = vmatpush1.msra.mxu0 %v2973
        %3728 = vmatprep.subr.mxu0 %v2980
        %3729 = vmatpush1.msra.mxu0 %v2979
        %3730 = vmatprep.subr.mxu0 %v2986
        %3731 = vmatpush1.msra.mxu0 %v2985
        %3732 = vmatprep.subr.mxu0 %v2992
        %3733 = vmatpush1.msra.mxu0 %v2991
        %3734 = vmatprep.subr.mxu0 %v2998
        %3735 = vmatpush1.msra.mxu0 %v2997
        %3736 = vmatprep.subr.mxu0 %v3004
        %3737 = vmatpush1.msra.mxu0 %v3003
        %3738 = vmatprep.subr.mxu0 %v3010
        %3739 = vmatpush1.msra.mxu0 %v3009
        %3740 = vmatprep.subr.mxu0 %v3016
        %3741 = vmatpush1.msra.mxu0 %v3015
        %3742 = vmatprep.subr.mxu0 %v3022
        %3743 = vmatpush1.msra.mxu0 %v3021
        %3744 = vmatprep.subr.mxu0 %v3028
        %3745 = vmatpush1.msra.mxu0 %v3027
        %3746 = vmatprep.subr.mxu0 %v3034
        %3747 = vmatpush1.msra.mxu0 %v3033
        %3748 = vmatprep.subr.mxu0 %v3040
        %3749 = vmatpush1.msra.mxu0 %v3039
        %3750 = vmatprep.subr.mxu0 %v3046
        %3751 = vmatpush1.msra.mxu0 %v3045
        %3752 = vmatprep.subr.mxu0 %v3052
        %3753 = vmatpush1.msra.mxu0 %v3051
        %3754 = vmatprep.subr.mxu0 %v3058
        %3755 = vmatpush1.msra.mxu0 %v3057
        %3756 = vmatprep.subr.mxu0 %v3064
        %3757 = vmatpush1.msra.mxu0 %v3063
        %3758 = vmatprep.subr.mxu0 %v3070
        %3759 = vmatpush1.msra.mxu0 %v3069
        %3760 = vmatprep.subr.mxu0 %v3076
        %3761 = vmatpush1.msra.mxu0 %v3075
        %3762 = vmatprep.subr.mxu0 %v3082
        %3763 = vmatpush1.msra.mxu0 %v3081
        %3764 = vmatprep.mubr.f32.mxu0 %v2870
        %3765 = vmatmul.mubr.f32.gmra.mrb[0].mxu0 %v2869
        %v3766 = vpop.f32.mrb[0].mxu0
        %v3767 = vadd.f32 0.0, %v3766
        %v3768 = vpop.f32.mrb[0].mxu0
        %v3769 = vadd.f32 0.0, %v3768
        %3770 = vmatprep.mubr.f32.mxu0 %v2876
        %3771 = vmatmul.mubr.f32.gmra.mrb[0].mxu0 %v2875
        %v3772 = vpop.f32.mrb[0].mxu0
        %v3773 = vadd.f32 0.0, %v3772
        %v3774 = vpop.f32.mrb[0].mxu0
        %v3775 = vadd.f32 0.0, %v3774
        %3776 = vdwg.mxu0
        %3777 = vmatprep.subr.mxu0 %v3088
        %3778 = vmatpush1.msra.mxu0 %v3087
        %3779 = vmatprep.subr.mxu0 %v3094
        %3780 = vmatpush1.msra.mxu0 %v3093
        %3781 = vmatprep.subr.mxu0 %v3100
        %3782 = vmatpush1.msra.mxu0 %v3099
        %3783 = vmatprep.subr.mxu0 %v3106
        %3784 = vmatpush1.msra.mxu0 %v3105
        %3785 = vmatprep.subr.mxu0 %v3112
        %3786 = vmatpush1.msra.mxu0 %v3111
        %3787 = vmatprep.subr.mxu0 %v3118
        %3788 = vmatpush1.msra.mxu0 %v3117
        %3789 = vmatprep.subr.mxu0 %v3124
        %3790 = vmatpush1.msra.mxu0 %v3123
        %3791 = vmatprep.subr.mxu0 %v3130
        %3792 = vmatpush1.msra.mxu0 %v3129
        %3793 = vmatprep.subr.mxu0 %v3136
        %3794 = vmatpush1.msra.mxu0 %v3135
        %3795 = vmatprep.subr.mxu0 %v3142
        %3796 = vmatpush1.msra.mxu0 %v3141
        %3797 = vmatprep.subr.mxu0 %v3148
        %3798 = vmatpush1.msra.mxu0 %v3147
        %3799 = vmatprep.subr.mxu0 %v3154
        %3800 = vmatpush1.msra.mxu0 %v3153
        %3801 = vmatprep.subr.mxu0 %v3160
        %3802 = vmatpush1.msra.mxu0 %v3159
        %3803 = vmatprep.subr.mxu0 %v3166
        %3804 = vmatpush1.msra.mxu0 %v3165
        %3805 = vmatprep.subr.mxu0 %v3172
        %3806 = vmatpush1.msra.mxu0 %v3171
        %3807 = vmatprep.subr.mxu0 %v3178
        %3808 = vmatpush1.msra.mxu0 %v3177
        %3809 = vmatprep.subr.mxu0 %v3184
        %3810 = vmatpush1.msra.mxu0 %v3183
        %3811 = vmatprep.subr.mxu0 %v3190
        %3812 = vmatpush1.msra.mxu0 %v3189
        %3813 = vmatprep.subr.mxu0 %v3196
        %3814 = vmatpush1.msra.mxu0 %v3195
        %3815 = vmatprep.subr.mxu0 %v3202
        %3816 = vmatpush1.msra.mxu0 %v3201
        %3817 = vmatprep.subr.mxu0 %v3208
        %3818 = vmatpush1.msra.mxu0 %v3207
        %3819 = vmatprep.subr.mxu0 %v3214
        %3820 = vmatpush1.msra.mxu0 %v3213
        %3821 = vmatprep.subr.mxu0 %v3220
        %3822 = vmatpush1.msra.mxu0 %v3219
        %3823 = vmatprep.subr.mxu0 %v3226
        %3824 = vmatpush1.msra.mxu0 %v3225
        %3825 = vmatprep.subr.mxu0 %v3232
        %3826 = vmatpush1.msra.mxu0 %v3231
        %3827 = vmatprep.subr.mxu0 %v3238
        %3828 = vmatpush1.msra.mxu0 %v3237
        %3829 = vmatprep.subr.mxu0 %v3244
        %3830 = vmatpush1.msra.mxu0 %v3243
        %3831 = vmatprep.subr.mxu0 %v3250
        %3832 = vmatpush1.msra.mxu0 %v3249
        %3833 = vmatprep.subr.mxu0 %v3256
        %3834 = vmatpush1.msra.mxu0 %v3255
        %3835 = vmatprep.subr.mxu0 %v3262
        %3836 = vmatpush1.msra.mxu0 %v3261
        %3837 = vmatprep.subr.mxu0 %v3268
        %3838 = vmatpush1.msra.mxu0 %v3267
        %3839 = vmatprep.subr.mxu0 %v3274
        %3840 = vmatpush1.msra.mxu0 %v3273
        %3841 = vmatprep.mubr.f32.mxu0 %v2872
        %3842 = vmatmul.mubr.f32.gmra.mrb[0].mxu0 %v2871
        %v3843 = vpop.f32.mrb[0].mxu0
        %v3844 = vadd.f32 %v3767, %v3843
        %v3845 = vpop.f32.mrb[0].mxu0
        %v3846 = vadd.f32 %v3769, %v3845
        %3847 = vmatprep.mubr.f32.mxu0 %v2878
        %3848 = vmatmul.mubr.f32.gmra.mrb[0].mxu0 %v2877
        %v3849 = vpop.f32.mrb[0].mxu0
        %v3850 = vadd.f32 %v3773, %v3849
        %v3851 = vpop.f32.mrb[0].mxu0
        %v3852 = vadd.f32 %v3775, %v3851
        %3853 = vdwg.mxu0
        %3854 = vmatprep.subr.mxu0 %v3280
        %3855 = vmatpush1.msra.mxu0 %v3279
        %3856 = vmatprep.subr.mxu0 %v3286
        %3857 = vmatpush1.msra.mxu0 %v3285
        %3858 = vmatprep.subr.mxu0 %v3292
        %3859 = vmatpush1.msra.mxu0 %v3291
        %3860 = vmatprep.subr.mxu0 %v3298
        %3861 = vmatpush1.msra.mxu0 %v3297
        %3862 = vmatprep.subr.mxu0 %v3304
        %3863 = vmatpush1.msra.mxu0 %v3303
        %3864 = vmatprep.subr.mxu0 %v3310
        %3865 = vmatpush1.msra.mxu0 %v3309
        %3866 = vmatprep.subr.mxu0 %v3316
        %3867 = vmatpush1.msra.mxu0 %v3315
        %3868 = vmatprep.subr.mxu0 %v3322
        %3869 = vmatpush1.msra.mxu0 %v3321
        %3870 = vmatprep.subr.mxu0 %v3328
        %3871 = vmatpush1.msra.mxu0 %v3327
        %3872 = vmatprep.subr.mxu0 %v3334
        %3873 = vmatpush1.msra.mxu0 %v3333
        %3874 = vmatprep.subr.mxu0 %v3340
        %3875 = vmatpush1.msra.mxu0 %v3339
        %3876 = vmatprep.subr.mxu0 %v3346
        %3877 = vmatpush1.msra.mxu0 %v3345
        %3878 = vmatprep.subr.mxu0 %v3352
        %3879 = vmatpush1.msra.mxu0 %v3351
        %3880 = vmatprep.subr.mxu0 %v3358
        %3881 = vmatpush1.msra.mxu0 %v3357
        %3882 = vmatprep.subr.mxu0 %v3364
        %3883 = vmatpush1.msra.mxu0 %v3363
        %3884 = vmatprep.subr.mxu0 %v3370
        %3885 = vmatpush1.msra.mxu0 %v3369
        %3886 = vmatprep.subr.mxu0 %v3376
        %3887 = vmatpush1.msra.mxu0 %v3375
        %3888 = vmatprep.subr.mxu0 %v3382
        %3889 = vmatpush1.msra.mxu0 %v3381
        %3890 = vmatprep.subr.mxu0 %v3388
        %3891 = vmatpush1.msra.mxu0 %v3387
        %3892 = vmatprep.subr.mxu0 %v3394
        %3893 = vmatpush1.msra.mxu0 %v3393
        %3894 = vmatprep.subr.mxu0 %v3400
        %3895 = vmatpush1.msra.mxu0 %v3399
        %3896 = vmatprep.subr.mxu0 %v3406
        %3897 = vmatpush1.msra.mxu0 %v3405
        %3898 = vmatprep.subr.mxu0 %v3412
        %3899 = vmatpush1.msra.mxu0 %v3411
        %3900 = vmatprep.subr.mxu0 %v3418
        %3901 = vmatpush1.msra.mxu0 %v3417
        %3902 = vmatprep.subr.mxu0 %v3424
        %3903 = vmatpush1.msra.mxu0 %v3423
        %3904 = vmatprep.subr.mxu0 %v3430
        %3905 = vmatpush1.msra.mxu0 %v3429
        %3906 = vmatprep.subr.mxu0 %v3436
        %3907 = vmatpush1.msra.mxu0 %v3435
        %3908 = vmatprep.subr.mxu0 %v3442
        %3909 = vmatpush1.msra.mxu0 %v3441
        %3910 = vmatprep.subr.mxu0 %v3448
        %3911 = vmatpush1.msra.mxu0 %v3447
        %3912 = vmatprep.subr.mxu0 %v3454
        %3913 = vmatpush1.msra.mxu0 %v3453
        %3914 = vmatprep.subr.mxu0 %v3460
        %3915 = vmatpush1.msra.mxu0 %v3459
        %3916 = vmatprep.subr.mxu0 %v3466
        %3917 = vmatpush1.msra.mxu0 %v3465
        %3918 = vmatprep.mubr.f32.mxu0 %v2874
        %3919 = vmatmul.mubr.f32.gmra.mrb[0].mxu0 %v2873
        %v3920 = vpop.f32.mrb[0].mxu0
        %v3921 = vadd.f32 %v3844, %v3920
        %v3922 = vpop.f32.mrb[0].mxu0
        %v3923 = vadd.f32 %v3846, %v3922
        %3924 = vmatprep.mubr.f32.mxu0 %v2880
        %3925 = vmatmul.mubr.f32.gmra.mrb[0].mxu0 %v2879
        %v3926 = vpop.f32.mrb[0].mxu0
        %v3927 = vadd.f32 %v3850, %v3926
        %v3928 = vpop.f32.mrb[0].mxu0
        %v3929 = vadd.f32 %v3852, %v3928
        %3930 = vdwg.mxu0
        %3931 = vmatprep.subr.mxu0 %v2898
        %3932 = vmatpush1.msra.mxu0 %v2897
        %3933 = vmatprep.subr.mxu0 %v2904
        %3934 = vmatpush1.msra.mxu0 %v2903
        %3935 = vmatprep.subr.mxu0 %v2910
        %3936 = vmatpush1.msra.mxu0 %v2909
        %3937 = vmatprep.subr.mxu0 %v2916
        %3938 = vmatpush1.msra.mxu0 %v2915
        %3939 = vmatprep.subr.mxu0 %v2922
        %3940 = vmatpush1.msra.mxu0 %v2921
        %3941 = vmatprep.subr.mxu0 %v2928
        %3942 = vmatpush1.msra.mxu0 %v2927
        %3943 = vmatprep.subr.mxu0 %v2934
        %3944 = vmatpush1.msra.mxu0 %v2933
        %3945 = vmatprep.subr.mxu0 %v2940
        %3946 = vmatpush1.msra.mxu0 %v2939
        %3947 = vmatprep.subr.mxu0 %v2946
        %3948 = vmatpush1.msra.mxu0 %v2945
        %3949 = vmatprep.subr.mxu0 %v2952
        %3950 = vmatpush1.msra.mxu0 %v2951
        %3951 = vmatprep.subr.mxu0 %v2958
        %3952 = vmatpush1.msra.mxu0 %v2957
        %3953 = vmatprep.subr.mxu0 %v2964
        %3954 = vmatpush1.msra.mxu0 %v2963
        %3955 = vmatprep.subr.mxu0 %v2970
        %3956 = vmatpush1.msra.mxu0 %v2969
        %3957 = vmatprep.subr.mxu0 %v2976
        %3958 = vmatpush1.msra.mxu0 %v2975
        %3959 = vmatprep.subr.mxu0 %v2982
        %3960 = vmatpush1.msra.mxu0 %v2981
        %3961 = vmatprep.subr.mxu0 %v2988
        %3962 = vmatpush1.msra.mxu0 %v2987
        %3963 = vmatprep.subr.mxu0 %v2994
        %3964 = vmatpush1.msra.mxu0 %v2993
        %3965 = vmatprep.subr.mxu0 %v3000
        %3966 = vmatpush1.msra.mxu0 %v2999
        %3967 = vmatprep.subr.mxu0 %v3006
        %3968 = vmatpush1.msra.mxu0 %v3005
        %3969 = vmatprep.subr.mxu0 %v3012
        %3970 = vmatpush1.msra.mxu0 %v3011
        %3971 = vmatprep.subr.mxu0 %v3018
        %3972 = vmatpush1.msra.mxu0 %v3017
        %3973 = vmatprep.subr.mxu0 %v3024
        %3974 = vmatpush1.msra.mxu0 %v3023
        %3975 = vmatprep.subr.mxu0 %v3030
        %3976 = vmatpush1.msra.mxu0 %v3029
        %3977 = vmatprep.subr.mxu0 %v3036
        %3978 = vmatpush1.msra.mxu0 %v3035
        %3979 = vmatprep.subr.mxu0 %v3042
        %3980 = vmatpush1.msra.mxu0 %v3041
        %3981 = vmatprep.subr.mxu0 %v3048
        %3982 = vmatpush1.msra.mxu0 %v3047
        %3983 = vmatprep.subr.mxu0 %v3054
        %3984 = vmatpush1.msra.mxu0 %v3053
        %3985 = vmatprep.subr.mxu0 %v3060
        %3986 = vmatpush1.msra.mxu0 %v3059
        %3987 = vmatprep.subr.mxu0 %v3066
        %3988 = vmatpush1.msra.mxu0 %v3065
        %3989 = vmatprep.subr.mxu0 %v3072
        %3990 = vmatpush1.msra.mxu0 %v3071
        %3991 = vmatprep.subr.mxu0 %v3078
        %3992 = vmatpush1.msra.mxu0 %v3077
        %3993 = vmatprep.subr.mxu0 %v3084
        %3994 = vmatpush1.msra.mxu0 %v3083
        %3995 = vmatprep.mubr.f32.mxu0 %v2870
        %3996 = vmatmul.mubr.f32.gmra.mrb[0].mxu0 %v2869
        %v3997 = vpop.f32.mrb[0].mxu0
        %v3998 = vadd.f32 0.0, %v3997
        %v3999 = vpop.f32.mrb[0].mxu0
        %v4000 = vadd.f32 0.0, %v3999
        %4001 = vmatprep.mubr.f32.mxu0 %v2876
        %4002 = vmatmul.mubr.f32.gmra.mrb[0].mxu0 %v2875
        %v4003 = vpop.f32.mrb[0].mxu0
        %v4004 = vadd.f32 0.0, %v4003
        %v4005 = vpop.f32.mrb[0].mxu0
        %v4006 = vadd.f32 0.0, %v4005
        %4007 = vdwg.mxu0
        %4008 = vmatprep.subr.mxu0 %v3090
        %4009 = vmatpush1.msra.mxu0 %v3089
        %4010 = vmatprep.subr.mxu0 %v3096
        %4011 = vmatpush1.msra.mxu0 %v3095
        %4012 = vmatprep.subr.mxu0 %v3102
        %4013 = vmatpush1.msra.mxu0 %v3101
        %4014 = vmatprep.subr.mxu0 %v3108
        %4015 = vmatpush1.msra.mxu0 %v3107
        %4016 = vmatprep.subr.mxu0 %v3114
        %4017 = vmatpush1.msra.mxu0 %v3113
        %4018 = vmatprep.subr.mxu0 %v3120
        %4019 = vmatpush1.msra.mxu0 %v3119
        %4020 = vmatprep.subr.mxu0 %v3126
        %4021 = vmatpush1.msra.mxu0 %v3125
        %4022 = vmatprep.subr.mxu0 %v3132
        %4023 = vmatpush1.msra.mxu0 %v3131
        %4024 = vmatprep.subr.mxu0 %v3138
        %4025 = vmatpush1.msra.mxu0 %v3137
        %4026 = vmatprep.subr.mxu0 %v3144
        %4027 = vmatpush1.msra.mxu0 %v3143
        %4028 = vmatprep.subr.mxu0 %v3150
        %4029 = vmatpush1.msra.mxu0 %v3149
        %4030 = vmatprep.subr.mxu0 %v3156
        %4031 = vmatpush1.msra.mxu0 %v3155
        %4032 = vmatprep.subr.mxu0 %v3162
        %4033 = vmatpush1.msra.mxu0 %v3161
        %4034 = vmatprep.subr.mxu0 %v3168
        %4035 = vmatpush1.msra.mxu0 %v3167
        %4036 = vmatprep.subr.mxu0 %v3174
        %4037 = vmatpush1.msra.mxu0 %v3173
        %4038 = vmatprep.subr.mxu0 %v3180
        %4039 = vmatpush1.msra.mxu0 %v3179
        %4040 = vmatprep.subr.mxu0 %v3186
        %4041 = vmatpush1.msra.mxu0 %v3185
        %4042 = vmatprep.subr.mxu0 %v3192
        %4043 = vmatpush1.msra.mxu0 %v3191
        %4044 = vmatprep.subr.mxu0 %v3198
        %4045 = vmatpush1.msra.mxu0 %v3197
        %4046 = vmatprep.subr.mxu0 %v3204
        %4047 = vmatpush1.msra.mxu0 %v3203
        %4048 = vmatprep.subr.mxu0 %v3210
        %4049 = vmatpush1.msra.mxu0 %v3209
        %4050 = vmatprep.subr.mxu0 %v3216
        %4051 = vmatpush1.msra.mxu0 %v3215
        %4052 = vmatprep.subr.mxu0 %v3222
        %4053 = vmatpush1.msra.mxu0 %v3221
        %4054 = vmatprep.subr.mxu0 %v3228
        %4055 = vmatpush1.msra.mxu0 %v3227
        %4056 = vmatprep.subr.mxu0 %v3234
        %4057 = vmatpush1.msra.mxu0 %v3233
        %4058 = vmatprep.subr.mxu0 %v3240
        %4059 = vmatpush1.msra.mxu0 %v3239
        %4060 = vmatprep.subr.mxu0 %v3246
        %4061 = vmatpush1.msra.mxu0 %v3245
        %4062 = vmatprep.subr.mxu0 %v3252
        %4063 = vmatpush1.msra.mxu0 %v3251
        %4064 = vmatprep.subr.mxu0 %v3258
        %4065 = vmatpush1.msra.mxu0 %v3257
        %4066 = vmatprep.subr.mxu0 %v3264
        %4067 = vmatpush1.msra.mxu0 %v3263
        %4068 = vmatprep.subr.mxu0 %v3270
        %4069 = vmatpush1.msra.mxu0 %v3269
        %4070 = vmatprep.subr.mxu0 %v3276
        %4071 = vmatpush1.msra.mxu0 %v3275
        %4072 = vmatprep.mubr.f32.mxu0 %v2872
        %4073 = vmatmul.mubr.f32.gmra.mrb[0].mxu0 %v2871
        %v4074 = vpop.f32.mrb[0].mxu0
        %v4075 = vadd.f32 %v3998, %v4074
        %v4076 = vpop.f32.mrb[0].mxu0
        %v4077 = vadd.f32 %v4000, %v4076
        %4078 = vmatprep.mubr.f32.mxu0 %v2878
        %4079 = vmatmul.mubr.f32.gmra.mrb[0].mxu0 %v2877
        %v4080 = vpop.f32.mrb[0].mxu0
        %v4081 = vadd.f32 %v4004, %v4080
        %v4082 = vpop.f32.mrb[0].mxu0
        %v4083 = vadd.f32 %v4006, %v4082
        %4084 = vdwg.mxu0
        %4085 = vmatprep.subr.mxu0 %v3282
        %4086 = vmatpush1.msra.mxu0 %v3281
        %4087 = vmatprep.subr.mxu0 %v3288
        %4088 = vmatpush1.msra.mxu0 %v3287
        %4089 = vmatprep.subr.mxu0 %v3294
        %4090 = vmatpush1.msra.mxu0 %v3293
        %4091 = vmatprep.subr.mxu0 %v3300
        %4092 = vmatpush1.msra.mxu0 %v3299
        %4093 = vmatprep.subr.mxu0 %v3306
        %4094 = vmatpush1.msra.mxu0 %v3305
        %4095 = vmatprep.subr.mxu0 %v3312
        %4096 = vmatpush1.msra.mxu0 %v3311
        %4097 = vmatprep.subr.mxu0 %v3318
        %4098 = vmatpush1.msra.mxu0 %v3317
        %4099 = vmatprep.subr.mxu0 %v3324
        %4100 = vmatpush1.msra.mxu0 %v3323
        %4101 = vmatprep.subr.mxu0 %v3330
        %4102 = vmatpush1.msra.mxu0 %v3329
        %4103 = vmatprep.subr.mxu0 %v3336
        %4104 = vmatpush1.msra.mxu0 %v3335
        %4105 = vmatprep.subr.mxu0 %v3342
        %4106 = vmatpush1.msra.mxu0 %v3341
        %4107 = vmatprep.subr.mxu0 %v3348
        %4108 = vmatpush1.msra.mxu0 %v3347
        %4109 = vmatprep.subr.mxu0 %v3354
        %4110 = vmatpush1.msra.mxu0 %v3353
        %4111 = vmatprep.subr.mxu0 %v3360
        %4112 = vmatpush1.msra.mxu0 %v3359
        %4113 = vmatprep.subr.mxu0 %v3366
        %4114 = vmatpush1.msra.mxu0 %v3365
        %4115 = vmatprep.subr.mxu0 %v3372
        %4116 = vmatpush1.msra.mxu0 %v3371
        %4117 = vmatprep.subr.mxu0 %v3378
        %4118 = vmatpush1.msra.mxu0 %v3377
        %4119 = vmatprep.subr.mxu0 %v3384
        %4120 = vmatpush1.msra.mxu0 %v3383
        %4121 = vmatprep.subr.mxu0 %v3390
        %4122 = vmatpush1.msra.mxu0 %v3389
        %4123 = vmatprep.subr.mxu0 %v3396
        %4124 = vmatpush1.msra.mxu0 %v3395
        %4125 = vmatprep.subr.mxu0 %v3402
        %4126 = vmatpush1.msra.mxu0 %v3401
        %4127 = vmatprep.subr.mxu0 %v3408
        %4128 = vmatpush1.msra.mxu0 %v3407
        %4129 = vmatprep.subr.mxu0 %v3414
        %4130 = vmatpush1.msra.mxu0 %v3413
        %4131 = vmatprep.subr.mxu0 %v3420
        %4132 = vmatpush1.msra.mxu0 %v3419
        %4133 = vmatprep.subr.mxu0 %v3426
        %4134 = vmatpush1.msra.mxu0 %v3425
        %4135 = vmatprep.subr.mxu0 %v3432
        %4136 = vmatpush1.msra.mxu0 %v3431
        %4137 = vmatprep.subr.mxu0 %v3438
        %4138 = vmatpush1.msra.mxu0 %v3437
        %4139 = vmatprep.subr.mxu0 %v3444
        %4140 = vmatpush1.msra.mxu0 %v3443
        %4141 = vmatprep.subr.mxu0 %v3450
        %4142 = vmatpush1.msra.mxu0 %v3449
        %4143 = vmatprep.subr.mxu0 %v3456
        %4144 = vmatpush1.msra.mxu0 %v3455
        %4145 = vmatprep.subr.mxu0 %v3462
        %4146 = vmatpush1.msra.mxu0 %v3461
        %4147 = vmatprep.subr.mxu0 %v3468
        %4148 = vmatpush1.msra.mxu0 %v3467
        %4149 = vmatprep.mubr.f32.mxu0 %v2874
        %4150 = vmatmul.mubr.f32.gmra.mrb[0].mxu0 %v2873
        %v4151 = vpop.f32.mrb[0].mxu0
        %v4152 = vadd.f32 %v4075, %v4151
        %v4153 = vpop.f32.mrb[0].mxu0
        %v4154 = vadd.f32 %v4077, %v4153
        %4155 = vmatprep.mubr.f32.mxu0 %v2880
        %4156 = vmatmul.mubr.f32.gmra.mrb[0].mxu0 %v2879
        %v4157 = vpop.f32.mrb[0].mxu0
        %v4158 = vadd.f32 %v4081, %v4157
        %v4159 = vpop.f32.mrb[0].mxu0
        %v4160 = vadd.f32 %v4083, %v4159
        %4161 = vdwg.mxu0
        %v4162 = vadd.f32 %v2881, %v3690
        %v4163 = vadd.f32 %v2882, %v3692
        %v4164 = vadd.f32 %v2883, %v3921
        %v4165 = vadd.f32 %v2884, %v3923
        %v4166 = vadd.f32 %v2885, %v4152
        %v4167 = vadd.f32 %v2886, %v4154
        %v4168 = vadd.f32 %v2887, %v3696
        %v4169 = vadd.f32 %v2888, %v3698
        %v4170 = vadd.f32 %v2889, %v3927
        %v4171 = vadd.f32 %v2890, %v3929
        %v4172 = vadd.f32 %v2891, %v4158
        %v4173 = vadd.f32 %v2892, %v4160
        %4174 = vst [vmem:[#allocation2] sm:$0xff] %v4162
        %4175 = vst [vmem:[#allocation2 + $0x8] sm:$0xff] %v4163
        %4176 = vst [vmem:[#allocation2 + $0x10] sm:$0xff] %v4164
        %4177 = vst [vmem:[#allocation2 + $0x18] sm:$0xff] %v4165
        %4178 = vst [vmem:[#allocation2 + $0x20] sm:$0xff] %v4166
        %4179 = vst [vmem:[#allocation2 + $0x28] sm:$0xff] %v4167
        %4180 = vst [vmem:[#allocation2 + $0x30] sm:$0xff] %v4168
        %4181 = vst [vmem:[#allocation2 + $0x38] sm:$0xff] %v4169
        %4182 = vst [vmem:[#allocation2 + $0x40] sm:$0xff] %v4170
        %4183 = vst [vmem:[#allocation2 + $0x48] sm:$0xff] %v4171
        %4184 = vst [vmem:[#allocation2 + $0x50] sm:$0xff] %v4172
        %4185 = vst [vmem:[#allocation2 + $0x58] sm:$0xff] %v4173
        %p4186 = scmp.eq.s32.totalorder %s27, 3
        // Predicated region
        $region80: #{encoder_layer.7} parent=66 // pred_check
          %p4187 = pneg %p4186
        $region81: #{encoder_layer.7} parent=66 // pred_check_branch
          %4189 = sbr.rel (%p4187) target = $region83
        $region82: #{encoder_layer.7} parent=66 // pred_region
          %v4190 = vld [vmem:[#allocation2] sm:$0xff]
          %v4191 = vld [vmem:[#allocation2 + $0x8] sm:$0xff]
          %v4192 = vld [vmem:[#allocation2 + $0x10] sm:$0xff]
          %v4193 = vld [vmem:[#allocation2 + $0x18] sm:$0xff]
          %v4194 = vld [vmem:[#allocation2 + $0x20] sm:$0xff]
          %v4195 = vld [vmem:[#allocation2 + $0x28] sm:$0xff]
          %v4196 = vld [vmem:[#allocation2 + $0x30] sm:$0xff]
          %v4197 = vld [vmem:[#allocation2 + $0x38] sm:$0xff]
          %v4198 = vld [vmem:[#allocation2 + $0x40] sm:$0xff]
          %v4199 = vld [vmem:[#allocation2 + $0x48] sm:$0xff]
          %v4200 = vld [vmem:[#allocation2 + $0x50] sm:$0xff]
          %v4201 = vld [vmem:[#allocation2 + $0x58] sm:$0xff]
          %v4202 = vld [vmem:[%s4] sm:$0x3f]
          %v4204 = vlaneseq
          %v4205 = vshrl.u32 %v4204, 7
          %v4206 = vsub.s32 0, %v4205
          %v4207 = vrot.slane %v4202, %v4206
          %v4208 = vlaneseq
          %v4209 = vshrl.u32 %v4208, 7
          %v4210 = vsub.s32 1, %v4209
          %v4211 = vrot.slane %v4202, %v4210
          %v4212 = vlaneseq
          %v4213 = vshrl.u32 %v4212, 7
          %v4214 = vsub.s32 2, %v4213
          %v4215 = vrot.slane %v4202, %v4214
          %v4216 = vlaneseq
          %v4217 = vshrl.u32 %v4216, 7
          %v4218 = vsub.s32 3, %v4217
          %v4219 = vrot.slane %v4202, %v4218
          %v4220 = vlaneseq
          %v4221 = vshrl.u32 %v4220, 7
          %v4222 = vsub.s32 4, %v4221
          %v4223 = vrot.slane %v4202, %v4222
          %v4224 = vlaneseq
          %v4225 = vshrl.u32 %v4224, 7
          %v4226 = vsub.s32 5, %v4225
          %v4227 = vrot.slane %v4202, %v4226
          %v4234 = vadd.f32 %v4190, %v4207
          %v4235 = vadd.f32 %v4191, %v4211
          %v4236 = vadd.f32 %v4192, %v4215
          %v4237 = vadd.f32 %v4193, %v4219
          %v4238 = vadd.f32 %v4194, %v4223
          %v4239 = vadd.f32 %v4195, %v4227
          %v4240 = vadd.f32 %v4196, %v4207
          %v4241 = vadd.f32 %v4197, %v4211
          %v4242 = vadd.f32 %v4198, %v4215
          %v4243 = vadd.f32 %v4199, %v4219
          %v4244 = vadd.f32 %v4200, %v4223
          %v4245 = vadd.f32 %v4201, %v4227
          %v4246 = vld [vmem:[%s1530] sm:$0xff]
          %v4247 = vld [vmem:[%s1530 + $0x8] sm:$0xff]
          %v4248 = vld [vmem:[%s1530 + $0x10] sm:$0xff]
          %v4249 = vld [vmem:[%s1530 + $0x18] sm:$0xff]
          %v4250 = vld [vmem:[%s1530 + $0x20] sm:$0xff]
          %v4251 = vld [vmem:[%s1530 + $0x28] sm:$0xff]
          %v4252 = vld [vmem:[%s1530 + $0x30] sm:$0xff]
          %v4253 = vld [vmem:[%s1530 + $0x38] sm:$0xff]
          %v4254 = vld [vmem:[%s1530 + $0x40] sm:$0xff]
          %v4255 = vld [vmem:[%s1530 + $0x48] sm:$0xff]
          %v4256 = vld [vmem:[%s1530 + $0x50] sm:$0xff]
          %v4257 = vld [vmem:[%s1530 + $0x58] sm:$0xff]
          %v4258 = vadd.f32 %v4234, %v4246
          %v4259 = vadd.f32 %v4235, %v4247
          %v4260 = vadd.f32 %v4236, %v4248
          %v4261 = vadd.f32 %v4237, %v4249
          %v4262 = vadd.f32 %v4238, %v4250
          %v4263 = vadd.f32 %v4239, %v4251
          %v4264 = vadd.f32 %v4240, %v4252
          %v4265 = vadd.f32 %v4241, %v4253
          %v4266 = vadd.f32 %v4242, %v4254
          %v4267 = vadd.f32 %v4243, %v4255
          %v4268 = vadd.f32 %v4244, %v4256
          %v4269 = vadd.f32 %v4245, %v4257
          %v4270 = vadd.f32 %v4258, %v4259
          %v4271 = vadd.f32 %v4270, %v4260
          %v4272 = vadd.f32 %v4271, %v4261
          %v4273 = vadd.f32 %v4272, %v4262
          %v4274 = vadd.f32 %v4273, %v4263
          %4275 = vadd.xlane.f32.xlu0 %v4274
          %v4276 = vpop.xlane.xlu0 %4275
          %v4277 = vadd.f32 %v4264, %v4265
          %v4278 = vadd.f32 %v4277, %v4266
          %v4279 = vadd.f32 %v4278, %v4267
          %v4280 = vadd.f32 %v4279, %v4268
          %v4281 = vadd.f32 %v4280, %v4269
          %4282 = vadd.xlane.f32.xlu0 %v4281
          %v4283 = vpop.xlane.xlu0 %4282
          %v4284 = vrcp.pop 768.0
          %v4285 = vmul.f32 %v4276, %v4284
          %v4286 = vmul.f32 %v4283, %v4284
          %v4287 = vsub.f32 %v4258, %v4285
          %v4288 = vsub.f32 %v4259, %v4285
          %v4289 = vsub.f32 %v4260, %v4285
          %v4290 = vsub.f32 %v4261, %v4285
          %v4291 = vsub.f32 %v4262, %v4285
          %v4292 = vsub.f32 %v4263, %v4285
          %v4293 = vsub.f32 %v4264, %v4286
          %v4294 = vsub.f32 %v4265, %v4286
          %v4295 = vsub.f32 %v4266, %v4286
          %v4296 = vsub.f32 %v4267, %v4286
          %v4297 = vsub.f32 %v4268, %v4286
          %v4298 = vsub.f32 %v4269, %v4286
          %v4299 = vmul.f32 %v4287, %v4287
          %v4300 = vmul.f32 %v4288, %v4288
          %v4301 = vmul.f32 %v4289, %v4289
          %v4302 = vmul.f32 %v4290, %v4290
          %v4303 = vmul.f32 %v4291, %v4291
          %v4304 = vmul.f32 %v4292, %v4292
          %v4305 = vmul.f32 %v4293, %v4293
          %v4306 = vmul.f32 %v4294, %v4294
          %v4307 = vmul.f32 %v4295, %v4295
          %v4308 = vmul.f32 %v4296, %v4296
          %v4309 = vmul.f32 %v4297, %v4297
          %v4310 = vmul.f32 %v4298, %v4298
          %v4311 = vadd.f32 %v4299, %v4300
          %v4312 = vadd.f32 %v4311, %v4301
          %v4313 = vadd.f32 %v4312, %v4302
          %v4314 = vadd.f32 %v4313, %v4303
          %v4315 = vadd.f32 %v4314, %v4304
          %4316 = vadd.xlane.f32.xlu0 %v4315
          %v4317 = vpop.xlane.xlu0 %4316
          %v4318 = vadd.f32 %v4305, %v4306
          %v4319 = vadd.f32 %v4318, %v4307
          %v4320 = vadd.f32 %v4319, %v4308
          %v4321 = vadd.f32 %v4320, %v4309
          %v4322 = vadd.f32 %v4321, %v4310
          %4323 = vadd.xlane.f32.xlu0 %v4322
          %v4324 = vpop.xlane.xlu0 %4323
          %v4325 = vmul.f32 %v4317, %v4284
          %v4326 = vmul.f32 %v4324, %v4284
          %v4327 = vadd.f32 %v4325, 1e-05
          %v4328 = vadd.f32 %v4326, 1e-05
          %v4329 = vrsqrt.pop %v4327
          %v4330 = vrsqrt.pop %v4328
          %v4331 = vmul.f32 %v4287, %v4329
          %v4332 = vmul.f32 %v4288, %v4329
          %v4333 = vmul.f32 %v4289, %v4329
          %v4334 = vmul.f32 %v4290, %v4329
          %v4335 = vmul.f32 %v4291, %v4329
          %v4336 = vmul.f32 %v4292, %v4329
          %v4337 = vmul.f32 %v4293, %v4330
          %v4338 = vmul.f32 %v4294, %v4330
          %v4339 = vmul.f32 %v4295, %v4330
          %v4340 = vmul.f32 %v4296, %v4330
          %v4341 = vmul.f32 %v4297, %v4330
          %v4342 = vmul.f32 %v4298, %v4330
          %v4343 = vld [vmem:[%s5] sm:$0x3f]
          %v4345 = vlaneseq
          %v4346 = vshrl.u32 %v4345, 7
          %v4347 = vsub.s32 0, %v4346
          %v4348 = vrot.slane %v4343, %v4347
          %v4349 = vlaneseq
          %v4350 = vshrl.u32 %v4349, 7
          %v4351 = vsub.s32 1, %v4350
          %v4352 = vrot.slane %v4343, %v4351
          %v4353 = vlaneseq
          %v4354 = vshrl.u32 %v4353, 7
          %v4355 = vsub.s32 2, %v4354
          %v4356 = vrot.slane %v4343, %v4355
          %v4357 = vlaneseq
          %v4358 = vshrl.u32 %v4357, 7
          %v4359 = vsub.s32 3, %v4358
          %v4360 = vrot.slane %v4343, %v4359
          %v4361 = vlaneseq
          %v4362 = vshrl.u32 %v4361, 7
          %v4363 = vsub.s32 4, %v4362
          %v4364 = vrot.slane %v4343, %v4363
          %v4365 = vlaneseq
          %v4366 = vshrl.u32 %v4365, 7
          %v4367 = vsub.s32 5, %v4366
          %v4368 = vrot.slane %v4343, %v4367
          %v4375 = vmul.f32 %v4331, %v4348
          %v4376 = vmul.f32 %v4332, %v4352
          %v4377 = vmul.f32 %v4333, %v4356
          %v4378 = vmul.f32 %v4334, %v4360
          %v4379 = vmul.f32 %v4335, %v4364
          %v4380 = vmul.f32 %v4336, %v4368
          %v4381 = vmul.f32 %v4337, %v4348
          %v4382 = vmul.f32 %v4338, %v4352
          %v4383 = vmul.f32 %v4339, %v4356
          %v4384 = vmul.f32 %v4340, %v4360
          %v4385 = vmul.f32 %v4341, %v4364
          %v4386 = vmul.f32 %v4342, %v4368
          %v4387 = vld [vmem:[%s6] sm:$0x3f]
          %v4389 = vlaneseq
          %v4390 = vshrl.u32 %v4389, 7
          %v4391 = vsub.s32 0, %v4390
          %v4392 = vrot.slane %v4387, %v4391
          %v4393 = vlaneseq
          %v4394 = vshrl.u32 %v4393, 7
          %v4395 = vsub.s32 1, %v4394
          %v4396 = vrot.slane %v4387, %v4395
          %v4397 = vlaneseq
          %v4398 = vshrl.u32 %v4397, 7
          %v4399 = vsub.s32 2, %v4398
          %v4400 = vrot.slane %v4387, %v4399
          %v4401 = vlaneseq
          %v4402 = vshrl.u32 %v4401, 7
          %v4403 = vsub.s32 3, %v4402
          %v4404 = vrot.slane %v4387, %v4403
          %v4405 = vlaneseq
          %v4406 = vshrl.u32 %v4405, 7
          %v4407 = vsub.s32 4, %v4406
          %v4408 = vrot.slane %v4387, %v4407
          %v4409 = vlaneseq
          %v4410 = vshrl.u32 %v4409, 7
          %v4411 = vsub.s32 5, %v4410
          %v4412 = vrot.slane %v4387, %v4411
          %v4419 = vadd.f32 %v4375, %v4392
          %v4420 = vadd.f32 %v4376, %v4396
          %v4421 = vadd.f32 %v4377, %v4400
          %v4422 = vadd.f32 %v4378, %v4404
          %v4423 = vadd.f32 %v4379, %v4408
          %v4424 = vadd.f32 %v4380, %v4412
          %v4425 = vadd.f32 %v4381, %v4392
          %v4426 = vadd.f32 %v4382, %v4396
          %v4427 = vadd.f32 %v4383, %v4400
          %v4428 = vadd.f32 %v4384, %v4404
          %v4429 = vadd.f32 %v4385, %v4408
          %v4430 = vadd.f32 %v4386, %v4412
          %4431 = vst [vmem:[#allocation7] sm:$0xff] %v4419
          %4432 = vst [vmem:[#allocation7 + $0x8] sm:$0xff] %v4420
          %4433 = vst [vmem:[#allocation7 + $0x10] sm:$0xff] %v4421
          %4434 = vst [vmem:[#allocation7 + $0x18] sm:$0xff] %v4422
          %4435 = vst [vmem:[#allocation7 + $0x20] sm:$0xff] %v4423
          %4436 = vst [vmem:[#allocation7 + $0x28] sm:$0xff] %v4424
          %4437 = vst [vmem:[#allocation7 + $0x30] sm:$0xff] %v4425
          %4438 = vst [vmem:[#allocation7 + $0x38] sm:$0xff] %v4426
          %4439 = vst [vmem:[#allocation7 + $0x40] sm:$0xff] %v4427
          %4440 = vst [vmem:[#allocation7 + $0x48] sm:$0xff] %v4428
          %4441 = vst [vmem:[#allocation7 + $0x50] sm:$0xff] %v4429
          %4442 = vst [vmem:[#allocation7 + $0x58] sm:$0xff] %v4430
        $region83: #{encoder_layer.7} parent=66 // pred_fallthru
          _
        // Predicated region
        $region84: #{encoder_layer.7} parent=66 // pred_check
          %p4443 = pneg %p219
        $region85: #{encoder_layer.7} parent=66 // pred_check_branch
          %4445 = sbr.rel (%p4443) target = $region87
        $region86: #{encoder_layer.7} parent=66 // pred_region
          %s4446 = smul.u32 2, %s26
          %s4448 = ssub.s32 1536, 1536
          %4449 = vsyncadd [#allocation6], %s4448
          %s4450 = smul.addr %s4446, 6
          %s4451 = smul.addr %s4450, 128
          %s4452 = scalar_lea.hbm %s7, %s4451
          %s4453 = sshll.u32 [#allocation7], 4
          %s4454 = int_to_ptr.vmem [resolvable:$true] %s4453
          %4459 = dma.vmem_to_hbm [thread:$0]  %s4454, 1536, %s4452, [#allocation6], 768, 768, 48
        $region87: #{encoder_layer.7} parent=66 // pred_fallthru
          _
        // Predicated region
        $region88: #{encoder_layer.7} parent=66 // pred_check
          %p4460 = pneg %p219
        $region89: #{encoder_layer.7} parent=66 // pred_check_branch
          %4462 = sbr.rel (%p4460) target = $region91
        $region90: #{encoder_layer.7} parent=66 // pred_region
          %4463 = dma.done [#allocation6], 1536
        $region91: #{encoder_layer.7} parent=66 // pred_fallthru
          _
      $region67: #{encoder_layer.7} parent=5 // pred_fallthru
        _
      %p4464 = scmp.le.s32.totalorder 2, %s17
      // Predicated region
      $region92: #{encoder_layer.7} parent=5 // pred_check
        %p4465 = pneg %p4464
      $region93: #{encoder_layer.7} parent=5 // pred_check_branch
        %4467 = sbr.rel (%p4465) target = $region95
      $region94: #{encoder_layer.7} parent=5 // pred_region
        %s4468 = ssub.s32 %s17, 2
      $region95: #{encoder_layer.7} parent=5 // pred_fallthru
        _
    $region6: #{encoder_layer.7} parent=1 // loop_footer
      %s21 = sadd.s32 1, %s17
    $region7: #{encoder_layer.7} parent=1 // loop_footer_branch
      %16 = sbr.rel target = $region3
    $region8: #{encoder_layer.7} parent=1 // loop_exit
      _
    %4469 = vsyncpa [#allocation5], 1
    %s4470 = scalar_lea.sflag [#allocation5], 1
    %4471 = vsyncpa %s4470, 1
    %4472 = vsyncpa [#allocation6], 1
    %s4473 = scalar_lea.sflag [#allocation6], 1
    %4474 = vsyncpa %s4473, 1

</llo_original>
